<compile_context>
chip_gen: v6e
topology: v6e:2x2x1
jax: 0.10.0
libtpu: 0.0.40
codegen_flags: <defaults>
</compile_context>

<pallas_src>
import jax
import jax.numpy as jnp
import numpy as np
from jax import lax
from jax.experimental import pallas as pl
from jax.experimental.pallas import tpu as pltpu


def _make_resblock_kernel(H, W, Cin, Cmid, Cout, d1, d2, same_shape, want_xbn):
    """Kernel factory: one grid step processes one batch element (NHWC)."""
    p1, p2 = d1, d2
    HW = H * W

    def kernel(*refs):
        x_ref = refs[0]
        sa_ref, ba_ref, w2a_ref = refs[1], refs[2], refs[3]
        bb_ref, w2b_ref = refs[4], refs[5]
        i = 6
        w1_ref = None
        if not same_shape:
            w1_ref = refs[i]; i += 1
        out_ref = refs[i]; i += 1
        xbn_ref = None
        if want_xbn:
            xbn_ref = refs[i]; i += 1
        apad, bpad = refs[i], refs[i + 1]

        x = x_ref[0]                                        # [H, W, Cin] f32

        # ---- branch2 = relu(bn_branch2a(x)) (folded eval-mode BN) ----
        sa = sa_ref[...].reshape(1, 1, Cin)
        ba = ba_ref[...].reshape(1, 1, Cin)
        a = jnp.maximum(x * sa + ba, 0.0)                   # [H, W, Cin] f32
        if want_xbn:
            xbn_ref[0] = a

        a_bf = a.astype(jnp.bfloat16)

        # ---- branch1: 1x1 conv on bn-relu output (issued early so a_bf's
        #      live range ends before the 3x3 tap loops) ----
        branch1 = None
        if not same_shape:
            branch1 = jnp.dot(a_bf.reshape(HW, Cin), w1_ref[...],
                              preferred_element_type=jnp.float32)   # [HW, Cout]

        # ---- conv_branch2a: 3x3, stride 1, dilation d1, "same" padding.
        #      BN_2b1's scale is pre-folded into w2a's output channels. ----
        # zero only the halo border; the interior is fully overwritten below
        apad[:p1, :, :] = jnp.zeros((p1, W + 2 * p1, Cin), jnp.bfloat16)
        apad[p1 + H:, :, :] = jnp.zeros((p1, W + 2 * p1, Cin), jnp.bfloat16)
        apad[p1:p1 + H, :p1, :] = jnp.zeros((H, p1, Cin), jnp.bfloat16)
        apad[p1:p1 + H, p1 + W:, :] = jnp.zeros((H, p1, Cin), jnp.bfloat16)
        apad[p1:p1 + H, p1:p1 + W, :] = a_bf

        acc_a = jnp.zeros((HW, Cmid), jnp.float32)
        for ky in range(3):
            for kx in range(3):
                patch = apad[ky * d1:ky * d1 + H, kx * d1:kx * d1 + W, :]
                acc_a = acc_a + jnp.dot(
                    patch.reshape(HW, Cin), w2a_ref[ky * 3 + kx],
                    preferred_element_type=jnp.float32)

        # ---- bn_branch2b1 (scale already folded) + relu (f32) ----
        b = jnp.maximum(acc_a + bb_ref[...], 0.0)           # [HW, Cmid] f32
        b_bf = b.astype(jnp.bfloat16).reshape(H, W, Cmid)

        # ---- conv_branch2b1: 3x3, stride 1, dilation d2, "same" padding ----
        bpad[:p2, :, :] = jnp.zeros((p2, W + 2 * p2, Cmid), jnp.bfloat16)
        bpad[p2 + H:, :, :] = jnp.zeros((p2, W + 2 * p2, Cmid), jnp.bfloat16)
        bpad[p2:p2 + H, :p2, :] = jnp.zeros((H, p2, Cmid), jnp.bfloat16)
        bpad[p2:p2 + H, p2 + W:, :] = jnp.zeros((H, p2, Cmid), jnp.bfloat16)
        bpad[p2:p2 + H, p2:p2 + W, :] = b_bf

        acc_b = jnp.zeros((HW, Cout), jnp.float32)
        for ky in range(3):
            for kx in range(3):
                patch = bpad[ky * d2:ky * d2 + H, kx * d2:kx * d2 + W, :]
                acc_b = acc_b + jnp.dot(
                    patch.reshape(HW, Cmid), w2b_ref[ky * 3 + kx],
                    preferred_element_type=jnp.float32)

        # ---- residual add ----
        if same_shape:
            branch1 = x_ref[0].reshape(HW, Cout)            # Cin == Cout, f32

        out_ref[0] = (branch1 + acc_b).reshape(H, W, Cout).astype(out_ref.dtype)

    return kernel


def _fold_bn(gamma, beta, mean, var, eps=1e-5):
    scale = gamma / jnp.sqrt(var + eps)
    shift = beta - mean * scale
    return scale, shift


def resblock_forward(x_nchw, params, *, first_dilation=None, dilation=1,
                     get_x_bn_relu=False):
    d2 = int(dilation)
    d1 = d2 if first_dilation is None else int(first_dilation)

    N, Cin, H, W = x_nchw.shape
    w2a = params['conv_branch2a']        # (Cmid, Cin, 3, 3)  PyTorch OIHW
    w2b = params['conv_branch2b1']       # (Cout, Cmid, 3, 3)
    Cmid, Cout = w2a.shape[0], w2b.shape[0]
    same_shape = (Cin == Cout)           # stride fixed to 1

    zeros = lambda c: jnp.zeros((c,), jnp.float32)
    ones = lambda c: jnp.ones((c,), jnp.float32)
    sa, ba = _fold_bn(params['bn2a_gamma'], params['bn2a_beta'],
                      params.get('bn2a_mean', zeros(Cin)),
                      params.get('bn2a_var', ones(Cin)))
    sb, bb = _fold_bn(params['bn2b1_gamma'], params['bn2b1_beta'],
                      params.get('bn2b1_mean', zeros(Cmid)),
                      params.get('bn2b1_var', ones(Cmid)))

    x = jnp.transpose(x_nchw, (0, 2, 3, 1)).astype(jnp.float32)        # NHWC
    # conv weights: OIHW -> [kh*kw, Cin, Cout]; fold BN_2b1's scale into the
    # output channels of w2a at f32 precision, then cast to bf16 for the MXU.
    w2a_k = jnp.transpose(w2a, (2, 3, 1, 0)).reshape(9, Cin, Cmid)
    w2a_k = (w2a_k * sb.reshape(1, 1, Cmid)).astype(jnp.bfloat16)
    w2b_k = jnp.transpose(w2b, (2, 3, 1, 0)).reshape(9, Cmid, Cout).astype(jnp.bfloat16)

    inputs = [x,
              sa.reshape(1, Cin).astype(jnp.float32),
              ba.reshape(1, Cin).astype(jnp.float32),
              w2a_k,
              bb.reshape(1, Cmid).astype(jnp.float32),
              w2b_k]
    in_specs = [
        pl.BlockSpec((1, H, W, Cin), lambda n: (n, 0, 0, 0)),
        pl.BlockSpec((1, Cin), lambda n: (0, 0)),
        pl.BlockSpec((1, Cin), lambda n: (0, 0)),
        pl.BlockSpec((9, Cin, Cmid), lambda n: (0, 0, 0)),
        pl.BlockSpec((1, Cmid), lambda n: (0, 0)),
        pl.BlockSpec((9, Cmid, Cout), lambda n: (0, 0, 0)),
    ]
    if not same_shape:
        w1 = params['conv_branch1'].reshape(Cout, Cin).T.astype(jnp.bfloat16)
        inputs.append(w1)
        in_specs.append(pl.BlockSpec((Cin, Cout), lambda n: (0, 0)))

    out_specs = [pl.BlockSpec((1, H, W, Cout), lambda n: (n, 0, 0, 0))]
    out_shape = [jax.ShapeDtypeStruct((N, H, W, Cout), jnp.float32)]
    if get_x_bn_relu:
        out_specs.append(pl.BlockSpec((1, H, W, Cin), lambda n: (n, 0, 0, 0)))
        out_shape.append(jax.ShapeDtypeStruct((N, H, W, Cin), jnp.float32))

    kernel = _make_resblock_kernel(H, W, Cin, Cmid, Cout, d1, d2,
                                   same_shape, get_x_bn_relu)

    # scoped-VMEM estimate: double-buffered blocks + weights + padded scratch
    f32b, bf16b = 4, 2
    blk = 2 * (H * W * Cin * f32b + H * W * Cout * f32b
               + (H * W * Cin * f32b if get_x_bn_relu else 0))
    wts = 2 * (9 * Cin * Cmid * bf16b + 9 * Cmid * Cout * bf16b
               + 2 * Cin * f32b + Cmid * f32b
               + (0 if same_shape else Cin * Cout * bf16b))
    scr = ((H + 2 * d1) * (W + 2 * d1) * Cin * bf16b
           + (H + 2 * d2) * (W + 2 * d2) * Cmid * bf16b)
    vmem_limit = int(min(max(2 * (blk + wts + scr) + (4 << 20), 16 << 20),
                         64 << 20))

    flops = N * (2 * 9 * H * W * Cin * Cmid + 2 * 9 * H * W * Cmid * Cout
                 + (0 if same_shape else 2 * H * W * Cin * Cout))
    bytes_accessed = (N * H * W * Cin * 4 + N * H * W * Cout * 4
                      + (N * H * W * Cin * 4 if get_x_bn_relu else 0)
                      + 9 * Cin * Cmid * 2 + 9 * Cmid * Cout * 2
                      + (0 if same_shape else Cin * Cout * 2))

    results = pl.pallas_call(
        kernel,
        grid=(N,),
        in_specs=in_specs,
        out_specs=out_specs,
        out_shape=out_shape,
        scratch_shapes=[
            pltpu.VMEM((H + 2 * d1, W + 2 * d1, Cin), jnp.bfloat16),
            pltpu.VMEM((H + 2 * d2, W + 2 * d2, Cmid), jnp.bfloat16),
        ],
        compiler_params=pltpu.CompilerParams(
            dimension_semantics=("parallel",),     # batch axis -> both v7x TCs
            vmem_limit_bytes=vmem_limit),
        cost_estimate=pl.CostEstimate(
            flops=flops, transcendentals=0, bytes_accessed=bytes_accessed),
    )(*inputs)

    out_nchw = jnp.transpose(results[0], (0, 3, 1, 2))
    if get_x_bn_relu:
        return out_nchw, jnp.transpose(results[1], (0, 3, 1, 2))
    return out_nchw


def resblock_reference(x, params, *, first_dilation=None, dilation=1):
    """Pure-JAX (XLA) reference, NCHW. Convs use bf16 operands / f32 accumulation
    to mirror the kernel's MXU numerics (kernel additionally folds BN_2b1's
    scale into w2a before the bf16 cast, hence the loose tolerance on `out`)."""
    eps = 1e-5
    d2 = dilation
    d1 = dilation if first_dilation is None else first_dilation
    Cin = x.shape[1]
    Cmid = params['conv_branch2a'].shape[0]
    Cout = params['conv_branch2b1'].shape[0]

    zeros = lambda c: jnp.zeros((c,), jnp.float32)
    ones = lambda c: jnp.ones((c,), jnp.float32)

    def bn(y, g, b, mean, var):
        s = g / jnp.sqrt(var + eps)
        return y * s.reshape(1, -1, 1, 1) + (b - mean * s).reshape(1, -1, 1, 1)

    def conv(y, w, d, k):
        pad = [(d, d), (d, d)] if k == 3 else [(0, 0), (0, 0)]
        return lax.conv_general_dilated(
            y.astype(jnp.bfloat16), w.astype(jnp.bfloat16),
            window_strides=(1, 1), padding=pad, rhs_dilation=(d, d),
            dimension_numbers=('NCHW', 'OIHW', 'NCHW'),
            preferred_element_type=jnp.float32)

    a = jax.nn.relu(bn(x, params['bn2a_gamma'], params['bn2a_beta'],
                       params.get('bn2a_mean', zeros(Cin)),
                       params.get('bn2a_var', ones(Cin))))
    if Cin == Cout:
        branch1 = x
    else:
        branch1 = conv(a, params['conv_branch1'], 1, 1)
    b = conv(a, params['conv_branch2a'], d1, 3)
    b = jax.nn.relu(bn(b, params['bn2b1_gamma'], params['bn2b1_beta'],
                       params.get('bn2b1_mean', zeros(Cmid)),
                       params.get('bn2b1_var', ones(Cmid))))
    b = conv(b, params['conv_branch2b1'], d2, 3)
    return branch1 + b, a


if __name__ == "__main__":
    key = jax.random.PRNGKey(0)

    # --- test 1: Cin != Cout (exercises the 1x1 conv_branch1 path), with
    #             non-trivial BN running statistics, get_x_bn_relu=True -------
    N, Cin, Cmid, Cout, H, W = 2, 4, 8, 8, 16, 16
    ks = jax.random.split(key, 12)
    params = {
        'bn2a_gamma':     1.0 + 0.1 * jax.random.normal(ks[0], (Cin,), jnp.float32),
        'bn2a_beta':      0.1 * jax.random.normal(ks[1], (Cin,), jnp.float32),
        'bn2a_mean':      0.1 * jax.random.normal(ks[8], (Cin,), jnp.float32),
        'bn2a_var':       1.0 + 0.1 * jax.random.uniform(ks[9], (Cin,), jnp.float32),
        'conv_branch2a':  0.1 * jax.random.normal(ks[2], (Cmid, Cin, 3, 3), jnp.float32),
        'bn2b1_gamma':    1.0 + 0.1 * jax.random.normal(ks[3], (Cmid,), jnp.float32),
        'bn2b1_beta':     0.1 * jax.random.normal(ks[4], (Cmid,), jnp.float32),
        'bn2b1_mean':     0.1 * jax.random.normal(ks[10], (Cmid,), jnp.float32),
        'bn2b1_var':      1.0 + 0.1 * jax.random.uniform(ks[11], (Cmid,), jnp.float32),
        'conv_branch2b1': 0.1 * jax.random.normal(ks[5], (Cout, Cmid, 3, 3), jnp.float32),
        'conv_branch1':   0.1 * jax.random.normal(ks[6], (Cout, Cin, 1, 1), jnp.float32),
    }
    x = jax.random.normal(ks[7], (N, Cin, H, W), jnp.float32)

    out, x_bn_relu = resblock_forward(x, params, get_x_bn_relu=True)
    out = jax.block_until_ready(out)
    x_bn_relu = jax.block_until_ready(x_bn_relu)

    ref_out, ref_a = resblock_reference(x, params)
    np.testing.assert_allclose(np.asarray(out), np.asarray(ref_out),
                               atol=2e-2, rtol=2e-2)
    np.testing.assert_allclose(np.asarray(x_bn_relu), np.asarray(ref_a),
                               atol=1e-5, rtol=1e-5)

    # --- test 2: Cin == Cout (identity branch1), dilation=2 / first_dilation=1,
    #             no auxiliary output (lighter pallas_call variant) -----------
    C = 8
    ks2 = jax.random.split(jax.random.PRNGKey(1), 6)
    params2 = {
        'bn2a_gamma':     1.0 + 0.1 * jax.random.normal(ks2[0], (C,), jnp.float32),
        'bn2a_beta':      0.1 * jax.random.normal(ks2[1], (C,), jnp.float32),
        'conv_branch2a':  0.1 * jax.random.normal(ks2[2], (C, C, 3, 3), jnp.float32),
        'bn2b1_gamma':    1.0 + 0.1 * jax.random.normal(ks2[3], (C,), jnp.float32),
        'bn2b1_beta':     0.1 * jax.random.normal(ks2[4], (C,), jnp.float32),
        'conv_branch2b1': 0.1 * jax.random.normal(ks2[5], (C, C, 3, 3), jnp.float32),
    }
    x2 = jax.random.normal(jax.random.PRNGKey(2), (N, C, H, W), jnp.float32)
    out2 = jax.block_until_ready(
        resblock_forward(x2, params2, first_dilation=1, dilation=2))
    ref_out2, _ = resblock_reference(x2, params2, first_dilation=1, dilation=2)
    np.testing.assert_allclose(np.asarray(out2), np.asarray(ref_out2),
                               atol=2e-2, rtol=2e-2)

    print("KERNEL_OK")
</pallas_src>

<mosaic_0001>
module attributes {stable_mosaic.version = 11 : i64} {
  func.func @kernel(%arg0: i32, %arg1: memref<1x16x16x4xf32, #tpu.memory_space<vmem>>, %arg2: memref<1x4xf32, #tpu.memory_space<vmem>>, %arg3: memref<1x4xf32, #tpu.memory_space<vmem>>, %arg4: memref<9x4x8xbf16, #tpu.memory_space<vmem>>, %arg5: memref<1x8xf32, #tpu.memory_space<vmem>>, %arg6: memref<9x8x8xbf16, #tpu.memory_space<vmem>>, %arg7: memref<4x8xbf16, #tpu.memory_space<vmem>>, %arg8: memref<1x16x16x8xf32, #tpu.memory_space<vmem>>, %arg9: memref<1x16x16x4xf32, #tpu.memory_space<vmem>>, %arg10: memref<18x18x4xbf16, #tpu.memory_space<vmem>>, %arg11: memref<18x18x8xbf16, #tpu.memory_space<vmem>>) attributes {dimension_semantics = [#tpu.dimension_semantics<parallel>], iteration_bounds = array<i64: 2>, scalar_prefetch = 0 : i64, scratch_operands = 2 : i64, tpu.core_type = #tpu.core_type<tc>, window_params = [{transform_indices = @transform_0, window_bounds = array<i64: 1, 16, 16, 4>}, {pipeline_mode = #tpu.pipeline_mode<synchronous>, transform_indices = @transform_1, window_bounds = array<i64: 1, 4>}, {pipeline_mode = #tpu.pipeline_mode<synchronous>, transform_indices = @transform_2, window_bounds = array<i64: 1, 4>}, {pipeline_mode = #tpu.pipeline_mode<synchronous>, transform_indices = @transform_3, window_bounds = array<i64: 9, 4, 8>}, {pipeline_mode = #tpu.pipeline_mode<synchronous>, transform_indices = @transform_4, window_bounds = array<i64: 1, 8>}, {pipeline_mode = #tpu.pipeline_mode<synchronous>, transform_indices = @transform_5, window_bounds = array<i64: 9, 8, 8>}, {pipeline_mode = #tpu.pipeline_mode<synchronous>, transform_indices = @transform_6, window_bounds = array<i64: 4, 8>}, {transform_indices = @transform_7, window_bounds = array<i64: 1, 16, 16, 8>}, {transform_indices = @transform_8, window_bounds = array<i64: 1, 16, 16, 4>}]} {
    %c0 = arith.constant 0 : index
    %c0_0 = arith.constant 0 : index
    %c0_1 = arith.constant 0 : index
    %c0_2 = arith.constant 0 : index
    %0 = vector.load %arg1[%c0, %c0_0, %c0_1, %c0_2] : memref<1x16x16x4xf32, #tpu.memory_space<vmem>>, vector<1x16x16x4xf32>
    %1 = vector.shape_cast %0 : vector<1x16x16x4xf32> to vector<16x16x4xf32>
    %c0_3 = arith.constant 0 : index
    %c0_4 = arith.constant 0 : index
    %2 = vector.load %arg2[%c0_3, %c0_4] : memref<1x4xf32, #tpu.memory_space<vmem>>, vector<1x4xf32>
    %3 = vector.shape_cast %2 : vector<1x4xf32> to vector<1x1x4xf32>
    %c0_5 = arith.constant 0 : index
    %c0_6 = arith.constant 0 : index
    %4 = vector.load %arg3[%c0_5, %c0_6] : memref<1x4xf32, #tpu.memory_space<vmem>>, vector<1x4xf32>
    %5 = vector.shape_cast %4 : vector<1x4xf32> to vector<1x1x4xf32>
    %6 = vector.broadcast %3 : vector<1x1x4xf32> to vector<16x16x4xf32>
    %7 = arith.mulf %1, %6 : vector<16x16x4xf32>
    %8 = vector.broadcast %5 : vector<1x1x4xf32> to vector<16x16x4xf32>
    %9 = arith.addf %7, %8 : vector<16x16x4xf32>
    %cst = arith.constant 0.000000e+00 : f32
    %10 = vector.broadcast %cst : f32 to vector<16x16x4xf32>
    %11 = arith.maximumf %9, %10 : vector<16x16x4xf32>
    %c0_7 = arith.constant 0 : index
    %c0_8 = arith.constant 0 : index
    %c0_9 = arith.constant 0 : index
    %c0_10 = arith.constant 0 : index
    %12 = vector.load %arg9[%c0_7, %c0_8, %c0_9, %c0_10] : memref<1x16x16x4xf32, #tpu.memory_space<vmem>>, vector<1x16x16x4xf32>
    %13 = vector.shape_cast %12 : vector<1x16x16x4xf32> to vector<16x16x4xf32>
    %14 = vector.shape_cast %11 : vector<16x16x4xf32> to vector<1x16x16x4xf32>
    tpu.vector_store %arg9[%c0_7, %c0_8, %c0_9, %c0_10], %14 {strides = array<i32>} : memref<1x16x16x4xf32, #tpu.memory_space<vmem>>, vector<1x16x16x4xf32>,
    %15 = arith.truncf %11 : vector<16x16x4xf32> to vector<16x16x4xbf16>
    %16 = vector.shape_cast %15 : vector<16x16x4xbf16> to vector<256x4xbf16>
    %c0_11 = arith.constant 0 : index
    %c0_12 = arith.constant 0 : index
    %17 = vector.load %arg7[%c0_11, %c0_12] : memref<4x8xbf16, #tpu.memory_space<vmem>>, vector<4x8xbf16>
    %cst_13 = arith.constant dense<0.000000e+00> : vector<256x8xf32>
    %18 = tpu.matmul %16, %17, %cst_13 {dimension_numbers = #tpu.dot_dimension_numbers<[1], [0], [0], [1], [0, 0, 1, 1], [], []>} : vector<256x4xbf16>, vector<4x8xbf16>, vector<256x8xf32> -> vector<256x8xf32>
    %cst_14 = arith.constant 0.000000e+00 : bf16
    %19 = vector.broadcast %cst_14 : bf16 to vector<1x18x4xbf16>
    %c0_15 = arith.constant 0 : index
    %c0_16 = arith.constant 0 : index
    %c0_17 = arith.constant 0 : index
    %20 = vector.load %arg10[%c0_15, %c0_16, %c0_17] : memref<18x18x4xbf16, #tpu.memory_space<vmem>>, vector<1x18x4xbf16>
    tpu.vector_store %arg10[%c0_15, %c0_16, %c0_17], %19 {strides = array<i32>} : memref<18x18x4xbf16, #tpu.memory_space<vmem>>, vector<1x18x4xbf16>,
    %cst_18 = arith.constant 0.000000e+00 : bf16
    %21 = vector.broadcast %cst_18 : bf16 to vector<1x18x4xbf16>
    %c17 = arith.constant 17 : index
    %c0_19 = arith.constant 0 : index
    %c0_20 = arith.constant 0 : index
    %22 = vector.load %arg10[%c17, %c0_19, %c0_20] : memref<18x18x4xbf16, #tpu.memory_space<vmem>>, vector<1x18x4xbf16>
    tpu.vector_store %arg10[%c17, %c0_19, %c0_20], %21 {strides = array<i32>} : memref<18x18x4xbf16, #tpu.memory_space<vmem>>, vector<1x18x4xbf16>,
    %cst_21 = arith.constant 0.000000e+00 : bf16
    %23 = vector.broadcast %cst_21 : bf16 to vector<16x1x4xbf16>
    %c1 = arith.constant 1 : index
    %c0_22 = arith.constant 0 : index
    %c0_23 = arith.constant 0 : index
    %24 = vector.load %arg10[%c1, %c0_22, %c0_23] : memref<18x18x4xbf16, #tpu.memory_space<vmem>>, vector<16x1x4xbf16>
    tpu.vector_store %arg10[%c1, %c0_22, %c0_23], %23 {strides = array<i32>} : memref<18x18x4xbf16, #tpu.memory_space<vmem>>, vector<16x1x4xbf16>,
    %cst_24 = arith.constant 0.000000e+00 : bf16
    %25 = vector.broadcast %cst_24 : bf16 to vector<16x1x4xbf16>
    %c1_25 = arith.constant 1 : index
    %c17_26 = arith.constant 17 : index
    %c0_27 = arith.constant 0 : index
    %26 = vector.load %arg10[%c1_25, %c17_26, %c0_27] : memref<18x18x4xbf16, #tpu.memory_space<vmem>>, vector<16x1x4xbf16>
    tpu.vector_store %arg10[%c1_25, %c17_26, %c0_27], %25 {strides = array<i32>} : memref<18x18x4xbf16, #tpu.memory_space<vmem>>, vector<16x1x4xbf16>,
    %c1_28 = arith.constant 1 : index
    %c1_29 = arith.constant 1 : index
    %c0_30 = arith.constant 0 : index
    %27 = vector.load %arg10[%c1_28, %c1_29, %c0_30] : memref<18x18x4xbf16, #tpu.memory_space<vmem>>, vector<16x16x4xbf16>
    tpu.vector_store %arg10[%c1_28, %c1_29, %c0_30], %15 {strides = array<i32>} : memref<18x18x4xbf16, #tpu.memory_space<vmem>>, vector<16x16x4xbf16>,
    %cst_31 = arith.constant 0.000000e+00 : f32
    %28 = vector.broadcast %cst_31 : f32 to vector<256x8xf32>
    %c0_32 = arith.constant 0 : index
    %c0_33 = arith.constant 0 : index
    %c0_34 = arith.constant 0 : index
    %29 = vector.load %arg10[%c0_32, %c0_33, %c0_34] : memref<18x18x4xbf16, #tpu.memory_space<vmem>>, vector<16x16x4xbf16>
    %30 = vector.shape_cast %29 : vector<16x16x4xbf16> to vector<256x4xbf16>
    %c0_35 = arith.constant 0 : index
    %c0_36 = arith.constant 0 : index
    %c0_37 = arith.constant 0 : index
    %31 = vector.load %arg4[%c0_35, %c0_36, %c0_37] : memref<9x4x8xbf16, #tpu.memory_space<vmem>>, vector<1x4x8xbf16>
    %32 = vector.shape_cast %31 : vector<1x4x8xbf16> to vector<4x8xbf16>
    %cst_38 = arith.constant dense<0.000000e+00> : vector<256x8xf32>
    %33 = tpu.matmul %30, %32, %cst_38 {dimension_numbers = #tpu.dot_dimension_numbers<[1], [0], [0], [1], [0, 0, 1, 1], [], []>} : vector<256x4xbf16>, vector<4x8xbf16>, vector<256x8xf32> -> vector<256x8xf32>
    %34 = arith.addf %28, %33 : vector<256x8xf32>
    %c0_39 = arith.constant 0 : index
    %c1_40 = arith.constant 1 : index
    %c0_41 = arith.constant 0 : index
    %35 = vector.load %arg10[%c0_39, %c1_40, %c0_41] : memref<18x18x4xbf16, #tpu.memory_space<vmem>>, vector<16x16x4xbf16>
    %36 = vector.shape_cast %35 : vector<16x16x4xbf16> to vector<256x4xbf16>
    %c1_42 = arith.constant 1 : index
    %c0_43 = arith.constant 0 : index
    %c0_44 = arith.constant 0 : index
    %37 = vector.load %arg4[%c1_42, %c0_43, %c0_44] : memref<9x4x8xbf16, #tpu.memory_space<vmem>>, vector<1x4x8xbf16>
    %38 = vector.shape_cast %37 : vector<1x4x8xbf16> to vector<4x8xbf16>
    %cst_45 = arith.constant dense<0.000000e+00> : vector<256x8xf32>
    %39 = tpu.matmul %36, %38, %cst_45 {dimension_numbers = #tpu.dot_dimension_numbers<[1], [0], [0], [1], [0, 0, 1, 1], [], []>} : vector<256x4xbf16>, vector<4x8xbf16>, vector<256x8xf32> -> vector<256x8xf32>
    %40 = arith.addf %34, %39 : vector<256x8xf32>
    %c0_46 = arith.constant 0 : index
    %c2 = arith.constant 2 : index
    %c0_47 = arith.constant 0 : index
    %41 = vector.load %arg10[%c0_46, %c2, %c0_47] : memref<18x18x4xbf16, #tpu.memory_space<vmem>>, vector<16x16x4xbf16>
    %42 = vector.shape_cast %41 : vector<16x16x4xbf16> to vector<256x4xbf16>
    %c2_48 = arith.constant 2 : index
    %c0_49 = arith.constant 0 : index
    %c0_50 = arith.constant 0 : index
    %43 = vector.load %arg4[%c2_48, %c0_49, %c0_50] : memref<9x4x8xbf16, #tpu.memory_space<vmem>>, vector<1x4x8xbf16>
    %44 = vector.shape_cast %43 : vector<1x4x8xbf16> to vector<4x8xbf16>
    %cst_51 = arith.constant dense<0.000000e+00> : vector<256x8xf32>
    %45 = tpu.matmul %42, %44, %cst_51 {dimension_numbers = #tpu.dot_dimension_numbers<[1], [0], [0], [1], [0, 0, 1, 1], [], []>} : vector<256x4xbf16>, vector<4x8xbf16>, vector<256x8xf32> -> vector<256x8xf32>
    %46 = arith.addf %40, %45 : vector<256x8xf32>
    %c1_52 = arith.constant 1 : index
    %c0_53 = arith.constant 0 : index
    %c0_54 = arith.constant 0 : index
    %47 = vector.load %arg10[%c1_52, %c0_53, %c0_54] : memref<18x18x4xbf16, #tpu.memory_space<vmem>>, vector<16x16x4xbf16>
    %48 = vector.shape_cast %47 : vector<16x16x4xbf16> to vector<256x4xbf16>
    %c3 = arith.constant 3 : index
    %c0_55 = arith.constant 0 : index
    %c0_56 = arith.constant 0 : index
    %49 = vector.load %arg4[%c3, %c0_55, %c0_56] : memref<9x4x8xbf16, #tpu.memory_space<vmem>>, vector<1x4x8xbf16>
    %50 = vector.shape_cast %49 : vector<1x4x8xbf16> to vector<4x8xbf16>
    %cst_57 = arith.constant dense<0.000000e+00> : vector<256x8xf32>
    %51 = tpu.matmul %48, %50, %cst_57 {dimension_numbers = #tpu.dot_dimension_numbers<[1], [0], [0], [1], [0, 0, 1, 1], [], []>} : vector<256x4xbf16>, vector<4x8xbf16>, vector<256x8xf32> -> vector<256x8xf32>
    %52 = arith.addf %46, %51 : vector<256x8xf32>
    %c1_58 = arith.constant 1 : index
    %c1_59 = arith.constant 1 : index
    %c0_60 = arith.constant 0 : index
    %53 = vector.load %arg10[%c1_58, %c1_59, %c0_60] : memref<18x18x4xbf16, #tpu.memory_space<vmem>>, vector<16x16x4xbf16>
    %54 = vector.shape_cast %53 : vector<16x16x4xbf16> to vector<256x4xbf16>
    %c4 = arith.constant 4 : index
    %c0_61 = arith.constant 0 : index
    %c0_62 = arith.constant 0 : index
    %55 = vector.load %arg4[%c4, %c0_61, %c0_62] : memref<9x4x8xbf16, #tpu.memory_space<vmem>>, vector<1x4x8xbf16>
    %56 = vector.shape_cast %55 : vector<1x4x8xbf16> to vector<4x8xbf16>
    %cst_63 = arith.constant dense<0.000000e+00> : vector<256x8xf32>
    %57 = tpu.matmul %54, %56, %cst_63 {dimension_numbers = #tpu.dot_dimension_numbers<[1], [0], [0], [1], [0, 0, 1, 1], [], []>} : vector<256x4xbf16>, vector<4x8xbf16>, vector<256x8xf32> -> vector<256x8xf32>
    %58 = arith.addf %52, %57 : vector<256x8xf32>
    %c1_64 = arith.constant 1 : index
    %c2_65 = arith.constant 2 : index
    %c0_66 = arith.constant 0 : index
    %59 = vector.load %arg10[%c1_64, %c2_65, %c0_66] : memref<18x18x4xbf16, #tpu.memory_space<vmem>>, vector<16x16x4xbf16>
    %60 = vector.shape_cast %59 : vector<16x16x4xbf16> to vector<256x4xbf16>
    %c5 = arith.constant 5 : index
    %c0_67 = arith.constant 0 : index
    %c0_68 = arith.constant 0 : index
    %61 = vector.load %arg4[%c5, %c0_67, %c0_68] : memref<9x4x8xbf16, #tpu.memory_space<vmem>>, vector<1x4x8xbf16>
    %62 = vector.shape_cast %61 : vector<1x4x8xbf16> to vector<4x8xbf16>
    %cst_69 = arith.constant dense<0.000000e+00> : vector<256x8xf32>
    %63 = tpu.matmul %60, %62, %cst_69 {dimension_numbers = #tpu.dot_dimension_numbers<[1], [0], [0], [1], [0, 0, 1, 1], [], []>} : vector<256x4xbf16>, vector<4x8xbf16>, vector<256x8xf32> -> vector<256x8xf32>
    %64 = arith.addf %58, %63 : vector<256x8xf32>
    %c2_70 = arith.constant 2 : index
    %c0_71 = arith.constant 0 : index
    %c0_72 = arith.constant 0 : index
    %65 = vector.load %arg10[%c2_70, %c0_71, %c0_72] : memref<18x18x4xbf16, #tpu.memory_space<vmem>>, vector<16x16x4xbf16>
    %66 = vector.shape_cast %65 : vector<16x16x4xbf16> to vector<256x4xbf16>
    %c6 = arith.constant 6 : index
    %c0_73 = arith.constant 0 : index
    %c0_74 = arith.constant 0 : index
    %67 = vector.load %arg4[%c6, %c0_73, %c0_74] : memref<9x4x8xbf16, #tpu.memory_space<vmem>>, vector<1x4x8xbf16>
    %68 = vector.shape_cast %67 : vector<1x4x8xbf16> to vector<4x8xbf16>
    %cst_75 = arith.constant dense<0.000000e+00> : vector<256x8xf32>
    %69 = tpu.matmul %66, %68, %cst_75 {dimension_numbers = #tpu.dot_dimension_numbers<[1], [0], [0], [1], [0, 0, 1, 1], [], []>} : vector<256x4xbf16>, vector<4x8xbf16>, vector<256x8xf32> -> vector<256x8xf32>
    %70 = arith.addf %64, %69 : vector<256x8xf32>
    %c2_76 = arith.constant 2 : index
    %c1_77 = arith.constant 1 : index
    %c0_78 = arith.constant 0 : index
    %71 = vector.load %arg10[%c2_76, %c1_77, %c0_78] : memref<18x18x4xbf16, #tpu.memory_space<vmem>>, vector<16x16x4xbf16>
    %72 = vector.shape_cast %71 : vector<16x16x4xbf16> to vector<256x4xbf16>
    %c7 = arith.constant 7 : index
    %c0_79 = arith.constant 0 : index
    %c0_80 = arith.constant 0 : index
    %73 = vector.load %arg4[%c7, %c0_79, %c0_80] : memref<9x4x8xbf16, #tpu.memory_space<vmem>>, vector<1x4x8xbf16>
    %74 = vector.shape_cast %73 : vector<1x4x8xbf16> to vector<4x8xbf16>
    %cst_81 = arith.constant dense<0.000000e+00> : vector<256x8xf32>
    %75 = tpu.matmul %72, %74, %cst_81 {dimension_numbers = #tpu.dot_dimension_numbers<[1], [0], [0], [1], [0, 0, 1, 1], [], []>} : vector<256x4xbf16>, vector<4x8xbf16>, vector<256x8xf32> -> vector<256x8xf32>
    %76 = arith.addf %70, %75 : vector<256x8xf32>
    %c2_82 = arith.constant 2 : index
    %c2_83 = arith.constant 2 : index
    %c0_84 = arith.constant 0 : index
    %77 = vector.load %arg10[%c2_82, %c2_83, %c0_84] : memref<18x18x4xbf16, #tpu.memory_space<vmem>>, vector<16x16x4xbf16>
    %78 = vector.shape_cast %77 : vector<16x16x4xbf16> to vector<256x4xbf16>
    %c8 = arith.constant 8 : index
    %c0_85 = arith.constant 0 : index
    %c0_86 = arith.constant 0 : index
    %79 = vector.load %arg4[%c8, %c0_85, %c0_86] : memref<9x4x8xbf16, #tpu.memory_space<vmem>>, vector<1x4x8xbf16>
    %80 = vector.shape_cast %79 : vector<1x4x8xbf16> to vector<4x8xbf16>
    %cst_87 = arith.constant dense<0.000000e+00> : vector<256x8xf32>
    %81 = tpu.matmul %78, %80, %cst_87 {dimension_numbers = #tpu.dot_dimension_numbers<[1], [0], [0], [1], [0, 0, 1, 1], [], []>} : vector<256x4xbf16>, vector<4x8xbf16>, vector<256x8xf32> -> vector<256x8xf32>
    %82 = arith.addf %76, %81 : vector<256x8xf32>
    %c0_88 = arith.constant 0 : index
    %c0_89 = arith.constant 0 : index
    %83 = vector.load %arg5[%c0_88, %c0_89] : memref<1x8xf32, #tpu.memory_space<vmem>>, vector<1x8xf32>
    %84 = vector.broadcast %83 : vector<1x8xf32> to vector<256x8xf32>
    %85 = arith.addf %82, %84 : vector<256x8xf32>
    %cst_90 = arith.constant 0.000000e+00 : f32
    %86 = vector.broadcast %cst_90 : f32 to vector<256x8xf32>
    %87 = arith.maximumf %85, %86 : vector<256x8xf32>
    %88 = arith.truncf %87 : vector<256x8xf32> to vector<256x8xbf16>
    %89 = vector.shape_cast %88 : vector<256x8xbf16> to vector<16x16x8xbf16>
    %cst_91 = arith.constant 0.000000e+00 : bf16
    %90 = vector.broadcast %cst_91 : bf16 to vector<1x18x8xbf16>
    %c0_92 = arith.constant 0 : index
    %c0_93 = arith.constant 0 : index
    %c0_94 = arith.constant 0 : index
    %91 = vector.load %arg11[%c0_92, %c0_93, %c0_94] : memref<18x18x8xbf16, #tpu.memory_space<vmem>>, vector<1x18x8xbf16>
    tpu.vector_store %arg11[%c0_92, %c0_93, %c0_94], %90 {strides = array<i32>} : memref<18x18x8xbf16, #tpu.memory_space<vmem>>, vector<1x18x8xbf16>,
    %cst_95 = arith.constant 0.000000e+00 : bf16
    %92 = vector.broadcast %cst_95 : bf16 to vector<1x18x8xbf16>
    %c17_96 = arith.constant 17 : index
    %c0_97 = arith.constant 0 : index
    %c0_98 = arith.constant 0 : index
    %93 = vector.load %arg11[%c17_96, %c0_97, %c0_98] : memref<18x18x8xbf16, #tpu.memory_space<vmem>>, vector<1x18x8xbf16>
    tpu.vector_store %arg11[%c17_96, %c0_97, %c0_98], %92 {strides = array<i32>} : memref<18x18x8xbf16, #tpu.memory_space<vmem>>, vector<1x18x8xbf16>,
    %cst_99 = arith.constant 0.000000e+00 : bf16
    %94 = vector.broadcast %cst_99 : bf16 to vector<16x1x8xbf16>
    %c1_100 = arith.constant 1 : index
    %c0_101 = arith.constant 0 : index
    %c0_102 = arith.constant 0 : index
    %95 = vector.load %arg11[%c1_100, %c0_101, %c0_102] : memref<18x18x8xbf16, #tpu.memory_space<vmem>>, vector<16x1x8xbf16>
    tpu.vector_store %arg11[%c1_100, %c0_101, %c0_102], %94 {strides = array<i32>} : memref<18x18x8xbf16, #tpu.memory_space<vmem>>, vector<16x1x8xbf16>,
    %cst_103 = arith.constant 0.000000e+00 : bf16
    %96 = vector.broadcast %cst_103 : bf16 to vector<16x1x8xbf16>
    %c1_104 = arith.constant 1 : index
    %c17_105 = arith.constant 17 : index
    %c0_106 = arith.constant 0 : index
    %97 = vector.load %arg11[%c1_104, %c17_105, %c0_106] : memref<18x18x8xbf16, #tpu.memory_space<vmem>>, vector<16x1x8xbf16>
    tpu.vector_store %arg11[%c1_104, %c17_105, %c0_106], %96 {strides = array<i32>} : memref<18x18x8xbf16, #tpu.memory_space<vmem>>, vector<16x1x8xbf16>,
    %c1_107 = arith.constant 1 : index
    %c1_108 = arith.constant 1 : index
    %c0_109 = arith.constant 0 : index
    %98 = vector.load %arg11[%c1_107, %c1_108, %c0_109] : memref<18x18x8xbf16, #tpu.memory_space<vmem>>, vector<16x16x8xbf16>
    tpu.vector_store %arg11[%c1_107, %c1_108, %c0_109], %89 {strides = array<i32>} : memref<18x18x8xbf16, #tpu.memory_space<vmem>>, vector<16x16x8xbf16>,
    %cst_110 = arith.constant 0.000000e+00 : f32
    %99 = vector.broadcast %cst_110 : f32 to vector<256x8xf32>
    %c0_111 = arith.constant 0 : index
    %c0_112 = arith.constant 0 : index
    %c0_113 = arith.constant 0 : index
    %100 = vector.load %arg11[%c0_111, %c0_112, %c0_113] : memref<18x18x8xbf16, #tpu.memory_space<vmem>>, vector<16x16x8xbf16>
    %101 = vector.shape_cast %100 : vector<16x16x8xbf16> to vector<256x8xbf16>
    %c0_114 = arith.constant 0 : index
    %c0_115 = arith.constant 0 : index
    %c0_116 = arith.constant 0 : index
    %102 = vector.load %arg6[%c0_114, %c0_115, %c0_116] : memref<9x8x8xbf16, #tpu.memory_space<vmem>>, vector<1x8x8xbf16>
    %103 = vector.shape_cast %102 : vector<1x8x8xbf16> to vector<8x8xbf16>
    %cst_117 = arith.constant dense<0.000000e+00> : vector<256x8xf32>
    %104 = tpu.matmul %101, %103, %cst_117 {dimension_numbers = #tpu.dot_dimension_numbers<[1], [0], [0], [1], [0, 0, 1, 1], [], []>} : vector<256x8xbf16>, vector<8x8xbf16>, vector<256x8xf32> -> vector<256x8xf32>
    %105 = arith.addf %99, %104 : vector<256x8xf32>
    %c0_118 = arith.constant 0 : index
    %c1_119 = arith.constant 1 : index
    %c0_120 = arith.constant 0 : index
    %106 = vector.load %arg11[%c0_118, %c1_119, %c0_120] : memref<18x18x8xbf16, #tpu.memory_space<vmem>>, vector<16x16x8xbf16>
    %107 = vector.shape_cast %106 : vector<16x16x8xbf16> to vector<256x8xbf16>
    %c1_121 = arith.constant 1 : index
    %c0_122 = arith.constant 0 : index
    %c0_123 = arith.constant 0 : index
    %108 = vector.load %arg6[%c1_121, %c0_122, %c0_123] : memref<9x8x8xbf16, #tpu.memory_space<vmem>>, vector<1x8x8xbf16>
    %109 = vector.shape_cast %108 : vector<1x8x8xbf16> to vector<8x8xbf16>
    %cst_124 = arith.constant dense<0.000000e+00> : vector<256x8xf32>
    %110 = tpu.matmul %107, %109, %cst_124 {dimension_numbers = #tpu.dot_dimension_numbers<[1], [0], [0], [1], [0, 0, 1, 1], [], []>} : vector<256x8xbf16>, vector<8x8xbf16>, vector<256x8xf32> -> vector<256x8xf32>
    %111 = arith.addf %105, %110 : vector<256x8xf32>
    %c0_125 = arith.constant 0 : index
    %c2_126 = arith.constant 2 : index
    %c0_127 = arith.constant 0 : index
    %112 = vector.load %arg11[%c0_125, %c2_126, %c0_127] : memref<18x18x8xbf16, #tpu.memory_space<vmem>>, vector<16x16x8xbf16>
    %113 = vector.shape_cast %112 : vector<16x16x8xbf16> to vector<256x8xbf16>
    %c2_128 = arith.constant 2 : index
    %c0_129 = arith.constant 0 : index
    %c0_130 = arith.constant 0 : index
    %114 = vector.load %arg6[%c2_128, %c0_129, %c0_130] : memref<9x8x8xbf16, #tpu.memory_space<vmem>>, vector<1x8x8xbf16>
    %115 = vector.shape_cast %114 : vector<1x8x8xbf16> to vector<8x8xbf16>
    %cst_131 = arith.constant dense<0.000000e+00> : vector<256x8xf32>
    %116 = tpu.matmul %113, %115, %cst_131 {dimension_numbers = #tpu.dot_dimension_numbers<[1], [0], [0], [1], [0, 0, 1, 1], [], []>} : vector<256x8xbf16>, vector<8x8xbf16>, vector<256x8xf32> -> vector<256x8xf32>
    %117 = arith.addf %111, %116 : vector<256x8xf32>
    %c1_132 = arith.constant 1 : index
    %c0_133 = arith.constant 0 : index
    %c0_134 = arith.constant 0 : index
    %118 = vector.load %arg11[%c1_132, %c0_133, %c0_134] : memref<18x18x8xbf16, #tpu.memory_space<vmem>>, vector<16x16x8xbf16>
    %119 = vector.shape_cast %118 : vector<16x16x8xbf16> to vector<256x8xbf16>
    %c3_135 = arith.constant 3 : index
    %c0_136 = arith.constant 0 : index
    %c0_137 = arith.constant 0 : index
    %120 = vector.load %arg6[%c3_135, %c0_136, %c0_137] : memref<9x8x8xbf16, #tpu.memory_space<vmem>>, vector<1x8x8xbf16>
    %121 = vector.shape_cast %120 : vector<1x8x8xbf16> to vector<8x8xbf16>
    %cst_138 = arith.constant dense<0.000000e+00> : vector<256x8xf32>
    %122 = tpu.matmul %119, %121, %cst_138 {dimension_numbers = #tpu.dot_dimension_numbers<[1], [0], [0], [1], [0, 0, 1, 1], [], []>} : vector<256x8xbf16>, vector<8x8xbf16>, vector<256x8xf32> -> vector<256x8xf32>
    %123 = arith.addf %117, %122 : vector<256x8xf32>
    %c1_139 = arith.constant 1 : index
    %c1_140 = arith.constant 1 : index
    %c0_141 = arith.constant 0 : index
    %124 = vector.load %arg11[%c1_139, %c1_140, %c0_141] : memref<18x18x8xbf16, #tpu.memory_space<vmem>>, vector<16x16x8xbf16>
    %125 = vector.shape_cast %124 : vector<16x16x8xbf16> to vector<256x8xbf16>
    %c4_142 = arith.constant 4 : index
    %c0_143 = arith.constant 0 : index
    %c0_144 = arith.constant 0 : index
    %126 = vector.load %arg6[%c4_142, %c0_143, %c0_144] : memref<9x8x8xbf16, #tpu.memory_space<vmem>>, vector<1x8x8xbf16>
    %127 = vector.shape_cast %126 : vector<1x8x8xbf16> to vector<8x8xbf16>
    %cst_145 = arith.constant dense<0.000000e+00> : vector<256x8xf32>
    %128 = tpu.matmul %125, %127, %cst_145 {dimension_numbers = #tpu.dot_dimension_numbers<[1], [0], [0], [1], [0, 0, 1, 1], [], []>} : vector<256x8xbf16>, vector<8x8xbf16>, vector<256x8xf32> -> vector<256x8xf32>
    %129 = arith.addf %123, %128 : vector<256x8xf32>
    %c1_146 = arith.constant 1 : index
    %c2_147 = arith.constant 2 : index
    %c0_148 = arith.constant 0 : index
    %130 = vector.load %arg11[%c1_146, %c2_147, %c0_148] : memref<18x18x8xbf16, #tpu.memory_space<vmem>>, vector<16x16x8xbf16>
    %131 = vector.shape_cast %130 : vector<16x16x8xbf16> to vector<256x8xbf16>
    %c5_149 = arith.constant 5 : index
    %c0_150 = arith.constant 0 : index
    %c0_151 = arith.constant 0 : index
    %132 = vector.load %arg6[%c5_149, %c0_150, %c0_151] : memref<9x8x8xbf16, #tpu.memory_space<vmem>>, vector<1x8x8xbf16>
    %133 = vector.shape_cast %132 : vector<1x8x8xbf16> to vector<8x8xbf16>
    %cst_152 = arith.constant dense<0.000000e+00> : vector<256x8xf32>
    %134 = tpu.matmul %131, %133, %cst_152 {dimension_numbers = #tpu.dot_dimension_numbers<[1], [0], [0], [1], [0, 0, 1, 1], [], []>} : vector<256x8xbf16>, vector<8x8xbf16>, vector<256x8xf32> -> vector<256x8xf32>
    %135 = arith.addf %129, %134 : vector<256x8xf32>
    %c2_153 = arith.constant 2 : index
    %c0_154 = arith.constant 0 : index
    %c0_155 = arith.constant 0 : index
    %136 = vector.load %arg11[%c2_153, %c0_154, %c0_155] : memref<18x18x8xbf16, #tpu.memory_space<vmem>>, vector<16x16x8xbf16>
    %137 = vector.shape_cast %136 : vector<16x16x8xbf16> to vector<256x8xbf16>
    %c6_156 = arith.constant 6 : index
    %c0_157 = arith.constant 0 : index
    %c0_158 = arith.constant 0 : index
    %138 = vector.load %arg6[%c6_156, %c0_157, %c0_158] : memref<9x8x8xbf16, #tpu.memory_space<vmem>>, vector<1x8x8xbf16>
    %139 = vector.shape_cast %138 : vector<1x8x8xbf16> to vector<8x8xbf16>
    %cst_159 = arith.constant dense<0.000000e+00> : vector<256x8xf32>
    %140 = tpu.matmul %137, %139, %cst_159 {dimension_numbers = #tpu.dot_dimension_numbers<[1], [0], [0], [1], [0, 0, 1, 1], [], []>} : vector<256x8xbf16>, vector<8x8xbf16>, vector<256x8xf32> -> vector<256x8xf32>
    %141 = arith.addf %135, %140 : vector<256x8xf32>
    %c2_160 = arith.constant 2 : index
    %c1_161 = arith.constant 1 : index
    %c0_162 = arith.constant 0 : index
    %142 = vector.load %arg11[%c2_160, %c1_161, %c0_162] : memref<18x18x8xbf16, #tpu.memory_space<vmem>>, vector<16x16x8xbf16>
    %143 = vector.shape_cast %142 : vector<16x16x8xbf16> to vector<256x8xbf16>
    %c7_163 = arith.constant 7 : index
    %c0_164 = arith.constant 0 : index
    %c0_165 = arith.constant 0 : index
    %144 = vector.load %arg6[%c7_163, %c0_164, %c0_165] : memref<9x8x8xbf16, #tpu.memory_space<vmem>>, vector<1x8x8xbf16>
    %145 = vector.shape_cast %144 : vector<1x8x8xbf16> to vector<8x8xbf16>
    %cst_166 = arith.constant dense<0.000000e+00> : vector<256x8xf32>
    %146 = tpu.matmul %143, %145, %cst_166 {dimension_numbers = #tpu.dot_dimension_numbers<[1], [0], [0], [1], [0, 0, 1, 1], [], []>} : vector<256x8xbf16>, vector<8x8xbf16>, vector<256x8xf32> -> vector<256x8xf32>
    %147 = arith.addf %141, %146 : vector<256x8xf32>
    %c2_167 = arith.constant 2 : index
    %c2_168 = arith.constant 2 : index
    %c0_169 = arith.constant 0 : index
    %148 = vector.load %arg11[%c2_167, %c2_168, %c0_169] : memref<18x18x8xbf16, #tpu.memory_space<vmem>>, vector<16x16x8xbf16>
    %149 = vector.shape_cast %148 : vector<16x16x8xbf16> to vector<256x8xbf16>
    %c8_170 = arith.constant 8 : index
    %c0_171 = arith.constant 0 : index
    %c0_172 = arith.constant 0 : index
    %150 = vector.load %arg6[%c8_170, %c0_171, %c0_172] : memref<9x8x8xbf16, #tpu.memory_space<vmem>>, vector<1x8x8xbf16>
    %151 = vector.shape_cast %150 : vector<1x8x8xbf16> to vector<8x8xbf16>
    %cst_173 = arith.constant dense<0.000000e+00> : vector<256x8xf32>
    %152 = tpu.matmul %149, %151, %cst_173 {dimension_numbers = #tpu.dot_dimension_numbers<[1], [0], [0], [1], [0, 0, 1, 1], [], []>} : vector<256x8xbf16>, vector<8x8xbf16>, vector<256x8xf32> -> vector<256x8xf32>
    %153 = arith.addf %147, %152 : vector<256x8xf32>
    %154 = arith.addf %18, %153 : vector<256x8xf32>
    %155 = vector.shape_cast %154 : vector<256x8xf32> to vector<16x16x8xf32>
    %c0_174 = arith.constant 0 : index
    %c0_175 = arith.constant 0 : index
    %c0_176 = arith.constant 0 : index
    %c0_177 = arith.constant 0 : index
    %156 = vector.load %arg8[%c0_174, %c0_175, %c0_176, %c0_177] : memref<1x16x16x8xf32, #tpu.memory_space<vmem>>, vector<1x16x16x8xf32>
    %157 = vector.shape_cast %156 : vector<1x16x16x8xf32> to vector<16x16x8xf32>
    %158 = vector.shape_cast %155 : vector<16x16x8xf32> to vector<1x16x16x8xf32>
    tpu.vector_store %arg8[%c0_174, %c0_175, %c0_176, %c0_177], %158 {strides = array<i32>} : memref<1x16x16x8xf32, #tpu.memory_space<vmem>>, vector<1x16x16x8xf32>,
    return
  }
  func.func @transform_0(%arg0: i32) -> (i32, i32, i32, i32) {
    %c0_i32 = arith.constant 0 : i32
    %c0_i32_0 = arith.constant 0 : i32
    %c0_i32_1 = arith.constant 0 : i32
    %c0_i32_2 = arith.constant 0 : i32
    return %arg0, %c0_i32, %c0_i32_0, %c0_i32_1 : i32, i32, i32, i32
  }
  func.func @transform_1(%arg0: i32) -> (i32, i32) {
    %c0_i32 = arith.constant 0 : i32
    %c0_i32_0 = arith.constant 0 : i32
    %c0_i32_1 = arith.constant 0 : i32
    return %c0_i32, %c0_i32_0 : i32, i32
  }
  func.func @transform_2(%arg0: i32) -> (i32, i32) {
    %c0_i32 = arith.constant 0 : i32
    %c0_i32_0 = arith.constant 0 : i32
    %c0_i32_1 = arith.constant 0 : i32
    return %c0_i32, %c0_i32_0 : i32, i32
  }
  func.func @transform_3(%arg0: i32) -> (i32, i32, i32) {
    %c0_i32 = arith.constant 0 : i32
    %c0_i32_0 = arith.constant 0 : i32
    %c0_i32_1 = arith.constant 0 : i32
    %c0_i32_2 = arith.constant 0 : i32
    return %c0_i32, %c0_i32_0, %c0_i32_1 : i32, i32, i32
  }
  func.func @transform_4(%arg0: i32) -> (i32, i32) {
    %c0_i32 = arith.constant 0 : i32
    %c0_i32_0 = arith.constant 0 : i32
    %c0_i32_1 = arith.constant 0 : i32
    return %c0_i32, %c0_i32_0 : i32, i32
  }
  func.func @transform_5(%arg0: i32) -> (i32, i32, i32) {
    %c0_i32 = arith.constant 0 : i32
    %c0_i32_0 = arith.constant 0 : i32
    %c0_i32_1 = arith.constant 0 : i32
    %c0_i32_2 = arith.constant 0 : i32
    return %c0_i32, %c0_i32_0, %c0_i32_1 : i32, i32, i32
  }
  func.func @transform_6(%arg0: i32) -> (i32, i32) {
    %c0_i32 = arith.constant 0 : i32
    %c0_i32_0 = arith.constant 0 : i32
    %c0_i32_1 = arith.constant 0 : i32
    return %c0_i32, %c0_i32_0 : i32, i32
  }
  func.func @transform_7(%arg0: i32) -> (i32, i32, i32, i32) {
    %c0_i32 = arith.constant 0 : i32
    %c0_i32_0 = arith.constant 0 : i32
    %c0_i32_1 = arith.constant 0 : i32
    %c0_i32_2 = arith.constant 0 : i32
    return %arg0, %c0_i32, %c0_i32_0, %c0_i32_1 : i32, i32, i32, i32
  }
  func.func @transform_8(%arg0: i32) -> (i32, i32, i32, i32) {
    %c0_i32 = arith.constant 0 : i32
    %c0_i32_0 = arith.constant 0 : i32
    %c0_i32_1 = arith.constant 0 : i32
    %c0_i32_2 = arith.constant 0 : i32
    return %arg0, %c0_i32, %c0_i32_0, %c0_i32_1 : i32, i32, i32, i32
  }
}

</mosaic_0001>

<llo_original>
// kernel: tpu_custom_call.1
$region0: #{tpu_custom_call.1}
  #allocation0 [shape = 'u32[]', space=smem, size = 0x4, offset = 0x4, fixed_abs, tag = 'smem constant byte address 0x4 - core index']
  #allocation1 [shape = 'u32[144,128]{1,0:T(1,128)}', space=vmem, size = 0x12000, scoped, tag = 'internal scratch']
  #allocation2 [shape = 'bf16[18,18,4]{2,1,0:T(8,128)(2,1)}', space=vmem, size = 0x1b000, scoped, tag = 'scratch operand']
  #allocation3 [shape = 'bf16[18,18,8]{2,1,0:T(8,128)(2,1)}', space=vmem, size = 0x1b000, scoped, tag = 'scratch operand']
  %s0 = inlined_call_operand.vmem [shape: f32[2,16,16,4], index: 0, kind: input, shape index: {}]
  %s1 = inlined_call_operand.vmem [shape: f32[1,4], index: 1, kind: input, shape index: {}]
  %s2 = inlined_call_operand.vmem [shape: f32[1,4], index: 2, kind: input, shape index: {}]
  %s3 = inlined_call_operand.vmem [shape: bf16[9,4,8], index: 3, kind: input, shape index: {}]
  %s4 = inlined_call_operand.vmem [shape: f32[1,8], index: 4, kind: input, shape index: {}]
  %s5 = inlined_call_operand.vmem [shape: bf16[9,8,8], index: 5, kind: input, shape index: {}]
  %s6 = inlined_call_operand.vmem [shape: bf16[4,8], index: 6, kind: input, shape index: {}]
  %s7 = inlined_call_operand.vmem [shape: f32[2,16,16,8], index: 7, kind: output, shape index: {0}]
  %s8 = inlined_call_operand.vmem [shape: f32[2,16,16,4], index: 8, kind: output, shape index: {1}]
  %9 = xla_tuple %s7, %s8
  %s10 = sld [smem:[#allocation0]]
  $region69: #{tpu_custom_call.1} parent=0
    _
  %s12 = ssub.s32 1, %s10
  %s13 = scalar_select 0, %s12, %s10
  loop: start=0, step=1, limit=4
  $region2: #{tpu_custom_call.1} parent=0 // loop_pre_header
    _
  $region3: #{tpu_custom_call.1} parent=0 // loop_header
    %s15 = sphi 0, %s19
    %p16 = scmp.ge.s32.totalorder %s15, 4
    %s25 = sphi 0, %s27
    %s28 = sphi 0, %s25
    %s29 = sphi 0, %s28
    %s45 = sphi 0, %s29
    %s49 = sphi 0, %s49
    %s51 = sphi 0, %s49
    %s52 = sphi 0, %s51
    %s66 = sphi 0, %s52
    %s70 = sphi 0, %s70
    %s72 = sphi 0, %s70
    %s73 = sphi 0, %s72
    %s87 = sphi 0, %s73
    %s91 = sphi 0, %s91
    %s93 = sphi 0, %s91
    %s94 = sphi 0, %s93
    %s108 = sphi 0, %s94
    %s112 = sphi 0, %s112
    %s114 = sphi 0, %s112
    %s115 = sphi 0, %s114
    %s129 = sphi 0, %s115
    %s133 = sphi 0, %s133
    %s135 = sphi 0, %s133
    %s136 = sphi 0, %s135
    %s150 = sphi 0, %s136
    %s154 = sphi 0, %s154
    %s156 = sphi 0, %s154
    %s157 = sphi 0, %s156
    %s171 = sphi 0, %s157
    %s177 = sphi 0, %s179
    %s180 = sphi 0, %s177
    %s181 = sphi 0, %s180
    %s197 = sphi 0, %s181
    %s203 = sphi 0, %s205
    %s206 = sphi 0, %s203
    %s207 = sphi 0, %s206
    %s223 = sphi 0, %s207
  $region4: #{tpu_custom_call.1} parent=0 // loop_header_branch
    %18 = sbr.rel (%p16) target = $region8
  $region5: #{tpu_custom_call.1} parent=0 // loop_body
    %s20 = ssub.s32 %s15, 1
    %s21 = ssub.s32 %s15, 2
    %s22 = sadd.s32 %s15, 1
    %s23 = ssub.s32 %s15, %s22
    %p24 = scmp.eq.s32.totalorder %s23, 0
    %s26 = sadd.s32 %s25, 1
    %s27 = scalar_select %p24, %s25, %s26
    %p30 = pneg %p24
    %p31 = scmp.eq.s32.totalorder %s15, 1
    %p32 = por %p30, %p31
    %p33 = scmp.ne.s32.totalorder %s25, %s28
    %p34 = scmp.eq.s32.totalorder %s15, 0
    %p35 = por %p33, %p34
    %p36 = scmp.ne.s32.totalorder %s25, %s28
    %p37 = scmp.eq.s32.totalorder %s20, 1
    %p38 = por %p36, %p37
    %p39 = scmp.ne.s32.totalorder %s28, %s29
    %p40 = scmp.eq.s32.totalorder %s20, 0
    %p41 = por %p39, %p40
    %p42 = scmp.ne.s32.totalorder %s28, %s29
    %p43 = scmp.eq.s32.totalorder %s21, 1
    %p44 = por %p42, %p43
    %p46 = scmp.ne.s32.totalorder %s29, %s45
    %p47 = scmp.eq.s32.totalorder %s21, 0
    %p48 = por %p46, %p47
    %s50 = sadd.s32 %s49, 1
    %p53 = scmp.eq.s32.totalorder %s15, 1
    %p54 = scmp.ne.s32.totalorder %s49, %s51
    %p55 = scmp.eq.s32.totalorder %s15, 0
    %p56 = por %p54, %p55
    %p57 = scmp.ne.s32.totalorder %s49, %s51
    %p58 = scmp.eq.s32.totalorder %s20, 1
    %p59 = por %p57, %p58
    %p60 = scmp.ne.s32.totalorder %s51, %s52
    %p61 = scmp.eq.s32.totalorder %s20, 0
    %p62 = por %p60, %p61
    %p63 = scmp.ne.s32.totalorder %s51, %s52
    %p64 = scmp.eq.s32.totalorder %s21, 1
    %p65 = por %p63, %p64
    %p67 = scmp.ne.s32.totalorder %s52, %s66
    %p68 = scmp.eq.s32.totalorder %s21, 0
    %p69 = por %p67, %p68
    %s71 = sadd.s32 %s70, 1
    %p74 = scmp.eq.s32.totalorder %s15, 1
    %p75 = scmp.ne.s32.totalorder %s70, %s72
    %p76 = scmp.eq.s32.totalorder %s15, 0
    %p77 = por %p75, %p76
    %p78 = scmp.ne.s32.totalorder %s70, %s72
    %p79 = scmp.eq.s32.totalorder %s20, 1
    %p80 = por %p78, %p79
    %p81 = scmp.ne.s32.totalorder %s72, %s73
    %p82 = scmp.eq.s32.totalorder %s20, 0
    %p83 = por %p81, %p82
    %p84 = scmp.ne.s32.totalorder %s72, %s73
    %p85 = scmp.eq.s32.totalorder %s21, 1
    %p86 = por %p84, %p85
    %p88 = scmp.ne.s32.totalorder %s73, %s87
    %p89 = scmp.eq.s32.totalorder %s21, 0
    %p90 = por %p88, %p89
    %s92 = sadd.s32 %s91, 1
    %p95 = scmp.eq.s32.totalorder %s15, 1
    %p96 = scmp.ne.s32.totalorder %s91, %s93
    %p97 = scmp.eq.s32.totalorder %s15, 0
    %p98 = por %p96, %p97
    %p99 = scmp.ne.s32.totalorder %s91, %s93
    %p100 = scmp.eq.s32.totalorder %s20, 1
    %p101 = por %p99, %p100
    %p102 = scmp.ne.s32.totalorder %s93, %s94
    %p103 = scmp.eq.s32.totalorder %s20, 0
    %p104 = por %p102, %p103
    %p105 = scmp.ne.s32.totalorder %s93, %s94
    %p106 = scmp.eq.s32.totalorder %s21, 1
    %p107 = por %p105, %p106
    %p109 = scmp.ne.s32.totalorder %s94, %s108
    %p110 = scmp.eq.s32.totalorder %s21, 0
    %p111 = por %p109, %p110
    %s113 = sadd.s32 %s112, 1
    %p116 = scmp.eq.s32.totalorder %s15, 1
    %p117 = scmp.ne.s32.totalorder %s112, %s114
    %p118 = scmp.eq.s32.totalorder %s15, 0
    %p119 = por %p117, %p118
    %p120 = scmp.ne.s32.totalorder %s112, %s114
    %p121 = scmp.eq.s32.totalorder %s20, 1
    %p122 = por %p120, %p121
    %p123 = scmp.ne.s32.totalorder %s114, %s115
    %p124 = scmp.eq.s32.totalorder %s20, 0
    %p125 = por %p123, %p124
    %p126 = scmp.ne.s32.totalorder %s114, %s115
    %p127 = scmp.eq.s32.totalorder %s21, 1
    %p128 = por %p126, %p127
    %p130 = scmp.ne.s32.totalorder %s115, %s129
    %p131 = scmp.eq.s32.totalorder %s21, 0
    %p132 = por %p130, %p131
    %s134 = sadd.s32 %s133, 1
    %p137 = scmp.eq.s32.totalorder %s15, 1
    %p138 = scmp.ne.s32.totalorder %s133, %s135
    %p139 = scmp.eq.s32.totalorder %s15, 0
    %p140 = por %p138, %p139
    %p141 = scmp.ne.s32.totalorder %s133, %s135
    %p142 = scmp.eq.s32.totalorder %s20, 1
    %p143 = por %p141, %p142
    %p144 = scmp.ne.s32.totalorder %s135, %s136
    %p145 = scmp.eq.s32.totalorder %s20, 0
    %p146 = por %p144, %p145
    %p147 = scmp.ne.s32.totalorder %s135, %s136
    %p148 = scmp.eq.s32.totalorder %s21, 1
    %p149 = por %p147, %p148
    %p151 = scmp.ne.s32.totalorder %s136, %s150
    %p152 = scmp.eq.s32.totalorder %s21, 0
    %p153 = por %p151, %p152
    %s155 = sadd.s32 %s154, 1
    %p158 = scmp.eq.s32.totalorder %s15, 1
    %p159 = scmp.ne.s32.totalorder %s154, %s156
    %p160 = scmp.eq.s32.totalorder %s15, 0
    %p161 = por %p159, %p160
    %p162 = scmp.ne.s32.totalorder %s154, %s156
    %p163 = scmp.eq.s32.totalorder %s20, 1
    %p164 = por %p162, %p163
    %p165 = scmp.ne.s32.totalorder %s156, %s157
    %p166 = scmp.eq.s32.totalorder %s20, 0
    %p167 = por %p165, %p166
    %p168 = scmp.ne.s32.totalorder %s156, %s157
    %p169 = scmp.eq.s32.totalorder %s21, 1
    %p170 = por %p168, %p169
    %p172 = scmp.ne.s32.totalorder %s157, %s171
    %p173 = scmp.eq.s32.totalorder %s21, 0
    %p174 = por %p172, %p173
    %s175 = ssub.s32 %s15, %s22
    %p176 = scmp.eq.s32.totalorder %s175, 0
    %s178 = sadd.s32 %s177, 1
    %s179 = scalar_select %p176, %s177, %s178
    %p182 = pneg %p176
    %p183 = scmp.eq.s32.totalorder %s15, 1
    %p184 = por %p182, %p183
    %p185 = scmp.ne.s32.totalorder %s177, %s180
    %p186 = scmp.eq.s32.totalorder %s15, 0
    %p187 = por %p185, %p186
    %p188 = scmp.ne.s32.totalorder %s177, %s180
    %p189 = scmp.eq.s32.totalorder %s20, 1
    %p190 = por %p188, %p189
    %p191 = scmp.ne.s32.totalorder %s180, %s181
    %p192 = scmp.eq.s32.totalorder %s20, 0
    %p193 = por %p191, %p192
    %p194 = scmp.ne.s32.totalorder %s180, %s181
    %p195 = scmp.eq.s32.totalorder %s21, 1
    %p196 = por %p194, %p195
    %p198 = scmp.ne.s32.totalorder %s181, %s197
    %p199 = scmp.eq.s32.totalorder %s21, 0
    %p200 = por %p198, %p199
    %s201 = ssub.s32 %s15, %s22
    %p202 = scmp.eq.s32.totalorder %s201, 0
    %s204 = sadd.s32 %s203, 1
    %s205 = scalar_select %p202, %s203, %s204
    %p208 = pneg %p202
    %p209 = scmp.eq.s32.totalorder %s15, 1
    %p210 = por %p208, %p209
    %p211 = scmp.ne.s32.totalorder %s203, %s206
    %p212 = scmp.eq.s32.totalorder %s15, 0
    %p213 = por %p211, %p212
    %p214 = scmp.ne.s32.totalorder %s203, %s206
    %p215 = scmp.eq.s32.totalorder %s20, 1
    %p216 = por %p214, %p215
    %p217 = scmp.ne.s32.totalorder %s206, %s207
    %p218 = scmp.eq.s32.totalorder %s20, 0
    %p219 = por %p217, %p218
    %p220 = scmp.ne.s32.totalorder %s206, %s207
    %p221 = scmp.eq.s32.totalorder %s21, 1
    %p222 = por %p220, %p221
    %p224 = scmp.ne.s32.totalorder %s207, %s223
    %p225 = scmp.eq.s32.totalorder %s21, 0
    %p226 = por %p224, %p225
    %p227 = scmp.le.s32.totalorder 1, %s15
    %p228 = scmp.lt.s32.totalorder %s15, 3
    %p229 = pnand %p227, %p228
    %p230 = pneg %p229
    // Predicated region
    $region9: #{tpu_custom_call.1} parent=5 // pred_check
      _
    $region10: #{tpu_custom_call.1} parent=5 // pred_check_branch
      %232 = sbr.rel (%p229) target = $region12
    $region11: #{tpu_custom_call.1} parent=5 // pred_region
      %s233 = ssub.s32 %s15, 1
      // Predicated region
      $region13: #{tpu_custom_call.1} parent=11 // pred_check
        %p234 = pneg %p62
      $region14: #{tpu_custom_call.1} parent=11 // pred_check_branch
        %236 = sbr.rel (%p234) target = $region16
      $region15: #{tpu_custom_call.1} parent=11 // pred_region
        _
      $region16: #{tpu_custom_call.1} parent=11 // pred_fallthru
        _
      // Predicated region
      $region17: #{tpu_custom_call.1} parent=11 // pred_check
        %p237 = pneg %p83
      $region18: #{tpu_custom_call.1} parent=11 // pred_check_branch
        %239 = sbr.rel (%p237) target = $region20
      $region19: #{tpu_custom_call.1} parent=11 // pred_region
        _
      $region20: #{tpu_custom_call.1} parent=11 // pred_fallthru
        _
      // Predicated region
      $region21: #{tpu_custom_call.1} parent=11 // pred_check
        %p240 = pneg %p104
      $region22: #{tpu_custom_call.1} parent=11 // pred_check_branch
        %242 = sbr.rel (%p240) target = $region24
      $region23: #{tpu_custom_call.1} parent=11 // pred_region
        _
      $region24: #{tpu_custom_call.1} parent=11 // pred_fallthru
        _
      // Predicated region
      $region25: #{tpu_custom_call.1} parent=11 // pred_check
        %p243 = pneg %p125
      $region26: #{tpu_custom_call.1} parent=11 // pred_check_branch
        %245 = sbr.rel (%p243) target = $region28
      $region27: #{tpu_custom_call.1} parent=11 // pred_region
        _
      $region28: #{tpu_custom_call.1} parent=11 // pred_fallthru
        _
      // Predicated region
      $region29: #{tpu_custom_call.1} parent=11 // pred_check
        %p246 = pneg %p146
      $region30: #{tpu_custom_call.1} parent=11 // pred_check_branch
        %248 = sbr.rel (%p246) target = $region32
      $region31: #{tpu_custom_call.1} parent=11 // pred_region
        _
      $region32: #{tpu_custom_call.1} parent=11 // pred_fallthru
        _
      // Predicated region
      $region33: #{tpu_custom_call.1} parent=11 // pred_check
        %p249 = pneg %p167
      $region34: #{tpu_custom_call.1} parent=11 // pred_check_branch
        %251 = sbr.rel (%p249) target = $region36
      $region35: #{tpu_custom_call.1} parent=11 // pred_region
        _
      $region36: #{tpu_custom_call.1} parent=11 // pred_fallthru
        _
    $region12: #{tpu_custom_call.1} parent=5 // pred_fallthru
      _
    %p252 = scmp.lt.s32.totalorder %s15, 2
    // Predicated region
    $region37: #{tpu_custom_call.1} parent=5 // pred_check
      %p253 = pneg %p252
    $region38: #{tpu_custom_call.1} parent=5 // pred_check_branch
      %255 = sbr.rel (%p253) target = $region40
    $region39: #{tpu_custom_call.1} parent=5 // pred_region
      // Predicated region
      $region41: #{tpu_custom_call.1} parent=39 // pred_check
        %p256 = pneg %p35
      $region42: #{tpu_custom_call.1} parent=39 // pred_check_branch
        %258 = sbr.rel (%p256) target = $region44
      $region43: #{tpu_custom_call.1} parent=39 // pred_region
        %p259 = scmp.lt.s32.totalorder %s15, 1
        %s260 = scalar_select %p259, %s15, 1
        %s261 = smul.addr %s260, 32
        %s262 = smul.addr %s261, 8
        %s263 = scalar_lea.vmem %s0, %s262
      $region44: #{tpu_custom_call.1} parent=39 // pred_fallthru
        _
    $region40: #{tpu_custom_call.1} parent=5 // pred_fallthru
      _
    %p264 = scmp.le.s32.totalorder 1, %s15
    %p265 = scmp.lt.s32.totalorder %s15, 3
    %p266 = pnand %p264, %p265
    %p267 = pneg %p266
    // Predicated region
    $region45: #{tpu_custom_call.1} parent=5 // pred_check
      _
    $region46: #{tpu_custom_call.1} parent=5 // pred_check_branch
      %269 = sbr.rel (%p266) target = $region48
    $region47: #{tpu_custom_call.1} parent=5 // pred_region
      %s270 = ssub.s32 %s15, 1
      %p271 = scmp.lt.s32.totalorder %s20, 1
      %s272 = scalar_select %p271, %s20, 1
      %s273 = smul.addr %s272, 32
      %s274 = smul.addr %s273, 8
      %s275 = scalar_lea.vmem %s0, %s274
      %p276 = pneg %p41
      %p277 = pneg %p38
      %p278 = pneg %p62
      %p279 = pneg %p59
      %p280 = pneg %p83
      %p281 = pneg %p80
      %p282 = pneg %p104
      %p283 = pneg %p101
      %p284 = pneg %p125
      %p285 = pneg %p122
      %p286 = pneg %p146
      %p287 = pneg %p143
      %p288 = pneg %p167
      %p289 = pneg %p164
      %p290 = pneg %p193
      %p291 = pneg %p190
      %p292 = scmp.lt.s32.totalorder %s20, 1
      %s293 = scalar_select %p292, %s20, 1
      %s294 = smul.addr %s293, 32
      %s295 = smul.addr %s294, 8
      %s296 = scalar_lea.vmem %s7, %s295
      %p297 = pneg %p219
      %p298 = pneg %p216
      %p299 = scmp.lt.s32.totalorder %s20, 1
      %s300 = scalar_select %p299, %s20, 1
      %s301 = smul.addr %s300, 32
      %s302 = smul.addr %s301, 8
      %s303 = scalar_lea.vmem %s8, %s302
      %p304 = scmp.lt.s32.totalorder %s20, 1
      %s305 = scalar_select %p304, %s20, 1
      %s306 = smul.addr %s305, 32
      %s307 = smul.addr %s306, 8
      %s308 = scalar_lea.vmem %s0, %s307
      %p309 = scmp.lt.s32.totalorder %s20, 1
      %s310 = scalar_select %p309, %s20, 1
      %s311 = smul.addr %s310, 32
      %s312 = smul.addr %s311, 8
      %s313 = scalar_lea.vmem %s7, %s312
      %p314 = scmp.lt.s32.totalorder %s20, 1
      %s315 = scalar_select %p314, %s20, 1
      %s316 = smul.addr %s315, 32
      %s317 = smul.addr %s316, 8
      %s318 = scalar_lea.vmem %s8, %s317
      %v320 = vld [vmem:[%s308] sm:$0xff]
      %v321 = vld [vmem:[%s308 + $0x8] sm:$0xff]
      %v322 = vld [vmem:[%s308 + $0x10] sm:$0xff]
      %v323 = vld [vmem:[%s308 + $0x18] sm:$0xff]
      %v324 = vld [vmem:[%s308 + $0x20] sm:$0xff]
      %v325 = vld [vmem:[%s308 + $0x28] sm:$0xff]
      %v326 = vld [vmem:[%s308 + $0x30] sm:$0xff]
      %v327 = vld [vmem:[%s308 + $0x38] sm:$0xff]
      %v328 = vld [vmem:[%s308 + $0x40] sm:$0xff]
      %v329 = vld [vmem:[%s308 + $0x48] sm:$0xff]
      %v330 = vld [vmem:[%s308 + $0x50] sm:$0xff]
      %v331 = vld [vmem:[%s308 + $0x58] sm:$0xff]
      %v332 = vld [vmem:[%s308 + $0x60] sm:$0xff]
      %v333 = vld [vmem:[%s308 + $0x68] sm:$0xff]
      %v334 = vld [vmem:[%s308 + $0x70] sm:$0xff]
      %v335 = vld [vmem:[%s308 + $0x78] sm:$0xff]
      %v336 = vld [vmem:[%s308 + $0x80] sm:$0xff]
      %v337 = vld [vmem:[%s308 + $0x88] sm:$0xff]
      %v338 = vld [vmem:[%s308 + $0x90] sm:$0xff]
      %v339 = vld [vmem:[%s308 + $0x98] sm:$0xff]
      %v340 = vld [vmem:[%s308 + $0xa0] sm:$0xff]
      %v341 = vld [vmem:[%s308 + $0xa8] sm:$0xff]
      %v342 = vld [vmem:[%s308 + $0xb0] sm:$0xff]
      %v343 = vld [vmem:[%s308 + $0xb8] sm:$0xff]
      %v344 = vld [vmem:[%s308 + $0xc0] sm:$0xff]
      %v345 = vld [vmem:[%s308 + $0xc8] sm:$0xff]
      %v346 = vld [vmem:[%s308 + $0xd0] sm:$0xff]
      %v347 = vld [vmem:[%s308 + $0xd8] sm:$0xff]
      %v348 = vld [vmem:[%s308 + $0xe0] sm:$0xff]
      %v349 = vld [vmem:[%s308 + $0xe8] sm:$0xff]
      %v350 = vld [vmem:[%s308 + $0xf0] sm:$0xff]
      %v351 = vld [vmem:[%s308 + $0xf8] sm:$0xff]
      %v352 = vld [vmem:[%s1] sm:$0x1]
      %v353 = vld [vmem:[%s2] sm:$0x1]
      %v355 = vlaneseq
      %v356 = vshrl.u32 %v355, 7
      %v357 = vsub.s32 0, %v356
      %v358 = vrot.slane %v352, %v357
      %v360 = vmul.f32 %v320, %v358
      %v361 = vmul.f32 %v321, %v358
      %v362 = vmul.f32 %v322, %v358
      %v363 = vmul.f32 %v323, %v358
      %v364 = vmul.f32 %v324, %v358
      %v365 = vmul.f32 %v325, %v358
      %v366 = vmul.f32 %v326, %v358
      %v367 = vmul.f32 %v327, %v358
      %v368 = vmul.f32 %v328, %v358
      %v369 = vmul.f32 %v329, %v358
      %v370 = vmul.f32 %v330, %v358
      %v371 = vmul.f32 %v331, %v358
      %v372 = vmul.f32 %v332, %v358
      %v373 = vmul.f32 %v333, %v358
      %v374 = vmul.f32 %v334, %v358
      %v375 = vmul.f32 %v335, %v358
      %v376 = vmul.f32 %v336, %v358
      %v377 = vmul.f32 %v337, %v358
      %v378 = vmul.f32 %v338, %v358
      %v379 = vmul.f32 %v339, %v358
      %v380 = vmul.f32 %v340, %v358
      %v381 = vmul.f32 %v341, %v358
      %v382 = vmul.f32 %v342, %v358
      %v383 = vmul.f32 %v343, %v358
      %v384 = vmul.f32 %v344, %v358
      %v385 = vmul.f32 %v345, %v358
      %v386 = vmul.f32 %v346, %v358
      %v387 = vmul.f32 %v347, %v358
      %v388 = vmul.f32 %v348, %v358
      %v389 = vmul.f32 %v349, %v358
      %v390 = vmul.f32 %v350, %v358
      %v391 = vmul.f32 %v351, %v358
      %v393 = vlaneseq
      %v394 = vshrl.u32 %v393, 7
      %v395 = vsub.s32 0, %v394
      %v396 = vrot.slane %v353, %v395
      %v398 = vadd.f32 %v360, %v396
      %v399 = vadd.f32 %v361, %v396
      %v400 = vadd.f32 %v362, %v396
      %v401 = vadd.f32 %v363, %v396
      %v402 = vadd.f32 %v364, %v396
      %v403 = vadd.f32 %v365, %v396
      %v404 = vadd.f32 %v366, %v396
      %v405 = vadd.f32 %v367, %v396
      %v406 = vadd.f32 %v368, %v396
      %v407 = vadd.f32 %v369, %v396
      %v408 = vadd.f32 %v370, %v396
      %v409 = vadd.f32 %v371, %v396
      %v410 = vadd.f32 %v372, %v396
      %v411 = vadd.f32 %v373, %v396
      %v412 = vadd.f32 %v374, %v396
      %v413 = vadd.f32 %v375, %v396
      %v414 = vadd.f32 %v376, %v396
      %v415 = vadd.f32 %v377, %v396
      %v416 = vadd.f32 %v378, %v396
      %v417 = vadd.f32 %v379, %v396
      %v418 = vadd.f32 %v380, %v396
      %v419 = vadd.f32 %v381, %v396
      %v420 = vadd.f32 %v382, %v396
      %v421 = vadd.f32 %v383, %v396
      %v422 = vadd.f32 %v384, %v396
      %v423 = vadd.f32 %v385, %v396
      %v424 = vadd.f32 %v386, %v396
      %v425 = vadd.f32 %v387, %v396
      %v426 = vadd.f32 %v388, %v396
      %v427 = vadd.f32 %v389, %v396
      %v428 = vadd.f32 %v390, %v396
      %v429 = vadd.f32 %v391, %v396
      %v430 = vmax.f32 %v398, 0.0
      %v431 = vmax.f32 %v399, 0.0
      %v432 = vmax.f32 %v400, 0.0
      %v433 = vmax.f32 %v401, 0.0
      %v434 = vmax.f32 %v402, 0.0
      %v435 = vmax.f32 %v403, 0.0
      %v436 = vmax.f32 %v404, 0.0
      %v437 = vmax.f32 %v405, 0.0
      %v438 = vmax.f32 %v406, 0.0
      %v439 = vmax.f32 %v407, 0.0
      %v440 = vmax.f32 %v408, 0.0
      %v441 = vmax.f32 %v409, 0.0
      %v442 = vmax.f32 %v410, 0.0
      %v443 = vmax.f32 %v411, 0.0
      %v444 = vmax.f32 %v412, 0.0
      %v445 = vmax.f32 %v413, 0.0
      %v446 = vmax.f32 %v414, 0.0
      %v447 = vmax.f32 %v415, 0.0
      %v448 = vmax.f32 %v416, 0.0
      %v449 = vmax.f32 %v417, 0.0
      %v450 = vmax.f32 %v418, 0.0
      %v451 = vmax.f32 %v419, 0.0
      %v452 = vmax.f32 %v420, 0.0
      %v453 = vmax.f32 %v421, 0.0
      %v454 = vmax.f32 %v422, 0.0
      %v455 = vmax.f32 %v423, 0.0
      %v456 = vmax.f32 %v424, 0.0
      %v457 = vmax.f32 %v425, 0.0
      %v458 = vmax.f32 %v426, 0.0
      %v459 = vmax.f32 %v427, 0.0
      %v460 = vmax.f32 %v428, 0.0
      %v461 = vmax.f32 %v429, 0.0
      %vm462 = vcmask 31744
      %463 = vst.msk [vmem:[%s318] sm:$0xff] %vm462, %v430
      %464 = vst.msk [vmem:[%s318 + $0x8] sm:$0xff] %vm462, %v431
      %465 = vst.msk [vmem:[%s318 + $0x10] sm:$0xff] %vm462, %v432
      %466 = vst.msk [vmem:[%s318 + $0x18] sm:$0xff] %vm462, %v433
      %467 = vst.msk [vmem:[%s318 + $0x20] sm:$0xff] %vm462, %v434
      %468 = vst.msk [vmem:[%s318 + $0x28] sm:$0xff] %vm462, %v435
      %469 = vst.msk [vmem:[%s318 + $0x30] sm:$0xff] %vm462, %v436
      %470 = vst.msk [vmem:[%s318 + $0x38] sm:$0xff] %vm462, %v437
      %471 = vst.msk [vmem:[%s318 + $0x40] sm:$0xff] %vm462, %v438
      %472 = vst.msk [vmem:[%s318 + $0x48] sm:$0xff] %vm462, %v439
      %473 = vst.msk [vmem:[%s318 + $0x50] sm:$0xff] %vm462, %v440
      %474 = vst.msk [vmem:[%s318 + $0x58] sm:$0xff] %vm462, %v441
      %475 = vst.msk [vmem:[%s318 + $0x60] sm:$0xff] %vm462, %v442
      %476 = vst.msk [vmem:[%s318 + $0x68] sm:$0xff] %vm462, %v443
      %477 = vst.msk [vmem:[%s318 + $0x70] sm:$0xff] %vm462, %v444
      %478 = vst.msk [vmem:[%s318 + $0x78] sm:$0xff] %vm462, %v445
      %479 = vst.msk [vmem:[%s318 + $0x80] sm:$0xff] %vm462, %v446
      %480 = vst.msk [vmem:[%s318 + $0x88] sm:$0xff] %vm462, %v447
      %481 = vst.msk [vmem:[%s318 + $0x90] sm:$0xff] %vm462, %v448
      %482 = vst.msk [vmem:[%s318 + $0x98] sm:$0xff] %vm462, %v449
      %483 = vst.msk [vmem:[%s318 + $0xa0] sm:$0xff] %vm462, %v450
      %484 = vst.msk [vmem:[%s318 + $0xa8] sm:$0xff] %vm462, %v451
      %485 = vst.msk [vmem:[%s318 + $0xb0] sm:$0xff] %vm462, %v452
      %486 = vst.msk [vmem:[%s318 + $0xb8] sm:$0xff] %vm462, %v453
      %487 = vst.msk [vmem:[%s318 + $0xc0] sm:$0xff] %vm462, %v454
      %488 = vst.msk [vmem:[%s318 + $0xc8] sm:$0xff] %vm462, %v455
      %489 = vst.msk [vmem:[%s318 + $0xd0] sm:$0xff] %vm462, %v456
      %490 = vst.msk [vmem:[%s318 + $0xd8] sm:$0xff] %vm462, %v457
      %491 = vst.msk [vmem:[%s318 + $0xe0] sm:$0xff] %vm462, %v458
      %492 = vst.msk [vmem:[%s318 + $0xe8] sm:$0xff] %vm462, %v459
      %493 = vst.msk [vmem:[%s318 + $0xf0] sm:$0xff] %vm462, %v460
      %494 = vst.msk [vmem:[%s318 + $0xf8] sm:$0xff] %vm462, %v461
      %v495 = vpack.c.bf16 %v431, %v430
      %v496 = vpack.c.bf16 %v433, %v432
      %v497 = vpack.c.bf16 %v435, %v434
      %v498 = vpack.c.bf16 %v437, %v436
      %v499 = vpack.c.bf16 %v439, %v438
      %v500 = vpack.c.bf16 %v441, %v440
      %v501 = vpack.c.bf16 %v443, %v442
      %v502 = vpack.c.bf16 %v445, %v444
      %v503 = vpack.c.bf16 %v447, %v446
      %v504 = vpack.c.bf16 %v449, %v448
      %v505 = vpack.c.bf16 %v451, %v450
      %v506 = vpack.c.bf16 %v453, %v452
      %v507 = vpack.c.bf16 %v455, %v454
      %v508 = vpack.c.bf16 %v457, %v456
      %v509 = vpack.c.bf16 %v459, %v458
      %v510 = vpack.c.bf16 %v461, %v460
      %v511 = vld [vmem:[%s6] sm:$0x3]
      %vm512 = vcmask 27648
      %513 = vst.msk [vmem:[#allocation2] sm:$0xf] %vm512, 0
      %514 = vst.msk [vmem:[#allocation2 + $0x4] sm:$0xf] %vm512, 0
      %vm515 = vcmask 24576
      %516 = vst.msk [vmem:[#allocation2 + $0x8] sm:$0x1] %vm515, 0
      %s517 = scalar_lea.vmem [#allocation2], 204
      %518 = vst.msk [vmem:[%s517] sm:$0xf] %vm512, 0
      %519 = vst.msk [vmem:[%s517 + $0x4] sm:$0xf] %vm512, 0
      %520 = vst.msk [vmem:[%s517 + $0x8] sm:$0x1] %vm515, 0
      %s521 = scalar_lea.vmem [#allocation2], 12
      %vm522 = vcmask 24576
      %vm523 = vsmask.f32 256
      %vm524 = vmand %vm522, %vm523
      %v525 = vld [vmem:[%s521] sm:$0x1]
      %v526 = vsel %vm524, 0, %v525
      %527 = vst [vmem:[%s521] sm:$0x1] %v526
      %v528 = vld [vmem:[%s521 + $0xc] sm:$0x1]
      %v529 = vsel %vm524, 0, %v528
      %530 = vst [vmem:[%s521 + $0xc] sm:$0x1] %v529
      %v531 = vld [vmem:[%s521 + $0x18] sm:$0x1]
      %v532 = vsel %vm524, 0, %v531
      %533 = vst [vmem:[%s521 + $0x18] sm:$0x1] %v532
      %v534 = vld [vmem:[%s521 + $0x24] sm:$0x1]
      %v535 = vsel %vm524, 0, %v534
      %536 = vst [vmem:[%s521 + $0x24] sm:$0x1] %v535
      %v537 = vld [vmem:[%s521 + $0x30] sm:$0x1]
      %v538 = vsel %vm524, 0, %v537
      %539 = vst [vmem:[%s521 + $0x30] sm:$0x1] %v538
      %v540 = vld [vmem:[%s521 + $0x3c] sm:$0x1]
      %v541 = vsel %vm524, 0, %v540
      %542 = vst [vmem:[%s521 + $0x3c] sm:$0x1] %v541
      %v543 = vld [vmem:[%s521 + $0x48] sm:$0x1]
      %v544 = vsel %vm524, 0, %v543
      %545 = vst [vmem:[%s521 + $0x48] sm:$0x1] %v544
      %v546 = vld [vmem:[%s521 + $0x54] sm:$0x1]
      %v547 = vsel %vm524, 0, %v546
      %548 = vst [vmem:[%s521 + $0x54] sm:$0x1] %v547
      %v549 = vld [vmem:[%s521 + $0x60] sm:$0x1]
      %v550 = vsel %vm524, 0, %v549
      %551 = vst [vmem:[%s521 + $0x60] sm:$0x1] %v550
      %v552 = vld [vmem:[%s521 + $0x6c] sm:$0x1]
      %v553 = vsel %vm524, 0, %v552
      %554 = vst [vmem:[%s521 + $0x6c] sm:$0x1] %v553
      %v555 = vld [vmem:[%s521 + $0x78] sm:$0x1]
      %v556 = vsel %vm524, 0, %v555
      %557 = vst [vmem:[%s521 + $0x78] sm:$0x1] %v556
      %v558 = vld [vmem:[%s521 + $0x84] sm:$0x1]
      %v559 = vsel %vm524, 0, %v558
      %560 = vst [vmem:[%s521 + $0x84] sm:$0x1] %v559
      %v561 = vld [vmem:[%s521 + $0x90] sm:$0x1]
      %v562 = vsel %vm524, 0, %v561
      %563 = vst [vmem:[%s521 + $0x90] sm:$0x1] %v562
      %v564 = vld [vmem:[%s521 + $0x9c] sm:$0x1]
      %v565 = vsel %vm524, 0, %v564
      %566 = vst [vmem:[%s521 + $0x9c] sm:$0x1] %v565
      %v567 = vld [vmem:[%s521 + $0xa8] sm:$0x1]
      %v568 = vsel %vm524, 0, %v567
      %569 = vst [vmem:[%s521 + $0xa8] sm:$0x1] %v568
      %v570 = vld [vmem:[%s521 + $0xb4] sm:$0x1]
      %v571 = vsel %vm524, 0, %v570
      %572 = vst [vmem:[%s521 + $0xb4] sm:$0x1] %v571
      %vm573 = vsmask.f32 7938
      %vm574 = vmand %vm522, %vm573
      %v575 = vld [vmem:[%s521 + $0x8] sm:$0x1]
      %v576 = vsel %vm574, 0, %v575
      %577 = vst [vmem:[%s521 + $0x8] sm:$0x1] %v576
      %v578 = vld [vmem:[%s521 + $0x14] sm:$0x1]
      %v579 = vsel %vm574, 0, %v578
      %580 = vst [vmem:[%s521 + $0x14] sm:$0x1] %v579
      %v581 = vld [vmem:[%s521 + $0x20] sm:$0x1]
      %v582 = vsel %vm574, 0, %v581
      %583 = vst [vmem:[%s521 + $0x20] sm:$0x1] %v582
      %v584 = vld [vmem:[%s521 + $0x2c] sm:$0x1]
      %v585 = vsel %vm574, 0, %v584
      %586 = vst [vmem:[%s521 + $0x2c] sm:$0x1] %v585
      %v587 = vld [vmem:[%s521 + $0x38] sm:$0x1]
      %v588 = vsel %vm574, 0, %v587
      %589 = vst [vmem:[%s521 + $0x38] sm:$0x1] %v588
      %v590 = vld [vmem:[%s521 + $0x44] sm:$0x1]
      %v591 = vsel %vm574, 0, %v590
      %592 = vst [vmem:[%s521 + $0x44] sm:$0x1] %v591
      %v593 = vld [vmem:[%s521 + $0x50] sm:$0x1]
      %v594 = vsel %vm574, 0, %v593
      %595 = vst [vmem:[%s521 + $0x50] sm:$0x1] %v594
      %v596 = vld [vmem:[%s521 + $0x5c] sm:$0x1]
      %v597 = vsel %vm574, 0, %v596
      %598 = vst [vmem:[%s521 + $0x5c] sm:$0x1] %v597
      %v599 = vld [vmem:[%s521 + $0x68] sm:$0x1]
      %v600 = vsel %vm574, 0, %v599
      %601 = vst [vmem:[%s521 + $0x68] sm:$0x1] %v600
      %v602 = vld [vmem:[%s521 + $0x74] sm:$0x1]
      %v603 = vsel %vm574, 0, %v602
      %604 = vst [vmem:[%s521 + $0x74] sm:$0x1] %v603
      %v605 = vld [vmem:[%s521 + $0x80] sm:$0x1]
      %v606 = vsel %vm574, 0, %v605
      %607 = vst [vmem:[%s521 + $0x80] sm:$0x1] %v606
      %v608 = vld [vmem:[%s521 + $0x8c] sm:$0x1]
      %v609 = vsel %vm574, 0, %v608
      %610 = vst [vmem:[%s521 + $0x8c] sm:$0x1] %v609
      %v611 = vld [vmem:[%s521 + $0x98] sm:$0x1]
      %v612 = vsel %vm574, 0, %v611
      %613 = vst [vmem:[%s521 + $0x98] sm:$0x1] %v612
      %v614 = vld [vmem:[%s521 + $0xa4] sm:$0x1]
      %v615 = vsel %vm574, 0, %v614
      %616 = vst [vmem:[%s521 + $0xa4] sm:$0x1] %v615
      %v617 = vld [vmem:[%s521 + $0xb0] sm:$0x1]
      %v618 = vsel %vm574, 0, %v617
      %619 = vst [vmem:[%s521 + $0xb0] sm:$0x1] %v618
      %v620 = vld [vmem:[%s521 + $0xbc] sm:$0x1]
      %v621 = vsel %vm574, 0, %v620
      %622 = vst [vmem:[%s521 + $0xbc] sm:$0x1] %v621
      %v639 = vunpack.c.l.b16 %v495
      %v640 = vunpack.c.h.b16 %v495
      %v641 = vunpack.c.l.b16 %v496
      %v642 = vunpack.c.h.b16 %v496
      %v643 = vunpack.c.l.b16 %v497
      %v644 = vunpack.c.h.b16 %v497
      %v645 = vunpack.c.l.b16 %v498
      %v646 = vunpack.c.h.b16 %v498
      %v647 = vunpack.c.l.b16 %v499
      %v648 = vunpack.c.h.b16 %v499
      %v649 = vunpack.c.l.b16 %v500
      %v650 = vunpack.c.h.b16 %v500
      %v651 = vunpack.c.l.b16 %v501
      %v652 = vunpack.c.h.b16 %v501
      %v653 = vunpack.c.l.b16 %v502
      %v654 = vunpack.c.h.b16 %v502
      %v655 = vunpack.c.l.b16 %v503
      %v656 = vunpack.c.h.b16 %v503
      %v657 = vunpack.c.l.b16 %v504
      %v658 = vunpack.c.h.b16 %v504
      %v659 = vunpack.c.l.b16 %v505
      %v660 = vunpack.c.h.b16 %v505
      %v661 = vunpack.c.l.b16 %v506
      %v662 = vunpack.c.h.b16 %v506
      %v663 = vunpack.c.l.b16 %v507
      %v664 = vunpack.c.h.b16 %v507
      %v665 = vunpack.c.l.b16 %v508
      %v666 = vunpack.c.h.b16 %v508
      %v667 = vunpack.c.l.b16 %v509
      %v668 = vunpack.c.h.b16 %v509
      %v669 = vunpack.c.l.b16 %v510
      %v670 = vunpack.c.h.b16 %v510
      %v671 = vpack.c.b16 %v639, %v639
      %v672 = vpack.c.b16 %v640, %v640
      %v673 = vpack.c.b16 %v641, %v641
      %v674 = vpack.c.b16 %v642, %v642
      %v675 = vpack.c.b16 %v643, %v643
      %v676 = vpack.c.b16 %v644, %v644
      %v677 = vpack.c.b16 %v645, %v645
      %v678 = vpack.c.b16 %v646, %v646
      %v679 = vpack.c.b16 %v647, %v647
      %v680 = vpack.c.b16 %v648, %v648
      %v681 = vpack.c.b16 %v649, %v649
      %v682 = vpack.c.b16 %v650, %v650
      %v683 = vpack.c.b16 %v651, %v651
      %v684 = vpack.c.b16 %v652, %v652
      %v685 = vpack.c.b16 %v653, %v653
      %v686 = vpack.c.b16 %v654, %v654
      %v687 = vpack.c.b16 %v655, %v655
      %v688 = vpack.c.b16 %v656, %v656
      %v689 = vpack.c.b16 %v657, %v657
      %v690 = vpack.c.b16 %v658, %v658
      %v691 = vpack.c.b16 %v659, %v659
      %v692 = vpack.c.b16 %v660, %v660
      %v693 = vpack.c.b16 %v661, %v661
      %v694 = vpack.c.b16 %v662, %v662
      %v695 = vpack.c.b16 %v663, %v663
      %v696 = vpack.c.b16 %v664, %v664
      %v697 = vpack.c.b16 %v665, %v665
      %v698 = vpack.c.b16 %v666, %v666
      %v699 = vpack.c.b16 %v667, %v667
      %v700 = vpack.c.b16 %v668, %v668
      %v701 = vpack.c.b16 %v669, %v669
      %v702 = vpack.c.b16 %v670, %v670
      %vm703 = vsmask.f32 4368
      %vm704 = vmor %vm523, %vm703
      %v706 = vshrl.u32 %v671, 16
      %v708 = vrot.slane %v706, 7
      %v709 = vshll.u32 %v671, 16
      %v711 = vor.u32 %v708, %v709
      %v712 = vrot.slane %v708, 4
      %v714 = vshrl.u32 %v672, 16
      %v716 = vrot.slane %v714, 7
      %v717 = vshll.u32 %v672, 16
      %v719 = vor.u32 %v716, %v717
      %v720 = vsel %vm704, %v712, %v719
      %v721 = vrot.slane %v716, 4
      %v723 = vshrl.u32 %v673, 16
      %v725 = vrot.slane %v723, 7
      %v726 = vshll.u32 %v673, 16
      %v728 = vor.u32 %v725, %v726
      %v729 = vrot.slane %v725, 4
      %v731 = vshrl.u32 %v674, 16
      %v733 = vrot.slane %v731, 7
      %v734 = vshll.u32 %v674, 16
      %v736 = vor.u32 %v733, %v734
      %v737 = vsel %vm704, %v729, %v736
      %v738 = vrot.slane %v733, 4
      %v740 = vshrl.u32 %v675, 16
      %v742 = vrot.slane %v740, 7
      %v743 = vshll.u32 %v675, 16
      %v745 = vor.u32 %v742, %v743
      %v746 = vrot.slane %v742, 4
      %v748 = vshrl.u32 %v676, 16
      %v750 = vrot.slane %v748, 7
      %v751 = vshll.u32 %v676, 16
      %v753 = vor.u32 %v750, %v751
      %v754 = vsel %vm704, %v746, %v753
      %v755 = vrot.slane %v750, 4
      %v757 = vshrl.u32 %v677, 16
      %v759 = vrot.slane %v757, 7
      %v760 = vshll.u32 %v677, 16
      %v762 = vor.u32 %v759, %v760
      %v763 = vrot.slane %v759, 4
      %v765 = vshrl.u32 %v678, 16
      %v767 = vrot.slane %v765, 7
      %v768 = vshll.u32 %v678, 16
      %v770 = vor.u32 %v767, %v768
      %v771 = vsel %vm704, %v763, %v770
      %v772 = vrot.slane %v767, 4
      %v774 = vshrl.u32 %v679, 16
      %v776 = vrot.slane %v774, 7
      %v777 = vshll.u32 %v679, 16
      %v779 = vor.u32 %v776, %v777
      %v780 = vrot.slane %v776, 4
      %v782 = vshrl.u32 %v680, 16
      %v784 = vrot.slane %v782, 7
      %v785 = vshll.u32 %v680, 16
      %v787 = vor.u32 %v784, %v785
      %v788 = vsel %vm704, %v780, %v787
      %v789 = vrot.slane %v784, 4
      %v791 = vshrl.u32 %v681, 16
      %v793 = vrot.slane %v791, 7
      %v794 = vshll.u32 %v681, 16
      %v796 = vor.u32 %v793, %v794
      %v797 = vrot.slane %v793, 4
      %v799 = vshrl.u32 %v682, 16
      %v801 = vrot.slane %v799, 7
      %v802 = vshll.u32 %v682, 16
      %v804 = vor.u32 %v801, %v802
      %v805 = vsel %vm704, %v797, %v804
      %v806 = vrot.slane %v801, 4
      %v808 = vshrl.u32 %v683, 16
      %v810 = vrot.slane %v808, 7
      %v811 = vshll.u32 %v683, 16
      %v813 = vor.u32 %v810, %v811
      %v814 = vrot.slane %v810, 4
      %v816 = vshrl.u32 %v684, 16
      %v818 = vrot.slane %v816, 7
      %v819 = vshll.u32 %v684, 16
      %v821 = vor.u32 %v818, %v819
      %v822 = vsel %vm704, %v814, %v821
      %v823 = vrot.slane %v818, 4
      %v825 = vshrl.u32 %v685, 16
      %v827 = vrot.slane %v825, 7
      %v828 = vshll.u32 %v685, 16
      %v830 = vor.u32 %v827, %v828
      %v831 = vrot.slane %v827, 4
      %v833 = vshrl.u32 %v686, 16
      %v835 = vrot.slane %v833, 7
      %v836 = vshll.u32 %v686, 16
      %v838 = vor.u32 %v835, %v836
      %v839 = vsel %vm704, %v831, %v838
      %v840 = vrot.slane %v835, 4
      %v842 = vshrl.u32 %v687, 16
      %v844 = vrot.slane %v842, 7
      %v845 = vshll.u32 %v687, 16
      %v847 = vor.u32 %v844, %v845
      %v848 = vrot.slane %v844, 4
      %v850 = vshrl.u32 %v688, 16
      %v852 = vrot.slane %v850, 7
      %v853 = vshll.u32 %v688, 16
      %v855 = vor.u32 %v852, %v853
      %v856 = vsel %vm704, %v848, %v855
      %v857 = vrot.slane %v852, 4
      %v859 = vshrl.u32 %v689, 16
      %v861 = vrot.slane %v859, 7
      %v862 = vshll.u32 %v689, 16
      %v864 = vor.u32 %v861, %v862
      %v865 = vrot.slane %v861, 4
      %v867 = vshrl.u32 %v690, 16
      %v869 = vrot.slane %v867, 7
      %v870 = vshll.u32 %v690, 16
      %v872 = vor.u32 %v869, %v870
      %v873 = vsel %vm704, %v865, %v872
      %v874 = vrot.slane %v869, 4
      %v876 = vshrl.u32 %v691, 16
      %v878 = vrot.slane %v876, 7
      %v879 = vshll.u32 %v691, 16
      %v881 = vor.u32 %v878, %v879
      %v882 = vrot.slane %v878, 4
      %v884 = vshrl.u32 %v692, 16
      %v886 = vrot.slane %v884, 7
      %v887 = vshll.u32 %v692, 16
      %v889 = vor.u32 %v886, %v887
      %v890 = vsel %vm704, %v882, %v889
      %v891 = vrot.slane %v886, 4
      %v893 = vshrl.u32 %v693, 16
      %v895 = vrot.slane %v893, 7
      %v896 = vshll.u32 %v693, 16
      %v898 = vor.u32 %v895, %v896
      %v899 = vrot.slane %v895, 4
      %v901 = vshrl.u32 %v694, 16
      %v903 = vrot.slane %v901, 7
      %v904 = vshll.u32 %v694, 16
      %v906 = vor.u32 %v903, %v904
      %v907 = vsel %vm704, %v899, %v906
      %v908 = vrot.slane %v903, 4
      %v910 = vshrl.u32 %v695, 16
      %v912 = vrot.slane %v910, 7
      %v913 = vshll.u32 %v695, 16
      %v915 = vor.u32 %v912, %v913
      %v916 = vrot.slane %v912, 4
      %v918 = vshrl.u32 %v696, 16
      %v920 = vrot.slane %v918, 7
      %v921 = vshll.u32 %v696, 16
      %v923 = vor.u32 %v920, %v921
      %v924 = vsel %vm704, %v916, %v923
      %v925 = vrot.slane %v920, 4
      %v927 = vshrl.u32 %v697, 16
      %v929 = vrot.slane %v927, 7
      %v930 = vshll.u32 %v697, 16
      %v932 = vor.u32 %v929, %v930
      %v933 = vrot.slane %v929, 4
      %v935 = vshrl.u32 %v698, 16
      %v937 = vrot.slane %v935, 7
      %v938 = vshll.u32 %v698, 16
      %v940 = vor.u32 %v937, %v938
      %v941 = vsel %vm704, %v933, %v940
      %v942 = vrot.slane %v937, 4
      %v944 = vshrl.u32 %v699, 16
      %v946 = vrot.slane %v944, 7
      %v947 = vshll.u32 %v699, 16
      %v949 = vor.u32 %v946, %v947
      %v950 = vrot.slane %v946, 4
      %v952 = vshrl.u32 %v700, 16
      %v954 = vrot.slane %v952, 7
      %v955 = vshll.u32 %v700, 16
      %v957 = vor.u32 %v954, %v955
      %v958 = vsel %vm704, %v950, %v957
      %v959 = vrot.slane %v954, 4
      %v961 = vshrl.u32 %v701, 16
      %v963 = vrot.slane %v961, 7
      %v964 = vshll.u32 %v701, 16
      %v966 = vor.u32 %v963, %v964
      %v967 = vrot.slane %v963, 4
      %v969 = vshrl.u32 %v702, 16
      %v971 = vrot.slane %v969, 7
      %v972 = vshll.u32 %v702, 16
      %v974 = vor.u32 %v971, %v972
      %v975 = vsel %vm704, %v967, %v974
      %v976 = vrot.slane %v971, 4
      %vm1025 = vcmask 27648
      %vm1026 = vmand %vm1025, %vm573
      %v1027 = vld [vmem:[%s521] sm:$0xf]
      %v1028 = vsel %vm1026, %v711, %v1027
      %1029 = vst [vmem:[%s521] sm:$0xf] %v1028
      %1030 = vst.msk [vmem:[%s521 + $0x4] sm:$0xf] %vm512, %v720
      %v1031 = vld [vmem:[%s521 + $0x8] sm:$0x1]
      %v1032 = vsel %vm524, %v721, %v1031
      %1033 = vst [vmem:[%s521 + $0x8] sm:$0x1] %v1032
      %v1034 = vld [vmem:[%s521 + $0xc] sm:$0xf]
      %v1035 = vsel %vm1026, %v728, %v1034
      %1036 = vst [vmem:[%s521 + $0xc] sm:$0xf] %v1035
      %1037 = vst.msk [vmem:[%s521 + $0x10] sm:$0xf] %vm512, %v737
      %v1038 = vld [vmem:[%s521 + $0x14] sm:$0x1]
      %v1039 = vsel %vm524, %v738, %v1038
      %1040 = vst [vmem:[%s521 + $0x14] sm:$0x1] %v1039
      %v1041 = vld [vmem:[%s521 + $0x18] sm:$0xf]
      %v1042 = vsel %vm1026, %v745, %v1041
      %1043 = vst [vmem:[%s521 + $0x18] sm:$0xf] %v1042
      %1044 = vst.msk [vmem:[%s521 + $0x1c] sm:$0xf] %vm512, %v754
      %v1045 = vld [vmem:[%s521 + $0x20] sm:$0x1]
      %v1046 = vsel %vm524, %v755, %v1045
      %1047 = vst [vmem:[%s521 + $0x20] sm:$0x1] %v1046
      %v1048 = vld [vmem:[%s521 + $0x24] sm:$0xf]
      %v1049 = vsel %vm1026, %v762, %v1048
      %1050 = vst [vmem:[%s521 + $0x24] sm:$0xf] %v1049
      %1051 = vst.msk [vmem:[%s521 + $0x28] sm:$0xf] %vm512, %v771
      %v1052 = vld [vmem:[%s521 + $0x2c] sm:$0x1]
      %v1053 = vsel %vm524, %v772, %v1052
      %1054 = vst [vmem:[%s521 + $0x2c] sm:$0x1] %v1053
      %v1055 = vld [vmem:[%s521 + $0x30] sm:$0xf]
      %v1056 = vsel %vm1026, %v779, %v1055
      %1057 = vst [vmem:[%s521 + $0x30] sm:$0xf] %v1056
      %1058 = vst.msk [vmem:[%s521 + $0x34] sm:$0xf] %vm512, %v788
      %v1059 = vld [vmem:[%s521 + $0x38] sm:$0x1]
      %v1060 = vsel %vm524, %v789, %v1059
      %1061 = vst [vmem:[%s521 + $0x38] sm:$0x1] %v1060
      %v1062 = vld [vmem:[%s521 + $0x3c] sm:$0xf]
      %v1063 = vsel %vm1026, %v796, %v1062
      %1064 = vst [vmem:[%s521 + $0x3c] sm:$0xf] %v1063
      %1065 = vst.msk [vmem:[%s521 + $0x40] sm:$0xf] %vm512, %v805
      %v1066 = vld [vmem:[%s521 + $0x44] sm:$0x1]
      %v1067 = vsel %vm524, %v806, %v1066
      %1068 = vst [vmem:[%s521 + $0x44] sm:$0x1] %v1067
      %v1069 = vld [vmem:[%s521 + $0x48] sm:$0xf]
      %v1070 = vsel %vm1026, %v813, %v1069
      %1071 = vst [vmem:[%s521 + $0x48] sm:$0xf] %v1070
      %1072 = vst.msk [vmem:[%s521 + $0x4c] sm:$0xf] %vm512, %v822
      %v1073 = vld [vmem:[%s521 + $0x50] sm:$0x1]
      %v1074 = vsel %vm524, %v823, %v1073
      %1075 = vst [vmem:[%s521 + $0x50] sm:$0x1] %v1074
      %v1076 = vld [vmem:[%s521 + $0x54] sm:$0xf]
      %v1077 = vsel %vm1026, %v830, %v1076
      %1078 = vst [vmem:[%s521 + $0x54] sm:$0xf] %v1077
      %1079 = vst.msk [vmem:[%s521 + $0x58] sm:$0xf] %vm512, %v839
      %v1080 = vld [vmem:[%s521 + $0x5c] sm:$0x1]
      %v1081 = vsel %vm524, %v840, %v1080
      %1082 = vst [vmem:[%s521 + $0x5c] sm:$0x1] %v1081
      %v1083 = vld [vmem:[%s521 + $0x60] sm:$0xf]
      %v1084 = vsel %vm1026, %v847, %v1083
      %1085 = vst [vmem:[%s521 + $0x60] sm:$0xf] %v1084
      %1086 = vst.msk [vmem:[%s521 + $0x64] sm:$0xf] %vm512, %v856
      %v1087 = vld [vmem:[%s521 + $0x68] sm:$0x1]
      %v1088 = vsel %vm524, %v857, %v1087
      %1089 = vst [vmem:[%s521 + $0x68] sm:$0x1] %v1088
      %v1090 = vld [vmem:[%s521 + $0x6c] sm:$0xf]
      %v1091 = vsel %vm1026, %v864, %v1090
      %1092 = vst [vmem:[%s521 + $0x6c] sm:$0xf] %v1091
      %1093 = vst.msk [vmem:[%s521 + $0x70] sm:$0xf] %vm512, %v873
      %v1094 = vld [vmem:[%s521 + $0x74] sm:$0x1]
      %v1095 = vsel %vm524, %v874, %v1094
      %1096 = vst [vmem:[%s521 + $0x74] sm:$0x1] %v1095
      %v1097 = vld [vmem:[%s521 + $0x78] sm:$0xf]
      %v1098 = vsel %vm1026, %v881, %v1097
      %1099 = vst [vmem:[%s521 + $0x78] sm:$0xf] %v1098
      %1100 = vst.msk [vmem:[%s521 + $0x7c] sm:$0xf] %vm512, %v890
      %v1101 = vld [vmem:[%s521 + $0x80] sm:$0x1]
      %v1102 = vsel %vm524, %v891, %v1101
      %1103 = vst [vmem:[%s521 + $0x80] sm:$0x1] %v1102
      %v1104 = vld [vmem:[%s521 + $0x84] sm:$0xf]
      %v1105 = vsel %vm1026, %v898, %v1104
      %1106 = vst [vmem:[%s521 + $0x84] sm:$0xf] %v1105
      %1107 = vst.msk [vmem:[%s521 + $0x88] sm:$0xf] %vm512, %v907
      %v1108 = vld [vmem:[%s521 + $0x8c] sm:$0x1]
      %v1109 = vsel %vm524, %v908, %v1108
      %1110 = vst [vmem:[%s521 + $0x8c] sm:$0x1] %v1109
      %v1111 = vld [vmem:[%s521 + $0x90] sm:$0xf]
      %v1112 = vsel %vm1026, %v915, %v1111
      %1113 = vst [vmem:[%s521 + $0x90] sm:$0xf] %v1112
      %1114 = vst.msk [vmem:[%s521 + $0x94] sm:$0xf] %vm512, %v924
      %v1115 = vld [vmem:[%s521 + $0x98] sm:$0x1]
      %v1116 = vsel %vm524, %v925, %v1115
      %1117 = vst [vmem:[%s521 + $0x98] sm:$0x1] %v1116
      %v1118 = vld [vmem:[%s521 + $0x9c] sm:$0xf]
      %v1119 = vsel %vm1026, %v932, %v1118
      %1120 = vst [vmem:[%s521 + $0x9c] sm:$0xf] %v1119
      %1121 = vst.msk [vmem:[%s521 + $0xa0] sm:$0xf] %vm512, %v941
      %v1122 = vld [vmem:[%s521 + $0xa4] sm:$0x1]
      %v1123 = vsel %vm524, %v942, %v1122
      %1124 = vst [vmem:[%s521 + $0xa4] sm:$0x1] %v1123
      %v1125 = vld [vmem:[%s521 + $0xa8] sm:$0xf]
      %v1126 = vsel %vm1026, %v949, %v1125
      %1127 = vst [vmem:[%s521 + $0xa8] sm:$0xf] %v1126
      %1128 = vst.msk [vmem:[%s521 + $0xac] sm:$0xf] %vm512, %v958
      %v1129 = vld [vmem:[%s521 + $0xb0] sm:$0x1]
      %v1130 = vsel %vm524, %v959, %v1129
      %1131 = vst [vmem:[%s521 + $0xb0] sm:$0x1] %v1130
      %v1132 = vld [vmem:[%s521 + $0xb4] sm:$0xf]
      %v1133 = vsel %vm1026, %v966, %v1132
      %1134 = vst [vmem:[%s521 + $0xb4] sm:$0xf] %v1133
      %1135 = vst.msk [vmem:[%s521 + $0xb8] sm:$0xf] %vm512, %v975
      %v1136 = vld [vmem:[%s521 + $0xbc] sm:$0x1]
      %v1137 = vsel %vm524, %v976, %v1136
      %1138 = vst [vmem:[%s521 + $0xbc] sm:$0x1] %v1137
      %v1139 = vld [vmem:[#allocation2] sm:$0xf]
      %v1140 = vld [vmem:[#allocation2 + $0x4] sm:$0xf]
      %v1141 = vld [vmem:[#allocation2 + $0xc] sm:$0xf]
      %v1142 = vld [vmem:[#allocation2 + $0x10] sm:$0xf]
      %v1143 = vld [vmem:[#allocation2 + $0x18] sm:$0xf]
      %v1144 = vld [vmem:[#allocation2 + $0x1c] sm:$0xf]
      %v1145 = vld [vmem:[#allocation2 + $0x24] sm:$0xf]
      %v1146 = vld [vmem:[#allocation2 + $0x28] sm:$0xf]
      %v1147 = vld [vmem:[#allocation2 + $0x30] sm:$0xf]
      %v1148 = vld [vmem:[#allocation2 + $0x34] sm:$0xf]
      %v1149 = vld [vmem:[#allocation2 + $0x3c] sm:$0xf]
      %v1150 = vld [vmem:[#allocation2 + $0x40] sm:$0xf]
      %v1151 = vld [vmem:[#allocation2 + $0x48] sm:$0xf]
      %v1152 = vld [vmem:[#allocation2 + $0x4c] sm:$0xf]
      %v1153 = vld [vmem:[#allocation2 + $0x54] sm:$0xf]
      %v1154 = vld [vmem:[#allocation2 + $0x58] sm:$0xf]
      %v1155 = vld [vmem:[#allocation2 + $0x60] sm:$0xf]
      %v1156 = vld [vmem:[#allocation2 + $0x64] sm:$0xf]
      %v1157 = vld [vmem:[#allocation2 + $0x6c] sm:$0xf]
      %v1158 = vld [vmem:[#allocation2 + $0x70] sm:$0xf]
      %v1159 = vld [vmem:[#allocation2 + $0x78] sm:$0xf]
      %v1160 = vld [vmem:[#allocation2 + $0x7c] sm:$0xf]
      %v1161 = vld [vmem:[#allocation2 + $0x84] sm:$0xf]
      %v1162 = vld [vmem:[#allocation2 + $0x88] sm:$0xf]
      %v1163 = vld [vmem:[#allocation2 + $0x90] sm:$0xf]
      %v1164 = vld [vmem:[#allocation2 + $0x94] sm:$0xf]
      %v1165 = vld [vmem:[#allocation2 + $0x9c] sm:$0xf]
      %v1166 = vld [vmem:[#allocation2 + $0xa0] sm:$0xf]
      %v1167 = vld [vmem:[#allocation2 + $0xa8] sm:$0xf]
      %v1168 = vld [vmem:[#allocation2 + $0xac] sm:$0xf]
      %v1169 = vld [vmem:[#allocation2 + $0xb4] sm:$0xf]
      %v1170 = vld [vmem:[#allocation2 + $0xb8] sm:$0xf]
      %v1171 = vld [vmem:[%s3] sm:$0x3]
      %v1172 = vld [vmem:[#allocation2 + $0x8] sm:$0x1]
      %v1173 = vld [vmem:[#allocation2 + $0x14] sm:$0x1]
      %v1174 = vld [vmem:[#allocation2 + $0x20] sm:$0x1]
      %v1175 = vld [vmem:[#allocation2 + $0x2c] sm:$0x1]
      %v1176 = vld [vmem:[#allocation2 + $0x38] sm:$0x1]
      %v1177 = vld [vmem:[#allocation2 + $0x44] sm:$0x1]
      %v1178 = vld [vmem:[#allocation2 + $0x50] sm:$0x1]
      %v1179 = vld [vmem:[#allocation2 + $0x5c] sm:$0x1]
      %v1180 = vld [vmem:[#allocation2 + $0x68] sm:$0x1]
      %v1181 = vld [vmem:[#allocation2 + $0x74] sm:$0x1]
      %v1182 = vld [vmem:[#allocation2 + $0x80] sm:$0x1]
      %v1183 = vld [vmem:[#allocation2 + $0x8c] sm:$0x1]
      %v1184 = vld [vmem:[#allocation2 + $0x98] sm:$0x1]
      %v1185 = vld [vmem:[#allocation2 + $0xa4] sm:$0x1]
      %v1186 = vld [vmem:[#allocation2 + $0xb0] sm:$0x1]
      %v1187 = vld [vmem:[#allocation2 + $0xbc] sm:$0x1]
      %vm1188 = vsmask.f32 3328
      %vm1189 = vsmask.f32 7440
      %vm1190 = vmor %vm1188, %vm1189
      %v1192 = vshrl.u32 %v1139, 16
      %v1194 = vrot.slane %v1192, 4
      %v1195 = vshll.u32 %v1139, 16
      %v1197 = vrot.slane %v1195, 5
      %v1198 = vor.u32 %v1194, %v1197
      %v1199 = vrot.slane %v1198, 4
      %v1201 = vshll.u32 %v1140, 16
      %v1203 = vrot.slane %v1201, 5
      %v1204 = vsel %vm1190, %v1199, %v1203
      %v1205 = vshrl.u32 %v1140, 16
      %v1207 = vrot.slane %v1205, 4
      %v1208 = vor.u32 %v1207, %v1203
      %v1209 = vrot.slane %v1208, 4
      %v1211 = vshll.u32 %v1172, 16
      %v1213 = vrot.slane %v1211, 5
      %v1214 = vsel %vm1190, %v1209, %v1213
      %v1216 = vshrl.u32 %v1141, 16
      %v1218 = vrot.slane %v1216, 4
      %v1219 = vshll.u32 %v1141, 16
      %v1221 = vrot.slane %v1219, 5
      %v1222 = vor.u32 %v1218, %v1221
      %v1223 = vrot.slane %v1222, 4
      %v1225 = vshll.u32 %v1142, 16
      %v1227 = vrot.slane %v1225, 5
      %v1228 = vsel %vm1190, %v1223, %v1227
      %v1229 = vshrl.u32 %v1142, 16
      %v1231 = vrot.slane %v1229, 4
      %v1232 = vor.u32 %v1231, %v1227
      %v1233 = vrot.slane %v1232, 4
      %v1235 = vshll.u32 %v1173, 16
      %v1237 = vrot.slane %v1235, 5
      %v1238 = vsel %vm1190, %v1233, %v1237
      %v1240 = vshrl.u32 %v1143, 16
      %v1242 = vrot.slane %v1240, 4
      %v1243 = vshll.u32 %v1143, 16
      %v1245 = vrot.slane %v1243, 5
      %v1246 = vor.u32 %v1242, %v1245
      %v1247 = vrot.slane %v1246, 4
      %v1249 = vshll.u32 %v1144, 16
      %v1251 = vrot.slane %v1249, 5
      %v1252 = vsel %vm1190, %v1247, %v1251
      %v1253 = vshrl.u32 %v1144, 16
      %v1255 = vrot.slane %v1253, 4
      %v1256 = vor.u32 %v1255, %v1251
      %v1257 = vrot.slane %v1256, 4
      %v1259 = vshll.u32 %v1174, 16
      %v1261 = vrot.slane %v1259, 5
      %v1262 = vsel %vm1190, %v1257, %v1261
      %v1264 = vshrl.u32 %v1145, 16
      %v1266 = vrot.slane %v1264, 4
      %v1267 = vshll.u32 %v1145, 16
      %v1269 = vrot.slane %v1267, 5
      %v1270 = vor.u32 %v1266, %v1269
      %v1271 = vrot.slane %v1270, 4
      %v1273 = vshll.u32 %v1146, 16
      %v1275 = vrot.slane %v1273, 5
      %v1276 = vsel %vm1190, %v1271, %v1275
      %v1277 = vshrl.u32 %v1146, 16
      %v1279 = vrot.slane %v1277, 4
      %v1280 = vor.u32 %v1279, %v1275
      %v1281 = vrot.slane %v1280, 4
      %v1283 = vshll.u32 %v1175, 16
      %v1285 = vrot.slane %v1283, 5
      %v1286 = vsel %vm1190, %v1281, %v1285
      %v1288 = vshrl.u32 %v1147, 16
      %v1290 = vrot.slane %v1288, 4
      %v1291 = vshll.u32 %v1147, 16
      %v1293 = vrot.slane %v1291, 5
      %v1294 = vor.u32 %v1290, %v1293
      %v1295 = vrot.slane %v1294, 4
      %v1297 = vshll.u32 %v1148, 16
      %v1299 = vrot.slane %v1297, 5
      %v1300 = vsel %vm1190, %v1295, %v1299
      %v1301 = vshrl.u32 %v1148, 16
      %v1303 = vrot.slane %v1301, 4
      %v1304 = vor.u32 %v1303, %v1299
      %v1305 = vrot.slane %v1304, 4
      %v1307 = vshll.u32 %v1176, 16
      %v1309 = vrot.slane %v1307, 5
      %v1310 = vsel %vm1190, %v1305, %v1309
      %v1312 = vshrl.u32 %v1149, 16
      %v1314 = vrot.slane %v1312, 4
      %v1315 = vshll.u32 %v1149, 16
      %v1317 = vrot.slane %v1315, 5
      %v1318 = vor.u32 %v1314, %v1317
      %v1319 = vrot.slane %v1318, 4
      %v1321 = vshll.u32 %v1150, 16
      %v1323 = vrot.slane %v1321, 5
      %v1324 = vsel %vm1190, %v1319, %v1323
      %v1325 = vshrl.u32 %v1150, 16
      %v1327 = vrot.slane %v1325, 4
      %v1328 = vor.u32 %v1327, %v1323
      %v1329 = vrot.slane %v1328, 4
      %v1331 = vshll.u32 %v1177, 16
      %v1333 = vrot.slane %v1331, 5
      %v1334 = vsel %vm1190, %v1329, %v1333
      %v1336 = vshrl.u32 %v1151, 16
      %v1338 = vrot.slane %v1336, 4
      %v1339 = vshll.u32 %v1151, 16
      %v1341 = vrot.slane %v1339, 5
      %v1342 = vor.u32 %v1338, %v1341
      %v1343 = vrot.slane %v1342, 4
      %v1345 = vshll.u32 %v1152, 16
      %v1347 = vrot.slane %v1345, 5
      %v1348 = vsel %vm1190, %v1343, %v1347
      %v1349 = vshrl.u32 %v1152, 16
      %v1351 = vrot.slane %v1349, 4
      %v1352 = vor.u32 %v1351, %v1347
      %v1353 = vrot.slane %v1352, 4
      %v1355 = vshll.u32 %v1178, 16
      %v1357 = vrot.slane %v1355, 5
      %v1358 = vsel %vm1190, %v1353, %v1357
      %v1360 = vshrl.u32 %v1153, 16
      %v1362 = vrot.slane %v1360, 4
      %v1363 = vshll.u32 %v1153, 16
      %v1365 = vrot.slane %v1363, 5
      %v1366 = vor.u32 %v1362, %v1365
      %v1367 = vrot.slane %v1366, 4
      %v1369 = vshll.u32 %v1154, 16
      %v1371 = vrot.slane %v1369, 5
      %v1372 = vsel %vm1190, %v1367, %v1371
      %v1373 = vshrl.u32 %v1154, 16
      %v1375 = vrot.slane %v1373, 4
      %v1376 = vor.u32 %v1375, %v1371
      %v1377 = vrot.slane %v1376, 4
      %v1379 = vshll.u32 %v1179, 16
      %v1381 = vrot.slane %v1379, 5
      %v1382 = vsel %vm1190, %v1377, %v1381
      %v1384 = vshrl.u32 %v1155, 16
      %v1386 = vrot.slane %v1384, 4
      %v1387 = vshll.u32 %v1155, 16
      %v1389 = vrot.slane %v1387, 5
      %v1390 = vor.u32 %v1386, %v1389
      %v1391 = vrot.slane %v1390, 4
      %v1393 = vshll.u32 %v1156, 16
      %v1395 = vrot.slane %v1393, 5
      %v1396 = vsel %vm1190, %v1391, %v1395
      %v1397 = vshrl.u32 %v1156, 16
      %v1399 = vrot.slane %v1397, 4
      %v1400 = vor.u32 %v1399, %v1395
      %v1401 = vrot.slane %v1400, 4
      %v1403 = vshll.u32 %v1180, 16
      %v1405 = vrot.slane %v1403, 5
      %v1406 = vsel %vm1190, %v1401, %v1405
      %v1408 = vshrl.u32 %v1157, 16
      %v1410 = vrot.slane %v1408, 4
      %v1411 = vshll.u32 %v1157, 16
      %v1413 = vrot.slane %v1411, 5
      %v1414 = vor.u32 %v1410, %v1413
      %v1415 = vrot.slane %v1414, 4
      %v1417 = vshll.u32 %v1158, 16
      %v1419 = vrot.slane %v1417, 5
      %v1420 = vsel %vm1190, %v1415, %v1419
      %v1421 = vshrl.u32 %v1158, 16
      %v1423 = vrot.slane %v1421, 4
      %v1424 = vor.u32 %v1423, %v1419
      %v1425 = vrot.slane %v1424, 4
      %v1427 = vshll.u32 %v1181, 16
      %v1429 = vrot.slane %v1427, 5
      %v1430 = vsel %vm1190, %v1425, %v1429
      %v1432 = vshrl.u32 %v1159, 16
      %v1434 = vrot.slane %v1432, 4
      %v1435 = vshll.u32 %v1159, 16
      %v1437 = vrot.slane %v1435, 5
      %v1438 = vor.u32 %v1434, %v1437
      %v1439 = vrot.slane %v1438, 4
      %v1441 = vshll.u32 %v1160, 16
      %v1443 = vrot.slane %v1441, 5
      %v1444 = vsel %vm1190, %v1439, %v1443
      %v1445 = vshrl.u32 %v1160, 16
      %v1447 = vrot.slane %v1445, 4
      %v1448 = vor.u32 %v1447, %v1443
      %v1449 = vrot.slane %v1448, 4
      %v1451 = vshll.u32 %v1182, 16
      %v1453 = vrot.slane %v1451, 5
      %v1454 = vsel %vm1190, %v1449, %v1453
      %v1456 = vshrl.u32 %v1161, 16
      %v1458 = vrot.slane %v1456, 4
      %v1459 = vshll.u32 %v1161, 16
      %v1461 = vrot.slane %v1459, 5
      %v1462 = vor.u32 %v1458, %v1461
      %v1463 = vrot.slane %v1462, 4
      %v1465 = vshll.u32 %v1162, 16
      %v1467 = vrot.slane %v1465, 5
      %v1468 = vsel %vm1190, %v1463, %v1467
      %v1469 = vshrl.u32 %v1162, 16
      %v1471 = vrot.slane %v1469, 4
      %v1472 = vor.u32 %v1471, %v1467
      %v1473 = vrot.slane %v1472, 4
      %v1475 = vshll.u32 %v1183, 16
      %v1477 = vrot.slane %v1475, 5
      %v1478 = vsel %vm1190, %v1473, %v1477
      %v1480 = vshrl.u32 %v1163, 16
      %v1482 = vrot.slane %v1480, 4
      %v1483 = vshll.u32 %v1163, 16
      %v1485 = vrot.slane %v1483, 5
      %v1486 = vor.u32 %v1482, %v1485
      %v1487 = vrot.slane %v1486, 4
      %v1489 = vshll.u32 %v1164, 16
      %v1491 = vrot.slane %v1489, 5
      %v1492 = vsel %vm1190, %v1487, %v1491
      %v1493 = vshrl.u32 %v1164, 16
      %v1495 = vrot.slane %v1493, 4
      %v1496 = vor.u32 %v1495, %v1491
      %v1497 = vrot.slane %v1496, 4
      %v1499 = vshll.u32 %v1184, 16
      %v1501 = vrot.slane %v1499, 5
      %v1502 = vsel %vm1190, %v1497, %v1501
      %v1504 = vshrl.u32 %v1165, 16
      %v1506 = vrot.slane %v1504, 4
      %v1507 = vshll.u32 %v1165, 16
      %v1509 = vrot.slane %v1507, 5
      %v1510 = vor.u32 %v1506, %v1509
      %v1511 = vrot.slane %v1510, 4
      %v1513 = vshll.u32 %v1166, 16
      %v1515 = vrot.slane %v1513, 5
      %v1516 = vsel %vm1190, %v1511, %v1515
      %v1517 = vshrl.u32 %v1166, 16
      %v1519 = vrot.slane %v1517, 4
      %v1520 = vor.u32 %v1519, %v1515
      %v1521 = vrot.slane %v1520, 4
      %v1523 = vshll.u32 %v1185, 16
      %v1525 = vrot.slane %v1523, 5
      %v1526 = vsel %vm1190, %v1521, %v1525
      %v1528 = vshrl.u32 %v1167, 16
      %v1530 = vrot.slane %v1528, 4
      %v1531 = vshll.u32 %v1167, 16
      %v1533 = vrot.slane %v1531, 5
      %v1534 = vor.u32 %v1530, %v1533
      %v1535 = vrot.slane %v1534, 4
      %v1537 = vshll.u32 %v1168, 16
      %v1539 = vrot.slane %v1537, 5
      %v1540 = vsel %vm1190, %v1535, %v1539
      %v1541 = vshrl.u32 %v1168, 16
      %v1543 = vrot.slane %v1541, 4
      %v1544 = vor.u32 %v1543, %v1539
      %v1545 = vrot.slane %v1544, 4
      %v1547 = vshll.u32 %v1186, 16
      %v1549 = vrot.slane %v1547, 5
      %v1550 = vsel %vm1190, %v1545, %v1549
      %v1552 = vshrl.u32 %v1169, 16
      %v1554 = vrot.slane %v1552, 4
      %v1555 = vshll.u32 %v1169, 16
      %v1557 = vrot.slane %v1555, 5
      %v1558 = vor.u32 %v1554, %v1557
      %v1559 = vrot.slane %v1558, 4
      %v1561 = vshll.u32 %v1170, 16
      %v1563 = vrot.slane %v1561, 5
      %v1564 = vsel %vm1190, %v1559, %v1563
      %v1565 = vshrl.u32 %v1170, 16
      %v1567 = vrot.slane %v1565, 4
      %v1568 = vor.u32 %v1567, %v1563
      %v1569 = vrot.slane %v1568, 4
      %v1571 = vshll.u32 %v1187, 16
      %v1573 = vrot.slane %v1571, 5
      %v1574 = vsel %vm1190, %v1569, %v1573
      %s1575 = scalar_lea.vmem %s3, 2
      %v1576 = vld [vmem:[%s1575] sm:$0x3]
      %v1577 = vunpack.c.l.b16 %v1204
      %v1578 = vunpack.c.l.b16 %v1214
      %v1579 = vunpack.c.l.b16 %v1228
      %v1580 = vunpack.c.l.b16 %v1238
      %v1581 = vunpack.c.l.b16 %v1252
      %v1582 = vunpack.c.l.b16 %v1262
      %v1583 = vunpack.c.l.b16 %v1276
      %v1584 = vunpack.c.l.b16 %v1286
      %v1585 = vunpack.c.l.b16 %v1300
      %v1586 = vunpack.c.l.b16 %v1310
      %v1587 = vunpack.c.l.b16 %v1324
      %v1588 = vunpack.c.l.b16 %v1334
      %v1589 = vunpack.c.l.b16 %v1348
      %v1590 = vunpack.c.l.b16 %v1358
      %v1591 = vunpack.c.l.b16 %v1372
      %v1592 = vunpack.c.l.b16 %v1382
      %v1593 = vunpack.c.l.b16 %v1396
      %v1594 = vunpack.c.l.b16 %v1406
      %v1595 = vunpack.c.l.b16 %v1420
      %v1596 = vunpack.c.l.b16 %v1430
      %v1597 = vunpack.c.l.b16 %v1444
      %v1598 = vunpack.c.l.b16 %v1454
      %v1599 = vunpack.c.l.b16 %v1468
      %v1600 = vunpack.c.l.b16 %v1478
      %v1601 = vunpack.c.l.b16 %v1492
      %v1602 = vunpack.c.l.b16 %v1502
      %v1603 = vunpack.c.l.b16 %v1516
      %v1604 = vunpack.c.l.b16 %v1526
      %v1605 = vunpack.c.l.b16 %v1540
      %v1606 = vunpack.c.l.b16 %v1550
      %v1607 = vunpack.c.l.b16 %v1564
      %v1608 = vunpack.c.l.b16 %v1574
      %v1609 = vpack.c.b16 %v1578, %v1577
      %v1610 = vpack.c.b16 %v1580, %v1579
      %v1611 = vpack.c.b16 %v1582, %v1581
      %v1612 = vpack.c.b16 %v1584, %v1583
      %v1613 = vpack.c.b16 %v1586, %v1585
      %v1614 = vpack.c.b16 %v1588, %v1587
      %v1615 = vpack.c.b16 %v1590, %v1589
      %v1616 = vpack.c.b16 %v1592, %v1591
      %v1617 = vpack.c.b16 %v1594, %v1593
      %v1618 = vpack.c.b16 %v1596, %v1595
      %v1619 = vpack.c.b16 %v1598, %v1597
      %v1620 = vpack.c.b16 %v1600, %v1599
      %v1621 = vpack.c.b16 %v1602, %v1601
      %v1622 = vpack.c.b16 %v1604, %v1603
      %v1623 = vpack.c.b16 %v1606, %v1605
      %v1624 = vpack.c.b16 %v1608, %v1607
      %v1626 = vsel %vm462, %v1609, 0
      %v1629 = vsel %vm462, %v1610, 0
      %v1632 = vsel %vm462, %v1611, 0
      %v1635 = vsel %vm462, %v1612, 0
      %v1638 = vsel %vm462, %v1613, 0
      %v1641 = vsel %vm462, %v1614, 0
      %v1644 = vsel %vm462, %v1615, 0
      %v1647 = vsel %vm462, %v1616, 0
      %v1650 = vsel %vm462, %v1617, 0
      %v1653 = vsel %vm462, %v1618, 0
      %v1656 = vsel %vm462, %v1619, 0
      %v1659 = vsel %vm462, %v1620, 0
      %v1662 = vsel %vm462, %v1621, 0
      %v1665 = vsel %vm462, %v1622, 0
      %v1668 = vsel %vm462, %v1623, 0
      %v1671 = vsel %vm462, %v1624, 0
      %vm1673 = vcmask 1041408
      %v1675 = vsel %vm1673, %v1576, 0
      %1677 = vmatprep.subr.bf16.mxu0 0
      %1678 = vmatpush1.bf16.msra.mxu0 0
      %1679 = vmatprep.subr.bf16.mxu0 0
      %1680 = vmatpush1.bf16.msra.mxu0 0
      %1681 = vmatprep.subr.bf16.mxu0 0
      %1682 = vmatpush1.bf16.msra.mxu0 0
      %1683 = vmatprep.subr.bf16.mxu0 0
      %1684 = vmatpush1.bf16.msra.mxu0 0
      %1685 = vmatprep.subr.bf16.mxu0 0
      %1686 = vmatpush1.bf16.msra.mxu0 0
      %1687 = vmatprep.subr.bf16.mxu0 0
      %1688 = vmatpush1.bf16.msra.mxu0 0
      %1689 = vmatprep.subr.bf16.mxu0 0
      %1690 = vmatpush1.bf16.msra.mxu0 0
      %1691 = vmatprep.subr.bf16.mxu0 0
      %1692 = vmatpush1.bf16.msra.mxu0 %v1675
      %1693 = vmatprep.subr.bf16.mxu0 0
      %1694 = vmatpush2.bf16.msra.mxu0 0
      %1695 = vmatprep.subr.bf16.mxu0 0
      %1696 = vmatpush2.bf16.msra.mxu0 0
      %1697 = vmatprep.subr.bf16.mxu0 0
      %1698 = vmatpush2.bf16.msra.mxu0 0
      %1699 = vmatprep.subr.bf16.mxu0 0
      %1700 = vmatpush2.bf16.msra.mxu0 0
      %1701 = vmatprep.subr.bf16.mxu0 0
      %1702 = vmatpush2.bf16.msra.mxu0 0
      %1703 = vmatprep.subr.bf16.mxu0 0
      %1704 = vmatpush2.bf16.msra.mxu0 0
      %1705 = vmatprep.subr.bf16.mxu0 0
      %1706 = vmatpush2.bf16.msra.mxu0 0
      %1707 = vmatprep.subr.bf16.mxu0 0
      %1708 = vmatpush2.bf16.msra.mxu0 0
      %1709 = vmatprep.mubr.bf16.mxu0 0
      %1710 = vmatmul.mubr.bf16.gmra.mxu0 %v1626
      %v1711 = vpop.f32.mrf.mxu0
      %v1712 = vadd.f32 0.0, %v1711
      %v1713 = vpop.f32.mrf.mxu0
      %v1714 = vpop.f32.mrf.mxu0
      %v1715 = vadd.f32 0.0, %v1714
      %v1716 = vpop.f32.mrf.mxu0
      %1717 = vmatprep.mubr.bf16.mxu0 0
      %1718 = vmatmul.mubr.bf16.gmra.mxu0 %v1629
      %v1719 = vpop.f32.mrf.mxu0
      %v1720 = vadd.f32 0.0, %v1719
      %v1721 = vpop.f32.mrf.mxu0
      %v1722 = vpop.f32.mrf.mxu0
      %v1723 = vadd.f32 0.0, %v1722
      %v1724 = vpop.f32.mrf.mxu0
      %1725 = vmatprep.mubr.bf16.mxu0 0
      %1726 = vmatmul.mubr.bf16.gmra.mxu0 %v1632
      %v1727 = vpop.f32.mrf.mxu0
      %v1728 = vadd.f32 0.0, %v1727
      %v1729 = vpop.f32.mrf.mxu0
      %v1730 = vpop.f32.mrf.mxu0
      %v1731 = vadd.f32 0.0, %v1730
      %v1732 = vpop.f32.mrf.mxu0
      %1733 = vmatprep.mubr.bf16.mxu0 0
      %1734 = vmatmul.mubr.bf16.gmra.mxu0 %v1635
      %v1735 = vpop.f32.mrf.mxu0
      %v1736 = vadd.f32 0.0, %v1735
      %v1737 = vpop.f32.mrf.mxu0
      %v1738 = vpop.f32.mrf.mxu0
      %v1739 = vadd.f32 0.0, %v1738
      %v1740 = vpop.f32.mrf.mxu0
      %1741 = vmatprep.mubr.bf16.mxu0 0
      %1742 = vmatmul.mubr.bf16.gmra.mxu0 %v1638
      %v1743 = vpop.f32.mrf.mxu0
      %v1744 = vadd.f32 0.0, %v1743
      %v1745 = vpop.f32.mrf.mxu0
      %v1746 = vpop.f32.mrf.mxu0
      %v1747 = vadd.f32 0.0, %v1746
      %v1748 = vpop.f32.mrf.mxu0
      %1749 = vmatprep.mubr.bf16.mxu0 0
      %1750 = vmatmul.mubr.bf16.gmra.mxu0 %v1641
      %v1751 = vpop.f32.mrf.mxu0
      %v1752 = vadd.f32 0.0, %v1751
      %v1753 = vpop.f32.mrf.mxu0
      %v1754 = vpop.f32.mrf.mxu0
      %v1755 = vadd.f32 0.0, %v1754
      %v1756 = vpop.f32.mrf.mxu0
      %1757 = vmatprep.mubr.bf16.mxu0 0
      %1758 = vmatmul.mubr.bf16.gmra.mxu0 %v1644
      %v1759 = vpop.f32.mrf.mxu0
      %v1760 = vadd.f32 0.0, %v1759
      %v1761 = vpop.f32.mrf.mxu0
      %v1762 = vpop.f32.mrf.mxu0
      %v1763 = vadd.f32 0.0, %v1762
      %v1764 = vpop.f32.mrf.mxu0
      %1765 = vmatprep.mubr.bf16.mxu0 0
      %1766 = vmatmul.mubr.bf16.gmra.mxu0 %v1647
      %v1767 = vpop.f32.mrf.mxu0
      %v1768 = vadd.f32 0.0, %v1767
      %v1769 = vpop.f32.mrf.mxu0
      %v1770 = vpop.f32.mrf.mxu0
      %v1771 = vadd.f32 0.0, %v1770
      %v1772 = vpop.f32.mrf.mxu0
      %1773 = vmatprep.mubr.bf16.mxu0 0
      %1774 = vmatmul.mubr.bf16.gmra.mxu0 %v1650
      %v1775 = vpop.f32.mrf.mxu0
      %v1776 = vadd.f32 0.0, %v1775
      %v1777 = vpop.f32.mrf.mxu0
      %v1778 = vpop.f32.mrf.mxu0
      %v1779 = vadd.f32 0.0, %v1778
      %v1780 = vpop.f32.mrf.mxu0
      %1781 = vmatprep.mubr.bf16.mxu0 0
      %1782 = vmatmul.mubr.bf16.gmra.mxu0 %v1653
      %v1783 = vpop.f32.mrf.mxu0
      %v1784 = vadd.f32 0.0, %v1783
      %v1785 = vpop.f32.mrf.mxu0
      %v1786 = vpop.f32.mrf.mxu0
      %v1787 = vadd.f32 0.0, %v1786
      %v1788 = vpop.f32.mrf.mxu0
      %1789 = vmatprep.mubr.bf16.mxu0 0
      %1790 = vmatmul.mubr.bf16.gmra.mxu0 %v1656
      %v1791 = vpop.f32.mrf.mxu0
      %v1792 = vadd.f32 0.0, %v1791
      %v1793 = vpop.f32.mrf.mxu0
      %v1794 = vpop.f32.mrf.mxu0
      %v1795 = vadd.f32 0.0, %v1794
      %v1796 = vpop.f32.mrf.mxu0
      %1797 = vmatprep.mubr.bf16.mxu0 0
      %1798 = vmatmul.mubr.bf16.gmra.mxu0 %v1659
      %v1799 = vpop.f32.mrf.mxu0
      %v1800 = vadd.f32 0.0, %v1799
      %v1801 = vpop.f32.mrf.mxu0
      %v1802 = vpop.f32.mrf.mxu0
      %v1803 = vadd.f32 0.0, %v1802
      %v1804 = vpop.f32.mrf.mxu0
      %1805 = vmatprep.mubr.bf16.mxu0 0
      %1806 = vmatmul.mubr.bf16.gmra.mxu0 %v1662
      %v1807 = vpop.f32.mrf.mxu0
      %v1808 = vadd.f32 0.0, %v1807
      %v1809 = vpop.f32.mrf.mxu0
      %v1810 = vpop.f32.mrf.mxu0
      %v1811 = vadd.f32 0.0, %v1810
      %v1812 = vpop.f32.mrf.mxu0
      %1813 = vmatprep.mubr.bf16.mxu0 0
      %1814 = vmatmul.mubr.bf16.gmra.mxu0 %v1665
      %v1815 = vpop.f32.mrf.mxu0
      %v1816 = vadd.f32 0.0, %v1815
      %v1817 = vpop.f32.mrf.mxu0
      %v1818 = vpop.f32.mrf.mxu0
      %v1819 = vadd.f32 0.0, %v1818
      %v1820 = vpop.f32.mrf.mxu0
      %1821 = vmatprep.mubr.bf16.mxu0 0
      %1822 = vmatmul.mubr.bf16.gmra.mxu0 %v1668
      %v1823 = vpop.f32.mrf.mxu0
      %v1824 = vadd.f32 0.0, %v1823
      %v1825 = vpop.f32.mrf.mxu0
      %v1826 = vpop.f32.mrf.mxu0
      %v1827 = vadd.f32 0.0, %v1826
      %v1828 = vpop.f32.mrf.mxu0
      %1829 = vmatprep.mubr.bf16.mxu0 0
      %1830 = vmatmul.mubr.bf16.gmra.mxu0 %v1671
      %v1831 = vpop.f32.mrf.mxu0
      %v1832 = vadd.f32 0.0, %v1831
      %v1833 = vpop.f32.mrf.mxu0
      %v1834 = vpop.f32.mrf.mxu0
      %v1835 = vadd.f32 0.0, %v1834
      %v1836 = vpop.f32.mrf.mxu0
      %1837 = vdwg.mxu0
      %v1870 = vunpack.c.l.b16 %v1139
      %v1871 = vunpack.c.l.b16 %v1140
      %v1872 = vunpack.c.l.b16 %v1141
      %v1873 = vunpack.c.l.b16 %v1142
      %v1874 = vunpack.c.l.b16 %v1143
      %v1875 = vunpack.c.l.b16 %v1144
      %v1876 = vunpack.c.l.b16 %v1145
      %v1877 = vunpack.c.l.b16 %v1146
      %v1878 = vunpack.c.l.b16 %v1147
      %v1879 = vunpack.c.l.b16 %v1148
      %v1880 = vunpack.c.l.b16 %v1149
      %v1881 = vunpack.c.l.b16 %v1150
      %v1882 = vunpack.c.l.b16 %v1151
      %v1883 = vunpack.c.l.b16 %v1152
      %v1884 = vunpack.c.l.b16 %v1153
      %v1885 = vunpack.c.l.b16 %v1154
      %v1886 = vunpack.c.l.b16 %v1155
      %v1887 = vunpack.c.l.b16 %v1156
      %v1888 = vunpack.c.l.b16 %v1157
      %v1889 = vunpack.c.l.b16 %v1158
      %v1890 = vunpack.c.l.b16 %v1159
      %v1891 = vunpack.c.l.b16 %v1160
      %v1892 = vunpack.c.l.b16 %v1161
      %v1893 = vunpack.c.l.b16 %v1162
      %v1894 = vunpack.c.l.b16 %v1163
      %v1895 = vunpack.c.l.b16 %v1164
      %v1896 = vunpack.c.l.b16 %v1165
      %v1897 = vunpack.c.l.b16 %v1166
      %v1898 = vunpack.c.l.b16 %v1167
      %v1899 = vunpack.c.l.b16 %v1168
      %v1900 = vunpack.c.l.b16 %v1169
      %v1901 = vunpack.c.l.b16 %v1170
      %v1902 = vpack.c.b16 %v1871, %v1870
      %v1903 = vpack.c.b16 %v1873, %v1872
      %v1904 = vpack.c.b16 %v1875, %v1874
      %v1905 = vpack.c.b16 %v1877, %v1876
      %v1906 = vpack.c.b16 %v1879, %v1878
      %v1907 = vpack.c.b16 %v1881, %v1880
      %v1908 = vpack.c.b16 %v1883, %v1882
      %v1909 = vpack.c.b16 %v1885, %v1884
      %v1910 = vpack.c.b16 %v1887, %v1886
      %v1911 = vpack.c.b16 %v1889, %v1888
      %v1912 = vpack.c.b16 %v1891, %v1890
      %v1913 = vpack.c.b16 %v1893, %v1892
      %v1914 = vpack.c.b16 %v1895, %v1894
      %v1915 = vpack.c.b16 %v1897, %v1896
      %v1916 = vpack.c.b16 %v1899, %v1898
      %v1917 = vpack.c.b16 %v1901, %v1900
      %v1919 = vsel %vm462, %v1902, 0
      %v1922 = vsel %vm462, %v1903, 0
      %v1925 = vsel %vm462, %v1904, 0
      %v1928 = vsel %vm462, %v1905, 0
      %v1931 = vsel %vm462, %v1906, 0
      %v1934 = vsel %vm462, %v1907, 0
      %v1937 = vsel %vm462, %v1908, 0
      %v1940 = vsel %vm462, %v1909, 0
      %v1943 = vsel %vm462, %v1910, 0
      %v1946 = vsel %vm462, %v1911, 0
      %v1949 = vsel %vm462, %v1912, 0
      %v1952 = vsel %vm462, %v1913, 0
      %v1955 = vsel %vm462, %v1914, 0
      %v1958 = vsel %vm462, %v1915, 0
      %v1961 = vsel %vm462, %v1916, 0
      %v1964 = vsel %vm462, %v1917, 0
      %v1967 = vsel %vm1673, %v1171, 0
      %1969 = vmatprep.subr.bf16.mxu0 0
      %1970 = vmatpush1.bf16.msra.mxu0 0
      %1971 = vmatprep.subr.bf16.mxu0 0
      %1972 = vmatpush1.bf16.msra.mxu0 0
      %1973 = vmatprep.subr.bf16.mxu0 0
      %1974 = vmatpush1.bf16.msra.mxu0 0
      %1975 = vmatprep.subr.bf16.mxu0 0
      %1976 = vmatpush1.bf16.msra.mxu0 0
      %1977 = vmatprep.subr.bf16.mxu0 0
      %1978 = vmatpush1.bf16.msra.mxu0 0
      %1979 = vmatprep.subr.bf16.mxu0 0
      %1980 = vmatpush1.bf16.msra.mxu0 0
      %1981 = vmatprep.subr.bf16.mxu0 0
      %1982 = vmatpush1.bf16.msra.mxu0 0
      %1983 = vmatprep.subr.bf16.mxu0 0
      %1984 = vmatpush1.bf16.msra.mxu0 %v1967
      %1985 = vmatprep.subr.bf16.mxu0 0
      %1986 = vmatpush2.bf16.msra.mxu0 0
      %1987 = vmatprep.subr.bf16.mxu0 0
      %1988 = vmatpush2.bf16.msra.mxu0 0
      %1989 = vmatprep.subr.bf16.mxu0 0
      %1990 = vmatpush2.bf16.msra.mxu0 0
      %1991 = vmatprep.subr.bf16.mxu0 0
      %1992 = vmatpush2.bf16.msra.mxu0 0
      %1993 = vmatprep.subr.bf16.mxu0 0
      %1994 = vmatpush2.bf16.msra.mxu0 0
      %1995 = vmatprep.subr.bf16.mxu0 0
      %1996 = vmatpush2.bf16.msra.mxu0 0
      %1997 = vmatprep.subr.bf16.mxu0 0
      %1998 = vmatpush2.bf16.msra.mxu0 0
      %1999 = vmatprep.subr.bf16.mxu0 0
      %2000 = vmatpush2.bf16.msra.mxu0 0
      %2001 = vmatprep.mubr.bf16.mxu0 0
      %2002 = vmatmul.mubr.bf16.gmra.mxu0 %v1919
      %v2003 = vpop.f32.mrf.mxu0
      %v2004 = vadd.f32 %v1712, %v2003
      %v2005 = vpop.f32.mrf.mxu0
      %v2006 = vpop.f32.mrf.mxu0
      %v2007 = vadd.f32 %v1715, %v2006
      %v2008 = vpop.f32.mrf.mxu0
      %2009 = vmatprep.mubr.bf16.mxu0 0
      %2010 = vmatmul.mubr.bf16.gmra.mxu0 %v1922
      %v2011 = vpop.f32.mrf.mxu0
      %v2012 = vadd.f32 %v1720, %v2011
      %v2013 = vpop.f32.mrf.mxu0
      %v2014 = vpop.f32.mrf.mxu0
      %v2015 = vadd.f32 %v1723, %v2014
      %v2016 = vpop.f32.mrf.mxu0
      %2017 = vmatprep.mubr.bf16.mxu0 0
      %2018 = vmatmul.mubr.bf16.gmra.mxu0 %v1925
      %v2019 = vpop.f32.mrf.mxu0
      %v2020 = vadd.f32 %v1728, %v2019
      %v2021 = vpop.f32.mrf.mxu0
      %v2022 = vpop.f32.mrf.mxu0
      %v2023 = vadd.f32 %v1731, %v2022
      %v2024 = vpop.f32.mrf.mxu0
      %2025 = vmatprep.mubr.bf16.mxu0 0
      %2026 = vmatmul.mubr.bf16.gmra.mxu0 %v1928
      %v2027 = vpop.f32.mrf.mxu0
      %v2028 = vadd.f32 %v1736, %v2027
      %v2029 = vpop.f32.mrf.mxu0
      %v2030 = vpop.f32.mrf.mxu0
      %v2031 = vadd.f32 %v1739, %v2030
      %v2032 = vpop.f32.mrf.mxu0
      %2033 = vmatprep.mubr.bf16.mxu0 0
      %2034 = vmatmul.mubr.bf16.gmra.mxu0 %v1931
      %v2035 = vpop.f32.mrf.mxu0
      %v2036 = vadd.f32 %v1744, %v2035
      %v2037 = vpop.f32.mrf.mxu0
      %v2038 = vpop.f32.mrf.mxu0
      %v2039 = vadd.f32 %v1747, %v2038
      %v2040 = vpop.f32.mrf.mxu0
      %2041 = vmatprep.mubr.bf16.mxu0 0
      %2042 = vmatmul.mubr.bf16.gmra.mxu0 %v1934
      %v2043 = vpop.f32.mrf.mxu0
      %v2044 = vadd.f32 %v1752, %v2043
      %v2045 = vpop.f32.mrf.mxu0
      %v2046 = vpop.f32.mrf.mxu0
      %v2047 = vadd.f32 %v1755, %v2046
      %v2048 = vpop.f32.mrf.mxu0
      %2049 = vmatprep.mubr.bf16.mxu0 0
      %2050 = vmatmul.mubr.bf16.gmra.mxu0 %v1937
      %v2051 = vpop.f32.mrf.mxu0
      %v2052 = vadd.f32 %v1760, %v2051
      %v2053 = vpop.f32.mrf.mxu0
      %v2054 = vpop.f32.mrf.mxu0
      %v2055 = vadd.f32 %v1763, %v2054
      %v2056 = vpop.f32.mrf.mxu0
      %2057 = vmatprep.mubr.bf16.mxu0 0
      %2058 = vmatmul.mubr.bf16.gmra.mxu0 %v1940
      %v2059 = vpop.f32.mrf.mxu0
      %v2060 = vadd.f32 %v1768, %v2059
      %v2061 = vpop.f32.mrf.mxu0
      %v2062 = vpop.f32.mrf.mxu0
      %v2063 = vadd.f32 %v1771, %v2062
      %v2064 = vpop.f32.mrf.mxu0
      %2065 = vmatprep.mubr.bf16.mxu0 0
      %2066 = vmatmul.mubr.bf16.gmra.mxu0 %v1943
      %v2067 = vpop.f32.mrf.mxu0
      %v2068 = vadd.f32 %v1776, %v2067
      %v2069 = vpop.f32.mrf.mxu0
      %v2070 = vpop.f32.mrf.mxu0
      %v2071 = vadd.f32 %v1779, %v2070
      %v2072 = vpop.f32.mrf.mxu0
      %2073 = vmatprep.mubr.bf16.mxu0 0
      %2074 = vmatmul.mubr.bf16.gmra.mxu0 %v1946
      %v2075 = vpop.f32.mrf.mxu0
      %v2076 = vadd.f32 %v1784, %v2075
      %v2077 = vpop.f32.mrf.mxu0
      %v2078 = vpop.f32.mrf.mxu0
      %v2079 = vadd.f32 %v1787, %v2078
      %v2080 = vpop.f32.mrf.mxu0
      %2081 = vmatprep.mubr.bf16.mxu0 0
      %2082 = vmatmul.mubr.bf16.gmra.mxu0 %v1949
      %v2083 = vpop.f32.mrf.mxu0
      %v2084 = vadd.f32 %v1792, %v2083
      %v2085 = vpop.f32.mrf.mxu0
      %v2086 = vpop.f32.mrf.mxu0
      %v2087 = vadd.f32 %v1795, %v2086
      %v2088 = vpop.f32.mrf.mxu0
      %2089 = vmatprep.mubr.bf16.mxu0 0
      %2090 = vmatmul.mubr.bf16.gmra.mxu0 %v1952
      %v2091 = vpop.f32.mrf.mxu0
      %v2092 = vadd.f32 %v1800, %v2091
      %v2093 = vpop.f32.mrf.mxu0
      %v2094 = vpop.f32.mrf.mxu0
      %v2095 = vadd.f32 %v1803, %v2094
      %v2096 = vpop.f32.mrf.mxu0
      %2097 = vmatprep.mubr.bf16.mxu0 0
      %2098 = vmatmul.mubr.bf16.gmra.mxu0 %v1955
      %v2099 = vpop.f32.mrf.mxu0
      %v2100 = vadd.f32 %v1808, %v2099
      %v2101 = vpop.f32.mrf.mxu0
      %v2102 = vpop.f32.mrf.mxu0
      %v2103 = vadd.f32 %v1811, %v2102
      %v2104 = vpop.f32.mrf.mxu0
      %2105 = vmatprep.mubr.bf16.mxu0 0
      %2106 = vmatmul.mubr.bf16.gmra.mxu0 %v1958
      %v2107 = vpop.f32.mrf.mxu0
      %v2108 = vadd.f32 %v1816, %v2107
      %v2109 = vpop.f32.mrf.mxu0
      %v2110 = vpop.f32.mrf.mxu0
      %v2111 = vadd.f32 %v1819, %v2110
      %v2112 = vpop.f32.mrf.mxu0
      %2113 = vmatprep.mubr.bf16.mxu0 0
      %2114 = vmatmul.mubr.bf16.gmra.mxu0 %v1961
      %v2115 = vpop.f32.mrf.mxu0
      %v2116 = vadd.f32 %v1824, %v2115
      %v2117 = vpop.f32.mrf.mxu0
      %v2118 = vpop.f32.mrf.mxu0
      %v2119 = vadd.f32 %v1827, %v2118
      %v2120 = vpop.f32.mrf.mxu0
      %2121 = vmatprep.mubr.bf16.mxu0 0
      %2122 = vmatmul.mubr.bf16.gmra.mxu0 %v1964
      %v2123 = vpop.f32.mrf.mxu0
      %v2124 = vadd.f32 %v1832, %v2123
      %v2125 = vpop.f32.mrf.mxu0
      %v2126 = vpop.f32.mrf.mxu0
      %v2127 = vadd.f32 %v1835, %v2126
      %v2128 = vpop.f32.mrf.mxu0
      %2129 = vdwg.mxu0
      %v2130 = vld [vmem:[#allocation2] sm:$0xe]
      %v2131 = vld [vmem:[#allocation2 + $0xc] sm:$0xe]
      %v2132 = vld [vmem:[#allocation2 + $0x18] sm:$0xe]
      %v2133 = vld [vmem:[#allocation2 + $0x24] sm:$0xe]
      %v2134 = vld [vmem:[#allocation2 + $0x30] sm:$0xe]
      %v2135 = vld [vmem:[#allocation2 + $0x3c] sm:$0xe]
      %v2136 = vld [vmem:[#allocation2 + $0x48] sm:$0xe]
      %v2137 = vld [vmem:[#allocation2 + $0x54] sm:$0xe]
      %v2138 = vld [vmem:[#allocation2 + $0x60] sm:$0xe]
      %v2139 = vld [vmem:[#allocation2 + $0x6c] sm:$0xe]
      %v2140 = vld [vmem:[#allocation2 + $0x78] sm:$0xe]
      %v2141 = vld [vmem:[#allocation2 + $0x84] sm:$0xe]
      %v2142 = vld [vmem:[#allocation2 + $0x90] sm:$0xe]
      %v2143 = vld [vmem:[#allocation2 + $0x9c] sm:$0xe]
      %v2144 = vld [vmem:[#allocation2 + $0xa8] sm:$0xe]
      %v2145 = vld [vmem:[#allocation2 + $0xb4] sm:$0xe]
      %vm2178 = vcmask 1042432
      %vm2179 = vcmask 1046532
      %vm2180 = vmor %vm2178, %vm2179
      %v2181 = vrot.slane %v2130, 5
      %v2182 = vrot.slane %v2181, 4
      %v2183 = vrot.slane %v1140, 5
      %v2184 = vsel %vm2180, %v2182, %v2183
      %v2185 = vrot.slane %v2183, 4
      %v2186 = vrot.slane %v1172, 5
      %v2187 = vsel %vm2180, %v2185, %v2186
      %v2188 = vrot.slane %v2131, 5
      %v2189 = vrot.slane %v2188, 4
      %v2190 = vrot.slane %v1142, 5
      %v2191 = vsel %vm2180, %v2189, %v2190
      %v2192 = vrot.slane %v2190, 4
      %v2193 = vrot.slane %v1173, 5
      %v2194 = vsel %vm2180, %v2192, %v2193
      %v2195 = vrot.slane %v2132, 5
      %v2196 = vrot.slane %v2195, 4
      %v2197 = vrot.slane %v1144, 5
      %v2198 = vsel %vm2180, %v2196, %v2197
      %v2199 = vrot.slane %v2197, 4
      %v2200 = vrot.slane %v1174, 5
      %v2201 = vsel %vm2180, %v2199, %v2200
      %v2202 = vrot.slane %v2133, 5
      %v2203 = vrot.slane %v2202, 4
      %v2204 = vrot.slane %v1146, 5
      %v2205 = vsel %vm2180, %v2203, %v2204
      %v2206 = vrot.slane %v2204, 4
      %v2207 = vrot.slane %v1175, 5
      %v2208 = vsel %vm2180, %v2206, %v2207
      %v2209 = vrot.slane %v2134, 5
      %v2210 = vrot.slane %v2209, 4
      %v2211 = vrot.slane %v1148, 5
      %v2212 = vsel %vm2180, %v2210, %v2211
      %v2213 = vrot.slane %v2211, 4
      %v2214 = vrot.slane %v1176, 5
      %v2215 = vsel %vm2180, %v2213, %v2214
      %v2216 = vrot.slane %v2135, 5
      %v2217 = vrot.slane %v2216, 4
      %v2218 = vrot.slane %v1150, 5
      %v2219 = vsel %vm2180, %v2217, %v2218
      %v2220 = vrot.slane %v2218, 4
      %v2221 = vrot.slane %v1177, 5
      %v2222 = vsel %vm2180, %v2220, %v2221
      %v2223 = vrot.slane %v2136, 5
      %v2224 = vrot.slane %v2223, 4
      %v2225 = vrot.slane %v1152, 5
      %v2226 = vsel %vm2180, %v2224, %v2225
      %v2227 = vrot.slane %v2225, 4
      %v2228 = vrot.slane %v1178, 5
      %v2229 = vsel %vm2180, %v2227, %v2228
      %v2230 = vrot.slane %v2137, 5
      %v2231 = vrot.slane %v2230, 4
      %v2232 = vrot.slane %v1154, 5
      %v2233 = vsel %vm2180, %v2231, %v2232
      %v2234 = vrot.slane %v2232, 4
      %v2235 = vrot.slane %v1179, 5
      %v2236 = vsel %vm2180, %v2234, %v2235
      %v2237 = vrot.slane %v2138, 5
      %v2238 = vrot.slane %v2237, 4
      %v2239 = vrot.slane %v1156, 5
      %v2240 = vsel %vm2180, %v2238, %v2239
      %v2241 = vrot.slane %v2239, 4
      %v2242 = vrot.slane %v1180, 5
      %v2243 = vsel %vm2180, %v2241, %v2242
      %v2244 = vrot.slane %v2139, 5
      %v2245 = vrot.slane %v2244, 4
      %v2246 = vrot.slane %v1158, 5
      %v2247 = vsel %vm2180, %v2245, %v2246
      %v2248 = vrot.slane %v2246, 4
      %v2249 = vrot.slane %v1181, 5
      %v2250 = vsel %vm2180, %v2248, %v2249
      %v2251 = vrot.slane %v2140, 5
      %v2252 = vrot.slane %v2251, 4
      %v2253 = vrot.slane %v1160, 5
      %v2254 = vsel %vm2180, %v2252, %v2253
      %v2255 = vrot.slane %v2253, 4
      %v2256 = vrot.slane %v1182, 5
      %v2257 = vsel %vm2180, %v2255, %v2256
      %v2258 = vrot.slane %v2141, 5
      %v2259 = vrot.slane %v2258, 4
      %v2260 = vrot.slane %v1162, 5
      %v2261 = vsel %vm2180, %v2259, %v2260
      %v2262 = vrot.slane %v2260, 4
      %v2263 = vrot.slane %v1183, 5
      %v2264 = vsel %vm2180, %v2262, %v2263
      %v2265 = vrot.slane %v2142, 5
      %v2266 = vrot.slane %v2265, 4
      %v2267 = vrot.slane %v1164, 5
      %v2268 = vsel %vm2180, %v2266, %v2267
      %v2269 = vrot.slane %v2267, 4
      %v2270 = vrot.slane %v1184, 5
      %v2271 = vsel %vm2180, %v2269, %v2270
      %v2272 = vrot.slane %v2143, 5
      %v2273 = vrot.slane %v2272, 4
      %v2274 = vrot.slane %v1166, 5
      %v2275 = vsel %vm2180, %v2273, %v2274
      %v2276 = vrot.slane %v2274, 4
      %v2277 = vrot.slane %v1185, 5
      %v2278 = vsel %vm2180, %v2276, %v2277
      %v2279 = vrot.slane %v2144, 5
      %v2280 = vrot.slane %v2279, 4
      %v2281 = vrot.slane %v1168, 5
      %v2282 = vsel %vm2180, %v2280, %v2281
      %v2283 = vrot.slane %v2281, 4
      %v2284 = vrot.slane %v1186, 5
      %v2285 = vsel %vm2180, %v2283, %v2284
      %v2286 = vrot.slane %v2145, 5
      %v2287 = vrot.slane %v2286, 4
      %v2288 = vrot.slane %v1170, 5
      %v2289 = vsel %vm2180, %v2287, %v2288
      %v2290 = vrot.slane %v2288, 4
      %v2291 = vrot.slane %v1187, 5
      %v2292 = vsel %vm2180, %v2290, %v2291
      %s2293 = scalar_lea.vmem %s3, 4
      %v2294 = vld [vmem:[%s2293] sm:$0x3]
      %v2295 = vunpack.c.l.b16 %v2184
      %v2296 = vunpack.c.l.b16 %v2187
      %v2297 = vunpack.c.l.b16 %v2191
      %v2298 = vunpack.c.l.b16 %v2194
      %v2299 = vunpack.c.l.b16 %v2198
      %v2300 = vunpack.c.l.b16 %v2201
      %v2301 = vunpack.c.l.b16 %v2205
      %v2302 = vunpack.c.l.b16 %v2208
      %v2303 = vunpack.c.l.b16 %v2212
      %v2304 = vunpack.c.l.b16 %v2215
      %v2305 = vunpack.c.l.b16 %v2219
      %v2306 = vunpack.c.l.b16 %v2222
      %v2307 = vunpack.c.l.b16 %v2226
      %v2308 = vunpack.c.l.b16 %v2229
      %v2309 = vunpack.c.l.b16 %v2233
      %v2310 = vunpack.c.l.b16 %v2236
      %v2311 = vunpack.c.l.b16 %v2240
      %v2312 = vunpack.c.l.b16 %v2243
      %v2313 = vunpack.c.l.b16 %v2247
      %v2314 = vunpack.c.l.b16 %v2250
      %v2315 = vunpack.c.l.b16 %v2254
      %v2316 = vunpack.c.l.b16 %v2257
      %v2317 = vunpack.c.l.b16 %v2261
      %v2318 = vunpack.c.l.b16 %v2264
      %v2319 = vunpack.c.l.b16 %v2268
      %v2320 = vunpack.c.l.b16 %v2271
      %v2321 = vunpack.c.l.b16 %v2275
      %v2322 = vunpack.c.l.b16 %v2278
      %v2323 = vunpack.c.l.b16 %v2282
      %v2324 = vunpack.c.l.b16 %v2285
      %v2325 = vunpack.c.l.b16 %v2289
      %v2326 = vunpack.c.l.b16 %v2292
      %v2327 = vpack.c.b16 %v2296, %v2295
      %v2328 = vpack.c.b16 %v2298, %v2297
      %v2329 = vpack.c.b16 %v2300, %v2299
      %v2330 = vpack.c.b16 %v2302, %v2301
      %v2331 = vpack.c.b16 %v2304, %v2303
      %v2332 = vpack.c.b16 %v2306, %v2305
      %v2333 = vpack.c.b16 %v2308, %v2307
      %v2334 = vpack.c.b16 %v2310, %v2309
      %v2335 = vpack.c.b16 %v2312, %v2311
      %v2336 = vpack.c.b16 %v2314, %v2313
      %v2337 = vpack.c.b16 %v2316, %v2315
      %v2338 = vpack.c.b16 %v2318, %v2317
      %v2339 = vpack.c.b16 %v2320, %v2319
      %v2340 = vpack.c.b16 %v2322, %v2321
      %v2341 = vpack.c.b16 %v2324, %v2323
      %v2342 = vpack.c.b16 %v2326, %v2325
      %v2344 = vsel %vm462, %v2327, 0
      %v2347 = vsel %vm462, %v2328, 0
      %v2350 = vsel %vm462, %v2329, 0
      %v2353 = vsel %vm462, %v2330, 0
      %v2356 = vsel %vm462, %v2331, 0
      %v2359 = vsel %vm462, %v2332, 0
      %v2362 = vsel %vm462, %v2333, 0
      %v2365 = vsel %vm462, %v2334, 0
      %v2368 = vsel %vm462, %v2335, 0
      %v2371 = vsel %vm462, %v2336, 0
      %v2374 = vsel %vm462, %v2337, 0
      %v2377 = vsel %vm462, %v2338, 0
      %v2380 = vsel %vm462, %v2339, 0
      %v2383 = vsel %vm462, %v2340, 0
      %v2386 = vsel %vm462, %v2341, 0
      %v2389 = vsel %vm462, %v2342, 0
      %v2392 = vsel %vm1673, %v2294, 0
      %2394 = vmatprep.subr.bf16.mxu0 0
      %2395 = vmatpush1.bf16.msra.mxu0 0
      %2396 = vmatprep.subr.bf16.mxu0 0
      %2397 = vmatpush1.bf16.msra.mxu0 0
      %2398 = vmatprep.subr.bf16.mxu0 0
      %2399 = vmatpush1.bf16.msra.mxu0 0
      %2400 = vmatprep.subr.bf16.mxu0 0
      %2401 = vmatpush1.bf16.msra.mxu0 0
      %2402 = vmatprep.subr.bf16.mxu0 0
      %2403 = vmatpush1.bf16.msra.mxu0 0
      %2404 = vmatprep.subr.bf16.mxu0 0
      %2405 = vmatpush1.bf16.msra.mxu0 0
      %2406 = vmatprep.subr.bf16.mxu0 0
      %2407 = vmatpush1.bf16.msra.mxu0 0
      %2408 = vmatprep.subr.bf16.mxu0 0
      %2409 = vmatpush1.bf16.msra.mxu0 %v2392
      %2410 = vmatprep.subr.bf16.mxu0 0
      %2411 = vmatpush2.bf16.msra.mxu0 0
      %2412 = vmatprep.subr.bf16.mxu0 0
      %2413 = vmatpush2.bf16.msra.mxu0 0
      %2414 = vmatprep.subr.bf16.mxu0 0
      %2415 = vmatpush2.bf16.msra.mxu0 0
      %2416 = vmatprep.subr.bf16.mxu0 0
      %2417 = vmatpush2.bf16.msra.mxu0 0
      %2418 = vmatprep.subr.bf16.mxu0 0
      %2419 = vmatpush2.bf16.msra.mxu0 0
      %2420 = vmatprep.subr.bf16.mxu0 0
      %2421 = vmatpush2.bf16.msra.mxu0 0
      %2422 = vmatprep.subr.bf16.mxu0 0
      %2423 = vmatpush2.bf16.msra.mxu0 0
      %2424 = vmatprep.subr.bf16.mxu0 0
      %2425 = vmatpush2.bf16.msra.mxu0 0
      %2426 = vmatprep.mubr.bf16.mxu0 0
      %2427 = vmatmul.mubr.bf16.gmra.mxu0 %v2344
      %v2428 = vpop.f32.mrf.mxu0
      %v2429 = vadd.f32 0.0, %v2428
      %v2430 = vpop.f32.mrf.mxu0
      %v2431 = vpop.f32.mrf.mxu0
      %v2432 = vadd.f32 0.0, %v2431
      %v2433 = vpop.f32.mrf.mxu0
      %2434 = vmatprep.mubr.bf16.mxu0 0
      %2435 = vmatmul.mubr.bf16.gmra.mxu0 %v2347
      %v2436 = vpop.f32.mrf.mxu0
      %v2437 = vadd.f32 0.0, %v2436
      %v2438 = vpop.f32.mrf.mxu0
      %v2439 = vpop.f32.mrf.mxu0
      %v2440 = vadd.f32 0.0, %v2439
      %v2441 = vpop.f32.mrf.mxu0
      %2442 = vmatprep.mubr.bf16.mxu0 0
      %2443 = vmatmul.mubr.bf16.gmra.mxu0 %v2350
      %v2444 = vpop.f32.mrf.mxu0
      %v2445 = vadd.f32 0.0, %v2444
      %v2446 = vpop.f32.mrf.mxu0
      %v2447 = vpop.f32.mrf.mxu0
      %v2448 = vadd.f32 0.0, %v2447
      %v2449 = vpop.f32.mrf.mxu0
      %2450 = vmatprep.mubr.bf16.mxu0 0
      %2451 = vmatmul.mubr.bf16.gmra.mxu0 %v2353
      %v2452 = vpop.f32.mrf.mxu0
      %v2453 = vadd.f32 0.0, %v2452
      %v2454 = vpop.f32.mrf.mxu0
      %v2455 = vpop.f32.mrf.mxu0
      %v2456 = vadd.f32 0.0, %v2455
      %v2457 = vpop.f32.mrf.mxu0
      %2458 = vmatprep.mubr.bf16.mxu0 0
      %2459 = vmatmul.mubr.bf16.gmra.mxu0 %v2356
      %v2460 = vpop.f32.mrf.mxu0
      %v2461 = vadd.f32 0.0, %v2460
      %v2462 = vpop.f32.mrf.mxu0
      %v2463 = vpop.f32.mrf.mxu0
      %v2464 = vadd.f32 0.0, %v2463
      %v2465 = vpop.f32.mrf.mxu0
      %2466 = vmatprep.mubr.bf16.mxu0 0
      %2467 = vmatmul.mubr.bf16.gmra.mxu0 %v2359
      %v2468 = vpop.f32.mrf.mxu0
      %v2469 = vadd.f32 0.0, %v2468
      %v2470 = vpop.f32.mrf.mxu0
      %v2471 = vpop.f32.mrf.mxu0
      %v2472 = vadd.f32 0.0, %v2471
      %v2473 = vpop.f32.mrf.mxu0
      %2474 = vmatprep.mubr.bf16.mxu0 0
      %2475 = vmatmul.mubr.bf16.gmra.mxu0 %v2362
      %v2476 = vpop.f32.mrf.mxu0
      %v2477 = vadd.f32 0.0, %v2476
      %v2478 = vpop.f32.mrf.mxu0
      %v2479 = vpop.f32.mrf.mxu0
      %v2480 = vadd.f32 0.0, %v2479
      %v2481 = vpop.f32.mrf.mxu0
      %2482 = vmatprep.mubr.bf16.mxu0 0
      %2483 = vmatmul.mubr.bf16.gmra.mxu0 %v2365
      %v2484 = vpop.f32.mrf.mxu0
      %v2485 = vadd.f32 0.0, %v2484
      %v2486 = vpop.f32.mrf.mxu0
      %v2487 = vpop.f32.mrf.mxu0
      %v2488 = vadd.f32 0.0, %v2487
      %v2489 = vpop.f32.mrf.mxu0
      %2490 = vmatprep.mubr.bf16.mxu0 0
      %2491 = vmatmul.mubr.bf16.gmra.mxu0 %v2368
      %v2492 = vpop.f32.mrf.mxu0
      %v2493 = vadd.f32 0.0, %v2492
      %v2494 = vpop.f32.mrf.mxu0
      %v2495 = vpop.f32.mrf.mxu0
      %v2496 = vadd.f32 0.0, %v2495
      %v2497 = vpop.f32.mrf.mxu0
      %2498 = vmatprep.mubr.bf16.mxu0 0
      %2499 = vmatmul.mubr.bf16.gmra.mxu0 %v2371
      %v2500 = vpop.f32.mrf.mxu0
      %v2501 = vadd.f32 0.0, %v2500
      %v2502 = vpop.f32.mrf.mxu0
      %v2503 = vpop.f32.mrf.mxu0
      %v2504 = vadd.f32 0.0, %v2503
      %v2505 = vpop.f32.mrf.mxu0
      %2506 = vmatprep.mubr.bf16.mxu0 0
      %2507 = vmatmul.mubr.bf16.gmra.mxu0 %v2374
      %v2508 = vpop.f32.mrf.mxu0
      %v2509 = vadd.f32 0.0, %v2508
      %v2510 = vpop.f32.mrf.mxu0
      %v2511 = vpop.f32.mrf.mxu0
      %v2512 = vadd.f32 0.0, %v2511
      %v2513 = vpop.f32.mrf.mxu0
      %2514 = vmatprep.mubr.bf16.mxu0 0
      %2515 = vmatmul.mubr.bf16.gmra.mxu0 %v2377
      %v2516 = vpop.f32.mrf.mxu0
      %v2517 = vadd.f32 0.0, %v2516
      %v2518 = vpop.f32.mrf.mxu0
      %v2519 = vpop.f32.mrf.mxu0
      %v2520 = vadd.f32 0.0, %v2519
      %v2521 = vpop.f32.mrf.mxu0
      %2522 = vmatprep.mubr.bf16.mxu0 0
      %2523 = vmatmul.mubr.bf16.gmra.mxu0 %v2380
      %v2524 = vpop.f32.mrf.mxu0
      %v2525 = vadd.f32 0.0, %v2524
      %v2526 = vpop.f32.mrf.mxu0
      %v2527 = vpop.f32.mrf.mxu0
      %v2528 = vadd.f32 0.0, %v2527
      %v2529 = vpop.f32.mrf.mxu0
      %2530 = vmatprep.mubr.bf16.mxu0 0
      %2531 = vmatmul.mubr.bf16.gmra.mxu0 %v2383
      %v2532 = vpop.f32.mrf.mxu0
      %v2533 = vadd.f32 0.0, %v2532
      %v2534 = vpop.f32.mrf.mxu0
      %v2535 = vpop.f32.mrf.mxu0
      %v2536 = vadd.f32 0.0, %v2535
      %v2537 = vpop.f32.mrf.mxu0
      %2538 = vmatprep.mubr.bf16.mxu0 0
      %2539 = vmatmul.mubr.bf16.gmra.mxu0 %v2386
      %v2540 = vpop.f32.mrf.mxu0
      %v2541 = vadd.f32 0.0, %v2540
      %v2542 = vpop.f32.mrf.mxu0
      %v2543 = vpop.f32.mrf.mxu0
      %v2544 = vadd.f32 0.0, %v2543
      %v2545 = vpop.f32.mrf.mxu0
      %2546 = vmatprep.mubr.bf16.mxu0 0
      %2547 = vmatmul.mubr.bf16.gmra.mxu0 %v2389
      %v2548 = vpop.f32.mrf.mxu0
      %v2549 = vadd.f32 0.0, %v2548
      %v2550 = vpop.f32.mrf.mxu0
      %v2551 = vpop.f32.mrf.mxu0
      %v2552 = vadd.f32 0.0, %v2551
      %v2553 = vpop.f32.mrf.mxu0
      %2554 = vdwg.mxu0
      %v2555 = vadd.f32 %v2004, %v2429
      %v2556 = vadd.f32 %v2007, %v2432
      %v2557 = vadd.f32 %v2012, %v2437
      %v2558 = vadd.f32 %v2015, %v2440
      %v2559 = vadd.f32 %v2020, %v2445
      %v2560 = vadd.f32 %v2023, %v2448
      %v2561 = vadd.f32 %v2028, %v2453
      %v2562 = vadd.f32 %v2031, %v2456
      %v2563 = vadd.f32 %v2036, %v2461
      %v2564 = vadd.f32 %v2039, %v2464
      %v2565 = vadd.f32 %v2044, %v2469
      %v2566 = vadd.f32 %v2047, %v2472
      %v2567 = vadd.f32 %v2052, %v2477
      %v2568 = vadd.f32 %v2055, %v2480
      %v2569 = vadd.f32 %v2060, %v2485
      %v2570 = vadd.f32 %v2063, %v2488
      %v2571 = vadd.f32 %v2068, %v2493
      %v2572 = vadd.f32 %v2071, %v2496
      %v2573 = vadd.f32 %v2076, %v2501
      %v2574 = vadd.f32 %v2079, %v2504
      %v2575 = vadd.f32 %v2084, %v2509
      %v2576 = vadd.f32 %v2087, %v2512
      %v2577 = vadd.f32 %v2092, %v2517
      %v2578 = vadd.f32 %v2095, %v2520
      %v2579 = vadd.f32 %v2100, %v2525
      %v2580 = vadd.f32 %v2103, %v2528
      %v2581 = vadd.f32 %v2108, %v2533
      %v2582 = vadd.f32 %v2111, %v2536
      %v2583 = vadd.f32 %v2116, %v2541
      %v2584 = vadd.f32 %v2119, %v2544
      %v2585 = vadd.f32 %v2124, %v2549
      %v2586 = vadd.f32 %v2127, %v2552
      %v2587 = vld [vmem:[%s521] sm:$0xf]
      %v2588 = vld [vmem:[%s521 + $0x4] sm:$0xf]
      %v2589 = vld [vmem:[%s521 + $0xc] sm:$0xf]
      %v2590 = vld [vmem:[%s521 + $0x10] sm:$0xf]
      %v2591 = vld [vmem:[%s521 + $0x18] sm:$0xf]
      %v2592 = vld [vmem:[%s521 + $0x1c] sm:$0xf]
      %v2593 = vld [vmem:[%s521 + $0x24] sm:$0xf]
      %v2594 = vld [vmem:[%s521 + $0x28] sm:$0xf]
      %v2595 = vld [vmem:[%s521 + $0x30] sm:$0xf]
      %v2596 = vld [vmem:[%s521 + $0x34] sm:$0xf]
      %v2597 = vld [vmem:[%s521 + $0x3c] sm:$0xf]
      %v2598 = vld [vmem:[%s521 + $0x40] sm:$0xf]
      %v2599 = vld [vmem:[%s521 + $0x48] sm:$0xf]
      %v2600 = vld [vmem:[%s521 + $0x4c] sm:$0xf]
      %v2601 = vld [vmem:[%s521 + $0x54] sm:$0xf]
      %v2602 = vld [vmem:[%s521 + $0x58] sm:$0xf]
      %v2603 = vld [vmem:[%s521 + $0x60] sm:$0xf]
      %v2604 = vld [vmem:[%s521 + $0x64] sm:$0xf]
      %v2605 = vld [vmem:[%s521 + $0x6c] sm:$0xf]
      %v2606 = vld [vmem:[%s521 + $0x70] sm:$0xf]
      %v2607 = vld [vmem:[%s521 + $0x78] sm:$0xf]
      %v2608 = vld [vmem:[%s521 + $0x7c] sm:$0xf]
      %v2609 = vld [vmem:[%s521 + $0x84] sm:$0xf]
      %v2610 = vld [vmem:[%s521 + $0x88] sm:$0xf]
      %v2611 = vld [vmem:[%s521 + $0x90] sm:$0xf]
      %v2612 = vld [vmem:[%s521 + $0x94] sm:$0xf]
      %v2613 = vld [vmem:[%s521 + $0x9c] sm:$0xf]
      %v2614 = vld [vmem:[%s521 + $0xa0] sm:$0xf]
      %v2615 = vld [vmem:[%s521 + $0xa8] sm:$0xf]
      %v2616 = vld [vmem:[%s521 + $0xac] sm:$0xf]
      %v2617 = vld [vmem:[%s521 + $0xb4] sm:$0xf]
      %v2618 = vld [vmem:[%s521 + $0xb8] sm:$0xf]
      %s2619 = scalar_lea.vmem %s3, 6
      %v2620 = vld [vmem:[%s2619] sm:$0x3]
      %v2653 = vunpack.c.l.b16 %v2587
      %v2654 = vunpack.c.l.b16 %v2588
      %v2655 = vunpack.c.l.b16 %v2589
      %v2656 = vunpack.c.l.b16 %v2590
      %v2657 = vunpack.c.l.b16 %v2591
      %v2658 = vunpack.c.l.b16 %v2592
      %v2659 = vunpack.c.l.b16 %v2593
      %v2660 = vunpack.c.l.b16 %v2594
      %v2661 = vunpack.c.l.b16 %v2595
      %v2662 = vunpack.c.l.b16 %v2596
      %v2663 = vunpack.c.l.b16 %v2597
      %v2664 = vunpack.c.l.b16 %v2598
      %v2665 = vunpack.c.l.b16 %v2599
      %v2666 = vunpack.c.l.b16 %v2600
      %v2667 = vunpack.c.l.b16 %v2601
      %v2668 = vunpack.c.l.b16 %v2602
      %v2669 = vunpack.c.l.b16 %v2603
      %v2670 = vunpack.c.l.b16 %v2604
      %v2671 = vunpack.c.l.b16 %v2605
      %v2672 = vunpack.c.l.b16 %v2606
      %v2673 = vunpack.c.l.b16 %v2607
      %v2674 = vunpack.c.l.b16 %v2608
      %v2675 = vunpack.c.l.b16 %v2609
      %v2676 = vunpack.c.l.b16 %v2610
      %v2677 = vunpack.c.l.b16 %v2611
      %v2678 = vunpack.c.l.b16 %v2612
      %v2679 = vunpack.c.l.b16 %v2613
      %v2680 = vunpack.c.l.b16 %v2614
      %v2681 = vunpack.c.l.b16 %v2615
      %v2682 = vunpack.c.l.b16 %v2616
      %v2683 = vunpack.c.l.b16 %v2617
      %v2684 = vunpack.c.l.b16 %v2618
      %v2685 = vpack.c.b16 %v2654, %v2653
      %v2686 = vpack.c.b16 %v2656, %v2655
      %v2687 = vpack.c.b16 %v2658, %v2657
      %v2688 = vpack.c.b16 %v2660, %v2659
      %v2689 = vpack.c.b16 %v2662, %v2661
      %v2690 = vpack.c.b16 %v2664, %v2663
      %v2691 = vpack.c.b16 %v2666, %v2665
      %v2692 = vpack.c.b16 %v2668, %v2667
      %v2693 = vpack.c.b16 %v2670, %v2669
      %v2694 = vpack.c.b16 %v2672, %v2671
      %v2695 = vpack.c.b16 %v2674, %v2673
      %v2696 = vpack.c.b16 %v2676, %v2675
      %v2697 = vpack.c.b16 %v2678, %v2677
      %v2698 = vpack.c.b16 %v2680, %v2679
      %v2699 = vpack.c.b16 %v2682, %v2681
      %v2700 = vpack.c.b16 %v2684, %v2683
      %v2702 = vsel %vm462, %v2685, 0
      %v2705 = vsel %vm462, %v2686, 0
      %v2708 = vsel %vm462, %v2687, 0
      %v2711 = vsel %vm462, %v2688, 0
      %v2714 = vsel %vm462, %v2689, 0
      %v2717 = vsel %vm462, %v2690, 0
      %v2720 = vsel %vm462, %v2691, 0
      %v2723 = vsel %vm462, %v2692, 0
      %v2726 = vsel %vm462, %v2693, 0
      %v2729 = vsel %vm462, %v2694, 0
      %v2732 = vsel %vm462, %v2695, 0
      %v2735 = vsel %vm462, %v2696, 0
      %v2738 = vsel %vm462, %v2697, 0
      %v2741 = vsel %vm462, %v2698, 0
      %v2744 = vsel %vm462, %v2699, 0
      %v2747 = vsel %vm462, %v2700, 0
      %v2750 = vsel %vm1673, %v2620, 0
      %2752 = vmatprep.subr.bf16.mxu0 0
      %2753 = vmatpush1.bf16.msra.mxu0 0
      %2754 = vmatprep.subr.bf16.mxu0 0
      %2755 = vmatpush1.bf16.msra.mxu0 0
      %2756 = vmatprep.subr.bf16.mxu0 0
      %2757 = vmatpush1.bf16.msra.mxu0 0
      %2758 = vmatprep.subr.bf16.mxu0 0
      %2759 = vmatpush1.bf16.msra.mxu0 0
      %2760 = vmatprep.subr.bf16.mxu0 0
      %2761 = vmatpush1.bf16.msra.mxu0 0
      %2762 = vmatprep.subr.bf16.mxu0 0
      %2763 = vmatpush1.bf16.msra.mxu0 0
      %2764 = vmatprep.subr.bf16.mxu0 0
      %2765 = vmatpush1.bf16.msra.mxu0 0
      %2766 = vmatprep.subr.bf16.mxu0 0
      %2767 = vmatpush1.bf16.msra.mxu0 %v2750
      %2768 = vmatprep.subr.bf16.mxu0 0
      %2769 = vmatpush2.bf16.msra.mxu0 0
      %2770 = vmatprep.subr.bf16.mxu0 0
      %2771 = vmatpush2.bf16.msra.mxu0 0
      %2772 = vmatprep.subr.bf16.mxu0 0
      %2773 = vmatpush2.bf16.msra.mxu0 0
      %2774 = vmatprep.subr.bf16.mxu0 0
      %2775 = vmatpush2.bf16.msra.mxu0 0
      %2776 = vmatprep.subr.bf16.mxu0 0
      %2777 = vmatpush2.bf16.msra.mxu0 0
      %2778 = vmatprep.subr.bf16.mxu0 0
      %2779 = vmatpush2.bf16.msra.mxu0 0
      %2780 = vmatprep.subr.bf16.mxu0 0
      %2781 = vmatpush2.bf16.msra.mxu0 0
      %2782 = vmatprep.subr.bf16.mxu0 0
      %2783 = vmatpush2.bf16.msra.mxu0 0
      %2784 = vmatprep.mubr.bf16.mxu0 0
      %2785 = vmatmul.mubr.bf16.gmra.mxu0 %v2702
      %v2786 = vpop.f32.mrf.mxu0
      %v2787 = vadd.f32 0.0, %v2786
      %v2788 = vpop.f32.mrf.mxu0
      %v2789 = vpop.f32.mrf.mxu0
      %v2790 = vadd.f32 0.0, %v2789
      %v2791 = vpop.f32.mrf.mxu0
      %2792 = vmatprep.mubr.bf16.mxu0 0
      %2793 = vmatmul.mubr.bf16.gmra.mxu0 %v2705
      %v2794 = vpop.f32.mrf.mxu0
      %v2795 = vadd.f32 0.0, %v2794
      %v2796 = vpop.f32.mrf.mxu0
      %v2797 = vpop.f32.mrf.mxu0
      %v2798 = vadd.f32 0.0, %v2797
      %v2799 = vpop.f32.mrf.mxu0
      %2800 = vmatprep.mubr.bf16.mxu0 0
      %2801 = vmatmul.mubr.bf16.gmra.mxu0 %v2708
      %v2802 = vpop.f32.mrf.mxu0
      %v2803 = vadd.f32 0.0, %v2802
      %v2804 = vpop.f32.mrf.mxu0
      %v2805 = vpop.f32.mrf.mxu0
      %v2806 = vadd.f32 0.0, %v2805
      %v2807 = vpop.f32.mrf.mxu0
      %2808 = vmatprep.mubr.bf16.mxu0 0
      %2809 = vmatmul.mubr.bf16.gmra.mxu0 %v2711
      %v2810 = vpop.f32.mrf.mxu0
      %v2811 = vadd.f32 0.0, %v2810
      %v2812 = vpop.f32.mrf.mxu0
      %v2813 = vpop.f32.mrf.mxu0
      %v2814 = vadd.f32 0.0, %v2813
      %v2815 = vpop.f32.mrf.mxu0
      %2816 = vmatprep.mubr.bf16.mxu0 0
      %2817 = vmatmul.mubr.bf16.gmra.mxu0 %v2714
      %v2818 = vpop.f32.mrf.mxu0
      %v2819 = vadd.f32 0.0, %v2818
      %v2820 = vpop.f32.mrf.mxu0
      %v2821 = vpop.f32.mrf.mxu0
      %v2822 = vadd.f32 0.0, %v2821
      %v2823 = vpop.f32.mrf.mxu0
      %2824 = vmatprep.mubr.bf16.mxu0 0
      %2825 = vmatmul.mubr.bf16.gmra.mxu0 %v2717
      %v2826 = vpop.f32.mrf.mxu0
      %v2827 = vadd.f32 0.0, %v2826
      %v2828 = vpop.f32.mrf.mxu0
      %v2829 = vpop.f32.mrf.mxu0
      %v2830 = vadd.f32 0.0, %v2829
      %v2831 = vpop.f32.mrf.mxu0
      %2832 = vmatprep.mubr.bf16.mxu0 0
      %2833 = vmatmul.mubr.bf16.gmra.mxu0 %v2720
      %v2834 = vpop.f32.mrf.mxu0
      %v2835 = vadd.f32 0.0, %v2834
      %v2836 = vpop.f32.mrf.mxu0
      %v2837 = vpop.f32.mrf.mxu0
      %v2838 = vadd.f32 0.0, %v2837
      %v2839 = vpop.f32.mrf.mxu0
      %2840 = vmatprep.mubr.bf16.mxu0 0
      %2841 = vmatmul.mubr.bf16.gmra.mxu0 %v2723
      %v2842 = vpop.f32.mrf.mxu0
      %v2843 = vadd.f32 0.0, %v2842
      %v2844 = vpop.f32.mrf.mxu0
      %v2845 = vpop.f32.mrf.mxu0
      %v2846 = vadd.f32 0.0, %v2845
      %v2847 = vpop.f32.mrf.mxu0
      %2848 = vmatprep.mubr.bf16.mxu0 0
      %2849 = vmatmul.mubr.bf16.gmra.mxu0 %v2726
      %v2850 = vpop.f32.mrf.mxu0
      %v2851 = vadd.f32 0.0, %v2850
      %v2852 = vpop.f32.mrf.mxu0
      %v2853 = vpop.f32.mrf.mxu0
      %v2854 = vadd.f32 0.0, %v2853
      %v2855 = vpop.f32.mrf.mxu0
      %2856 = vmatprep.mubr.bf16.mxu0 0
      %2857 = vmatmul.mubr.bf16.gmra.mxu0 %v2729
      %v2858 = vpop.f32.mrf.mxu0
      %v2859 = vadd.f32 0.0, %v2858
      %v2860 = vpop.f32.mrf.mxu0
      %v2861 = vpop.f32.mrf.mxu0
      %v2862 = vadd.f32 0.0, %v2861
      %v2863 = vpop.f32.mrf.mxu0
      %2864 = vmatprep.mubr.bf16.mxu0 0
      %2865 = vmatmul.mubr.bf16.gmra.mxu0 %v2732
      %v2866 = vpop.f32.mrf.mxu0
      %v2867 = vadd.f32 0.0, %v2866
      %v2868 = vpop.f32.mrf.mxu0
      %v2869 = vpop.f32.mrf.mxu0
      %v2870 = vadd.f32 0.0, %v2869
      %v2871 = vpop.f32.mrf.mxu0
      %2872 = vmatprep.mubr.bf16.mxu0 0
      %2873 = vmatmul.mubr.bf16.gmra.mxu0 %v2735
      %v2874 = vpop.f32.mrf.mxu0
      %v2875 = vadd.f32 0.0, %v2874
      %v2876 = vpop.f32.mrf.mxu0
      %v2877 = vpop.f32.mrf.mxu0
      %v2878 = vadd.f32 0.0, %v2877
      %v2879 = vpop.f32.mrf.mxu0
      %2880 = vmatprep.mubr.bf16.mxu0 0
      %2881 = vmatmul.mubr.bf16.gmra.mxu0 %v2738
      %v2882 = vpop.f32.mrf.mxu0
      %v2883 = vadd.f32 0.0, %v2882
      %v2884 = vpop.f32.mrf.mxu0
      %v2885 = vpop.f32.mrf.mxu0
      %v2886 = vadd.f32 0.0, %v2885
      %v2887 = vpop.f32.mrf.mxu0
      %2888 = vmatprep.mubr.bf16.mxu0 0
      %2889 = vmatmul.mubr.bf16.gmra.mxu0 %v2741
      %v2890 = vpop.f32.mrf.mxu0
      %v2891 = vadd.f32 0.0, %v2890
      %v2892 = vpop.f32.mrf.mxu0
      %v2893 = vpop.f32.mrf.mxu0
      %v2894 = vadd.f32 0.0, %v2893
      %v2895 = vpop.f32.mrf.mxu0
      %2896 = vmatprep.mubr.bf16.mxu0 0
      %2897 = vmatmul.mubr.bf16.gmra.mxu0 %v2744
      %v2898 = vpop.f32.mrf.mxu0
      %v2899 = vadd.f32 0.0, %v2898
      %v2900 = vpop.f32.mrf.mxu0
      %v2901 = vpop.f32.mrf.mxu0
      %v2902 = vadd.f32 0.0, %v2901
      %v2903 = vpop.f32.mrf.mxu0
      %2904 = vmatprep.mubr.bf16.mxu0 0
      %2905 = vmatmul.mubr.bf16.gmra.mxu0 %v2747
      %v2906 = vpop.f32.mrf.mxu0
      %v2907 = vadd.f32 0.0, %v2906
      %v2908 = vpop.f32.mrf.mxu0
      %v2909 = vpop.f32.mrf.mxu0
      %v2910 = vadd.f32 0.0, %v2909
      %v2911 = vpop.f32.mrf.mxu0
      %2912 = vdwg.mxu0
      %v2913 = vadd.f32 %v2555, %v2787
      %v2914 = vadd.f32 %v2556, %v2790
      %v2915 = vadd.f32 %v2557, %v2795
      %v2916 = vadd.f32 %v2558, %v2798
      %v2917 = vadd.f32 %v2559, %v2803
      %v2918 = vadd.f32 %v2560, %v2806
      %v2919 = vadd.f32 %v2561, %v2811
      %v2920 = vadd.f32 %v2562, %v2814
      %v2921 = vadd.f32 %v2563, %v2819
      %v2922 = vadd.f32 %v2564, %v2822
      %v2923 = vadd.f32 %v2565, %v2827
      %v2924 = vadd.f32 %v2566, %v2830
      %v2925 = vadd.f32 %v2567, %v2835
      %v2926 = vadd.f32 %v2568, %v2838
      %v2927 = vadd.f32 %v2569, %v2843
      %v2928 = vadd.f32 %v2570, %v2846
      %v2929 = vadd.f32 %v2571, %v2851
      %v2930 = vadd.f32 %v2572, %v2854
      %v2931 = vadd.f32 %v2573, %v2859
      %v2932 = vadd.f32 %v2574, %v2862
      %v2933 = vadd.f32 %v2575, %v2867
      %v2934 = vadd.f32 %v2576, %v2870
      %v2935 = vadd.f32 %v2577, %v2875
      %v2936 = vadd.f32 %v2578, %v2878
      %v2937 = vadd.f32 %v2579, %v2883
      %v2938 = vadd.f32 %v2580, %v2886
      %v2939 = vadd.f32 %v2581, %v2891
      %v2940 = vadd.f32 %v2582, %v2894
      %v2941 = vadd.f32 %v2583, %v2899
      %v2942 = vadd.f32 %v2584, %v2902
      %v2943 = vadd.f32 %v2585, %v2907
      %v2944 = vadd.f32 %v2586, %v2910
      %v2945 = vld [vmem:[%s521] sm:$0xf]
      %v2946 = vld [vmem:[%s521 + $0x4] sm:$0xf]
      %v2947 = vld [vmem:[%s521 + $0x8] sm:$0x1]
      %v2948 = vld [vmem:[%s521 + $0xc] sm:$0xf]
      %v2949 = vld [vmem:[%s521 + $0x10] sm:$0xf]
      %v2950 = vld [vmem:[%s521 + $0x14] sm:$0x1]
      %v2951 = vld [vmem:[%s521 + $0x18] sm:$0xf]
      %v2952 = vld [vmem:[%s521 + $0x1c] sm:$0xf]
      %v2953 = vld [vmem:[%s521 + $0x20] sm:$0x1]
      %v2954 = vld [vmem:[%s521 + $0x24] sm:$0xf]
      %v2955 = vld [vmem:[%s521 + $0x28] sm:$0xf]
      %v2956 = vld [vmem:[%s521 + $0x2c] sm:$0x1]
      %v2957 = vld [vmem:[%s521 + $0x30] sm:$0xf]
      %v2958 = vld [vmem:[%s521 + $0x34] sm:$0xf]
      %v2959 = vld [vmem:[%s521 + $0x38] sm:$0x1]
      %v2960 = vld [vmem:[%s521 + $0x3c] sm:$0xf]
      %v2961 = vld [vmem:[%s521 + $0x40] sm:$0xf]
      %v2962 = vld [vmem:[%s521 + $0x44] sm:$0x1]
      %v2963 = vld [vmem:[%s521 + $0x48] sm:$0xf]
      %v2964 = vld [vmem:[%s521 + $0x4c] sm:$0xf]
      %v2965 = vld [vmem:[%s521 + $0x50] sm:$0x1]
      %v2966 = vld [vmem:[%s521 + $0x54] sm:$0xf]
      %v2967 = vld [vmem:[%s521 + $0x58] sm:$0xf]
      %v2968 = vld [vmem:[%s521 + $0x5c] sm:$0x1]
      %v2969 = vld [vmem:[%s521 + $0x60] sm:$0xf]
      %v2970 = vld [vmem:[%s521 + $0x64] sm:$0xf]
      %v2971 = vld [vmem:[%s521 + $0x68] sm:$0x1]
      %v2972 = vld [vmem:[%s521 + $0x6c] sm:$0xf]
      %v2973 = vld [vmem:[%s521 + $0x70] sm:$0xf]
      %v2974 = vld [vmem:[%s521 + $0x74] sm:$0x1]
      %v2975 = vld [vmem:[%s521 + $0x78] sm:$0xf]
      %v2976 = vld [vmem:[%s521 + $0x7c] sm:$0xf]
      %v2977 = vld [vmem:[%s521 + $0x80] sm:$0x1]
      %v2978 = vld [vmem:[%s521 + $0x84] sm:$0xf]
      %v2979 = vld [vmem:[%s521 + $0x88] sm:$0xf]
      %v2980 = vld [vmem:[%s521 + $0x8c] sm:$0x1]
      %v2981 = vld [vmem:[%s521 + $0x90] sm:$0xf]
      %v2982 = vld [vmem:[%s521 + $0x94] sm:$0xf]
      %v2983 = vld [vmem:[%s521 + $0x98] sm:$0x1]
      %v2984 = vld [vmem:[%s521 + $0x9c] sm:$0xf]
      %v2985 = vld [vmem:[%s521 + $0xa0] sm:$0xf]
      %v2986 = vld [vmem:[%s521 + $0xa4] sm:$0x1]
      %v2987 = vld [vmem:[%s521 + $0xa8] sm:$0xf]
      %v2988 = vld [vmem:[%s521 + $0xac] sm:$0xf]
      %v2989 = vld [vmem:[%s521 + $0xb0] sm:$0x1]
      %v2990 = vld [vmem:[%s521 + $0xb4] sm:$0xf]
      %v2991 = vld [vmem:[%s521 + $0xb8] sm:$0xf]
      %v2992 = vld [vmem:[%s521 + $0xbc] sm:$0x1]
      %v2994 = vshrl.u32 %v2945, 16
      %v2996 = vrot.slane %v2994, 4
      %v2997 = vshll.u32 %v2945, 16
      %v2999 = vrot.slane %v2997, 5
      %v3000 = vor.u32 %v2996, %v2999
      %v3001 = vrot.slane %v3000, 4
      %v3003 = vshll.u32 %v2946, 16
      %v3005 = vrot.slane %v3003, 5
      %v3006 = vsel %vm1190, %v3001, %v3005
      %v3007 = vshrl.u32 %v2946, 16
      %v3009 = vrot.slane %v3007, 4
      %v3010 = vor.u32 %v3009, %v3005
      %v3011 = vrot.slane %v3010, 4
      %v3013 = vshll.u32 %v2947, 16
      %v3015 = vrot.slane %v3013, 5
      %v3016 = vsel %vm1190, %v3011, %v3015
      %v3018 = vshrl.u32 %v2948, 16
      %v3020 = vrot.slane %v3018, 4
      %v3021 = vshll.u32 %v2948, 16
      %v3023 = vrot.slane %v3021, 5
      %v3024 = vor.u32 %v3020, %v3023
      %v3025 = vrot.slane %v3024, 4
      %v3027 = vshll.u32 %v2949, 16
      %v3029 = vrot.slane %v3027, 5
      %v3030 = vsel %vm1190, %v3025, %v3029
      %v3031 = vshrl.u32 %v2949, 16
      %v3033 = vrot.slane %v3031, 4
      %v3034 = vor.u32 %v3033, %v3029
      %v3035 = vrot.slane %v3034, 4
      %v3037 = vshll.u32 %v2950, 16
      %v3039 = vrot.slane %v3037, 5
      %v3040 = vsel %vm1190, %v3035, %v3039
      %v3042 = vshrl.u32 %v2951, 16
      %v3044 = vrot.slane %v3042, 4
      %v3045 = vshll.u32 %v2951, 16
      %v3047 = vrot.slane %v3045, 5
      %v3048 = vor.u32 %v3044, %v3047
      %v3049 = vrot.slane %v3048, 4
      %v3051 = vshll.u32 %v2952, 16
      %v3053 = vrot.slane %v3051, 5
      %v3054 = vsel %vm1190, %v3049, %v3053
      %v3055 = vshrl.u32 %v2952, 16
      %v3057 = vrot.slane %v3055, 4
      %v3058 = vor.u32 %v3057, %v3053
      %v3059 = vrot.slane %v3058, 4
      %v3061 = vshll.u32 %v2953, 16
      %v3063 = vrot.slane %v3061, 5
      %v3064 = vsel %vm1190, %v3059, %v3063
      %v3066 = vshrl.u32 %v2954, 16
      %v3068 = vrot.slane %v3066, 4
      %v3069 = vshll.u32 %v2954, 16
      %v3071 = vrot.slane %v3069, 5
      %v3072 = vor.u32 %v3068, %v3071
      %v3073 = vrot.slane %v3072, 4
      %v3075 = vshll.u32 %v2955, 16
      %v3077 = vrot.slane %v3075, 5
      %v3078 = vsel %vm1190, %v3073, %v3077
      %v3079 = vshrl.u32 %v2955, 16
      %v3081 = vrot.slane %v3079, 4
      %v3082 = vor.u32 %v3081, %v3077
      %v3083 = vrot.slane %v3082, 4
      %v3085 = vshll.u32 %v2956, 16
      %v3087 = vrot.slane %v3085, 5
      %v3088 = vsel %vm1190, %v3083, %v3087
      %v3090 = vshrl.u32 %v2957, 16
      %v3092 = vrot.slane %v3090, 4
      %v3093 = vshll.u32 %v2957, 16
      %v3095 = vrot.slane %v3093, 5
      %v3096 = vor.u32 %v3092, %v3095
      %v3097 = vrot.slane %v3096, 4
      %v3099 = vshll.u32 %v2958, 16
      %v3101 = vrot.slane %v3099, 5
      %v3102 = vsel %vm1190, %v3097, %v3101
      %v3103 = vshrl.u32 %v2958, 16
      %v3105 = vrot.slane %v3103, 4
      %v3106 = vor.u32 %v3105, %v3101
      %v3107 = vrot.slane %v3106, 4
      %v3109 = vshll.u32 %v2959, 16
      %v3111 = vrot.slane %v3109, 5
      %v3112 = vsel %vm1190, %v3107, %v3111
      %v3114 = vshrl.u32 %v2960, 16
      %v3116 = vrot.slane %v3114, 4
      %v3117 = vshll.u32 %v2960, 16
      %v3119 = vrot.slane %v3117, 5
      %v3120 = vor.u32 %v3116, %v3119
      %v3121 = vrot.slane %v3120, 4
      %v3123 = vshll.u32 %v2961, 16
      %v3125 = vrot.slane %v3123, 5
      %v3126 = vsel %vm1190, %v3121, %v3125
      %v3127 = vshrl.u32 %v2961, 16
      %v3129 = vrot.slane %v3127, 4
      %v3130 = vor.u32 %v3129, %v3125
      %v3131 = vrot.slane %v3130, 4
      %v3133 = vshll.u32 %v2962, 16
      %v3135 = vrot.slane %v3133, 5
      %v3136 = vsel %vm1190, %v3131, %v3135
      %v3138 = vshrl.u32 %v2963, 16
      %v3140 = vrot.slane %v3138, 4
      %v3141 = vshll.u32 %v2963, 16
      %v3143 = vrot.slane %v3141, 5
      %v3144 = vor.u32 %v3140, %v3143
      %v3145 = vrot.slane %v3144, 4
      %v3147 = vshll.u32 %v2964, 16
      %v3149 = vrot.slane %v3147, 5
      %v3150 = vsel %vm1190, %v3145, %v3149
      %v3151 = vshrl.u32 %v2964, 16
      %v3153 = vrot.slane %v3151, 4
      %v3154 = vor.u32 %v3153, %v3149
      %v3155 = vrot.slane %v3154, 4
      %v3157 = vshll.u32 %v2965, 16
      %v3159 = vrot.slane %v3157, 5
      %v3160 = vsel %vm1190, %v3155, %v3159
      %v3162 = vshrl.u32 %v2966, 16
      %v3164 = vrot.slane %v3162, 4
      %v3165 = vshll.u32 %v2966, 16
      %v3167 = vrot.slane %v3165, 5
      %v3168 = vor.u32 %v3164, %v3167
      %v3169 = vrot.slane %v3168, 4
      %v3171 = vshll.u32 %v2967, 16
      %v3173 = vrot.slane %v3171, 5
      %v3174 = vsel %vm1190, %v3169, %v3173
      %v3175 = vshrl.u32 %v2967, 16
      %v3177 = vrot.slane %v3175, 4
      %v3178 = vor.u32 %v3177, %v3173
      %v3179 = vrot.slane %v3178, 4
      %v3181 = vshll.u32 %v2968, 16
      %v3183 = vrot.slane %v3181, 5
      %v3184 = vsel %vm1190, %v3179, %v3183
      %v3186 = vshrl.u32 %v2969, 16
      %v3188 = vrot.slane %v3186, 4
      %v3189 = vshll.u32 %v2969, 16
      %v3191 = vrot.slane %v3189, 5
      %v3192 = vor.u32 %v3188, %v3191
      %v3193 = vrot.slane %v3192, 4
      %v3195 = vshll.u32 %v2970, 16
      %v3197 = vrot.slane %v3195, 5
      %v3198 = vsel %vm1190, %v3193, %v3197
      %v3199 = vshrl.u32 %v2970, 16
      %v3201 = vrot.slane %v3199, 4
      %v3202 = vor.u32 %v3201, %v3197
      %v3203 = vrot.slane %v3202, 4
      %v3205 = vshll.u32 %v2971, 16
      %v3207 = vrot.slane %v3205, 5
      %v3208 = vsel %vm1190, %v3203, %v3207
      %v3210 = vshrl.u32 %v2972, 16
      %v3212 = vrot.slane %v3210, 4
      %v3213 = vshll.u32 %v2972, 16
      %v3215 = vrot.slane %v3213, 5
      %v3216 = vor.u32 %v3212, %v3215
      %v3217 = vrot.slane %v3216, 4
      %v3219 = vshll.u32 %v2973, 16
      %v3221 = vrot.slane %v3219, 5
      %v3222 = vsel %vm1190, %v3217, %v3221
      %v3223 = vshrl.u32 %v2973, 16
      %v3225 = vrot.slane %v3223, 4
      %v3226 = vor.u32 %v3225, %v3221
      %v3227 = vrot.slane %v3226, 4
      %v3229 = vshll.u32 %v2974, 16
      %v3231 = vrot.slane %v3229, 5
      %v3232 = vsel %vm1190, %v3227, %v3231
      %v3234 = vshrl.u32 %v2975, 16
      %v3236 = vrot.slane %v3234, 4
      %v3237 = vshll.u32 %v2975, 16
      %v3239 = vrot.slane %v3237, 5
      %v3240 = vor.u32 %v3236, %v3239
      %v3241 = vrot.slane %v3240, 4
      %v3243 = vshll.u32 %v2976, 16
      %v3245 = vrot.slane %v3243, 5
      %v3246 = vsel %vm1190, %v3241, %v3245
      %v3247 = vshrl.u32 %v2976, 16
      %v3249 = vrot.slane %v3247, 4
      %v3250 = vor.u32 %v3249, %v3245
      %v3251 = vrot.slane %v3250, 4
      %v3253 = vshll.u32 %v2977, 16
      %v3255 = vrot.slane %v3253, 5
      %v3256 = vsel %vm1190, %v3251, %v3255
      %v3258 = vshrl.u32 %v2978, 16
      %v3260 = vrot.slane %v3258, 4
      %v3261 = vshll.u32 %v2978, 16
      %v3263 = vrot.slane %v3261, 5
      %v3264 = vor.u32 %v3260, %v3263
      %v3265 = vrot.slane %v3264, 4
      %v3267 = vshll.u32 %v2979, 16
      %v3269 = vrot.slane %v3267, 5
      %v3270 = vsel %vm1190, %v3265, %v3269
      %v3271 = vshrl.u32 %v2979, 16
      %v3273 = vrot.slane %v3271, 4
      %v3274 = vor.u32 %v3273, %v3269
      %v3275 = vrot.slane %v3274, 4
      %v3277 = vshll.u32 %v2980, 16
      %v3279 = vrot.slane %v3277, 5
      %v3280 = vsel %vm1190, %v3275, %v3279
      %v3282 = vshrl.u32 %v2981, 16
      %v3284 = vrot.slane %v3282, 4
      %v3285 = vshll.u32 %v2981, 16
      %v3287 = vrot.slane %v3285, 5
      %v3288 = vor.u32 %v3284, %v3287
      %v3289 = vrot.slane %v3288, 4
      %v3291 = vshll.u32 %v2982, 16
      %v3293 = vrot.slane %v3291, 5
      %v3294 = vsel %vm1190, %v3289, %v3293
      %v3295 = vshrl.u32 %v2982, 16
      %v3297 = vrot.slane %v3295, 4
      %v3298 = vor.u32 %v3297, %v3293
      %v3299 = vrot.slane %v3298, 4
      %v3301 = vshll.u32 %v2983, 16
      %v3303 = vrot.slane %v3301, 5
      %v3304 = vsel %vm1190, %v3299, %v3303
      %v3306 = vshrl.u32 %v2984, 16
      %v3308 = vrot.slane %v3306, 4
      %v3309 = vshll.u32 %v2984, 16
      %v3311 = vrot.slane %v3309, 5
      %v3312 = vor.u32 %v3308, %v3311
      %v3313 = vrot.slane %v3312, 4
      %v3315 = vshll.u32 %v2985, 16
      %v3317 = vrot.slane %v3315, 5
      %v3318 = vsel %vm1190, %v3313, %v3317
      %v3319 = vshrl.u32 %v2985, 16
      %v3321 = vrot.slane %v3319, 4
      %v3322 = vor.u32 %v3321, %v3317
      %v3323 = vrot.slane %v3322, 4
      %v3325 = vshll.u32 %v2986, 16
      %v3327 = vrot.slane %v3325, 5
      %v3328 = vsel %vm1190, %v3323, %v3327
      %v3330 = vshrl.u32 %v2987, 16
      %v3332 = vrot.slane %v3330, 4
      %v3333 = vshll.u32 %v2987, 16
      %v3335 = vrot.slane %v3333, 5
      %v3336 = vor.u32 %v3332, %v3335
      %v3337 = vrot.slane %v3336, 4
      %v3339 = vshll.u32 %v2988, 16
      %v3341 = vrot.slane %v3339, 5
      %v3342 = vsel %vm1190, %v3337, %v3341
      %v3343 = vshrl.u32 %v2988, 16
      %v3345 = vrot.slane %v3343, 4
      %v3346 = vor.u32 %v3345, %v3341
      %v3347 = vrot.slane %v3346, 4
      %v3349 = vshll.u32 %v2989, 16
      %v3351 = vrot.slane %v3349, 5
      %v3352 = vsel %vm1190, %v3347, %v3351
      %v3354 = vshrl.u32 %v2990, 16
      %v3356 = vrot.slane %v3354, 4
      %v3357 = vshll.u32 %v2990, 16
      %v3359 = vrot.slane %v3357, 5
      %v3360 = vor.u32 %v3356, %v3359
      %v3361 = vrot.slane %v3360, 4
      %v3363 = vshll.u32 %v2991, 16
      %v3365 = vrot.slane %v3363, 5
      %v3366 = vsel %vm1190, %v3361, %v3365
      %v3367 = vshrl.u32 %v2991, 16
      %v3369 = vrot.slane %v3367, 4
      %v3370 = vor.u32 %v3369, %v3365
      %v3371 = vrot.slane %v3370, 4
      %v3373 = vshll.u32 %v2992, 16
      %v3375 = vrot.slane %v3373, 5
      %v3376 = vsel %vm1190, %v3371, %v3375
      %s3377 = scalar_lea.vmem %s3, 8
      %v3378 = vld [vmem:[%s3377] sm:$0x3]
      %v3379 = vunpack.c.l.b16 %v3006
      %v3380 = vunpack.c.l.b16 %v3016
      %v3381 = vunpack.c.l.b16 %v3030
      %v3382 = vunpack.c.l.b16 %v3040
      %v3383 = vunpack.c.l.b16 %v3054
      %v3384 = vunpack.c.l.b16 %v3064
      %v3385 = vunpack.c.l.b16 %v3078
      %v3386 = vunpack.c.l.b16 %v3088
      %v3387 = vunpack.c.l.b16 %v3102
      %v3388 = vunpack.c.l.b16 %v3112
      %v3389 = vunpack.c.l.b16 %v3126
      %v3390 = vunpack.c.l.b16 %v3136
      %v3391 = vunpack.c.l.b16 %v3150
      %v3392 = vunpack.c.l.b16 %v3160
      %v3393 = vunpack.c.l.b16 %v3174
      %v3394 = vunpack.c.l.b16 %v3184
      %v3395 = vunpack.c.l.b16 %v3198
      %v3396 = vunpack.c.l.b16 %v3208
      %v3397 = vunpack.c.l.b16 %v3222
      %v3398 = vunpack.c.l.b16 %v3232
      %v3399 = vunpack.c.l.b16 %v3246
      %v3400 = vunpack.c.l.b16 %v3256
      %v3401 = vunpack.c.l.b16 %v3270
      %v3402 = vunpack.c.l.b16 %v3280
      %v3403 = vunpack.c.l.b16 %v3294
      %v3404 = vunpack.c.l.b16 %v3304
      %v3405 = vunpack.c.l.b16 %v3318
      %v3406 = vunpack.c.l.b16 %v3328
      %v3407 = vunpack.c.l.b16 %v3342
      %v3408 = vunpack.c.l.b16 %v3352
      %v3409 = vunpack.c.l.b16 %v3366
      %v3410 = vunpack.c.l.b16 %v3376
      %v3411 = vpack.c.b16 %v3380, %v3379
      %v3412 = vpack.c.b16 %v3382, %v3381
      %v3413 = vpack.c.b16 %v3384, %v3383
      %v3414 = vpack.c.b16 %v3386, %v3385
      %v3415 = vpack.c.b16 %v3388, %v3387
      %v3416 = vpack.c.b16 %v3390, %v3389
      %v3417 = vpack.c.b16 %v3392, %v3391
      %v3418 = vpack.c.b16 %v3394, %v3393
      %v3419 = vpack.c.b16 %v3396, %v3395
      %v3420 = vpack.c.b16 %v3398, %v3397
      %v3421 = vpack.c.b16 %v3400, %v3399
      %v3422 = vpack.c.b16 %v3402, %v3401
      %v3423 = vpack.c.b16 %v3404, %v3403
      %v3424 = vpack.c.b16 %v3406, %v3405
      %v3425 = vpack.c.b16 %v3408, %v3407
      %v3426 = vpack.c.b16 %v3410, %v3409
      %v3428 = vsel %vm462, %v3411, 0
      %v3431 = vsel %vm462, %v3412, 0
      %v3434 = vsel %vm462, %v3413, 0
      %v3437 = vsel %vm462, %v3414, 0
      %v3440 = vsel %vm462, %v3415, 0
      %v3443 = vsel %vm462, %v3416, 0
      %v3446 = vsel %vm462, %v3417, 0
      %v3449 = vsel %vm462, %v3418, 0
      %v3452 = vsel %vm462, %v3419, 0
      %v3455 = vsel %vm462, %v3420, 0
      %v3458 = vsel %vm462, %v3421, 0
      %v3461 = vsel %vm462, %v3422, 0
      %v3464 = vsel %vm462, %v3423, 0
      %v3467 = vsel %vm462, %v3424, 0
      %v3470 = vsel %vm462, %v3425, 0
      %v3473 = vsel %vm462, %v3426, 0
      %v3476 = vsel %vm1673, %v3378, 0
      %3478 = vmatprep.subr.bf16.mxu0 0
      %3479 = vmatpush1.bf16.msra.mxu0 0
      %3480 = vmatprep.subr.bf16.mxu0 0
      %3481 = vmatpush1.bf16.msra.mxu0 0
      %3482 = vmatprep.subr.bf16.mxu0 0
      %3483 = vmatpush1.bf16.msra.mxu0 0
      %3484 = vmatprep.subr.bf16.mxu0 0
      %3485 = vmatpush1.bf16.msra.mxu0 0
      %3486 = vmatprep.subr.bf16.mxu0 0
      %3487 = vmatpush1.bf16.msra.mxu0 0
      %3488 = vmatprep.subr.bf16.mxu0 0
      %3489 = vmatpush1.bf16.msra.mxu0 0
      %3490 = vmatprep.subr.bf16.mxu0 0
      %3491 = vmatpush1.bf16.msra.mxu0 0
      %3492 = vmatprep.subr.bf16.mxu0 0
      %3493 = vmatpush1.bf16.msra.mxu0 %v3476
      %3494 = vmatprep.subr.bf16.mxu0 0
      %3495 = vmatpush2.bf16.msra.mxu0 0
      %3496 = vmatprep.subr.bf16.mxu0 0
      %3497 = vmatpush2.bf16.msra.mxu0 0
      %3498 = vmatprep.subr.bf16.mxu0 0
      %3499 = vmatpush2.bf16.msra.mxu0 0
      %3500 = vmatprep.subr.bf16.mxu0 0
      %3501 = vmatpush2.bf16.msra.mxu0 0
      %3502 = vmatprep.subr.bf16.mxu0 0
      %3503 = vmatpush2.bf16.msra.mxu0 0
      %3504 = vmatprep.subr.bf16.mxu0 0
      %3505 = vmatpush2.bf16.msra.mxu0 0
      %3506 = vmatprep.subr.bf16.mxu0 0
      %3507 = vmatpush2.bf16.msra.mxu0 0
      %3508 = vmatprep.subr.bf16.mxu0 0
      %3509 = vmatpush2.bf16.msra.mxu0 0
      %3510 = vmatprep.mubr.bf16.mxu0 0
      %3511 = vmatmul.mubr.bf16.gmra.mxu0 %v3428
      %v3512 = vpop.f32.mrf.mxu0
      %v3513 = vadd.f32 0.0, %v3512
      %v3514 = vpop.f32.mrf.mxu0
      %v3515 = vpop.f32.mrf.mxu0
      %v3516 = vadd.f32 0.0, %v3515
      %v3517 = vpop.f32.mrf.mxu0
      %3518 = vmatprep.mubr.bf16.mxu0 0
      %3519 = vmatmul.mubr.bf16.gmra.mxu0 %v3431
      %v3520 = vpop.f32.mrf.mxu0
      %v3521 = vadd.f32 0.0, %v3520
      %v3522 = vpop.f32.mrf.mxu0
      %v3523 = vpop.f32.mrf.mxu0
      %v3524 = vadd.f32 0.0, %v3523
      %v3525 = vpop.f32.mrf.mxu0
      %3526 = vmatprep.mubr.bf16.mxu0 0
      %3527 = vmatmul.mubr.bf16.gmra.mxu0 %v3434
      %v3528 = vpop.f32.mrf.mxu0
      %v3529 = vadd.f32 0.0, %v3528
      %v3530 = vpop.f32.mrf.mxu0
      %v3531 = vpop.f32.mrf.mxu0
      %v3532 = vadd.f32 0.0, %v3531
      %v3533 = vpop.f32.mrf.mxu0
      %3534 = vmatprep.mubr.bf16.mxu0 0
      %3535 = vmatmul.mubr.bf16.gmra.mxu0 %v3437
      %v3536 = vpop.f32.mrf.mxu0
      %v3537 = vadd.f32 0.0, %v3536
      %v3538 = vpop.f32.mrf.mxu0
      %v3539 = vpop.f32.mrf.mxu0
      %v3540 = vadd.f32 0.0, %v3539
      %v3541 = vpop.f32.mrf.mxu0
      %3542 = vmatprep.mubr.bf16.mxu0 0
      %3543 = vmatmul.mubr.bf16.gmra.mxu0 %v3440
      %v3544 = vpop.f32.mrf.mxu0
      %v3545 = vadd.f32 0.0, %v3544
      %v3546 = vpop.f32.mrf.mxu0
      %v3547 = vpop.f32.mrf.mxu0
      %v3548 = vadd.f32 0.0, %v3547
      %v3549 = vpop.f32.mrf.mxu0
      %3550 = vmatprep.mubr.bf16.mxu0 0
      %3551 = vmatmul.mubr.bf16.gmra.mxu0 %v3443
      %v3552 = vpop.f32.mrf.mxu0
      %v3553 = vadd.f32 0.0, %v3552
      %v3554 = vpop.f32.mrf.mxu0
      %v3555 = vpop.f32.mrf.mxu0
      %v3556 = vadd.f32 0.0, %v3555
      %v3557 = vpop.f32.mrf.mxu0
      %3558 = vmatprep.mubr.bf16.mxu0 0
      %3559 = vmatmul.mubr.bf16.gmra.mxu0 %v3446
      %v3560 = vpop.f32.mrf.mxu0
      %v3561 = vadd.f32 0.0, %v3560
      %v3562 = vpop.f32.mrf.mxu0
      %v3563 = vpop.f32.mrf.mxu0
      %v3564 = vadd.f32 0.0, %v3563
      %v3565 = vpop.f32.mrf.mxu0
      %3566 = vmatprep.mubr.bf16.mxu0 0
      %3567 = vmatmul.mubr.bf16.gmra.mxu0 %v3449
      %v3568 = vpop.f32.mrf.mxu0
      %v3569 = vadd.f32 0.0, %v3568
      %v3570 = vpop.f32.mrf.mxu0
      %v3571 = vpop.f32.mrf.mxu0
      %v3572 = vadd.f32 0.0, %v3571
      %v3573 = vpop.f32.mrf.mxu0
      %3574 = vmatprep.mubr.bf16.mxu0 0
      %3575 = vmatmul.mubr.bf16.gmra.mxu0 %v3452
      %v3576 = vpop.f32.mrf.mxu0
      %v3577 = vadd.f32 0.0, %v3576
      %v3578 = vpop.f32.mrf.mxu0
      %v3579 = vpop.f32.mrf.mxu0
      %v3580 = vadd.f32 0.0, %v3579
      %v3581 = vpop.f32.mrf.mxu0
      %3582 = vmatprep.mubr.bf16.mxu0 0
      %3583 = vmatmul.mubr.bf16.gmra.mxu0 %v3455
      %v3584 = vpop.f32.mrf.mxu0
      %v3585 = vadd.f32 0.0, %v3584
      %v3586 = vpop.f32.mrf.mxu0
      %v3587 = vpop.f32.mrf.mxu0
      %v3588 = vadd.f32 0.0, %v3587
      %v3589 = vpop.f32.mrf.mxu0
      %3590 = vmatprep.mubr.bf16.mxu0 0
      %3591 = vmatmul.mubr.bf16.gmra.mxu0 %v3458
      %v3592 = vpop.f32.mrf.mxu0
      %v3593 = vadd.f32 0.0, %v3592
      %v3594 = vpop.f32.mrf.mxu0
      %v3595 = vpop.f32.mrf.mxu0
      %v3596 = vadd.f32 0.0, %v3595
      %v3597 = vpop.f32.mrf.mxu0
      %3598 = vmatprep.mubr.bf16.mxu0 0
      %3599 = vmatmul.mubr.bf16.gmra.mxu0 %v3461
      %v3600 = vpop.f32.mrf.mxu0
      %v3601 = vadd.f32 0.0, %v3600
      %v3602 = vpop.f32.mrf.mxu0
      %v3603 = vpop.f32.mrf.mxu0
      %v3604 = vadd.f32 0.0, %v3603
      %v3605 = vpop.f32.mrf.mxu0
      %3606 = vmatprep.mubr.bf16.mxu0 0
      %3607 = vmatmul.mubr.bf16.gmra.mxu0 %v3464
      %v3608 = vpop.f32.mrf.mxu0
      %v3609 = vadd.f32 0.0, %v3608
      %v3610 = vpop.f32.mrf.mxu0
      %v3611 = vpop.f32.mrf.mxu0
      %v3612 = vadd.f32 0.0, %v3611
      %v3613 = vpop.f32.mrf.mxu0
      %3614 = vmatprep.mubr.bf16.mxu0 0
      %3615 = vmatmul.mubr.bf16.gmra.mxu0 %v3467
      %v3616 = vpop.f32.mrf.mxu0
      %v3617 = vadd.f32 0.0, %v3616
      %v3618 = vpop.f32.mrf.mxu0
      %v3619 = vpop.f32.mrf.mxu0
      %v3620 = vadd.f32 0.0, %v3619
      %v3621 = vpop.f32.mrf.mxu0
      %3622 = vmatprep.mubr.bf16.mxu0 0
      %3623 = vmatmul.mubr.bf16.gmra.mxu0 %v3470
      %v3624 = vpop.f32.mrf.mxu0
      %v3625 = vadd.f32 0.0, %v3624
      %v3626 = vpop.f32.mrf.mxu0
      %v3627 = vpop.f32.mrf.mxu0
      %v3628 = vadd.f32 0.0, %v3627
      %v3629 = vpop.f32.mrf.mxu0
      %3630 = vmatprep.mubr.bf16.mxu0 0
      %3631 = vmatmul.mubr.bf16.gmra.mxu0 %v3473
      %v3632 = vpop.f32.mrf.mxu0
      %v3633 = vadd.f32 0.0, %v3632
      %v3634 = vpop.f32.mrf.mxu0
      %v3635 = vpop.f32.mrf.mxu0
      %v3636 = vadd.f32 0.0, %v3635
      %v3637 = vpop.f32.mrf.mxu0
      %3638 = vdwg.mxu0
      %v3639 = vadd.f32 %v2913, %v3513
      %v3640 = vadd.f32 %v2914, %v3516
      %v3641 = vadd.f32 %v2915, %v3521
      %v3642 = vadd.f32 %v2916, %v3524
      %v3643 = vadd.f32 %v2917, %v3529
      %v3644 = vadd.f32 %v2918, %v3532
      %v3645 = vadd.f32 %v2919, %v3537
      %v3646 = vadd.f32 %v2920, %v3540
      %v3647 = vadd.f32 %v2921, %v3545
      %v3648 = vadd.f32 %v2922, %v3548
      %v3649 = vadd.f32 %v2923, %v3553
      %v3650 = vadd.f32 %v2924, %v3556
      %v3651 = vadd.f32 %v2925, %v3561
      %v3652 = vadd.f32 %v2926, %v3564
      %v3653 = vadd.f32 %v2927, %v3569
      %v3654 = vadd.f32 %v2928, %v3572
      %v3655 = vadd.f32 %v2929, %v3577
      %v3656 = vadd.f32 %v2930, %v3580
      %v3657 = vadd.f32 %v2931, %v3585
      %v3658 = vadd.f32 %v2932, %v3588
      %v3659 = vadd.f32 %v2933, %v3593
      %v3660 = vadd.f32 %v2934, %v3596
      %v3661 = vadd.f32 %v2935, %v3601
      %v3662 = vadd.f32 %v2936, %v3604
      %v3663 = vadd.f32 %v2937, %v3609
      %v3664 = vadd.f32 %v2938, %v3612
      %v3665 = vadd.f32 %v2939, %v3617
      %v3666 = vadd.f32 %v2940, %v3620
      %v3667 = vadd.f32 %v2941, %v3625
      %v3668 = vadd.f32 %v2942, %v3628
      %v3669 = vadd.f32 %v2943, %v3633
      %v3670 = vadd.f32 %v2944, %v3636
      %v3671 = vld [vmem:[%s521] sm:$0xe]
      %v3672 = vld [vmem:[%s521 + $0xc] sm:$0xe]
      %v3673 = vld [vmem:[%s521 + $0x18] sm:$0xe]
      %v3674 = vld [vmem:[%s521 + $0x24] sm:$0xe]
      %v3675 = vld [vmem:[%s521 + $0x30] sm:$0xe]
      %v3676 = vld [vmem:[%s521 + $0x3c] sm:$0xe]
      %v3677 = vld [vmem:[%s521 + $0x48] sm:$0xe]
      %v3678 = vld [vmem:[%s521 + $0x54] sm:$0xe]
      %v3679 = vld [vmem:[%s521 + $0x60] sm:$0xe]
      %v3680 = vld [vmem:[%s521 + $0x6c] sm:$0xe]
      %v3681 = vld [vmem:[%s521 + $0x78] sm:$0xe]
      %v3682 = vld [vmem:[%s521 + $0x84] sm:$0xe]
      %v3683 = vld [vmem:[%s521 + $0x90] sm:$0xe]
      %v3684 = vld [vmem:[%s521 + $0x9c] sm:$0xe]
      %v3685 = vld [vmem:[%s521 + $0xa8] sm:$0xe]
      %v3686 = vld [vmem:[%s521 + $0xb4] sm:$0xe]
      %v3735 = vrot.slane %v3671, 5
      %v3736 = vrot.slane %v3735, 4
      %v3737 = vrot.slane %v2946, 5
      %v3738 = vsel %vm2180, %v3736, %v3737
      %v3739 = vrot.slane %v3737, 4
      %v3740 = vrot.slane %v2947, 5
      %v3741 = vsel %vm2180, %v3739, %v3740
      %v3742 = vrot.slane %v3672, 5
      %v3743 = vrot.slane %v3742, 4
      %v3744 = vrot.slane %v2949, 5
      %v3745 = vsel %vm2180, %v3743, %v3744
      %v3746 = vrot.slane %v3744, 4
      %v3747 = vrot.slane %v2950, 5
      %v3748 = vsel %vm2180, %v3746, %v3747
      %v3749 = vrot.slane %v3673, 5
      %v3750 = vrot.slane %v3749, 4
      %v3751 = vrot.slane %v2952, 5
      %v3752 = vsel %vm2180, %v3750, %v3751
      %v3753 = vrot.slane %v3751, 4
      %v3754 = vrot.slane %v2953, 5
      %v3755 = vsel %vm2180, %v3753, %v3754
      %v3756 = vrot.slane %v3674, 5
      %v3757 = vrot.slane %v3756, 4
      %v3758 = vrot.slane %v2955, 5
      %v3759 = vsel %vm2180, %v3757, %v3758
      %v3760 = vrot.slane %v3758, 4
      %v3761 = vrot.slane %v2956, 5
      %v3762 = vsel %vm2180, %v3760, %v3761
      %v3763 = vrot.slane %v3675, 5
      %v3764 = vrot.slane %v3763, 4
      %v3765 = vrot.slane %v2958, 5
      %v3766 = vsel %vm2180, %v3764, %v3765
      %v3767 = vrot.slane %v3765, 4
      %v3768 = vrot.slane %v2959, 5
      %v3769 = vsel %vm2180, %v3767, %v3768
      %v3770 = vrot.slane %v3676, 5
      %v3771 = vrot.slane %v3770, 4
      %v3772 = vrot.slane %v2961, 5
      %v3773 = vsel %vm2180, %v3771, %v3772
      %v3774 = vrot.slane %v3772, 4
      %v3775 = vrot.slane %v2962, 5
      %v3776 = vsel %vm2180, %v3774, %v3775
      %v3777 = vrot.slane %v3677, 5
      %v3778 = vrot.slane %v3777, 4
      %v3779 = vrot.slane %v2964, 5
      %v3780 = vsel %vm2180, %v3778, %v3779
      %v3781 = vrot.slane %v3779, 4
      %v3782 = vrot.slane %v2965, 5
      %v3783 = vsel %vm2180, %v3781, %v3782
      %v3784 = vrot.slane %v3678, 5
      %v3785 = vrot.slane %v3784, 4
      %v3786 = vrot.slane %v2967, 5
      %v3787 = vsel %vm2180, %v3785, %v3786
      %v3788 = vrot.slane %v3786, 4
      %v3789 = vrot.slane %v2968, 5
      %v3790 = vsel %vm2180, %v3788, %v3789
      %v3791 = vrot.slane %v3679, 5
      %v3792 = vrot.slane %v3791, 4
      %v3793 = vrot.slane %v2970, 5
      %v3794 = vsel %vm2180, %v3792, %v3793
      %v3795 = vrot.slane %v3793, 4
      %v3796 = vrot.slane %v2971, 5
      %v3797 = vsel %vm2180, %v3795, %v3796
      %v3798 = vrot.slane %v3680, 5
      %v3799 = vrot.slane %v3798, 4
      %v3800 = vrot.slane %v2973, 5
      %v3801 = vsel %vm2180, %v3799, %v3800
      %v3802 = vrot.slane %v3800, 4
      %v3803 = vrot.slane %v2974, 5
      %v3804 = vsel %vm2180, %v3802, %v3803
      %v3805 = vrot.slane %v3681, 5
      %v3806 = vrot.slane %v3805, 4
      %v3807 = vrot.slane %v2976, 5
      %v3808 = vsel %vm2180, %v3806, %v3807
      %v3809 = vrot.slane %v3807, 4
      %v3810 = vrot.slane %v2977, 5
      %v3811 = vsel %vm2180, %v3809, %v3810
      %v3812 = vrot.slane %v3682, 5
      %v3813 = vrot.slane %v3812, 4
      %v3814 = vrot.slane %v2979, 5
      %v3815 = vsel %vm2180, %v3813, %v3814
      %v3816 = vrot.slane %v3814, 4
      %v3817 = vrot.slane %v2980, 5
      %v3818 = vsel %vm2180, %v3816, %v3817
      %v3819 = vrot.slane %v3683, 5
      %v3820 = vrot.slane %v3819, 4
      %v3821 = vrot.slane %v2982, 5
      %v3822 = vsel %vm2180, %v3820, %v3821
      %v3823 = vrot.slane %v3821, 4
      %v3824 = vrot.slane %v2983, 5
      %v3825 = vsel %vm2180, %v3823, %v3824
      %v3826 = vrot.slane %v3684, 5
      %v3827 = vrot.slane %v3826, 4
      %v3828 = vrot.slane %v2985, 5
      %v3829 = vsel %vm2180, %v3827, %v3828
      %v3830 = vrot.slane %v3828, 4
      %v3831 = vrot.slane %v2986, 5
      %v3832 = vsel %vm2180, %v3830, %v3831
      %v3833 = vrot.slane %v3685, 5
      %v3834 = vrot.slane %v3833, 4
      %v3835 = vrot.slane %v2988, 5
      %v3836 = vsel %vm2180, %v3834, %v3835
      %v3837 = vrot.slane %v3835, 4
      %v3838 = vrot.slane %v2989, 5
      %v3839 = vsel %vm2180, %v3837, %v3838
      %v3840 = vrot.slane %v3686, 5
      %v3841 = vrot.slane %v3840, 4
      %v3842 = vrot.slane %v2991, 5
      %v3843 = vsel %vm2180, %v3841, %v3842
      %v3844 = vrot.slane %v3842, 4
      %v3845 = vrot.slane %v2992, 5
      %v3846 = vsel %vm2180, %v3844, %v3845
      %s3847 = scalar_lea.vmem %s3, 10
      %v3848 = vld [vmem:[%s3847] sm:$0x3]
      %v3849 = vunpack.c.l.b16 %v3738
      %v3850 = vunpack.c.l.b16 %v3741
      %v3851 = vunpack.c.l.b16 %v3745
      %v3852 = vunpack.c.l.b16 %v3748
      %v3853 = vunpack.c.l.b16 %v3752
      %v3854 = vunpack.c.l.b16 %v3755
      %v3855 = vunpack.c.l.b16 %v3759
      %v3856 = vunpack.c.l.b16 %v3762
      %v3857 = vunpack.c.l.b16 %v3766
      %v3858 = vunpack.c.l.b16 %v3769
      %v3859 = vunpack.c.l.b16 %v3773
      %v3860 = vunpack.c.l.b16 %v3776
      %v3861 = vunpack.c.l.b16 %v3780
      %v3862 = vunpack.c.l.b16 %v3783
      %v3863 = vunpack.c.l.b16 %v3787
      %v3864 = vunpack.c.l.b16 %v3790
      %v3865 = vunpack.c.l.b16 %v3794
      %v3866 = vunpack.c.l.b16 %v3797
      %v3867 = vunpack.c.l.b16 %v3801
      %v3868 = vunpack.c.l.b16 %v3804
      %v3869 = vunpack.c.l.b16 %v3808
      %v3870 = vunpack.c.l.b16 %v3811
      %v3871 = vunpack.c.l.b16 %v3815
      %v3872 = vunpack.c.l.b16 %v3818
      %v3873 = vunpack.c.l.b16 %v3822
      %v3874 = vunpack.c.l.b16 %v3825
      %v3875 = vunpack.c.l.b16 %v3829
      %v3876 = vunpack.c.l.b16 %v3832
      %v3877 = vunpack.c.l.b16 %v3836
      %v3878 = vunpack.c.l.b16 %v3839
      %v3879 = vunpack.c.l.b16 %v3843
      %v3880 = vunpack.c.l.b16 %v3846
      %v3881 = vpack.c.b16 %v3850, %v3849
      %v3882 = vpack.c.b16 %v3852, %v3851
      %v3883 = vpack.c.b16 %v3854, %v3853
      %v3884 = vpack.c.b16 %v3856, %v3855
      %v3885 = vpack.c.b16 %v3858, %v3857
      %v3886 = vpack.c.b16 %v3860, %v3859
      %v3887 = vpack.c.b16 %v3862, %v3861
      %v3888 = vpack.c.b16 %v3864, %v3863
      %v3889 = vpack.c.b16 %v3866, %v3865
      %v3890 = vpack.c.b16 %v3868, %v3867
      %v3891 = vpack.c.b16 %v3870, %v3869
      %v3892 = vpack.c.b16 %v3872, %v3871
      %v3893 = vpack.c.b16 %v3874, %v3873
      %v3894 = vpack.c.b16 %v3876, %v3875
      %v3895 = vpack.c.b16 %v3878, %v3877
      %v3896 = vpack.c.b16 %v3880, %v3879
      %v3898 = vsel %vm462, %v3881, 0
      %v3901 = vsel %vm462, %v3882, 0
      %v3904 = vsel %vm462, %v3883, 0
      %v3907 = vsel %vm462, %v3884, 0
      %v3910 = vsel %vm462, %v3885, 0
      %v3913 = vsel %vm462, %v3886, 0
      %v3916 = vsel %vm462, %v3887, 0
      %v3919 = vsel %vm462, %v3888, 0
      %v3922 = vsel %vm462, %v3889, 0
      %v3925 = vsel %vm462, %v3890, 0
      %v3928 = vsel %vm462, %v3891, 0
      %v3931 = vsel %vm462, %v3892, 0
      %v3934 = vsel %vm462, %v3893, 0
      %v3937 = vsel %vm462, %v3894, 0
      %v3940 = vsel %vm462, %v3895, 0
      %v3943 = vsel %vm462, %v3896, 0
      %v3946 = vsel %vm1673, %v3848, 0
      %3948 = vmatprep.subr.bf16.mxu0 0
      %3949 = vmatpush1.bf16.msra.mxu0 0
      %3950 = vmatprep.subr.bf16.mxu0 0
      %3951 = vmatpush1.bf16.msra.mxu0 0
      %3952 = vmatprep.subr.bf16.mxu0 0
      %3953 = vmatpush1.bf16.msra.mxu0 0
      %3954 = vmatprep.subr.bf16.mxu0 0
      %3955 = vmatpush1.bf16.msra.mxu0 0
      %3956 = vmatprep.subr.bf16.mxu0 0
      %3957 = vmatpush1.bf16.msra.mxu0 0
      %3958 = vmatprep.subr.bf16.mxu0 0
      %3959 = vmatpush1.bf16.msra.mxu0 0
      %3960 = vmatprep.subr.bf16.mxu0 0
      %3961 = vmatpush1.bf16.msra.mxu0 0
      %3962 = vmatprep.subr.bf16.mxu0 0
      %3963 = vmatpush1.bf16.msra.mxu0 %v3946
      %3964 = vmatprep.subr.bf16.mxu0 0
      %3965 = vmatpush2.bf16.msra.mxu0 0
      %3966 = vmatprep.subr.bf16.mxu0 0
      %3967 = vmatpush2.bf16.msra.mxu0 0
      %3968 = vmatprep.subr.bf16.mxu0 0
      %3969 = vmatpush2.bf16.msra.mxu0 0
      %3970 = vmatprep.subr.bf16.mxu0 0
      %3971 = vmatpush2.bf16.msra.mxu0 0
      %3972 = vmatprep.subr.bf16.mxu0 0
      %3973 = vmatpush2.bf16.msra.mxu0 0
      %3974 = vmatprep.subr.bf16.mxu0 0
      %3975 = vmatpush2.bf16.msra.mxu0 0
      %3976 = vmatprep.subr.bf16.mxu0 0
      %3977 = vmatpush2.bf16.msra.mxu0 0
      %3978 = vmatprep.subr.bf16.mxu0 0
      %3979 = vmatpush2.bf16.msra.mxu0 0
      %3980 = vmatprep.mubr.bf16.mxu0 0
      %3981 = vmatmul.mubr.bf16.gmra.mxu0 %v3898
      %v3982 = vpop.f32.mrf.mxu0
      %v3983 = vadd.f32 0.0, %v3982
      %v3984 = vpop.f32.mrf.mxu0
      %v3985 = vpop.f32.mrf.mxu0
      %v3986 = vadd.f32 0.0, %v3985
      %v3987 = vpop.f32.mrf.mxu0
      %3988 = vmatprep.mubr.bf16.mxu0 0
      %3989 = vmatmul.mubr.bf16.gmra.mxu0 %v3901
      %v3990 = vpop.f32.mrf.mxu0
      %v3991 = vadd.f32 0.0, %v3990
      %v3992 = vpop.f32.mrf.mxu0
      %v3993 = vpop.f32.mrf.mxu0
      %v3994 = vadd.f32 0.0, %v3993
      %v3995 = vpop.f32.mrf.mxu0
      %3996 = vmatprep.mubr.bf16.mxu0 0
      %3997 = vmatmul.mubr.bf16.gmra.mxu0 %v3904
      %v3998 = vpop.f32.mrf.mxu0
      %v3999 = vadd.f32 0.0, %v3998
      %v4000 = vpop.f32.mrf.mxu0
      %v4001 = vpop.f32.mrf.mxu0
      %v4002 = vadd.f32 0.0, %v4001
      %v4003 = vpop.f32.mrf.mxu0
      %4004 = vmatprep.mubr.bf16.mxu0 0
      %4005 = vmatmul.mubr.bf16.gmra.mxu0 %v3907
      %v4006 = vpop.f32.mrf.mxu0
      %v4007 = vadd.f32 0.0, %v4006
      %v4008 = vpop.f32.mrf.mxu0
      %v4009 = vpop.f32.mrf.mxu0
      %v4010 = vadd.f32 0.0, %v4009
      %v4011 = vpop.f32.mrf.mxu0
      %4012 = vmatprep.mubr.bf16.mxu0 0
      %4013 = vmatmul.mubr.bf16.gmra.mxu0 %v3910
      %v4014 = vpop.f32.mrf.mxu0
      %v4015 = vadd.f32 0.0, %v4014
      %v4016 = vpop.f32.mrf.mxu0
      %v4017 = vpop.f32.mrf.mxu0
      %v4018 = vadd.f32 0.0, %v4017
      %v4019 = vpop.f32.mrf.mxu0
      %4020 = vmatprep.mubr.bf16.mxu0 0
      %4021 = vmatmul.mubr.bf16.gmra.mxu0 %v3913
      %v4022 = vpop.f32.mrf.mxu0
      %v4023 = vadd.f32 0.0, %v4022
      %v4024 = vpop.f32.mrf.mxu0
      %v4025 = vpop.f32.mrf.mxu0
      %v4026 = vadd.f32 0.0, %v4025
      %v4027 = vpop.f32.mrf.mxu0
      %4028 = vmatprep.mubr.bf16.mxu0 0
      %4029 = vmatmul.mubr.bf16.gmra.mxu0 %v3916
      %v4030 = vpop.f32.mrf.mxu0
      %v4031 = vadd.f32 0.0, %v4030
      %v4032 = vpop.f32.mrf.mxu0
      %v4033 = vpop.f32.mrf.mxu0
      %v4034 = vadd.f32 0.0, %v4033
      %v4035 = vpop.f32.mrf.mxu0
      %4036 = vmatprep.mubr.bf16.mxu0 0
      %4037 = vmatmul.mubr.bf16.gmra.mxu0 %v3919
      %v4038 = vpop.f32.mrf.mxu0
      %v4039 = vadd.f32 0.0, %v4038
      %v4040 = vpop.f32.mrf.mxu0
      %v4041 = vpop.f32.mrf.mxu0
      %v4042 = vadd.f32 0.0, %v4041
      %v4043 = vpop.f32.mrf.mxu0
      %4044 = vmatprep.mubr.bf16.mxu0 0
      %4045 = vmatmul.mubr.bf16.gmra.mxu0 %v3922
      %v4046 = vpop.f32.mrf.mxu0
      %v4047 = vadd.f32 0.0, %v4046
      %v4048 = vpop.f32.mrf.mxu0
      %v4049 = vpop.f32.mrf.mxu0
      %v4050 = vadd.f32 0.0, %v4049
      %v4051 = vpop.f32.mrf.mxu0
      %4052 = vmatprep.mubr.bf16.mxu0 0
      %4053 = vmatmul.mubr.bf16.gmra.mxu0 %v3925
      %v4054 = vpop.f32.mrf.mxu0
      %v4055 = vadd.f32 0.0, %v4054
      %v4056 = vpop.f32.mrf.mxu0
      %v4057 = vpop.f32.mrf.mxu0
      %v4058 = vadd.f32 0.0, %v4057
      %v4059 = vpop.f32.mrf.mxu0
      %4060 = vmatprep.mubr.bf16.mxu0 0
      %4061 = vmatmul.mubr.bf16.gmra.mxu0 %v3928
      %v4062 = vpop.f32.mrf.mxu0
      %v4063 = vadd.f32 0.0, %v4062
      %v4064 = vpop.f32.mrf.mxu0
      %v4065 = vpop.f32.mrf.mxu0
      %v4066 = vadd.f32 0.0, %v4065
      %v4067 = vpop.f32.mrf.mxu0
      %4068 = vmatprep.mubr.bf16.mxu0 0
      %4069 = vmatmul.mubr.bf16.gmra.mxu0 %v3931
      %v4070 = vpop.f32.mrf.mxu0
      %v4071 = vadd.f32 0.0, %v4070
      %v4072 = vpop.f32.mrf.mxu0
      %v4073 = vpop.f32.mrf.mxu0
      %v4074 = vadd.f32 0.0, %v4073
      %v4075 = vpop.f32.mrf.mxu0
      %4076 = vmatprep.mubr.bf16.mxu0 0
      %4077 = vmatmul.mubr.bf16.gmra.mxu0 %v3934
      %v4078 = vpop.f32.mrf.mxu0
      %v4079 = vadd.f32 0.0, %v4078
      %v4080 = vpop.f32.mrf.mxu0
      %v4081 = vpop.f32.mrf.mxu0
      %v4082 = vadd.f32 0.0, %v4081
      %v4083 = vpop.f32.mrf.mxu0
      %4084 = vmatprep.mubr.bf16.mxu0 0
      %4085 = vmatmul.mubr.bf16.gmra.mxu0 %v3937
      %v4086 = vpop.f32.mrf.mxu0
      %v4087 = vadd.f32 0.0, %v4086
      %v4088 = vpop.f32.mrf.mxu0
      %v4089 = vpop.f32.mrf.mxu0
      %v4090 = vadd.f32 0.0, %v4089
      %v4091 = vpop.f32.mrf.mxu0
      %4092 = vmatprep.mubr.bf16.mxu0 0
      %4093 = vmatmul.mubr.bf16.gmra.mxu0 %v3940
      %v4094 = vpop.f32.mrf.mxu0
      %v4095 = vadd.f32 0.0, %v4094
      %v4096 = vpop.f32.mrf.mxu0
      %v4097 = vpop.f32.mrf.mxu0
      %v4098 = vadd.f32 0.0, %v4097
      %v4099 = vpop.f32.mrf.mxu0
      %4100 = vmatprep.mubr.bf16.mxu0 0
      %4101 = vmatmul.mubr.bf16.gmra.mxu0 %v3943
      %v4102 = vpop.f32.mrf.mxu0
      %v4103 = vadd.f32 0.0, %v4102
      %v4104 = vpop.f32.mrf.mxu0
      %v4105 = vpop.f32.mrf.mxu0
      %v4106 = vadd.f32 0.0, %v4105
      %v4107 = vpop.f32.mrf.mxu0
      %4108 = vdwg.mxu0
      %v4109 = vadd.f32 %v3639, %v3983
      %v4110 = vadd.f32 %v3640, %v3986
      %v4111 = vadd.f32 %v3641, %v3991
      %v4112 = vadd.f32 %v3642, %v3994
      %v4113 = vadd.f32 %v3643, %v3999
      %v4114 = vadd.f32 %v3644, %v4002
      %v4115 = vadd.f32 %v3645, %v4007
      %v4116 = vadd.f32 %v3646, %v4010
      %v4117 = vadd.f32 %v3647, %v4015
      %v4118 = vadd.f32 %v3648, %v4018
      %v4119 = vadd.f32 %v3649, %v4023
      %v4120 = vadd.f32 %v3650, %v4026
      %v4121 = vadd.f32 %v3651, %v4031
      %v4122 = vadd.f32 %v3652, %v4034
      %v4123 = vadd.f32 %v3653, %v4039
      %v4124 = vadd.f32 %v3654, %v4042
      %v4125 = vadd.f32 %v3655, %v4047
      %v4126 = vadd.f32 %v3656, %v4050
      %v4127 = vadd.f32 %v3657, %v4055
      %v4128 = vadd.f32 %v3658, %v4058
      %v4129 = vadd.f32 %v3659, %v4063
      %v4130 = vadd.f32 %v3660, %v4066
      %v4131 = vadd.f32 %v3661, %v4071
      %v4132 = vadd.f32 %v3662, %v4074
      %v4133 = vadd.f32 %v3663, %v4079
      %v4134 = vadd.f32 %v3664, %v4082
      %v4135 = vadd.f32 %v3665, %v4087
      %v4136 = vadd.f32 %v3666, %v4090
      %v4137 = vadd.f32 %v3667, %v4095
      %v4138 = vadd.f32 %v3668, %v4098
      %v4139 = vadd.f32 %v3669, %v4103
      %v4140 = vadd.f32 %v3670, %v4106
      %s4141 = scalar_lea.vmem [#allocation2], 24
      %v4142 = vld [vmem:[%s4141] sm:$0xf]
      %v4143 = vld [vmem:[%s4141 + $0x4] sm:$0xf]
      %v4144 = vld [vmem:[%s4141 + $0xc] sm:$0xf]
      %v4145 = vld [vmem:[%s4141 + $0x10] sm:$0xf]
      %v4146 = vld [vmem:[%s4141 + $0x18] sm:$0xf]
      %v4147 = vld [vmem:[%s4141 + $0x1c] sm:$0xf]
      %v4148 = vld [vmem:[%s4141 + $0x24] sm:$0xf]
      %v4149 = vld [vmem:[%s4141 + $0x28] sm:$0xf]
      %v4150 = vld [vmem:[%s4141 + $0x30] sm:$0xf]
      %v4151 = vld [vmem:[%s4141 + $0x34] sm:$0xf]
      %v4152 = vld [vmem:[%s4141 + $0x3c] sm:$0xf]
      %v4153 = vld [vmem:[%s4141 + $0x40] sm:$0xf]
      %v4154 = vld [vmem:[%s4141 + $0x48] sm:$0xf]
      %v4155 = vld [vmem:[%s4141 + $0x4c] sm:$0xf]
      %v4156 = vld [vmem:[%s4141 + $0x54] sm:$0xf]
      %v4157 = vld [vmem:[%s4141 + $0x58] sm:$0xf]
      %v4158 = vld [vmem:[%s4141 + $0x60] sm:$0xf]
      %v4159 = vld [vmem:[%s4141 + $0x64] sm:$0xf]
      %v4160 = vld [vmem:[%s4141 + $0x6c] sm:$0xf]
      %v4161 = vld [vmem:[%s4141 + $0x70] sm:$0xf]
      %v4162 = vld [vmem:[%s4141 + $0x78] sm:$0xf]
      %v4163 = vld [vmem:[%s4141 + $0x7c] sm:$0xf]
      %v4164 = vld [vmem:[%s4141 + $0x84] sm:$0xf]
      %v4165 = vld [vmem:[%s4141 + $0x88] sm:$0xf]
      %v4166 = vld [vmem:[%s4141 + $0x90] sm:$0xf]
      %v4167 = vld [vmem:[%s4141 + $0x94] sm:$0xf]
      %v4168 = vld [vmem:[%s4141 + $0x9c] sm:$0xf]
      %v4169 = vld [vmem:[%s4141 + $0xa0] sm:$0xf]
      %v4170 = vld [vmem:[%s4141 + $0xa8] sm:$0xf]
      %v4171 = vld [vmem:[%s4141 + $0xac] sm:$0xf]
      %v4172 = vld [vmem:[%s4141 + $0xb4] sm:$0xf]
      %v4173 = vld [vmem:[%s4141 + $0xb8] sm:$0xf]
      %s4174 = scalar_lea.vmem %s3, 12
      %v4175 = vld [vmem:[%s4174] sm:$0x3]
      %v4208 = vunpack.c.l.b16 %v4142
      %v4209 = vunpack.c.l.b16 %v4143
      %v4210 = vunpack.c.l.b16 %v4144
      %v4211 = vunpack.c.l.b16 %v4145
      %v4212 = vunpack.c.l.b16 %v4146
      %v4213 = vunpack.c.l.b16 %v4147
      %v4214 = vunpack.c.l.b16 %v4148
      %v4215 = vunpack.c.l.b16 %v4149
      %v4216 = vunpack.c.l.b16 %v4150
      %v4217 = vunpack.c.l.b16 %v4151
      %v4218 = vunpack.c.l.b16 %v4152
      %v4219 = vunpack.c.l.b16 %v4153
      %v4220 = vunpack.c.l.b16 %v4154
      %v4221 = vunpack.c.l.b16 %v4155
      %v4222 = vunpack.c.l.b16 %v4156
      %v4223 = vunpack.c.l.b16 %v4157
      %v4224 = vunpack.c.l.b16 %v4158
      %v4225 = vunpack.c.l.b16 %v4159
      %v4226 = vunpack.c.l.b16 %v4160
      %v4227 = vunpack.c.l.b16 %v4161
      %v4228 = vunpack.c.l.b16 %v4162
      %v4229 = vunpack.c.l.b16 %v4163
      %v4230 = vunpack.c.l.b16 %v4164
      %v4231 = vunpack.c.l.b16 %v4165
      %v4232 = vunpack.c.l.b16 %v4166
      %v4233 = vunpack.c.l.b16 %v4167
      %v4234 = vunpack.c.l.b16 %v4168
      %v4235 = vunpack.c.l.b16 %v4169
      %v4236 = vunpack.c.l.b16 %v4170
      %v4237 = vunpack.c.l.b16 %v4171
      %v4238 = vunpack.c.l.b16 %v4172
      %v4239 = vunpack.c.l.b16 %v4173
      %v4240 = vpack.c.b16 %v4209, %v4208
      %v4241 = vpack.c.b16 %v4211, %v4210
      %v4242 = vpack.c.b16 %v4213, %v4212
      %v4243 = vpack.c.b16 %v4215, %v4214
      %v4244 = vpack.c.b16 %v4217, %v4216
      %v4245 = vpack.c.b16 %v4219, %v4218
      %v4246 = vpack.c.b16 %v4221, %v4220
      %v4247 = vpack.c.b16 %v4223, %v4222
      %v4248 = vpack.c.b16 %v4225, %v4224
      %v4249 = vpack.c.b16 %v4227, %v4226
      %v4250 = vpack.c.b16 %v4229, %v4228
      %v4251 = vpack.c.b16 %v4231, %v4230
      %v4252 = vpack.c.b16 %v4233, %v4232
      %v4253 = vpack.c.b16 %v4235, %v4234
      %v4254 = vpack.c.b16 %v4237, %v4236
      %v4255 = vpack.c.b16 %v4239, %v4238
      %v4257 = vsel %vm462, %v4240, 0
      %v4260 = vsel %vm462, %v4241, 0
      %v4263 = vsel %vm462, %v4242, 0
      %v4266 = vsel %vm462, %v4243, 0
      %v4269 = vsel %vm462, %v4244, 0
      %v4272 = vsel %vm462, %v4245, 0
      %v4275 = vsel %vm462, %v4246, 0
      %v4278 = vsel %vm462, %v4247, 0
      %v4281 = vsel %vm462, %v4248, 0
      %v4284 = vsel %vm462, %v4249, 0
      %v4287 = vsel %vm462, %v4250, 0
      %v4290 = vsel %vm462, %v4251, 0
      %v4293 = vsel %vm462, %v4252, 0
      %v4296 = vsel %vm462, %v4253, 0
      %v4299 = vsel %vm462, %v4254, 0
      %v4302 = vsel %vm462, %v4255, 0
      %v4305 = vsel %vm1673, %v4175, 0
      %4307 = vmatprep.subr.bf16.mxu0 0
      %4308 = vmatpush1.bf16.msra.mxu0 0
      %4309 = vmatprep.subr.bf16.mxu0 0
      %4310 = vmatpush1.bf16.msra.mxu0 0
      %4311 = vmatprep.subr.bf16.mxu0 0
      %4312 = vmatpush1.bf16.msra.mxu0 0
      %4313 = vmatprep.subr.bf16.mxu0 0
      %4314 = vmatpush1.bf16.msra.mxu0 0
      %4315 = vmatprep.subr.bf16.mxu0 0
      %4316 = vmatpush1.bf16.msra.mxu0 0
      %4317 = vmatprep.subr.bf16.mxu0 0
      %4318 = vmatpush1.bf16.msra.mxu0 0
      %4319 = vmatprep.subr.bf16.mxu0 0
      %4320 = vmatpush1.bf16.msra.mxu0 0
      %4321 = vmatprep.subr.bf16.mxu0 0
      %4322 = vmatpush1.bf16.msra.mxu0 %v4305
      %4323 = vmatprep.subr.bf16.mxu0 0
      %4324 = vmatpush2.bf16.msra.mxu0 0
      %4325 = vmatprep.subr.bf16.mxu0 0
      %4326 = vmatpush2.bf16.msra.mxu0 0
      %4327 = vmatprep.subr.bf16.mxu0 0
      %4328 = vmatpush2.bf16.msra.mxu0 0
      %4329 = vmatprep.subr.bf16.mxu0 0
      %4330 = vmatpush2.bf16.msra.mxu0 0
      %4331 = vmatprep.subr.bf16.mxu0 0
      %4332 = vmatpush2.bf16.msra.mxu0 0
      %4333 = vmatprep.subr.bf16.mxu0 0
      %4334 = vmatpush2.bf16.msra.mxu0 0
      %4335 = vmatprep.subr.bf16.mxu0 0
      %4336 = vmatpush2.bf16.msra.mxu0 0
      %4337 = vmatprep.subr.bf16.mxu0 0
      %4338 = vmatpush2.bf16.msra.mxu0 0
      %4339 = vmatprep.mubr.bf16.mxu0 0
      %4340 = vmatmul.mubr.bf16.gmra.mxu0 %v4257
      %v4341 = vpop.f32.mrf.mxu0
      %v4342 = vadd.f32 0.0, %v4341
      %v4343 = vpop.f32.mrf.mxu0
      %v4344 = vpop.f32.mrf.mxu0
      %v4345 = vadd.f32 0.0, %v4344
      %v4346 = vpop.f32.mrf.mxu0
      %4347 = vmatprep.mubr.bf16.mxu0 0
      %4348 = vmatmul.mubr.bf16.gmra.mxu0 %v4260
      %v4349 = vpop.f32.mrf.mxu0
      %v4350 = vadd.f32 0.0, %v4349
      %v4351 = vpop.f32.mrf.mxu0
      %v4352 = vpop.f32.mrf.mxu0
      %v4353 = vadd.f32 0.0, %v4352
      %v4354 = vpop.f32.mrf.mxu0
      %4355 = vmatprep.mubr.bf16.mxu0 0
      %4356 = vmatmul.mubr.bf16.gmra.mxu0 %v4263
      %v4357 = vpop.f32.mrf.mxu0
      %v4358 = vadd.f32 0.0, %v4357
      %v4359 = vpop.f32.mrf.mxu0
      %v4360 = vpop.f32.mrf.mxu0
      %v4361 = vadd.f32 0.0, %v4360
      %v4362 = vpop.f32.mrf.mxu0
      %4363 = vmatprep.mubr.bf16.mxu0 0
      %4364 = vmatmul.mubr.bf16.gmra.mxu0 %v4266
      %v4365 = vpop.f32.mrf.mxu0
      %v4366 = vadd.f32 0.0, %v4365
      %v4367 = vpop.f32.mrf.mxu0
      %v4368 = vpop.f32.mrf.mxu0
      %v4369 = vadd.f32 0.0, %v4368
      %v4370 = vpop.f32.mrf.mxu0
      %4371 = vmatprep.mubr.bf16.mxu0 0
      %4372 = vmatmul.mubr.bf16.gmra.mxu0 %v4269
      %v4373 = vpop.f32.mrf.mxu0
      %v4374 = vadd.f32 0.0, %v4373
      %v4375 = vpop.f32.mrf.mxu0
      %v4376 = vpop.f32.mrf.mxu0
      %v4377 = vadd.f32 0.0, %v4376
      %v4378 = vpop.f32.mrf.mxu0
      %4379 = vmatprep.mubr.bf16.mxu0 0
      %4380 = vmatmul.mubr.bf16.gmra.mxu0 %v4272
      %v4381 = vpop.f32.mrf.mxu0
      %v4382 = vadd.f32 0.0, %v4381
      %v4383 = vpop.f32.mrf.mxu0
      %v4384 = vpop.f32.mrf.mxu0
      %v4385 = vadd.f32 0.0, %v4384
      %v4386 = vpop.f32.mrf.mxu0
      %4387 = vmatprep.mubr.bf16.mxu0 0
      %4388 = vmatmul.mubr.bf16.gmra.mxu0 %v4275
      %v4389 = vpop.f32.mrf.mxu0
      %v4390 = vadd.f32 0.0, %v4389
      %v4391 = vpop.f32.mrf.mxu0
      %v4392 = vpop.f32.mrf.mxu0
      %v4393 = vadd.f32 0.0, %v4392
      %v4394 = vpop.f32.mrf.mxu0
      %4395 = vmatprep.mubr.bf16.mxu0 0
      %4396 = vmatmul.mubr.bf16.gmra.mxu0 %v4278
      %v4397 = vpop.f32.mrf.mxu0
      %v4398 = vadd.f32 0.0, %v4397
      %v4399 = vpop.f32.mrf.mxu0
      %v4400 = vpop.f32.mrf.mxu0
      %v4401 = vadd.f32 0.0, %v4400
      %v4402 = vpop.f32.mrf.mxu0
      %4403 = vmatprep.mubr.bf16.mxu0 0
      %4404 = vmatmul.mubr.bf16.gmra.mxu0 %v4281
      %v4405 = vpop.f32.mrf.mxu0
      %v4406 = vadd.f32 0.0, %v4405
      %v4407 = vpop.f32.mrf.mxu0
      %v4408 = vpop.f32.mrf.mxu0
      %v4409 = vadd.f32 0.0, %v4408
      %v4410 = vpop.f32.mrf.mxu0
      %4411 = vmatprep.mubr.bf16.mxu0 0
      %4412 = vmatmul.mubr.bf16.gmra.mxu0 %v4284
      %v4413 = vpop.f32.mrf.mxu0
      %v4414 = vadd.f32 0.0, %v4413
      %v4415 = vpop.f32.mrf.mxu0
      %v4416 = vpop.f32.mrf.mxu0
      %v4417 = vadd.f32 0.0, %v4416
      %v4418 = vpop.f32.mrf.mxu0
      %4419 = vmatprep.mubr.bf16.mxu0 0
      %4420 = vmatmul.mubr.bf16.gmra.mxu0 %v4287
      %v4421 = vpop.f32.mrf.mxu0
      %v4422 = vadd.f32 0.0, %v4421
      %v4423 = vpop.f32.mrf.mxu0
      %v4424 = vpop.f32.mrf.mxu0
      %v4425 = vadd.f32 0.0, %v4424
      %v4426 = vpop.f32.mrf.mxu0
      %4427 = vmatprep.mubr.bf16.mxu0 0
      %4428 = vmatmul.mubr.bf16.gmra.mxu0 %v4290
      %v4429 = vpop.f32.mrf.mxu0
      %v4430 = vadd.f32 0.0, %v4429
      %v4431 = vpop.f32.mrf.mxu0
      %v4432 = vpop.f32.mrf.mxu0
      %v4433 = vadd.f32 0.0, %v4432
      %v4434 = vpop.f32.mrf.mxu0
      %4435 = vmatprep.mubr.bf16.mxu0 0
      %4436 = vmatmul.mubr.bf16.gmra.mxu0 %v4293
      %v4437 = vpop.f32.mrf.mxu0
      %v4438 = vadd.f32 0.0, %v4437
      %v4439 = vpop.f32.mrf.mxu0
      %v4440 = vpop.f32.mrf.mxu0
      %v4441 = vadd.f32 0.0, %v4440
      %v4442 = vpop.f32.mrf.mxu0
      %4443 = vmatprep.mubr.bf16.mxu0 0
      %4444 = vmatmul.mubr.bf16.gmra.mxu0 %v4296
      %v4445 = vpop.f32.mrf.mxu0
      %v4446 = vadd.f32 0.0, %v4445
      %v4447 = vpop.f32.mrf.mxu0
      %v4448 = vpop.f32.mrf.mxu0
      %v4449 = vadd.f32 0.0, %v4448
      %v4450 = vpop.f32.mrf.mxu0
      %4451 = vmatprep.mubr.bf16.mxu0 0
      %4452 = vmatmul.mubr.bf16.gmra.mxu0 %v4299
      %v4453 = vpop.f32.mrf.mxu0
      %v4454 = vadd.f32 0.0, %v4453
      %v4455 = vpop.f32.mrf.mxu0
      %v4456 = vpop.f32.mrf.mxu0
      %v4457 = vadd.f32 0.0, %v4456
      %v4458 = vpop.f32.mrf.mxu0
      %4459 = vmatprep.mubr.bf16.mxu0 0
      %4460 = vmatmul.mubr.bf16.gmra.mxu0 %v4302
      %v4461 = vpop.f32.mrf.mxu0
      %v4462 = vadd.f32 0.0, %v4461
      %v4463 = vpop.f32.mrf.mxu0
      %v4464 = vpop.f32.mrf.mxu0
      %v4465 = vadd.f32 0.0, %v4464
      %v4466 = vpop.f32.mrf.mxu0
      %4467 = vdwg.mxu0
      %v4468 = vadd.f32 %v4109, %v4342
      %v4469 = vadd.f32 %v4110, %v4345
      %v4470 = vadd.f32 %v4111, %v4350
      %v4471 = vadd.f32 %v4112, %v4353
      %v4472 = vadd.f32 %v4113, %v4358
      %v4473 = vadd.f32 %v4114, %v4361
      %v4474 = vadd.f32 %v4115, %v4366
      %v4475 = vadd.f32 %v4116, %v4369
      %v4476 = vadd.f32 %v4117, %v4374
      %v4477 = vadd.f32 %v4118, %v4377
      %v4478 = vadd.f32 %v4119, %v4382
      %v4479 = vadd.f32 %v4120, %v4385
      %v4480 = vadd.f32 %v4121, %v4390
      %v4481 = vadd.f32 %v4122, %v4393
      %v4482 = vadd.f32 %v4123, %v4398
      %v4483 = vadd.f32 %v4124, %v4401
      %v4484 = vadd.f32 %v4125, %v4406
      %v4485 = vadd.f32 %v4126, %v4409
      %v4486 = vadd.f32 %v4127, %v4414
      %v4487 = vadd.f32 %v4128, %v4417
      %v4488 = vadd.f32 %v4129, %v4422
      %v4489 = vadd.f32 %v4130, %v4425
      %v4490 = vadd.f32 %v4131, %v4430
      %v4491 = vadd.f32 %v4132, %v4433
      %v4492 = vadd.f32 %v4133, %v4438
      %v4493 = vadd.f32 %v4134, %v4441
      %v4494 = vadd.f32 %v4135, %v4446
      %v4495 = vadd.f32 %v4136, %v4449
      %v4496 = vadd.f32 %v4137, %v4454
      %v4497 = vadd.f32 %v4138, %v4457
      %v4498 = vadd.f32 %v4139, %v4462
      %v4499 = vadd.f32 %v4140, %v4465
      %v4500 = vld [vmem:[%s4141] sm:$0xf]
      %v4501 = vld [vmem:[%s4141 + $0x4] sm:$0xf]
      %v4502 = vld [vmem:[%s4141 + $0x8] sm:$0x1]
      %v4503 = vld [vmem:[%s4141 + $0xc] sm:$0xf]
      %v4504 = vld [vmem:[%s4141 + $0x10] sm:$0xf]
      %v4505 = vld [vmem:[%s4141 + $0x14] sm:$0x1]
      %v4506 = vld [vmem:[%s4141 + $0x18] sm:$0xf]
      %v4507 = vld [vmem:[%s4141 + $0x1c] sm:$0xf]
      %v4508 = vld [vmem:[%s4141 + $0x20] sm:$0x1]
      %v4509 = vld [vmem:[%s4141 + $0x24] sm:$0xf]
      %v4510 = vld [vmem:[%s4141 + $0x28] sm:$0xf]
      %v4511 = vld [vmem:[%s4141 + $0x2c] sm:$0x1]
      %v4512 = vld [vmem:[%s4141 + $0x30] sm:$0xf]
      %v4513 = vld [vmem:[%s4141 + $0x34] sm:$0xf]
      %v4514 = vld [vmem:[%s4141 + $0x38] sm:$0x1]
      %v4515 = vld [vmem:[%s4141 + $0x3c] sm:$0xf]
      %v4516 = vld [vmem:[%s4141 + $0x40] sm:$0xf]
      %v4517 = vld [vmem:[%s4141 + $0x44] sm:$0x1]
      %v4518 = vld [vmem:[%s4141 + $0x48] sm:$0xf]
      %v4519 = vld [vmem:[%s4141 + $0x4c] sm:$0xf]
      %v4520 = vld [vmem:[%s4141 + $0x50] sm:$0x1]
      %v4521 = vld [vmem:[%s4141 + $0x54] sm:$0xf]
      %v4522 = vld [vmem:[%s4141 + $0x58] sm:$0xf]
      %v4523 = vld [vmem:[%s4141 + $0x5c] sm:$0x1]
      %v4524 = vld [vmem:[%s4141 + $0x60] sm:$0xf]
      %v4525 = vld [vmem:[%s4141 + $0x64] sm:$0xf]
      %v4526 = vld [vmem:[%s4141 + $0x68] sm:$0x1]
      %v4527 = vld [vmem:[%s4141 + $0x6c] sm:$0xf]
      %v4528 = vld [vmem:[%s4141 + $0x70] sm:$0xf]
      %v4529 = vld [vmem:[%s4141 + $0x74] sm:$0x1]
      %v4530 = vld [vmem:[%s4141 + $0x78] sm:$0xf]
      %v4531 = vld [vmem:[%s4141 + $0x7c] sm:$0xf]
      %v4532 = vld [vmem:[%s4141 + $0x80] sm:$0x1]
      %v4533 = vld [vmem:[%s4141 + $0x84] sm:$0xf]
      %v4534 = vld [vmem:[%s4141 + $0x88] sm:$0xf]
      %v4535 = vld [vmem:[%s4141 + $0x8c] sm:$0x1]
      %v4536 = vld [vmem:[%s4141 + $0x90] sm:$0xf]
      %v4537 = vld [vmem:[%s4141 + $0x94] sm:$0xf]
      %v4538 = vld [vmem:[%s4141 + $0x98] sm:$0x1]
      %v4539 = vld [vmem:[%s4141 + $0x9c] sm:$0xf]
      %v4540 = vld [vmem:[%s4141 + $0xa0] sm:$0xf]
      %v4541 = vld [vmem:[%s4141 + $0xa4] sm:$0x1]
      %v4542 = vld [vmem:[%s4141 + $0xa8] sm:$0xf]
      %v4543 = vld [vmem:[%s4141 + $0xac] sm:$0xf]
      %v4544 = vld [vmem:[%s4141 + $0xb0] sm:$0x1]
      %v4545 = vld [vmem:[%s4141 + $0xb4] sm:$0xf]
      %v4546 = vld [vmem:[%s4141 + $0xb8] sm:$0xf]
      %v4547 = vld [vmem:[%s4141 + $0xbc] sm:$0x1]
      %v4549 = vshrl.u32 %v4500, 16
      %v4551 = vrot.slane %v4549, 4
      %v4552 = vshll.u32 %v4500, 16
      %v4554 = vrot.slane %v4552, 5
      %v4555 = vor.u32 %v4551, %v4554
      %v4556 = vrot.slane %v4555, 4
      %v4558 = vshll.u32 %v4501, 16
      %v4560 = vrot.slane %v4558, 5
      %v4561 = vsel %vm1190, %v4556, %v4560
      %v4562 = vshrl.u32 %v4501, 16
      %v4564 = vrot.slane %v4562, 4
      %v4565 = vor.u32 %v4564, %v4560
      %v4566 = vrot.slane %v4565, 4
      %v4568 = vshll.u32 %v4502, 16
      %v4570 = vrot.slane %v4568, 5
      %v4571 = vsel %vm1190, %v4566, %v4570
      %v4573 = vshrl.u32 %v4503, 16
      %v4575 = vrot.slane %v4573, 4
      %v4576 = vshll.u32 %v4503, 16
      %v4578 = vrot.slane %v4576, 5
      %v4579 = vor.u32 %v4575, %v4578
      %v4580 = vrot.slane %v4579, 4
      %v4582 = vshll.u32 %v4504, 16
      %v4584 = vrot.slane %v4582, 5
      %v4585 = vsel %vm1190, %v4580, %v4584
      %v4586 = vshrl.u32 %v4504, 16
      %v4588 = vrot.slane %v4586, 4
      %v4589 = vor.u32 %v4588, %v4584
      %v4590 = vrot.slane %v4589, 4
      %v4592 = vshll.u32 %v4505, 16
      %v4594 = vrot.slane %v4592, 5
      %v4595 = vsel %vm1190, %v4590, %v4594
      %v4597 = vshrl.u32 %v4506, 16
      %v4599 = vrot.slane %v4597, 4
      %v4600 = vshll.u32 %v4506, 16
      %v4602 = vrot.slane %v4600, 5
      %v4603 = vor.u32 %v4599, %v4602
      %v4604 = vrot.slane %v4603, 4
      %v4606 = vshll.u32 %v4507, 16
      %v4608 = vrot.slane %v4606, 5
      %v4609 = vsel %vm1190, %v4604, %v4608
      %v4610 = vshrl.u32 %v4507, 16
      %v4612 = vrot.slane %v4610, 4
      %v4613 = vor.u32 %v4612, %v4608
      %v4614 = vrot.slane %v4613, 4
      %v4616 = vshll.u32 %v4508, 16
      %v4618 = vrot.slane %v4616, 5
      %v4619 = vsel %vm1190, %v4614, %v4618
      %v4621 = vshrl.u32 %v4509, 16
      %v4623 = vrot.slane %v4621, 4
      %v4624 = vshll.u32 %v4509, 16
      %v4626 = vrot.slane %v4624, 5
      %v4627 = vor.u32 %v4623, %v4626
      %v4628 = vrot.slane %v4627, 4
      %v4630 = vshll.u32 %v4510, 16
      %v4632 = vrot.slane %v4630, 5
      %v4633 = vsel %vm1190, %v4628, %v4632
      %v4634 = vshrl.u32 %v4510, 16
      %v4636 = vrot.slane %v4634, 4
      %v4637 = vor.u32 %v4636, %v4632
      %v4638 = vrot.slane %v4637, 4
      %v4640 = vshll.u32 %v4511, 16
      %v4642 = vrot.slane %v4640, 5
      %v4643 = vsel %vm1190, %v4638, %v4642
      %v4645 = vshrl.u32 %v4512, 16
      %v4647 = vrot.slane %v4645, 4
      %v4648 = vshll.u32 %v4512, 16
      %v4650 = vrot.slane %v4648, 5
      %v4651 = vor.u32 %v4647, %v4650
      %v4652 = vrot.slane %v4651, 4
      %v4654 = vshll.u32 %v4513, 16
      %v4656 = vrot.slane %v4654, 5
      %v4657 = vsel %vm1190, %v4652, %v4656
      %v4658 = vshrl.u32 %v4513, 16
      %v4660 = vrot.slane %v4658, 4
      %v4661 = vor.u32 %v4660, %v4656
      %v4662 = vrot.slane %v4661, 4
      %v4664 = vshll.u32 %v4514, 16
      %v4666 = vrot.slane %v4664, 5
      %v4667 = vsel %vm1190, %v4662, %v4666
      %v4669 = vshrl.u32 %v4515, 16
      %v4671 = vrot.slane %v4669, 4
      %v4672 = vshll.u32 %v4515, 16
      %v4674 = vrot.slane %v4672, 5
      %v4675 = vor.u32 %v4671, %v4674
      %v4676 = vrot.slane %v4675, 4
      %v4678 = vshll.u32 %v4516, 16
      %v4680 = vrot.slane %v4678, 5
      %v4681 = vsel %vm1190, %v4676, %v4680
      %v4682 = vshrl.u32 %v4516, 16
      %v4684 = vrot.slane %v4682, 4
      %v4685 = vor.u32 %v4684, %v4680
      %v4686 = vrot.slane %v4685, 4
      %v4688 = vshll.u32 %v4517, 16
      %v4690 = vrot.slane %v4688, 5
      %v4691 = vsel %vm1190, %v4686, %v4690
      %v4693 = vshrl.u32 %v4518, 16
      %v4695 = vrot.slane %v4693, 4
      %v4696 = vshll.u32 %v4518, 16
      %v4698 = vrot.slane %v4696, 5
      %v4699 = vor.u32 %v4695, %v4698
      %v4700 = vrot.slane %v4699, 4
      %v4702 = vshll.u32 %v4519, 16
      %v4704 = vrot.slane %v4702, 5
      %v4705 = vsel %vm1190, %v4700, %v4704
      %v4706 = vshrl.u32 %v4519, 16
      %v4708 = vrot.slane %v4706, 4
      %v4709 = vor.u32 %v4708, %v4704
      %v4710 = vrot.slane %v4709, 4
      %v4712 = vshll.u32 %v4520, 16
      %v4714 = vrot.slane %v4712, 5
      %v4715 = vsel %vm1190, %v4710, %v4714
      %v4717 = vshrl.u32 %v4521, 16
      %v4719 = vrot.slane %v4717, 4
      %v4720 = vshll.u32 %v4521, 16
      %v4722 = vrot.slane %v4720, 5
      %v4723 = vor.u32 %v4719, %v4722
      %v4724 = vrot.slane %v4723, 4
      %v4726 = vshll.u32 %v4522, 16
      %v4728 = vrot.slane %v4726, 5
      %v4729 = vsel %vm1190, %v4724, %v4728
      %v4730 = vshrl.u32 %v4522, 16
      %v4732 = vrot.slane %v4730, 4
      %v4733 = vor.u32 %v4732, %v4728
      %v4734 = vrot.slane %v4733, 4
      %v4736 = vshll.u32 %v4523, 16
      %v4738 = vrot.slane %v4736, 5
      %v4739 = vsel %vm1190, %v4734, %v4738
      %v4741 = vshrl.u32 %v4524, 16
      %v4743 = vrot.slane %v4741, 4
      %v4744 = vshll.u32 %v4524, 16
      %v4746 = vrot.slane %v4744, 5
      %v4747 = vor.u32 %v4743, %v4746
      %v4748 = vrot.slane %v4747, 4
      %v4750 = vshll.u32 %v4525, 16
      %v4752 = vrot.slane %v4750, 5
      %v4753 = vsel %vm1190, %v4748, %v4752
      %v4754 = vshrl.u32 %v4525, 16
      %v4756 = vrot.slane %v4754, 4
      %v4757 = vor.u32 %v4756, %v4752
      %v4758 = vrot.slane %v4757, 4
      %v4760 = vshll.u32 %v4526, 16
      %v4762 = vrot.slane %v4760, 5
      %v4763 = vsel %vm1190, %v4758, %v4762
      %v4765 = vshrl.u32 %v4527, 16
      %v4767 = vrot.slane %v4765, 4
      %v4768 = vshll.u32 %v4527, 16
      %v4770 = vrot.slane %v4768, 5
      %v4771 = vor.u32 %v4767, %v4770
      %v4772 = vrot.slane %v4771, 4
      %v4774 = vshll.u32 %v4528, 16
      %v4776 = vrot.slane %v4774, 5
      %v4777 = vsel %vm1190, %v4772, %v4776
      %v4778 = vshrl.u32 %v4528, 16
      %v4780 = vrot.slane %v4778, 4
      %v4781 = vor.u32 %v4780, %v4776
      %v4782 = vrot.slane %v4781, 4
      %v4784 = vshll.u32 %v4529, 16
      %v4786 = vrot.slane %v4784, 5
      %v4787 = vsel %vm1190, %v4782, %v4786
      %v4789 = vshrl.u32 %v4530, 16
      %v4791 = vrot.slane %v4789, 4
      %v4792 = vshll.u32 %v4530, 16
      %v4794 = vrot.slane %v4792, 5
      %v4795 = vor.u32 %v4791, %v4794
      %v4796 = vrot.slane %v4795, 4
      %v4798 = vshll.u32 %v4531, 16
      %v4800 = vrot.slane %v4798, 5
      %v4801 = vsel %vm1190, %v4796, %v4800
      %v4802 = vshrl.u32 %v4531, 16
      %v4804 = vrot.slane %v4802, 4
      %v4805 = vor.u32 %v4804, %v4800
      %v4806 = vrot.slane %v4805, 4
      %v4808 = vshll.u32 %v4532, 16
      %v4810 = vrot.slane %v4808, 5
      %v4811 = vsel %vm1190, %v4806, %v4810
      %v4813 = vshrl.u32 %v4533, 16
      %v4815 = vrot.slane %v4813, 4
      %v4816 = vshll.u32 %v4533, 16
      %v4818 = vrot.slane %v4816, 5
      %v4819 = vor.u32 %v4815, %v4818
      %v4820 = vrot.slane %v4819, 4
      %v4822 = vshll.u32 %v4534, 16
      %v4824 = vrot.slane %v4822, 5
      %v4825 = vsel %vm1190, %v4820, %v4824
      %v4826 = vshrl.u32 %v4534, 16
      %v4828 = vrot.slane %v4826, 4
      %v4829 = vor.u32 %v4828, %v4824
      %v4830 = vrot.slane %v4829, 4
      %v4832 = vshll.u32 %v4535, 16
      %v4834 = vrot.slane %v4832, 5
      %v4835 = vsel %vm1190, %v4830, %v4834
      %v4837 = vshrl.u32 %v4536, 16
      %v4839 = vrot.slane %v4837, 4
      %v4840 = vshll.u32 %v4536, 16
      %v4842 = vrot.slane %v4840, 5
      %v4843 = vor.u32 %v4839, %v4842
      %v4844 = vrot.slane %v4843, 4
      %v4846 = vshll.u32 %v4537, 16
      %v4848 = vrot.slane %v4846, 5
      %v4849 = vsel %vm1190, %v4844, %v4848
      %v4850 = vshrl.u32 %v4537, 16
      %v4852 = vrot.slane %v4850, 4
      %v4853 = vor.u32 %v4852, %v4848
      %v4854 = vrot.slane %v4853, 4
      %v4856 = vshll.u32 %v4538, 16
      %v4858 = vrot.slane %v4856, 5
      %v4859 = vsel %vm1190, %v4854, %v4858
      %v4861 = vshrl.u32 %v4539, 16
      %v4863 = vrot.slane %v4861, 4
      %v4864 = vshll.u32 %v4539, 16
      %v4866 = vrot.slane %v4864, 5
      %v4867 = vor.u32 %v4863, %v4866
      %v4868 = vrot.slane %v4867, 4
      %v4870 = vshll.u32 %v4540, 16
      %v4872 = vrot.slane %v4870, 5
      %v4873 = vsel %vm1190, %v4868, %v4872
      %v4874 = vshrl.u32 %v4540, 16
      %v4876 = vrot.slane %v4874, 4
      %v4877 = vor.u32 %v4876, %v4872
      %v4878 = vrot.slane %v4877, 4
      %v4880 = vshll.u32 %v4541, 16
      %v4882 = vrot.slane %v4880, 5
      %v4883 = vsel %vm1190, %v4878, %v4882
      %v4885 = vshrl.u32 %v4542, 16
      %v4887 = vrot.slane %v4885, 4
      %v4888 = vshll.u32 %v4542, 16
      %v4890 = vrot.slane %v4888, 5
      %v4891 = vor.u32 %v4887, %v4890
      %v4892 = vrot.slane %v4891, 4
      %v4894 = vshll.u32 %v4543, 16
      %v4896 = vrot.slane %v4894, 5
      %v4897 = vsel %vm1190, %v4892, %v4896
      %v4898 = vshrl.u32 %v4543, 16
      %v4900 = vrot.slane %v4898, 4
      %v4901 = vor.u32 %v4900, %v4896
      %v4902 = vrot.slane %v4901, 4
      %v4904 = vshll.u32 %v4544, 16
      %v4906 = vrot.slane %v4904, 5
      %v4907 = vsel %vm1190, %v4902, %v4906
      %v4909 = vshrl.u32 %v4545, 16
      %v4911 = vrot.slane %v4909, 4
      %v4912 = vshll.u32 %v4545, 16
      %v4914 = vrot.slane %v4912, 5
      %v4915 = vor.u32 %v4911, %v4914
      %v4916 = vrot.slane %v4915, 4
      %v4918 = vshll.u32 %v4546, 16
      %v4920 = vrot.slane %v4918, 5
      %v4921 = vsel %vm1190, %v4916, %v4920
      %v4922 = vshrl.u32 %v4546, 16
      %v4924 = vrot.slane %v4922, 4
      %v4925 = vor.u32 %v4924, %v4920
      %v4926 = vrot.slane %v4925, 4
      %v4928 = vshll.u32 %v4547, 16
      %v4930 = vrot.slane %v4928, 5
      %v4931 = vsel %vm1190, %v4926, %v4930
      %s4932 = scalar_lea.vmem %s3, 14
      %v4933 = vld [vmem:[%s4932] sm:$0x3]
      %v4934 = vunpack.c.l.b16 %v4561
      %v4935 = vunpack.c.l.b16 %v4571
      %v4936 = vunpack.c.l.b16 %v4585
      %v4937 = vunpack.c.l.b16 %v4595
      %v4938 = vunpack.c.l.b16 %v4609
      %v4939 = vunpack.c.l.b16 %v4619
      %v4940 = vunpack.c.l.b16 %v4633
      %v4941 = vunpack.c.l.b16 %v4643
      %v4942 = vunpack.c.l.b16 %v4657
      %v4943 = vunpack.c.l.b16 %v4667
      %v4944 = vunpack.c.l.b16 %v4681
      %v4945 = vunpack.c.l.b16 %v4691
      %v4946 = vunpack.c.l.b16 %v4705
      %v4947 = vunpack.c.l.b16 %v4715
      %v4948 = vunpack.c.l.b16 %v4729
      %v4949 = vunpack.c.l.b16 %v4739
      %v4950 = vunpack.c.l.b16 %v4753
      %v4951 = vunpack.c.l.b16 %v4763
      %v4952 = vunpack.c.l.b16 %v4777
      %v4953 = vunpack.c.l.b16 %v4787
      %v4954 = vunpack.c.l.b16 %v4801
      %v4955 = vunpack.c.l.b16 %v4811
      %v4956 = vunpack.c.l.b16 %v4825
      %v4957 = vunpack.c.l.b16 %v4835
      %v4958 = vunpack.c.l.b16 %v4849
      %v4959 = vunpack.c.l.b16 %v4859
      %v4960 = vunpack.c.l.b16 %v4873
      %v4961 = vunpack.c.l.b16 %v4883
      %v4962 = vunpack.c.l.b16 %v4897
      %v4963 = vunpack.c.l.b16 %v4907
      %v4964 = vunpack.c.l.b16 %v4921
      %v4965 = vunpack.c.l.b16 %v4931
      %v4966 = vpack.c.b16 %v4935, %v4934
      %v4967 = vpack.c.b16 %v4937, %v4936
      %v4968 = vpack.c.b16 %v4939, %v4938
      %v4969 = vpack.c.b16 %v4941, %v4940
      %v4970 = vpack.c.b16 %v4943, %v4942
      %v4971 = vpack.c.b16 %v4945, %v4944
      %v4972 = vpack.c.b16 %v4947, %v4946
      %v4973 = vpack.c.b16 %v4949, %v4948
      %v4974 = vpack.c.b16 %v4951, %v4950
      %v4975 = vpack.c.b16 %v4953, %v4952
      %v4976 = vpack.c.b16 %v4955, %v4954
      %v4977 = vpack.c.b16 %v4957, %v4956
      %v4978 = vpack.c.b16 %v4959, %v4958
      %v4979 = vpack.c.b16 %v4961, %v4960
      %v4980 = vpack.c.b16 %v4963, %v4962
      %v4981 = vpack.c.b16 %v4965, %v4964
      %v4983 = vsel %vm462, %v4966, 0
      %v4986 = vsel %vm462, %v4967, 0
      %v4989 = vsel %vm462, %v4968, 0
      %v4992 = vsel %vm462, %v4969, 0
      %v4995 = vsel %vm462, %v4970, 0
      %v4998 = vsel %vm462, %v4971, 0
      %v5001 = vsel %vm462, %v4972, 0
      %v5004 = vsel %vm462, %v4973, 0
      %v5007 = vsel %vm462, %v4974, 0
      %v5010 = vsel %vm462, %v4975, 0
      %v5013 = vsel %vm462, %v4976, 0
      %v5016 = vsel %vm462, %v4977, 0
      %v5019 = vsel %vm462, %v4978, 0
      %v5022 = vsel %vm462, %v4979, 0
      %v5025 = vsel %vm462, %v4980, 0
      %v5028 = vsel %vm462, %v4981, 0
      %v5031 = vsel %vm1673, %v4933, 0
      %5033 = vmatprep.subr.bf16.mxu0 0
      %5034 = vmatpush1.bf16.msra.mxu0 0
      %5035 = vmatprep.subr.bf16.mxu0 0
      %5036 = vmatpush1.bf16.msra.mxu0 0
      %5037 = vmatprep.subr.bf16.mxu0 0
      %5038 = vmatpush1.bf16.msra.mxu0 0
      %5039 = vmatprep.subr.bf16.mxu0 0
      %5040 = vmatpush1.bf16.msra.mxu0 0
      %5041 = vmatprep.subr.bf16.mxu0 0
      %5042 = vmatpush1.bf16.msra.mxu0 0
      %5043 = vmatprep.subr.bf16.mxu0 0
      %5044 = vmatpush1.bf16.msra.mxu0 0
      %5045 = vmatprep.subr.bf16.mxu0 0
      %5046 = vmatpush1.bf16.msra.mxu0 0
      %5047 = vmatprep.subr.bf16.mxu0 0
      %5048 = vmatpush1.bf16.msra.mxu0 %v5031
      %5049 = vmatprep.subr.bf16.mxu0 0
      %5050 = vmatpush2.bf16.msra.mxu0 0
      %5051 = vmatprep.subr.bf16.mxu0 0
      %5052 = vmatpush2.bf16.msra.mxu0 0
      %5053 = vmatprep.subr.bf16.mxu0 0
      %5054 = vmatpush2.bf16.msra.mxu0 0
      %5055 = vmatprep.subr.bf16.mxu0 0
      %5056 = vmatpush2.bf16.msra.mxu0 0
      %5057 = vmatprep.subr.bf16.mxu0 0
      %5058 = vmatpush2.bf16.msra.mxu0 0
      %5059 = vmatprep.subr.bf16.mxu0 0
      %5060 = vmatpush2.bf16.msra.mxu0 0
      %5061 = vmatprep.subr.bf16.mxu0 0
      %5062 = vmatpush2.bf16.msra.mxu0 0
      %5063 = vmatprep.subr.bf16.mxu0 0
      %5064 = vmatpush2.bf16.msra.mxu0 0
      %5065 = vmatprep.mubr.bf16.mxu0 0
      %5066 = vmatmul.mubr.bf16.gmra.mxu0 %v4983
      %v5067 = vpop.f32.mrf.mxu0
      %v5068 = vadd.f32 0.0, %v5067
      %v5069 = vpop.f32.mrf.mxu0
      %v5070 = vpop.f32.mrf.mxu0
      %v5071 = vadd.f32 0.0, %v5070
      %v5072 = vpop.f32.mrf.mxu0
      %5073 = vmatprep.mubr.bf16.mxu0 0
      %5074 = vmatmul.mubr.bf16.gmra.mxu0 %v4986
      %v5075 = vpop.f32.mrf.mxu0
      %v5076 = vadd.f32 0.0, %v5075
      %v5077 = vpop.f32.mrf.mxu0
      %v5078 = vpop.f32.mrf.mxu0
      %v5079 = vadd.f32 0.0, %v5078
      %v5080 = vpop.f32.mrf.mxu0
      %5081 = vmatprep.mubr.bf16.mxu0 0
      %5082 = vmatmul.mubr.bf16.gmra.mxu0 %v4989
      %v5083 = vpop.f32.mrf.mxu0
      %v5084 = vadd.f32 0.0, %v5083
      %v5085 = vpop.f32.mrf.mxu0
      %v5086 = vpop.f32.mrf.mxu0
      %v5087 = vadd.f32 0.0, %v5086
      %v5088 = vpop.f32.mrf.mxu0
      %5089 = vmatprep.mubr.bf16.mxu0 0
      %5090 = vmatmul.mubr.bf16.gmra.mxu0 %v4992
      %v5091 = vpop.f32.mrf.mxu0
      %v5092 = vadd.f32 0.0, %v5091
      %v5093 = vpop.f32.mrf.mxu0
      %v5094 = vpop.f32.mrf.mxu0
      %v5095 = vadd.f32 0.0, %v5094
      %v5096 = vpop.f32.mrf.mxu0
      %5097 = vmatprep.mubr.bf16.mxu0 0
      %5098 = vmatmul.mubr.bf16.gmra.mxu0 %v4995
      %v5099 = vpop.f32.mrf.mxu0
      %v5100 = vadd.f32 0.0, %v5099
      %v5101 = vpop.f32.mrf.mxu0
      %v5102 = vpop.f32.mrf.mxu0
      %v5103 = vadd.f32 0.0, %v5102
      %v5104 = vpop.f32.mrf.mxu0
      %5105 = vmatprep.mubr.bf16.mxu0 0
      %5106 = vmatmul.mubr.bf16.gmra.mxu0 %v4998
      %v5107 = vpop.f32.mrf.mxu0
      %v5108 = vadd.f32 0.0, %v5107
      %v5109 = vpop.f32.mrf.mxu0
      %v5110 = vpop.f32.mrf.mxu0
      %v5111 = vadd.f32 0.0, %v5110
      %v5112 = vpop.f32.mrf.mxu0
      %5113 = vmatprep.mubr.bf16.mxu0 0
      %5114 = vmatmul.mubr.bf16.gmra.mxu0 %v5001
      %v5115 = vpop.f32.mrf.mxu0
      %v5116 = vadd.f32 0.0, %v5115
      %v5117 = vpop.f32.mrf.mxu0
      %v5118 = vpop.f32.mrf.mxu0
      %v5119 = vadd.f32 0.0, %v5118
      %v5120 = vpop.f32.mrf.mxu0
      %5121 = vmatprep.mubr.bf16.mxu0 0
      %5122 = vmatmul.mubr.bf16.gmra.mxu0 %v5004
      %v5123 = vpop.f32.mrf.mxu0
      %v5124 = vadd.f32 0.0, %v5123
      %v5125 = vpop.f32.mrf.mxu0
      %v5126 = vpop.f32.mrf.mxu0
      %v5127 = vadd.f32 0.0, %v5126
      %v5128 = vpop.f32.mrf.mxu0
      %5129 = vmatprep.mubr.bf16.mxu0 0
      %5130 = vmatmul.mubr.bf16.gmra.mxu0 %v5007
      %v5131 = vpop.f32.mrf.mxu0
      %v5132 = vadd.f32 0.0, %v5131
      %v5133 = vpop.f32.mrf.mxu0
      %v5134 = vpop.f32.mrf.mxu0
      %v5135 = vadd.f32 0.0, %v5134
      %v5136 = vpop.f32.mrf.mxu0
      %5137 = vmatprep.mubr.bf16.mxu0 0
      %5138 = vmatmul.mubr.bf16.gmra.mxu0 %v5010
      %v5139 = vpop.f32.mrf.mxu0
      %v5140 = vadd.f32 0.0, %v5139
      %v5141 = vpop.f32.mrf.mxu0
      %v5142 = vpop.f32.mrf.mxu0
      %v5143 = vadd.f32 0.0, %v5142
      %v5144 = vpop.f32.mrf.mxu0
      %5145 = vmatprep.mubr.bf16.mxu0 0
      %5146 = vmatmul.mubr.bf16.gmra.mxu0 %v5013
      %v5147 = vpop.f32.mrf.mxu0
      %v5148 = vadd.f32 0.0, %v5147
      %v5149 = vpop.f32.mrf.mxu0
      %v5150 = vpop.f32.mrf.mxu0
      %v5151 = vadd.f32 0.0, %v5150
      %v5152 = vpop.f32.mrf.mxu0
      %5153 = vmatprep.mubr.bf16.mxu0 0
      %5154 = vmatmul.mubr.bf16.gmra.mxu0 %v5016
      %v5155 = vpop.f32.mrf.mxu0
      %v5156 = vadd.f32 0.0, %v5155
      %v5157 = vpop.f32.mrf.mxu0
      %v5158 = vpop.f32.mrf.mxu0
      %v5159 = vadd.f32 0.0, %v5158
      %v5160 = vpop.f32.mrf.mxu0
      %5161 = vmatprep.mubr.bf16.mxu0 0
      %5162 = vmatmul.mubr.bf16.gmra.mxu0 %v5019
      %v5163 = vpop.f32.mrf.mxu0
      %v5164 = vadd.f32 0.0, %v5163
      %v5165 = vpop.f32.mrf.mxu0
      %v5166 = vpop.f32.mrf.mxu0
      %v5167 = vadd.f32 0.0, %v5166
      %v5168 = vpop.f32.mrf.mxu0
      %5169 = vmatprep.mubr.bf16.mxu0 0
      %5170 = vmatmul.mubr.bf16.gmra.mxu0 %v5022
      %v5171 = vpop.f32.mrf.mxu0
      %v5172 = vadd.f32 0.0, %v5171
      %v5173 = vpop.f32.mrf.mxu0
      %v5174 = vpop.f32.mrf.mxu0
      %v5175 = vadd.f32 0.0, %v5174
      %v5176 = vpop.f32.mrf.mxu0
      %5177 = vmatprep.mubr.bf16.mxu0 0
      %5178 = vmatmul.mubr.bf16.gmra.mxu0 %v5025
      %v5179 = vpop.f32.mrf.mxu0
      %v5180 = vadd.f32 0.0, %v5179
      %v5181 = vpop.f32.mrf.mxu0
      %v5182 = vpop.f32.mrf.mxu0
      %v5183 = vadd.f32 0.0, %v5182
      %v5184 = vpop.f32.mrf.mxu0
      %5185 = vmatprep.mubr.bf16.mxu0 0
      %5186 = vmatmul.mubr.bf16.gmra.mxu0 %v5028
      %v5187 = vpop.f32.mrf.mxu0
      %v5188 = vadd.f32 0.0, %v5187
      %v5189 = vpop.f32.mrf.mxu0
      %v5190 = vpop.f32.mrf.mxu0
      %v5191 = vadd.f32 0.0, %v5190
      %v5192 = vpop.f32.mrf.mxu0
      %5193 = vdwg.mxu0
      %v5194 = vadd.f32 %v4468, %v5068
      %v5195 = vadd.f32 %v4469, %v5071
      %v5196 = vadd.f32 %v4470, %v5076
      %v5197 = vadd.f32 %v4471, %v5079
      %v5198 = vadd.f32 %v4472, %v5084
      %v5199 = vadd.f32 %v4473, %v5087
      %v5200 = vadd.f32 %v4474, %v5092
      %v5201 = vadd.f32 %v4475, %v5095
      %v5202 = vadd.f32 %v4476, %v5100
      %v5203 = vadd.f32 %v4477, %v5103
      %v5204 = vadd.f32 %v4478, %v5108
      %v5205 = vadd.f32 %v4479, %v5111
      %v5206 = vadd.f32 %v4480, %v5116
      %v5207 = vadd.f32 %v4481, %v5119
      %v5208 = vadd.f32 %v4482, %v5124
      %v5209 = vadd.f32 %v4483, %v5127
      %v5210 = vadd.f32 %v4484, %v5132
      %v5211 = vadd.f32 %v4485, %v5135
      %v5212 = vadd.f32 %v4486, %v5140
      %v5213 = vadd.f32 %v4487, %v5143
      %v5214 = vadd.f32 %v4488, %v5148
      %v5215 = vadd.f32 %v4489, %v5151
      %v5216 = vadd.f32 %v4490, %v5156
      %v5217 = vadd.f32 %v4491, %v5159
      %v5218 = vadd.f32 %v4492, %v5164
      %v5219 = vadd.f32 %v4493, %v5167
      %v5220 = vadd.f32 %v4494, %v5172
      %v5221 = vadd.f32 %v4495, %v5175
      %v5222 = vadd.f32 %v4496, %v5180
      %v5223 = vadd.f32 %v4497, %v5183
      %v5224 = vadd.f32 %v4498, %v5188
      %v5225 = vadd.f32 %v4499, %v5191
      %v5226 = vld [vmem:[%s4141] sm:$0xe]
      %v5227 = vld [vmem:[%s4141 + $0xc] sm:$0xe]
      %v5228 = vld [vmem:[%s4141 + $0x18] sm:$0xe]
      %v5229 = vld [vmem:[%s4141 + $0x24] sm:$0xe]
      %v5230 = vld [vmem:[%s4141 + $0x30] sm:$0xe]
      %v5231 = vld [vmem:[%s4141 + $0x3c] sm:$0xe]
      %v5232 = vld [vmem:[%s4141 + $0x48] sm:$0xe]
      %v5233 = vld [vmem:[%s4141 + $0x54] sm:$0xe]
      %v5234 = vld [vmem:[%s4141 + $0x60] sm:$0xe]
      %v5235 = vld [vmem:[%s4141 + $0x6c] sm:$0xe]
      %v5236 = vld [vmem:[%s4141 + $0x78] sm:$0xe]
      %v5237 = vld [vmem:[%s4141 + $0x84] sm:$0xe]
      %v5238 = vld [vmem:[%s4141 + $0x90] sm:$0xe]
      %v5239 = vld [vmem:[%s4141 + $0x9c] sm:$0xe]
      %v5240 = vld [vmem:[%s4141 + $0xa8] sm:$0xe]
      %v5241 = vld [vmem:[%s4141 + $0xb4] sm:$0xe]
      %v5290 = vrot.slane %v5226, 5
      %v5291 = vrot.slane %v5290, 4
      %v5292 = vrot.slane %v4501, 5
      %v5293 = vsel %vm2180, %v5291, %v5292
      %v5294 = vrot.slane %v5292, 4
      %v5295 = vrot.slane %v4502, 5
      %v5296 = vsel %vm2180, %v5294, %v5295
      %v5297 = vrot.slane %v5227, 5
      %v5298 = vrot.slane %v5297, 4
      %v5299 = vrot.slane %v4504, 5
      %v5300 = vsel %vm2180, %v5298, %v5299
      %v5301 = vrot.slane %v5299, 4
      %v5302 = vrot.slane %v4505, 5
      %v5303 = vsel %vm2180, %v5301, %v5302
      %v5304 = vrot.slane %v5228, 5
      %v5305 = vrot.slane %v5304, 4
      %v5306 = vrot.slane %v4507, 5
      %v5307 = vsel %vm2180, %v5305, %v5306
      %v5308 = vrot.slane %v5306, 4
      %v5309 = vrot.slane %v4508, 5
      %v5310 = vsel %vm2180, %v5308, %v5309
      %v5311 = vrot.slane %v5229, 5
      %v5312 = vrot.slane %v5311, 4
      %v5313 = vrot.slane %v4510, 5
      %v5314 = vsel %vm2180, %v5312, %v5313
      %v5315 = vrot.slane %v5313, 4
      %v5316 = vrot.slane %v4511, 5
      %v5317 = vsel %vm2180, %v5315, %v5316
      %v5318 = vrot.slane %v5230, 5
      %v5319 = vrot.slane %v5318, 4
      %v5320 = vrot.slane %v4513, 5
      %v5321 = vsel %vm2180, %v5319, %v5320
      %v5322 = vrot.slane %v5320, 4
      %v5323 = vrot.slane %v4514, 5
      %v5324 = vsel %vm2180, %v5322, %v5323
      %v5325 = vrot.slane %v5231, 5
      %v5326 = vrot.slane %v5325, 4
      %v5327 = vrot.slane %v4516, 5
      %v5328 = vsel %vm2180, %v5326, %v5327
      %v5329 = vrot.slane %v5327, 4
      %v5330 = vrot.slane %v4517, 5
      %v5331 = vsel %vm2180, %v5329, %v5330
      %v5332 = vrot.slane %v5232, 5
      %v5333 = vrot.slane %v5332, 4
      %v5334 = vrot.slane %v4519, 5
      %v5335 = vsel %vm2180, %v5333, %v5334
      %v5336 = vrot.slane %v5334, 4
      %v5337 = vrot.slane %v4520, 5
      %v5338 = vsel %vm2180, %v5336, %v5337
      %v5339 = vrot.slane %v5233, 5
      %v5340 = vrot.slane %v5339, 4
      %v5341 = vrot.slane %v4522, 5
      %v5342 = vsel %vm2180, %v5340, %v5341
      %v5343 = vrot.slane %v5341, 4
      %v5344 = vrot.slane %v4523, 5
      %v5345 = vsel %vm2180, %v5343, %v5344
      %v5346 = vrot.slane %v5234, 5
      %v5347 = vrot.slane %v5346, 4
      %v5348 = vrot.slane %v4525, 5
      %v5349 = vsel %vm2180, %v5347, %v5348
      %v5350 = vrot.slane %v5348, 4
      %v5351 = vrot.slane %v4526, 5
      %v5352 = vsel %vm2180, %v5350, %v5351
      %v5353 = vrot.slane %v5235, 5
      %v5354 = vrot.slane %v5353, 4
      %v5355 = vrot.slane %v4528, 5
      %v5356 = vsel %vm2180, %v5354, %v5355
      %v5357 = vrot.slane %v5355, 4
      %v5358 = vrot.slane %v4529, 5
      %v5359 = vsel %vm2180, %v5357, %v5358
      %v5360 = vrot.slane %v5236, 5
      %v5361 = vrot.slane %v5360, 4
      %v5362 = vrot.slane %v4531, 5
      %v5363 = vsel %vm2180, %v5361, %v5362
      %v5364 = vrot.slane %v5362, 4
      %v5365 = vrot.slane %v4532, 5
      %v5366 = vsel %vm2180, %v5364, %v5365
      %v5367 = vrot.slane %v5237, 5
      %v5368 = vrot.slane %v5367, 4
      %v5369 = vrot.slane %v4534, 5
      %v5370 = vsel %vm2180, %v5368, %v5369
      %v5371 = vrot.slane %v5369, 4
      %v5372 = vrot.slane %v4535, 5
      %v5373 = vsel %vm2180, %v5371, %v5372
      %v5374 = vrot.slane %v5238, 5
      %v5375 = vrot.slane %v5374, 4
      %v5376 = vrot.slane %v4537, 5
      %v5377 = vsel %vm2180, %v5375, %v5376
      %v5378 = vrot.slane %v5376, 4
      %v5379 = vrot.slane %v4538, 5
      %v5380 = vsel %vm2180, %v5378, %v5379
      %v5381 = vrot.slane %v5239, 5
      %v5382 = vrot.slane %v5381, 4
      %v5383 = vrot.slane %v4540, 5
      %v5384 = vsel %vm2180, %v5382, %v5383
      %v5385 = vrot.slane %v5383, 4
      %v5386 = vrot.slane %v4541, 5
      %v5387 = vsel %vm2180, %v5385, %v5386
      %v5388 = vrot.slane %v5240, 5
      %v5389 = vrot.slane %v5388, 4
      %v5390 = vrot.slane %v4543, 5
      %v5391 = vsel %vm2180, %v5389, %v5390
      %v5392 = vrot.slane %v5390, 4
      %v5393 = vrot.slane %v4544, 5
      %v5394 = vsel %vm2180, %v5392, %v5393
      %v5395 = vrot.slane %v5241, 5
      %v5396 = vrot.slane %v5395, 4
      %v5397 = vrot.slane %v4546, 5
      %v5398 = vsel %vm2180, %v5396, %v5397
      %v5399 = vrot.slane %v5397, 4
      %v5400 = vrot.slane %v4547, 5
      %v5401 = vsel %vm2180, %v5399, %v5400
      %s5402 = scalar_lea.vmem %s3, 16
      %v5403 = vld [vmem:[%s5402] sm:$0x3]
      %v5404 = vunpack.c.l.b16 %v5293
      %v5405 = vunpack.c.l.b16 %v5296
      %v5406 = vunpack.c.l.b16 %v5300
      %v5407 = vunpack.c.l.b16 %v5303
      %v5408 = vunpack.c.l.b16 %v5307
      %v5409 = vunpack.c.l.b16 %v5310
      %v5410 = vunpack.c.l.b16 %v5314
      %v5411 = vunpack.c.l.b16 %v5317
      %v5412 = vunpack.c.l.b16 %v5321
      %v5413 = vunpack.c.l.b16 %v5324
      %v5414 = vunpack.c.l.b16 %v5328
      %v5415 = vunpack.c.l.b16 %v5331
      %v5416 = vunpack.c.l.b16 %v5335
      %v5417 = vunpack.c.l.b16 %v5338
      %v5418 = vunpack.c.l.b16 %v5342
      %v5419 = vunpack.c.l.b16 %v5345
      %v5420 = vunpack.c.l.b16 %v5349
      %v5421 = vunpack.c.l.b16 %v5352
      %v5422 = vunpack.c.l.b16 %v5356
      %v5423 = vunpack.c.l.b16 %v5359
      %v5424 = vunpack.c.l.b16 %v5363
      %v5425 = vunpack.c.l.b16 %v5366
      %v5426 = vunpack.c.l.b16 %v5370
      %v5427 = vunpack.c.l.b16 %v5373
      %v5428 = vunpack.c.l.b16 %v5377
      %v5429 = vunpack.c.l.b16 %v5380
      %v5430 = vunpack.c.l.b16 %v5384
      %v5431 = vunpack.c.l.b16 %v5387
      %v5432 = vunpack.c.l.b16 %v5391
      %v5433 = vunpack.c.l.b16 %v5394
      %v5434 = vunpack.c.l.b16 %v5398
      %v5435 = vunpack.c.l.b16 %v5401
      %v5436 = vpack.c.b16 %v5405, %v5404
      %v5437 = vpack.c.b16 %v5407, %v5406
      %v5438 = vpack.c.b16 %v5409, %v5408
      %v5439 = vpack.c.b16 %v5411, %v5410
      %v5440 = vpack.c.b16 %v5413, %v5412
      %v5441 = vpack.c.b16 %v5415, %v5414
      %v5442 = vpack.c.b16 %v5417, %v5416
      %v5443 = vpack.c.b16 %v5419, %v5418
      %v5444 = vpack.c.b16 %v5421, %v5420
      %v5445 = vpack.c.b16 %v5423, %v5422
      %v5446 = vpack.c.b16 %v5425, %v5424
      %v5447 = vpack.c.b16 %v5427, %v5426
      %v5448 = vpack.c.b16 %v5429, %v5428
      %v5449 = vpack.c.b16 %v5431, %v5430
      %v5450 = vpack.c.b16 %v5433, %v5432
      %v5451 = vpack.c.b16 %v5435, %v5434
      %v5453 = vsel %vm462, %v5436, 0
      %v5456 = vsel %vm462, %v5437, 0
      %v5459 = vsel %vm462, %v5438, 0
      %v5462 = vsel %vm462, %v5439, 0
      %v5465 = vsel %vm462, %v5440, 0
      %v5468 = vsel %vm462, %v5441, 0
      %v5471 = vsel %vm462, %v5442, 0
      %v5474 = vsel %vm462, %v5443, 0
      %v5477 = vsel %vm462, %v5444, 0
      %v5480 = vsel %vm462, %v5445, 0
      %v5483 = vsel %vm462, %v5446, 0
      %v5486 = vsel %vm462, %v5447, 0
      %v5489 = vsel %vm462, %v5448, 0
      %v5492 = vsel %vm462, %v5449, 0
      %v5495 = vsel %vm462, %v5450, 0
      %v5498 = vsel %vm462, %v5451, 0
      %v5501 = vsel %vm1673, %v5403, 0
      %5503 = vmatprep.subr.bf16.mxu0 0
      %5504 = vmatpush1.bf16.msra.mxu0 0
      %5505 = vmatprep.subr.bf16.mxu0 0
      %5506 = vmatpush1.bf16.msra.mxu0 0
      %5507 = vmatprep.subr.bf16.mxu0 0
      %5508 = vmatpush1.bf16.msra.mxu0 0
      %5509 = vmatprep.subr.bf16.mxu0 0
      %5510 = vmatpush1.bf16.msra.mxu0 0
      %5511 = vmatprep.subr.bf16.mxu0 0
      %5512 = vmatpush1.bf16.msra.mxu0 0
      %5513 = vmatprep.subr.bf16.mxu0 0
      %5514 = vmatpush1.bf16.msra.mxu0 0
      %5515 = vmatprep.subr.bf16.mxu0 0
      %5516 = vmatpush1.bf16.msra.mxu0 0
      %5517 = vmatprep.subr.bf16.mxu0 0
      %5518 = vmatpush1.bf16.msra.mxu0 %v5501
      %5519 = vmatprep.subr.bf16.mxu0 0
      %5520 = vmatpush2.bf16.msra.mxu0 0
      %5521 = vmatprep.subr.bf16.mxu0 0
      %5522 = vmatpush2.bf16.msra.mxu0 0
      %5523 = vmatprep.subr.bf16.mxu0 0
      %5524 = vmatpush2.bf16.msra.mxu0 0
      %5525 = vmatprep.subr.bf16.mxu0 0
      %5526 = vmatpush2.bf16.msra.mxu0 0
      %5527 = vmatprep.subr.bf16.mxu0 0
      %5528 = vmatpush2.bf16.msra.mxu0 0
      %5529 = vmatprep.subr.bf16.mxu0 0
      %5530 = vmatpush2.bf16.msra.mxu0 0
      %5531 = vmatprep.subr.bf16.mxu0 0
      %5532 = vmatpush2.bf16.msra.mxu0 0
      %5533 = vmatprep.subr.bf16.mxu0 0
      %5534 = vmatpush2.bf16.msra.mxu0 0
      %5535 = vmatprep.mubr.bf16.mxu0 0
      %5536 = vmatmul.mubr.bf16.gmra.mxu0 %v5453
      %v5537 = vpop.f32.mrf.mxu0
      %v5538 = vadd.f32 0.0, %v5537
      %v5539 = vpop.f32.mrf.mxu0
      %v5540 = vpop.f32.mrf.mxu0
      %v5541 = vadd.f32 0.0, %v5540
      %v5542 = vpop.f32.mrf.mxu0
      %5543 = vmatprep.mubr.bf16.mxu0 0
      %5544 = vmatmul.mubr.bf16.gmra.mxu0 %v5456
      %v5545 = vpop.f32.mrf.mxu0
      %v5546 = vadd.f32 0.0, %v5545
      %v5547 = vpop.f32.mrf.mxu0
      %v5548 = vpop.f32.mrf.mxu0
      %v5549 = vadd.f32 0.0, %v5548
      %v5550 = vpop.f32.mrf.mxu0
      %5551 = vmatprep.mubr.bf16.mxu0 0
      %5552 = vmatmul.mubr.bf16.gmra.mxu0 %v5459
      %v5553 = vpop.f32.mrf.mxu0
      %v5554 = vadd.f32 0.0, %v5553
      %v5555 = vpop.f32.mrf.mxu0
      %v5556 = vpop.f32.mrf.mxu0
      %v5557 = vadd.f32 0.0, %v5556
      %v5558 = vpop.f32.mrf.mxu0
      %5559 = vmatprep.mubr.bf16.mxu0 0
      %5560 = vmatmul.mubr.bf16.gmra.mxu0 %v5462
      %v5561 = vpop.f32.mrf.mxu0
      %v5562 = vadd.f32 0.0, %v5561
      %v5563 = vpop.f32.mrf.mxu0
      %v5564 = vpop.f32.mrf.mxu0
      %v5565 = vadd.f32 0.0, %v5564
      %v5566 = vpop.f32.mrf.mxu0
      %5567 = vmatprep.mubr.bf16.mxu0 0
      %5568 = vmatmul.mubr.bf16.gmra.mxu0 %v5465
      %v5569 = vpop.f32.mrf.mxu0
      %v5570 = vadd.f32 0.0, %v5569
      %v5571 = vpop.f32.mrf.mxu0
      %v5572 = vpop.f32.mrf.mxu0
      %v5573 = vadd.f32 0.0, %v5572
      %v5574 = vpop.f32.mrf.mxu0
      %5575 = vmatprep.mubr.bf16.mxu0 0
      %5576 = vmatmul.mubr.bf16.gmra.mxu0 %v5468
      %v5577 = vpop.f32.mrf.mxu0
      %v5578 = vadd.f32 0.0, %v5577
      %v5579 = vpop.f32.mrf.mxu0
      %v5580 = vpop.f32.mrf.mxu0
      %v5581 = vadd.f32 0.0, %v5580
      %v5582 = vpop.f32.mrf.mxu0
      %5583 = vmatprep.mubr.bf16.mxu0 0
      %5584 = vmatmul.mubr.bf16.gmra.mxu0 %v5471
      %v5585 = vpop.f32.mrf.mxu0
      %v5586 = vadd.f32 0.0, %v5585
      %v5587 = vpop.f32.mrf.mxu0
      %v5588 = vpop.f32.mrf.mxu0
      %v5589 = vadd.f32 0.0, %v5588
      %v5590 = vpop.f32.mrf.mxu0
      %5591 = vmatprep.mubr.bf16.mxu0 0
      %5592 = vmatmul.mubr.bf16.gmra.mxu0 %v5474
      %v5593 = vpop.f32.mrf.mxu0
      %v5594 = vadd.f32 0.0, %v5593
      %v5595 = vpop.f32.mrf.mxu0
      %v5596 = vpop.f32.mrf.mxu0
      %v5597 = vadd.f32 0.0, %v5596
      %v5598 = vpop.f32.mrf.mxu0
      %5599 = vmatprep.mubr.bf16.mxu0 0
      %5600 = vmatmul.mubr.bf16.gmra.mxu0 %v5477
      %v5601 = vpop.f32.mrf.mxu0
      %v5602 = vadd.f32 0.0, %v5601
      %v5603 = vpop.f32.mrf.mxu0
      %v5604 = vpop.f32.mrf.mxu0
      %v5605 = vadd.f32 0.0, %v5604
      %v5606 = vpop.f32.mrf.mxu0
      %5607 = vmatprep.mubr.bf16.mxu0 0
      %5608 = vmatmul.mubr.bf16.gmra.mxu0 %v5480
      %v5609 = vpop.f32.mrf.mxu0
      %v5610 = vadd.f32 0.0, %v5609
      %v5611 = vpop.f32.mrf.mxu0
      %v5612 = vpop.f32.mrf.mxu0
      %v5613 = vadd.f32 0.0, %v5612
      %v5614 = vpop.f32.mrf.mxu0
      %5615 = vmatprep.mubr.bf16.mxu0 0
      %5616 = vmatmul.mubr.bf16.gmra.mxu0 %v5483
      %v5617 = vpop.f32.mrf.mxu0
      %v5618 = vadd.f32 0.0, %v5617
      %v5619 = vpop.f32.mrf.mxu0
      %v5620 = vpop.f32.mrf.mxu0
      %v5621 = vadd.f32 0.0, %v5620
      %v5622 = vpop.f32.mrf.mxu0
      %5623 = vmatprep.mubr.bf16.mxu0 0
      %5624 = vmatmul.mubr.bf16.gmra.mxu0 %v5486
      %v5625 = vpop.f32.mrf.mxu0
      %v5626 = vadd.f32 0.0, %v5625
      %v5627 = vpop.f32.mrf.mxu0
      %v5628 = vpop.f32.mrf.mxu0
      %v5629 = vadd.f32 0.0, %v5628
      %v5630 = vpop.f32.mrf.mxu0
      %5631 = vmatprep.mubr.bf16.mxu0 0
      %5632 = vmatmul.mubr.bf16.gmra.mxu0 %v5489
      %v5633 = vpop.f32.mrf.mxu0
      %v5634 = vadd.f32 0.0, %v5633
      %v5635 = vpop.f32.mrf.mxu0
      %v5636 = vpop.f32.mrf.mxu0
      %v5637 = vadd.f32 0.0, %v5636
      %v5638 = vpop.f32.mrf.mxu0
      %5639 = vmatprep.mubr.bf16.mxu0 0
      %5640 = vmatmul.mubr.bf16.gmra.mxu0 %v5492
      %v5641 = vpop.f32.mrf.mxu0
      %v5642 = vadd.f32 0.0, %v5641
      %v5643 = vpop.f32.mrf.mxu0
      %v5644 = vpop.f32.mrf.mxu0
      %v5645 = vadd.f32 0.0, %v5644
      %v5646 = vpop.f32.mrf.mxu0
      %5647 = vmatprep.mubr.bf16.mxu0 0
      %5648 = vmatmul.mubr.bf16.gmra.mxu0 %v5495
      %v5649 = vpop.f32.mrf.mxu0
      %v5650 = vadd.f32 0.0, %v5649
      %v5651 = vpop.f32.mrf.mxu0
      %v5652 = vpop.f32.mrf.mxu0
      %v5653 = vadd.f32 0.0, %v5652
      %v5654 = vpop.f32.mrf.mxu0
      %5655 = vmatprep.mubr.bf16.mxu0 0
      %5656 = vmatmul.mubr.bf16.gmra.mxu0 %v5498
      %v5657 = vpop.f32.mrf.mxu0
      %v5658 = vadd.f32 0.0, %v5657
      %v5659 = vpop.f32.mrf.mxu0
      %v5660 = vpop.f32.mrf.mxu0
      %v5661 = vadd.f32 0.0, %v5660
      %v5662 = vpop.f32.mrf.mxu0
      %5663 = vdwg.mxu0
      %v5664 = vadd.f32 %v5194, %v5538
      %v5665 = vadd.f32 %v5195, %v5541
      %v5666 = vadd.f32 %v5196, %v5546
      %v5667 = vadd.f32 %v5197, %v5549
      %v5668 = vadd.f32 %v5198, %v5554
      %v5669 = vadd.f32 %v5199, %v5557
      %v5670 = vadd.f32 %v5200, %v5562
      %v5671 = vadd.f32 %v5201, %v5565
      %v5672 = vadd.f32 %v5202, %v5570
      %v5673 = vadd.f32 %v5203, %v5573
      %v5674 = vadd.f32 %v5204, %v5578
      %v5675 = vadd.f32 %v5205, %v5581
      %v5676 = vadd.f32 %v5206, %v5586
      %v5677 = vadd.f32 %v5207, %v5589
      %v5678 = vadd.f32 %v5208, %v5594
      %v5679 = vadd.f32 %v5209, %v5597
      %v5680 = vadd.f32 %v5210, %v5602
      %v5681 = vadd.f32 %v5211, %v5605
      %v5682 = vadd.f32 %v5212, %v5610
      %v5683 = vadd.f32 %v5213, %v5613
      %v5684 = vadd.f32 %v5214, %v5618
      %v5685 = vadd.f32 %v5215, %v5621
      %v5686 = vadd.f32 %v5216, %v5626
      %v5687 = vadd.f32 %v5217, %v5629
      %v5688 = vadd.f32 %v5218, %v5634
      %v5689 = vadd.f32 %v5219, %v5637
      %v5690 = vadd.f32 %v5220, %v5642
      %v5691 = vadd.f32 %v5221, %v5645
      %v5692 = vadd.f32 %v5222, %v5650
      %v5693 = vadd.f32 %v5223, %v5653
      %v5694 = vadd.f32 %v5224, %v5658
      %v5695 = vadd.f32 %v5225, %v5661
      %v5696 = vld [vmem:[%s4] sm:$0x1]
      %v5698 = vlaneseq
      %v5699 = vshrl.u32 %v5698, 7
      %v5700 = vsub.s32 0, %v5699
      %v5701 = vrot.slane %v5696, %v5700
      %v5703 = vadd.f32 %v5664, %v5701
      %v5704 = vadd.f32 %v5665, %v5701
      %v5705 = vadd.f32 %v5666, %v5701
      %v5706 = vadd.f32 %v5667, %v5701
      %v5707 = vadd.f32 %v5668, %v5701
      %v5708 = vadd.f32 %v5669, %v5701
      %v5709 = vadd.f32 %v5670, %v5701
      %v5710 = vadd.f32 %v5671, %v5701
      %v5711 = vadd.f32 %v5672, %v5701
      %v5712 = vadd.f32 %v5673, %v5701
      %v5713 = vadd.f32 %v5674, %v5701
      %v5714 = vadd.f32 %v5675, %v5701
      %v5715 = vadd.f32 %v5676, %v5701
      %v5716 = vadd.f32 %v5677, %v5701
      %v5717 = vadd.f32 %v5678, %v5701
      %v5718 = vadd.f32 %v5679, %v5701
      %v5719 = vadd.f32 %v5680, %v5701
      %v5720 = vadd.f32 %v5681, %v5701
      %v5721 = vadd.f32 %v5682, %v5701
      %v5722 = vadd.f32 %v5683, %v5701
      %v5723 = vadd.f32 %v5684, %v5701
      %v5724 = vadd.f32 %v5685, %v5701
      %v5725 = vadd.f32 %v5686, %v5701
      %v5726 = vadd.f32 %v5687, %v5701
      %v5727 = vadd.f32 %v5688, %v5701
      %v5728 = vadd.f32 %v5689, %v5701
      %v5729 = vadd.f32 %v5690, %v5701
      %v5730 = vadd.f32 %v5691, %v5701
      %v5731 = vadd.f32 %v5692, %v5701
      %v5732 = vadd.f32 %v5693, %v5701
      %v5733 = vadd.f32 %v5694, %v5701
      %v5734 = vadd.f32 %v5695, %v5701
      %v5735 = vmax.f32 %v5703, 0.0
      %v5736 = vmax.f32 %v5704, 0.0
      %v5737 = vmax.f32 %v5705, 0.0
      %v5738 = vmax.f32 %v5706, 0.0
      %v5739 = vmax.f32 %v5707, 0.0
      %v5740 = vmax.f32 %v5708, 0.0
      %v5741 = vmax.f32 %v5709, 0.0
      %v5742 = vmax.f32 %v5710, 0.0
      %v5743 = vmax.f32 %v5711, 0.0
      %v5744 = vmax.f32 %v5712, 0.0
      %v5745 = vmax.f32 %v5713, 0.0
      %v5746 = vmax.f32 %v5714, 0.0
      %v5747 = vmax.f32 %v5715, 0.0
      %v5748 = vmax.f32 %v5716, 0.0
      %v5749 = vmax.f32 %v5717, 0.0
      %v5750 = vmax.f32 %v5718, 0.0
      %v5751 = vmax.f32 %v5719, 0.0
      %v5752 = vmax.f32 %v5720, 0.0
      %v5753 = vmax.f32 %v5721, 0.0
      %v5754 = vmax.f32 %v5722, 0.0
      %v5755 = vmax.f32 %v5723, 0.0
      %v5756 = vmax.f32 %v5724, 0.0
      %v5757 = vmax.f32 %v5725, 0.0
      %v5758 = vmax.f32 %v5726, 0.0
      %v5759 = vmax.f32 %v5727, 0.0
      %v5760 = vmax.f32 %v5728, 0.0
      %v5761 = vmax.f32 %v5729, 0.0
      %v5762 = vmax.f32 %v5730, 0.0
      %v5763 = vmax.f32 %v5731, 0.0
      %v5764 = vmax.f32 %v5732, 0.0
      %v5765 = vmax.f32 %v5733, 0.0
      %v5766 = vmax.f32 %v5734, 0.0
      %v5767 = vpack.c.bf16 %v5736, %v5735
      %v5768 = vpack.c.bf16 %v5738, %v5737
      %v5769 = vpack.c.bf16 %v5740, %v5739
      %v5770 = vpack.c.bf16 %v5742, %v5741
      %v5771 = vpack.c.bf16 %v5744, %v5743
      %v5772 = vpack.c.bf16 %v5746, %v5745
      %v5773 = vpack.c.bf16 %v5748, %v5747
      %v5774 = vpack.c.bf16 %v5750, %v5749
      %v5775 = vpack.c.bf16 %v5752, %v5751
      %v5776 = vpack.c.bf16 %v5754, %v5753
      %v5777 = vpack.c.bf16 %v5756, %v5755
      %v5778 = vpack.c.bf16 %v5758, %v5757
      %v5779 = vpack.c.bf16 %v5760, %v5759
      %v5780 = vpack.c.bf16 %v5762, %v5761
      %v5781 = vpack.c.bf16 %v5764, %v5763
      %v5782 = vpack.c.bf16 %v5766, %v5765
      %vm5783 = vcmask 60416
      %5784 = vst.msk [vmem:[#allocation3] sm:$0xf] %vm5783, 0
      %5785 = vst.msk [vmem:[#allocation3 + $0x4] sm:$0xf] %vm5783, 0
      %vm5786 = vcmask 57344
      %5787 = vst.msk [vmem:[#allocation3 + $0x8] sm:$0x1] %vm5786, 0
      %s5788 = scalar_lea.vmem [#allocation3], 204
      %5789 = vst.msk [vmem:[%s5788] sm:$0xf] %vm5783, 0
      %5790 = vst.msk [vmem:[%s5788 + $0x4] sm:$0xf] %vm5783, 0
      %5791 = vst.msk [vmem:[%s5788 + $0x8] sm:$0x1] %vm5786, 0
      %s5792 = scalar_lea.vmem [#allocation3], 12
      %vm5793 = vcmask 57344
      %vm5794 = vmand %vm5793, %vm523
      %v5795 = vld [vmem:[%s5792] sm:$0x1]
      %v5796 = vsel %vm5794, 0, %v5795
      %5797 = vst [vmem:[%s5792] sm:$0x1] %v5796
      %v5798 = vld [vmem:[%s5792 + $0xc] sm:$0x1]
      %v5799 = vsel %vm5794, 0, %v5798
      %5800 = vst [vmem:[%s5792 + $0xc] sm:$0x1] %v5799
      %v5801 = vld [vmem:[%s5792 + $0x18] sm:$0x1]
      %v5802 = vsel %vm5794, 0, %v5801
      %5803 = vst [vmem:[%s5792 + $0x18] sm:$0x1] %v5802
      %v5804 = vld [vmem:[%s5792 + $0x24] sm:$0x1]
      %v5805 = vsel %vm5794, 0, %v5804
      %5806 = vst [vmem:[%s5792 + $0x24] sm:$0x1] %v5805
      %v5807 = vld [vmem:[%s5792 + $0x30] sm:$0x1]
      %v5808 = vsel %vm5794, 0, %v5807
      %5809 = vst [vmem:[%s5792 + $0x30] sm:$0x1] %v5808
      %v5810 = vld [vmem:[%s5792 + $0x3c] sm:$0x1]
      %v5811 = vsel %vm5794, 0, %v5810
      %5812 = vst [vmem:[%s5792 + $0x3c] sm:$0x1] %v5811
      %v5813 = vld [vmem:[%s5792 + $0x48] sm:$0x1]
      %v5814 = vsel %vm5794, 0, %v5813
      %5815 = vst [vmem:[%s5792 + $0x48] sm:$0x1] %v5814
      %v5816 = vld [vmem:[%s5792 + $0x54] sm:$0x1]
      %v5817 = vsel %vm5794, 0, %v5816
      %5818 = vst [vmem:[%s5792 + $0x54] sm:$0x1] %v5817
      %v5819 = vld [vmem:[%s5792 + $0x60] sm:$0x1]
      %v5820 = vsel %vm5794, 0, %v5819
      %5821 = vst [vmem:[%s5792 + $0x60] sm:$0x1] %v5820
      %v5822 = vld [vmem:[%s5792 + $0x6c] sm:$0x1]
      %v5823 = vsel %vm5794, 0, %v5822
      %5824 = vst [vmem:[%s5792 + $0x6c] sm:$0x1] %v5823
      %v5825 = vld [vmem:[%s5792 + $0x78] sm:$0x1]
      %v5826 = vsel %vm5794, 0, %v5825
      %5827 = vst [vmem:[%s5792 + $0x78] sm:$0x1] %v5826
      %v5828 = vld [vmem:[%s5792 + $0x84] sm:$0x1]
      %v5829 = vsel %vm5794, 0, %v5828
      %5830 = vst [vmem:[%s5792 + $0x84] sm:$0x1] %v5829
      %v5831 = vld [vmem:[%s5792 + $0x90] sm:$0x1]
      %v5832 = vsel %vm5794, 0, %v5831
      %5833 = vst [vmem:[%s5792 + $0x90] sm:$0x1] %v5832
      %v5834 = vld [vmem:[%s5792 + $0x9c] sm:$0x1]
      %v5835 = vsel %vm5794, 0, %v5834
      %5836 = vst [vmem:[%s5792 + $0x9c] sm:$0x1] %v5835
      %v5837 = vld [vmem:[%s5792 + $0xa8] sm:$0x1]
      %v5838 = vsel %vm5794, 0, %v5837
      %5839 = vst [vmem:[%s5792 + $0xa8] sm:$0x1] %v5838
      %v5840 = vld [vmem:[%s5792 + $0xb4] sm:$0x1]
      %v5841 = vsel %vm5794, 0, %v5840
      %5842 = vst [vmem:[%s5792 + $0xb4] sm:$0x1] %v5841
      %vm5843 = vmand %vm5793, %vm573
      %v5844 = vld [vmem:[%s5792 + $0x8] sm:$0x1]
      %v5845 = vsel %vm5843, 0, %v5844
      %5846 = vst [vmem:[%s5792 + $0x8] sm:$0x1] %v5845
      %v5847 = vld [vmem:[%s5792 + $0x14] sm:$0x1]
      %v5848 = vsel %vm5843, 0, %v5847
      %5849 = vst [vmem:[%s5792 + $0x14] sm:$0x1] %v5848
      %v5850 = vld [vmem:[%s5792 + $0x20] sm:$0x1]
      %v5851 = vsel %vm5843, 0, %v5850
      %5852 = vst [vmem:[%s5792 + $0x20] sm:$0x1] %v5851
      %v5853 = vld [vmem:[%s5792 + $0x2c] sm:$0x1]
      %v5854 = vsel %vm5843, 0, %v5853
      %5855 = vst [vmem:[%s5792 + $0x2c] sm:$0x1] %v5854
      %v5856 = vld [vmem:[%s5792 + $0x38] sm:$0x1]
      %v5857 = vsel %vm5843, 0, %v5856
      %5858 = vst [vmem:[%s5792 + $0x38] sm:$0x1] %v5857
      %v5859 = vld [vmem:[%s5792 + $0x44] sm:$0x1]
      %v5860 = vsel %vm5843, 0, %v5859
      %5861 = vst [vmem:[%s5792 + $0x44] sm:$0x1] %v5860
      %v5862 = vld [vmem:[%s5792 + $0x50] sm:$0x1]
      %v5863 = vsel %vm5843, 0, %v5862
      %5864 = vst [vmem:[%s5792 + $0x50] sm:$0x1] %v5863
      %v5865 = vld [vmem:[%s5792 + $0x5c] sm:$0x1]
      %v5866 = vsel %vm5843, 0, %v5865
      %5867 = vst [vmem:[%s5792 + $0x5c] sm:$0x1] %v5866
      %v5868 = vld [vmem:[%s5792 + $0x68] sm:$0x1]
      %v5869 = vsel %vm5843, 0, %v5868
      %5870 = vst [vmem:[%s5792 + $0x68] sm:$0x1] %v5869
      %v5871 = vld [vmem:[%s5792 + $0x74] sm:$0x1]
      %v5872 = vsel %vm5843, 0, %v5871
      %5873 = vst [vmem:[%s5792 + $0x74] sm:$0x1] %v5872
      %v5874 = vld [vmem:[%s5792 + $0x80] sm:$0x1]
      %v5875 = vsel %vm5843, 0, %v5874
      %5876 = vst [vmem:[%s5792 + $0x80] sm:$0x1] %v5875
      %v5877 = vld [vmem:[%s5792 + $0x8c] sm:$0x1]
      %v5878 = vsel %vm5843, 0, %v5877
      %5879 = vst [vmem:[%s5792 + $0x8c] sm:$0x1] %v5878
      %v5880 = vld [vmem:[%s5792 + $0x98] sm:$0x1]
      %v5881 = vsel %vm5843, 0, %v5880
      %5882 = vst [vmem:[%s5792 + $0x98] sm:$0x1] %v5881
      %v5883 = vld [vmem:[%s5792 + $0xa4] sm:$0x1]
      %v5884 = vsel %vm5843, 0, %v5883
      %5885 = vst [vmem:[%s5792 + $0xa4] sm:$0x1] %v5884
      %v5886 = vld [vmem:[%s5792 + $0xb0] sm:$0x1]
      %v5887 = vsel %vm5843, 0, %v5886
      %5888 = vst [vmem:[%s5792 + $0xb0] sm:$0x1] %v5887
      %v5889 = vld [vmem:[%s5792 + $0xbc] sm:$0x1]
      %v5890 = vsel %vm5843, 0, %v5889
      %5891 = vst [vmem:[%s5792 + $0xbc] sm:$0x1] %v5890
      %v5908 = vunpack.c.l.b16 %v5767
      %v5909 = vunpack.c.h.b16 %v5767
      %v5910 = vunpack.c.l.b16 %v5768
      %v5911 = vunpack.c.h.b16 %v5768
      %v5912 = vunpack.c.l.b16 %v5769
      %v5913 = vunpack.c.h.b16 %v5769
      %v5914 = vunpack.c.l.b16 %v5770
      %v5915 = vunpack.c.h.b16 %v5770
      %v5916 = vunpack.c.l.b16 %v5771
      %v5917 = vunpack.c.h.b16 %v5771
      %v5918 = vunpack.c.l.b16 %v5772
      %v5919 = vunpack.c.h.b16 %v5772
      %v5920 = vunpack.c.l.b16 %v5773
      %v5921 = vunpack.c.h.b16 %v5773
      %v5922 = vunpack.c.l.b16 %v5774
      %v5923 = vunpack.c.h.b16 %v5774
      %v5924 = vunpack.c.l.b16 %v5775
      %v5925 = vunpack.c.h.b16 %v5775
      %v5926 = vunpack.c.l.b16 %v5776
      %v5927 = vunpack.c.h.b16 %v5776
      %v5928 = vunpack.c.l.b16 %v5777
      %v5929 = vunpack.c.h.b16 %v5777
      %v5930 = vunpack.c.l.b16 %v5778
      %v5931 = vunpack.c.h.b16 %v5778
      %v5932 = vunpack.c.l.b16 %v5779
      %v5933 = vunpack.c.h.b16 %v5779
      %v5934 = vunpack.c.l.b16 %v5780
      %v5935 = vunpack.c.h.b16 %v5780
      %v5936 = vunpack.c.l.b16 %v5781
      %v5937 = vunpack.c.h.b16 %v5781
      %v5938 = vunpack.c.l.b16 %v5782
      %v5939 = vunpack.c.h.b16 %v5782
      %v5940 = vpack.c.b16 %v5908, %v5908
      %v5941 = vpack.c.b16 %v5909, %v5909
      %v5942 = vpack.c.b16 %v5910, %v5910
      %v5943 = vpack.c.b16 %v5911, %v5911
      %v5944 = vpack.c.b16 %v5912, %v5912
      %v5945 = vpack.c.b16 %v5913, %v5913
      %v5946 = vpack.c.b16 %v5914, %v5914
      %v5947 = vpack.c.b16 %v5915, %v5915
      %v5948 = vpack.c.b16 %v5916, %v5916
      %v5949 = vpack.c.b16 %v5917, %v5917
      %v5950 = vpack.c.b16 %v5918, %v5918
      %v5951 = vpack.c.b16 %v5919, %v5919
      %v5952 = vpack.c.b16 %v5920, %v5920
      %v5953 = vpack.c.b16 %v5921, %v5921
      %v5954 = vpack.c.b16 %v5922, %v5922
      %v5955 = vpack.c.b16 %v5923, %v5923
      %v5956 = vpack.c.b16 %v5924, %v5924
      %v5957 = vpack.c.b16 %v5925, %v5925
      %v5958 = vpack.c.b16 %v5926, %v5926
      %v5959 = vpack.c.b16 %v5927, %v5927
      %v5960 = vpack.c.b16 %v5928, %v5928
      %v5961 = vpack.c.b16 %v5929, %v5929
      %v5962 = vpack.c.b16 %v5930, %v5930
      %v5963 = vpack.c.b16 %v5931, %v5931
      %v5964 = vpack.c.b16 %v5932, %v5932
      %v5965 = vpack.c.b16 %v5933, %v5933
      %v5966 = vpack.c.b16 %v5934, %v5934
      %v5967 = vpack.c.b16 %v5935, %v5935
      %v5968 = vpack.c.b16 %v5936, %v5936
      %v5969 = vpack.c.b16 %v5937, %v5937
      %v5970 = vpack.c.b16 %v5938, %v5938
      %v5971 = vpack.c.b16 %v5939, %v5939
      %v5973 = vshrl.u32 %v5940, 16
      %v5975 = vrot.slane %v5973, 7
      %v5976 = vshll.u32 %v5940, 16
      %v5978 = vor.u32 %v5975, %v5976
      %v5979 = vrot.slane %v5975, 4
      %v5981 = vshrl.u32 %v5941, 16
      %v5983 = vrot.slane %v5981, 7
      %v5984 = vshll.u32 %v5941, 16
      %v5986 = vor.u32 %v5983, %v5984
      %v5987 = vsel %vm704, %v5979, %v5986
      %v5988 = vrot.slane %v5983, 4
      %v5990 = vshrl.u32 %v5942, 16
      %v5992 = vrot.slane %v5990, 7
      %v5993 = vshll.u32 %v5942, 16
      %v5995 = vor.u32 %v5992, %v5993
      %v5996 = vrot.slane %v5992, 4
      %v5998 = vshrl.u32 %v5943, 16
      %v6000 = vrot.slane %v5998, 7
      %v6001 = vshll.u32 %v5943, 16
      %v6003 = vor.u32 %v6000, %v6001
      %v6004 = vsel %vm704, %v5996, %v6003
      %v6005 = vrot.slane %v6000, 4
      %v6007 = vshrl.u32 %v5944, 16
      %v6009 = vrot.slane %v6007, 7
      %v6010 = vshll.u32 %v5944, 16
      %v6012 = vor.u32 %v6009, %v6010
      %v6013 = vrot.slane %v6009, 4
      %v6015 = vshrl.u32 %v5945, 16
      %v6017 = vrot.slane %v6015, 7
      %v6018 = vshll.u32 %v5945, 16
      %v6020 = vor.u32 %v6017, %v6018
      %v6021 = vsel %vm704, %v6013, %v6020
      %v6022 = vrot.slane %v6017, 4
      %v6024 = vshrl.u32 %v5946, 16
      %v6026 = vrot.slane %v6024, 7
      %v6027 = vshll.u32 %v5946, 16
      %v6029 = vor.u32 %v6026, %v6027
      %v6030 = vrot.slane %v6026, 4
      %v6032 = vshrl.u32 %v5947, 16
      %v6034 = vrot.slane %v6032, 7
      %v6035 = vshll.u32 %v5947, 16
      %v6037 = vor.u32 %v6034, %v6035
      %v6038 = vsel %vm704, %v6030, %v6037
      %v6039 = vrot.slane %v6034, 4
      %v6041 = vshrl.u32 %v5948, 16
      %v6043 = vrot.slane %v6041, 7
      %v6044 = vshll.u32 %v5948, 16
      %v6046 = vor.u32 %v6043, %v6044
      %v6047 = vrot.slane %v6043, 4
      %v6049 = vshrl.u32 %v5949, 16
      %v6051 = vrot.slane %v6049, 7
      %v6052 = vshll.u32 %v5949, 16
      %v6054 = vor.u32 %v6051, %v6052
      %v6055 = vsel %vm704, %v6047, %v6054
      %v6056 = vrot.slane %v6051, 4
      %v6058 = vshrl.u32 %v5950, 16
      %v6060 = vrot.slane %v6058, 7
      %v6061 = vshll.u32 %v5950, 16
      %v6063 = vor.u32 %v6060, %v6061
      %v6064 = vrot.slane %v6060, 4
      %v6066 = vshrl.u32 %v5951, 16
      %v6068 = vrot.slane %v6066, 7
      %v6069 = vshll.u32 %v5951, 16
      %v6071 = vor.u32 %v6068, %v6069
      %v6072 = vsel %vm704, %v6064, %v6071
      %v6073 = vrot.slane %v6068, 4
      %v6075 = vshrl.u32 %v5952, 16
      %v6077 = vrot.slane %v6075, 7
      %v6078 = vshll.u32 %v5952, 16
      %v6080 = vor.u32 %v6077, %v6078
      %v6081 = vrot.slane %v6077, 4
      %v6083 = vshrl.u32 %v5953, 16
      %v6085 = vrot.slane %v6083, 7
      %v6086 = vshll.u32 %v5953, 16
      %v6088 = vor.u32 %v6085, %v6086
      %v6089 = vsel %vm704, %v6081, %v6088
      %v6090 = vrot.slane %v6085, 4
      %v6092 = vshrl.u32 %v5954, 16
      %v6094 = vrot.slane %v6092, 7
      %v6095 = vshll.u32 %v5954, 16
      %v6097 = vor.u32 %v6094, %v6095
      %v6098 = vrot.slane %v6094, 4
      %v6100 = vshrl.u32 %v5955, 16
      %v6102 = vrot.slane %v6100, 7
      %v6103 = vshll.u32 %v5955, 16
      %v6105 = vor.u32 %v6102, %v6103
      %v6106 = vsel %vm704, %v6098, %v6105
      %v6107 = vrot.slane %v6102, 4
      %v6109 = vshrl.u32 %v5956, 16
      %v6111 = vrot.slane %v6109, 7
      %v6112 = vshll.u32 %v5956, 16
      %v6114 = vor.u32 %v6111, %v6112
      %v6115 = vrot.slane %v6111, 4
      %v6117 = vshrl.u32 %v5957, 16
      %v6119 = vrot.slane %v6117, 7
      %v6120 = vshll.u32 %v5957, 16
      %v6122 = vor.u32 %v6119, %v6120
      %v6123 = vsel %vm704, %v6115, %v6122
      %v6124 = vrot.slane %v6119, 4
      %v6126 = vshrl.u32 %v5958, 16
      %v6128 = vrot.slane %v6126, 7
      %v6129 = vshll.u32 %v5958, 16
      %v6131 = vor.u32 %v6128, %v6129
      %v6132 = vrot.slane %v6128, 4
      %v6134 = vshrl.u32 %v5959, 16
      %v6136 = vrot.slane %v6134, 7
      %v6137 = vshll.u32 %v5959, 16
      %v6139 = vor.u32 %v6136, %v6137
      %v6140 = vsel %vm704, %v6132, %v6139
      %v6141 = vrot.slane %v6136, 4
      %v6143 = vshrl.u32 %v5960, 16
      %v6145 = vrot.slane %v6143, 7
      %v6146 = vshll.u32 %v5960, 16
      %v6148 = vor.u32 %v6145, %v6146
      %v6149 = vrot.slane %v6145, 4
      %v6151 = vshrl.u32 %v5961, 16
      %v6153 = vrot.slane %v6151, 7
      %v6154 = vshll.u32 %v5961, 16
      %v6156 = vor.u32 %v6153, %v6154
      %v6157 = vsel %vm704, %v6149, %v6156
      %v6158 = vrot.slane %v6153, 4
      %v6160 = vshrl.u32 %v5962, 16
      %v6162 = vrot.slane %v6160, 7
      %v6163 = vshll.u32 %v5962, 16
      %v6165 = vor.u32 %v6162, %v6163
      %v6166 = vrot.slane %v6162, 4
      %v6168 = vshrl.u32 %v5963, 16
      %v6170 = vrot.slane %v6168, 7
      %v6171 = vshll.u32 %v5963, 16
      %v6173 = vor.u32 %v6170, %v6171
      %v6174 = vsel %vm704, %v6166, %v6173
      %v6175 = vrot.slane %v6170, 4
      %v6177 = vshrl.u32 %v5964, 16
      %v6179 = vrot.slane %v6177, 7
      %v6180 = vshll.u32 %v5964, 16
      %v6182 = vor.u32 %v6179, %v6180
      %v6183 = vrot.slane %v6179, 4
      %v6185 = vshrl.u32 %v5965, 16
      %v6187 = vrot.slane %v6185, 7
      %v6188 = vshll.u32 %v5965, 16
      %v6190 = vor.u32 %v6187, %v6188
      %v6191 = vsel %vm704, %v6183, %v6190
      %v6192 = vrot.slane %v6187, 4
      %v6194 = vshrl.u32 %v5966, 16
      %v6196 = vrot.slane %v6194, 7
      %v6197 = vshll.u32 %v5966, 16
      %v6199 = vor.u32 %v6196, %v6197
      %v6200 = vrot.slane %v6196, 4
      %v6202 = vshrl.u32 %v5967, 16
      %v6204 = vrot.slane %v6202, 7
      %v6205 = vshll.u32 %v5967, 16
      %v6207 = vor.u32 %v6204, %v6205
      %v6208 = vsel %vm704, %v6200, %v6207
      %v6209 = vrot.slane %v6204, 4
      %v6211 = vshrl.u32 %v5968, 16
      %v6213 = vrot.slane %v6211, 7
      %v6214 = vshll.u32 %v5968, 16
      %v6216 = vor.u32 %v6213, %v6214
      %v6217 = vrot.slane %v6213, 4
      %v6219 = vshrl.u32 %v5969, 16
      %v6221 = vrot.slane %v6219, 7
      %v6222 = vshll.u32 %v5969, 16
      %v6224 = vor.u32 %v6221, %v6222
      %v6225 = vsel %vm704, %v6217, %v6224
      %v6226 = vrot.slane %v6221, 4
      %v6228 = vshrl.u32 %v5970, 16
      %v6230 = vrot.slane %v6228, 7
      %v6231 = vshll.u32 %v5970, 16
      %v6233 = vor.u32 %v6230, %v6231
      %v6234 = vrot.slane %v6230, 4
      %v6236 = vshrl.u32 %v5971, 16
      %v6238 = vrot.slane %v6236, 7
      %v6239 = vshll.u32 %v5971, 16
      %v6241 = vor.u32 %v6238, %v6239
      %v6242 = vsel %vm704, %v6234, %v6241
      %v6243 = vrot.slane %v6238, 4
      %vm6292 = vcmask 60416
      %vm6293 = vmand %vm6292, %vm573
      %v6294 = vld [vmem:[%s5792] sm:$0xf]
      %v6295 = vsel %vm6293, %v5978, %v6294
      %6296 = vst [vmem:[%s5792] sm:$0xf] %v6295
      %6297 = vst.msk [vmem:[%s5792 + $0x4] sm:$0xf] %vm5783, %v5987
      %v6298 = vld [vmem:[%s5792 + $0x8] sm:$0x1]
      %v6299 = vsel %vm5794, %v5988, %v6298
      %6300 = vst [vmem:[%s5792 + $0x8] sm:$0x1] %v6299
      %v6301 = vld [vmem:[%s5792 + $0xc] sm:$0xf]
      %v6302 = vsel %vm6293, %v5995, %v6301
      %6303 = vst [vmem:[%s5792 + $0xc] sm:$0xf] %v6302
      %6304 = vst.msk [vmem:[%s5792 + $0x10] sm:$0xf] %vm5783, %v6004
      %v6305 = vld [vmem:[%s5792 + $0x14] sm:$0x1]
      %v6306 = vsel %vm5794, %v6005, %v6305
      %6307 = vst [vmem:[%s5792 + $0x14] sm:$0x1] %v6306
      %v6308 = vld [vmem:[%s5792 + $0x18] sm:$0xf]
      %v6309 = vsel %vm6293, %v6012, %v6308
      %6310 = vst [vmem:[%s5792 + $0x18] sm:$0xf] %v6309
      %6311 = vst.msk [vmem:[%s5792 + $0x1c] sm:$0xf] %vm5783, %v6021
      %v6312 = vld [vmem:[%s5792 + $0x20] sm:$0x1]
      %v6313 = vsel %vm5794, %v6022, %v6312
      %6314 = vst [vmem:[%s5792 + $0x20] sm:$0x1] %v6313
      %v6315 = vld [vmem:[%s5792 + $0x24] sm:$0xf]
      %v6316 = vsel %vm6293, %v6029, %v6315
      %6317 = vst [vmem:[%s5792 + $0x24] sm:$0xf] %v6316
      %6318 = vst.msk [vmem:[%s5792 + $0x28] sm:$0xf] %vm5783, %v6038
      %v6319 = vld [vmem:[%s5792 + $0x2c] sm:$0x1]
      %v6320 = vsel %vm5794, %v6039, %v6319
      %6321 = vst [vmem:[%s5792 + $0x2c] sm:$0x1] %v6320
      %v6322 = vld [vmem:[%s5792 + $0x30] sm:$0xf]
      %v6323 = vsel %vm6293, %v6046, %v6322
      %6324 = vst [vmem:[%s5792 + $0x30] sm:$0xf] %v6323
      %6325 = vst.msk [vmem:[%s5792 + $0x34] sm:$0xf] %vm5783, %v6055
      %v6326 = vld [vmem:[%s5792 + $0x38] sm:$0x1]
      %v6327 = vsel %vm5794, %v6056, %v6326
      %6328 = vst [vmem:[%s5792 + $0x38] sm:$0x1] %v6327
      %v6329 = vld [vmem:[%s5792 + $0x3c] sm:$0xf]
      %v6330 = vsel %vm6293, %v6063, %v6329
      %6331 = vst [vmem:[%s5792 + $0x3c] sm:$0xf] %v6330
      %6332 = vst.msk [vmem:[%s5792 + $0x40] sm:$0xf] %vm5783, %v6072
      %v6333 = vld [vmem:[%s5792 + $0x44] sm:$0x1]
      %v6334 = vsel %vm5794, %v6073, %v6333
      %6335 = vst [vmem:[%s5792 + $0x44] sm:$0x1] %v6334
      %v6336 = vld [vmem:[%s5792 + $0x48] sm:$0xf]
      %v6337 = vsel %vm6293, %v6080, %v6336
      %6338 = vst [vmem:[%s5792 + $0x48] sm:$0xf] %v6337
      %6339 = vst.msk [vmem:[%s5792 + $0x4c] sm:$0xf] %vm5783, %v6089
      %v6340 = vld [vmem:[%s5792 + $0x50] sm:$0x1]
      %v6341 = vsel %vm5794, %v6090, %v6340
      %6342 = vst [vmem:[%s5792 + $0x50] sm:$0x1] %v6341
      %v6343 = vld [vmem:[%s5792 + $0x54] sm:$0xf]
      %v6344 = vsel %vm6293, %v6097, %v6343
      %6345 = vst [vmem:[%s5792 + $0x54] sm:$0xf] %v6344
      %6346 = vst.msk [vmem:[%s5792 + $0x58] sm:$0xf] %vm5783, %v6106
      %v6347 = vld [vmem:[%s5792 + $0x5c] sm:$0x1]
      %v6348 = vsel %vm5794, %v6107, %v6347
      %6349 = vst [vmem:[%s5792 + $0x5c] sm:$0x1] %v6348
      %v6350 = vld [vmem:[%s5792 + $0x60] sm:$0xf]
      %v6351 = vsel %vm6293, %v6114, %v6350
      %6352 = vst [vmem:[%s5792 + $0x60] sm:$0xf] %v6351
      %6353 = vst.msk [vmem:[%s5792 + $0x64] sm:$0xf] %vm5783, %v6123
      %v6354 = vld [vmem:[%s5792 + $0x68] sm:$0x1]
      %v6355 = vsel %vm5794, %v6124, %v6354
      %6356 = vst [vmem:[%s5792 + $0x68] sm:$0x1] %v6355
      %v6357 = vld [vmem:[%s5792 + $0x6c] sm:$0xf]
      %v6358 = vsel %vm6293, %v6131, %v6357
      %6359 = vst [vmem:[%s5792 + $0x6c] sm:$0xf] %v6358
      %6360 = vst.msk [vmem:[%s5792 + $0x70] sm:$0xf] %vm5783, %v6140
      %v6361 = vld [vmem:[%s5792 + $0x74] sm:$0x1]
      %v6362 = vsel %vm5794, %v6141, %v6361
      %6363 = vst [vmem:[%s5792 + $0x74] sm:$0x1] %v6362
      %v6364 = vld [vmem:[%s5792 + $0x78] sm:$0xf]
      %v6365 = vsel %vm6293, %v6148, %v6364
      %6366 = vst [vmem:[%s5792 + $0x78] sm:$0xf] %v6365
      %6367 = vst.msk [vmem:[%s5792 + $0x7c] sm:$0xf] %vm5783, %v6157
      %v6368 = vld [vmem:[%s5792 + $0x80] sm:$0x1]
      %v6369 = vsel %vm5794, %v6158, %v6368
      %6370 = vst [vmem:[%s5792 + $0x80] sm:$0x1] %v6369
      %v6371 = vld [vmem:[%s5792 + $0x84] sm:$0xf]
      %v6372 = vsel %vm6293, %v6165, %v6371
      %6373 = vst [vmem:[%s5792 + $0x84] sm:$0xf] %v6372
      %6374 = vst.msk [vmem:[%s5792 + $0x88] sm:$0xf] %vm5783, %v6174
      %v6375 = vld [vmem:[%s5792 + $0x8c] sm:$0x1]
      %v6376 = vsel %vm5794, %v6175, %v6375
      %6377 = vst [vmem:[%s5792 + $0x8c] sm:$0x1] %v6376
      %v6378 = vld [vmem:[%s5792 + $0x90] sm:$0xf]
      %v6379 = vsel %vm6293, %v6182, %v6378
      %6380 = vst [vmem:[%s5792 + $0x90] sm:$0xf] %v6379
      %6381 = vst.msk [vmem:[%s5792 + $0x94] sm:$0xf] %vm5783, %v6191
      %v6382 = vld [vmem:[%s5792 + $0x98] sm:$0x1]
      %v6383 = vsel %vm5794, %v6192, %v6382
      %6384 = vst [vmem:[%s5792 + $0x98] sm:$0x1] %v6383
      %v6385 = vld [vmem:[%s5792 + $0x9c] sm:$0xf]
      %v6386 = vsel %vm6293, %v6199, %v6385
      %6387 = vst [vmem:[%s5792 + $0x9c] sm:$0xf] %v6386
      %6388 = vst.msk [vmem:[%s5792 + $0xa0] sm:$0xf] %vm5783, %v6208
      %v6389 = vld [vmem:[%s5792 + $0xa4] sm:$0x1]
      %v6390 = vsel %vm5794, %v6209, %v6389
      %6391 = vst [vmem:[%s5792 + $0xa4] sm:$0x1] %v6390
      %v6392 = vld [vmem:[%s5792 + $0xa8] sm:$0xf]
      %v6393 = vsel %vm6293, %v6216, %v6392
      %6394 = vst [vmem:[%s5792 + $0xa8] sm:$0xf] %v6393
      %6395 = vst.msk [vmem:[%s5792 + $0xac] sm:$0xf] %vm5783, %v6225
      %v6396 = vld [vmem:[%s5792 + $0xb0] sm:$0x1]
      %v6397 = vsel %vm5794, %v6226, %v6396
      %6398 = vst [vmem:[%s5792 + $0xb0] sm:$0x1] %v6397
      %v6399 = vld [vmem:[%s5792 + $0xb4] sm:$0xf]
      %v6400 = vsel %vm6293, %v6233, %v6399
      %6401 = vst [vmem:[%s5792 + $0xb4] sm:$0xf] %v6400
      %6402 = vst.msk [vmem:[%s5792 + $0xb8] sm:$0xf] %vm5783, %v6242
      %v6403 = vld [vmem:[%s5792 + $0xbc] sm:$0x1]
      %v6404 = vsel %vm5794, %v6243, %v6403
      %6405 = vst [vmem:[%s5792 + $0xbc] sm:$0x1] %v6404
      %v6406 = vld [vmem:[#allocation3] sm:$0xf]
      %v6407 = vld [vmem:[#allocation3 + $0x4] sm:$0xf]
      %v6408 = vld [vmem:[#allocation3 + $0xc] sm:$0xf]
      %v6409 = vld [vmem:[#allocation3 + $0x10] sm:$0xf]
      %v6410 = vld [vmem:[#allocation3 + $0x18] sm:$0xf]
      %v6411 = vld [vmem:[#allocation3 + $0x1c] sm:$0xf]
      %v6412 = vld [vmem:[#allocation3 + $0x24] sm:$0xf]
      %v6413 = vld [vmem:[#allocation3 + $0x28] sm:$0xf]
      %v6414 = vld [vmem:[#allocation3 + $0x30] sm:$0xf]
      %v6415 = vld [vmem:[#allocation3 + $0x34] sm:$0xf]
      %v6416 = vld [vmem:[#allocation3 + $0x3c] sm:$0xf]
      %v6417 = vld [vmem:[#allocation3 + $0x40] sm:$0xf]
      %v6418 = vld [vmem:[#allocation3 + $0x48] sm:$0xf]
      %v6419 = vld [vmem:[#allocation3 + $0x4c] sm:$0xf]
      %v6420 = vld [vmem:[#allocation3 + $0x54] sm:$0xf]
      %v6421 = vld [vmem:[#allocation3 + $0x58] sm:$0xf]
      %v6422 = vld [vmem:[#allocation3 + $0x60] sm:$0xf]
      %v6423 = vld [vmem:[#allocation3 + $0x64] sm:$0xf]
      %v6424 = vld [vmem:[#allocation3 + $0x6c] sm:$0xf]
      %v6425 = vld [vmem:[#allocation3 + $0x70] sm:$0xf]
      %v6426 = vld [vmem:[#allocation3 + $0x78] sm:$0xf]
      %v6427 = vld [vmem:[#allocation3 + $0x7c] sm:$0xf]
      %v6428 = vld [vmem:[#allocation3 + $0x84] sm:$0xf]
      %v6429 = vld [vmem:[#allocation3 + $0x88] sm:$0xf]
      %v6430 = vld [vmem:[#allocation3 + $0x90] sm:$0xf]
      %v6431 = vld [vmem:[#allocation3 + $0x94] sm:$0xf]
      %v6432 = vld [vmem:[#allocation3 + $0x9c] sm:$0xf]
      %v6433 = vld [vmem:[#allocation3 + $0xa0] sm:$0xf]
      %v6434 = vld [vmem:[#allocation3 + $0xa8] sm:$0xf]
      %v6435 = vld [vmem:[#allocation3 + $0xac] sm:$0xf]
      %v6436 = vld [vmem:[#allocation3 + $0xb4] sm:$0xf]
      %v6437 = vld [vmem:[#allocation3 + $0xb8] sm:$0xf]
      %v6438 = vld [vmem:[%s5] sm:$0xf]
      %v6439 = vld [vmem:[#allocation3 + $0x8] sm:$0x1]
      %v6440 = vld [vmem:[#allocation3 + $0x14] sm:$0x1]
      %v6441 = vld [vmem:[#allocation3 + $0x20] sm:$0x1]
      %v6442 = vld [vmem:[#allocation3 + $0x2c] sm:$0x1]
      %v6443 = vld [vmem:[#allocation3 + $0x38] sm:$0x1]
      %v6444 = vld [vmem:[#allocation3 + $0x44] sm:$0x1]
      %v6445 = vld [vmem:[#allocation3 + $0x50] sm:$0x1]
      %v6446 = vld [vmem:[#allocation3 + $0x5c] sm:$0x1]
      %v6447 = vld [vmem:[#allocation3 + $0x68] sm:$0x1]
      %v6448 = vld [vmem:[#allocation3 + $0x74] sm:$0x1]
      %v6449 = vld [vmem:[#allocation3 + $0x80] sm:$0x1]
      %v6450 = vld [vmem:[#allocation3 + $0x8c] sm:$0x1]
      %v6451 = vld [vmem:[#allocation3 + $0x98] sm:$0x1]
      %v6452 = vld [vmem:[#allocation3 + $0xa4] sm:$0x1]
      %v6453 = vld [vmem:[#allocation3 + $0xb0] sm:$0x1]
      %v6454 = vld [vmem:[#allocation3 + $0xbc] sm:$0x1]
      %v6456 = vshrl.u32 %v6406, 16
      %v6458 = vrot.slane %v6456, 4
      %v6459 = vshll.u32 %v6406, 16
      %v6461 = vrot.slane %v6459, 5
      %v6462 = vor.u32 %v6458, %v6461
      %v6463 = vrot.slane %v6462, 4
      %v6465 = vshll.u32 %v6407, 16
      %v6467 = vrot.slane %v6465, 5
      %v6468 = vsel %vm1190, %v6463, %v6467
      %v6469 = vshrl.u32 %v6407, 16
      %v6471 = vrot.slane %v6469, 4
      %v6472 = vor.u32 %v6471, %v6467
      %v6473 = vrot.slane %v6472, 4
      %v6475 = vshll.u32 %v6439, 16
      %v6477 = vrot.slane %v6475, 5
      %v6478 = vsel %vm1190, %v6473, %v6477
      %v6480 = vshrl.u32 %v6408, 16
      %v6482 = vrot.slane %v6480, 4
      %v6483 = vshll.u32 %v6408, 16
      %v6485 = vrot.slane %v6483, 5
      %v6486 = vor.u32 %v6482, %v6485
      %v6487 = vrot.slane %v6486, 4
      %v6489 = vshll.u32 %v6409, 16
      %v6491 = vrot.slane %v6489, 5
      %v6492 = vsel %vm1190, %v6487, %v6491
      %v6493 = vshrl.u32 %v6409, 16
      %v6495 = vrot.slane %v6493, 4
      %v6496 = vor.u32 %v6495, %v6491
      %v6497 = vrot.slane %v6496, 4
      %v6499 = vshll.u32 %v6440, 16
      %v6501 = vrot.slane %v6499, 5
      %v6502 = vsel %vm1190, %v6497, %v6501
      %v6504 = vshrl.u32 %v6410, 16
      %v6506 = vrot.slane %v6504, 4
      %v6507 = vshll.u32 %v6410, 16
      %v6509 = vrot.slane %v6507, 5
      %v6510 = vor.u32 %v6506, %v6509
      %v6511 = vrot.slane %v6510, 4
      %v6513 = vshll.u32 %v6411, 16
      %v6515 = vrot.slane %v6513, 5
      %v6516 = vsel %vm1190, %v6511, %v6515
      %v6517 = vshrl.u32 %v6411, 16
      %v6519 = vrot.slane %v6517, 4
      %v6520 = vor.u32 %v6519, %v6515
      %v6521 = vrot.slane %v6520, 4
      %v6523 = vshll.u32 %v6441, 16
      %v6525 = vrot.slane %v6523, 5
      %v6526 = vsel %vm1190, %v6521, %v6525
      %v6528 = vshrl.u32 %v6412, 16
      %v6530 = vrot.slane %v6528, 4
      %v6531 = vshll.u32 %v6412, 16
      %v6533 = vrot.slane %v6531, 5
      %v6534 = vor.u32 %v6530, %v6533
      %v6535 = vrot.slane %v6534, 4
      %v6537 = vshll.u32 %v6413, 16
      %v6539 = vrot.slane %v6537, 5
      %v6540 = vsel %vm1190, %v6535, %v6539
      %v6541 = vshrl.u32 %v6413, 16
      %v6543 = vrot.slane %v6541, 4
      %v6544 = vor.u32 %v6543, %v6539
      %v6545 = vrot.slane %v6544, 4
      %v6547 = vshll.u32 %v6442, 16
      %v6549 = vrot.slane %v6547, 5
      %v6550 = vsel %vm1190, %v6545, %v6549
      %v6552 = vshrl.u32 %v6414, 16
      %v6554 = vrot.slane %v6552, 4
      %v6555 = vshll.u32 %v6414, 16
      %v6557 = vrot.slane %v6555, 5
      %v6558 = vor.u32 %v6554, %v6557
      %v6559 = vrot.slane %v6558, 4
      %v6561 = vshll.u32 %v6415, 16
      %v6563 = vrot.slane %v6561, 5
      %v6564 = vsel %vm1190, %v6559, %v6563
      %v6565 = vshrl.u32 %v6415, 16
      %v6567 = vrot.slane %v6565, 4
      %v6568 = vor.u32 %v6567, %v6563
      %v6569 = vrot.slane %v6568, 4
      %v6571 = vshll.u32 %v6443, 16
      %v6573 = vrot.slane %v6571, 5
      %v6574 = vsel %vm1190, %v6569, %v6573
      %v6576 = vshrl.u32 %v6416, 16
      %v6578 = vrot.slane %v6576, 4
      %v6579 = vshll.u32 %v6416, 16
      %v6581 = vrot.slane %v6579, 5
      %v6582 = vor.u32 %v6578, %v6581
      %v6583 = vrot.slane %v6582, 4
      %v6585 = vshll.u32 %v6417, 16
      %v6587 = vrot.slane %v6585, 5
      %v6588 = vsel %vm1190, %v6583, %v6587
      %v6589 = vshrl.u32 %v6417, 16
      %v6591 = vrot.slane %v6589, 4
      %v6592 = vor.u32 %v6591, %v6587
      %v6593 = vrot.slane %v6592, 4
      %v6595 = vshll.u32 %v6444, 16
      %v6597 = vrot.slane %v6595, 5
      %v6598 = vsel %vm1190, %v6593, %v6597
      %v6600 = vshrl.u32 %v6418, 16
      %v6602 = vrot.slane %v6600, 4
      %v6603 = vshll.u32 %v6418, 16
      %v6605 = vrot.slane %v6603, 5
      %v6606 = vor.u32 %v6602, %v6605
      %v6607 = vrot.slane %v6606, 4
      %v6609 = vshll.u32 %v6419, 16
      %v6611 = vrot.slane %v6609, 5
      %v6612 = vsel %vm1190, %v6607, %v6611
      %v6613 = vshrl.u32 %v6419, 16
      %v6615 = vrot.slane %v6613, 4
      %v6616 = vor.u32 %v6615, %v6611
      %v6617 = vrot.slane %v6616, 4
      %v6619 = vshll.u32 %v6445, 16
      %v6621 = vrot.slane %v6619, 5
      %v6622 = vsel %vm1190, %v6617, %v6621
      %v6624 = vshrl.u32 %v6420, 16
      %v6626 = vrot.slane %v6624, 4
      %v6627 = vshll.u32 %v6420, 16
      %v6629 = vrot.slane %v6627, 5
      %v6630 = vor.u32 %v6626, %v6629
      %v6631 = vrot.slane %v6630, 4
      %v6633 = vshll.u32 %v6421, 16
      %v6635 = vrot.slane %v6633, 5
      %v6636 = vsel %vm1190, %v6631, %v6635
      %v6637 = vshrl.u32 %v6421, 16
      %v6639 = vrot.slane %v6637, 4
      %v6640 = vor.u32 %v6639, %v6635
      %v6641 = vrot.slane %v6640, 4
      %v6643 = vshll.u32 %v6446, 16
      %v6645 = vrot.slane %v6643, 5
      %v6646 = vsel %vm1190, %v6641, %v6645
      %v6648 = vshrl.u32 %v6422, 16
      %v6650 = vrot.slane %v6648, 4
      %v6651 = vshll.u32 %v6422, 16
      %v6653 = vrot.slane %v6651, 5
      %v6654 = vor.u32 %v6650, %v6653
      %v6655 = vrot.slane %v6654, 4
      %v6657 = vshll.u32 %v6423, 16
      %v6659 = vrot.slane %v6657, 5
      %v6660 = vsel %vm1190, %v6655, %v6659
      %v6661 = vshrl.u32 %v6423, 16
      %v6663 = vrot.slane %v6661, 4
      %v6664 = vor.u32 %v6663, %v6659
      %v6665 = vrot.slane %v6664, 4
      %v6667 = vshll.u32 %v6447, 16
      %v6669 = vrot.slane %v6667, 5
      %v6670 = vsel %vm1190, %v6665, %v6669
      %v6672 = vshrl.u32 %v6424, 16
      %v6674 = vrot.slane %v6672, 4
      %v6675 = vshll.u32 %v6424, 16
      %v6677 = vrot.slane %v6675, 5
      %v6678 = vor.u32 %v6674, %v6677
      %v6679 = vrot.slane %v6678, 4
      %v6681 = vshll.u32 %v6425, 16
      %v6683 = vrot.slane %v6681, 5
      %v6684 = vsel %vm1190, %v6679, %v6683
      %v6685 = vshrl.u32 %v6425, 16
      %v6687 = vrot.slane %v6685, 4
      %v6688 = vor.u32 %v6687, %v6683
      %v6689 = vrot.slane %v6688, 4
      %v6691 = vshll.u32 %v6448, 16
      %v6693 = vrot.slane %v6691, 5
      %v6694 = vsel %vm1190, %v6689, %v6693
      %v6696 = vshrl.u32 %v6426, 16
      %v6698 = vrot.slane %v6696, 4
      %v6699 = vshll.u32 %v6426, 16
      %v6701 = vrot.slane %v6699, 5
      %v6702 = vor.u32 %v6698, %v6701
      %v6703 = vrot.slane %v6702, 4
      %v6705 = vshll.u32 %v6427, 16
      %v6707 = vrot.slane %v6705, 5
      %v6708 = vsel %vm1190, %v6703, %v6707
      %v6709 = vshrl.u32 %v6427, 16
      %v6711 = vrot.slane %v6709, 4
      %v6712 = vor.u32 %v6711, %v6707
      %v6713 = vrot.slane %v6712, 4
      %v6715 = vshll.u32 %v6449, 16
      %v6717 = vrot.slane %v6715, 5
      %v6718 = vsel %vm1190, %v6713, %v6717
      %v6720 = vshrl.u32 %v6428, 16
      %v6722 = vrot.slane %v6720, 4
      %v6723 = vshll.u32 %v6428, 16
      %v6725 = vrot.slane %v6723, 5
      %v6726 = vor.u32 %v6722, %v6725
      %v6727 = vrot.slane %v6726, 4
      %v6729 = vshll.u32 %v6429, 16
      %v6731 = vrot.slane %v6729, 5
      %v6732 = vsel %vm1190, %v6727, %v6731
      %v6733 = vshrl.u32 %v6429, 16
      %v6735 = vrot.slane %v6733, 4
      %v6736 = vor.u32 %v6735, %v6731
      %v6737 = vrot.slane %v6736, 4
      %v6739 = vshll.u32 %v6450, 16
      %v6741 = vrot.slane %v6739, 5
      %v6742 = vsel %vm1190, %v6737, %v6741
      %v6744 = vshrl.u32 %v6430, 16
      %v6746 = vrot.slane %v6744, 4
      %v6747 = vshll.u32 %v6430, 16
      %v6749 = vrot.slane %v6747, 5
      %v6750 = vor.u32 %v6746, %v6749
      %v6751 = vrot.slane %v6750, 4
      %v6753 = vshll.u32 %v6431, 16
      %v6755 = vrot.slane %v6753, 5
      %v6756 = vsel %vm1190, %v6751, %v6755
      %v6757 = vshrl.u32 %v6431, 16
      %v6759 = vrot.slane %v6757, 4
      %v6760 = vor.u32 %v6759, %v6755
      %v6761 = vrot.slane %v6760, 4
      %v6763 = vshll.u32 %v6451, 16
      %v6765 = vrot.slane %v6763, 5
      %v6766 = vsel %vm1190, %v6761, %v6765
      %v6768 = vshrl.u32 %v6432, 16
      %v6770 = vrot.slane %v6768, 4
      %v6771 = vshll.u32 %v6432, 16
      %v6773 = vrot.slane %v6771, 5
      %v6774 = vor.u32 %v6770, %v6773
      %v6775 = vrot.slane %v6774, 4
      %v6777 = vshll.u32 %v6433, 16
      %v6779 = vrot.slane %v6777, 5
      %v6780 = vsel %vm1190, %v6775, %v6779
      %v6781 = vshrl.u32 %v6433, 16
      %v6783 = vrot.slane %v6781, 4
      %v6784 = vor.u32 %v6783, %v6779
      %v6785 = vrot.slane %v6784, 4
      %v6787 = vshll.u32 %v6452, 16
      %v6789 = vrot.slane %v6787, 5
      %v6790 = vsel %vm1190, %v6785, %v6789
      %v6792 = vshrl.u32 %v6434, 16
      %v6794 = vrot.slane %v6792, 4
      %v6795 = vshll.u32 %v6434, 16
      %v6797 = vrot.slane %v6795, 5
      %v6798 = vor.u32 %v6794, %v6797
      %v6799 = vrot.slane %v6798, 4
      %v6801 = vshll.u32 %v6435, 16
      %v6803 = vrot.slane %v6801, 5
      %v6804 = vsel %vm1190, %v6799, %v6803
      %v6805 = vshrl.u32 %v6435, 16
      %v6807 = vrot.slane %v6805, 4
      %v6808 = vor.u32 %v6807, %v6803
      %v6809 = vrot.slane %v6808, 4
      %v6811 = vshll.u32 %v6453, 16
      %v6813 = vrot.slane %v6811, 5
      %v6814 = vsel %vm1190, %v6809, %v6813
      %v6816 = vshrl.u32 %v6436, 16
      %v6818 = vrot.slane %v6816, 4
      %v6819 = vshll.u32 %v6436, 16
      %v6821 = vrot.slane %v6819, 5
      %v6822 = vor.u32 %v6818, %v6821
      %v6823 = vrot.slane %v6822, 4
      %v6825 = vshll.u32 %v6437, 16
      %v6827 = vrot.slane %v6825, 5
      %v6828 = vsel %vm1190, %v6823, %v6827
      %v6829 = vshrl.u32 %v6437, 16
      %v6831 = vrot.slane %v6829, 4
      %v6832 = vor.u32 %v6831, %v6827
      %v6833 = vrot.slane %v6832, 4
      %v6835 = vshll.u32 %v6454, 16
      %v6837 = vrot.slane %v6835, 5
      %v6838 = vsel %vm1190, %v6833, %v6837
      %s6839 = scalar_lea.vmem %s5, 4
      %v6840 = vld [vmem:[%s6839] sm:$0xf]
      %v6841 = vunpack.c.l.b16 %v6468
      %v6842 = vunpack.c.l.b16 %v6478
      %v6843 = vunpack.c.l.b16 %v6492
      %v6844 = vunpack.c.l.b16 %v6502
      %v6845 = vunpack.c.l.b16 %v6516
      %v6846 = vunpack.c.l.b16 %v6526
      %v6847 = vunpack.c.l.b16 %v6540
      %v6848 = vunpack.c.l.b16 %v6550
      %v6849 = vunpack.c.l.b16 %v6564
      %v6850 = vunpack.c.l.b16 %v6574
      %v6851 = vunpack.c.l.b16 %v6588
      %v6852 = vunpack.c.l.b16 %v6598
      %v6853 = vunpack.c.l.b16 %v6612
      %v6854 = vunpack.c.l.b16 %v6622
      %v6855 = vunpack.c.l.b16 %v6636
      %v6856 = vunpack.c.l.b16 %v6646
      %v6857 = vunpack.c.l.b16 %v6660
      %v6858 = vunpack.c.l.b16 %v6670
      %v6859 = vunpack.c.l.b16 %v6684
      %v6860 = vunpack.c.l.b16 %v6694
      %v6861 = vunpack.c.l.b16 %v6708
      %v6862 = vunpack.c.l.b16 %v6718
      %v6863 = vunpack.c.l.b16 %v6732
      %v6864 = vunpack.c.l.b16 %v6742
      %v6865 = vunpack.c.l.b16 %v6756
      %v6866 = vunpack.c.l.b16 %v6766
      %v6867 = vunpack.c.l.b16 %v6780
      %v6868 = vunpack.c.l.b16 %v6790
      %v6869 = vunpack.c.l.b16 %v6804
      %v6870 = vunpack.c.l.b16 %v6814
      %v6871 = vunpack.c.l.b16 %v6828
      %v6872 = vunpack.c.l.b16 %v6838
      %v6873 = vpack.c.b16 %v6842, %v6841
      %v6874 = vpack.c.b16 %v6844, %v6843
      %v6875 = vpack.c.b16 %v6846, %v6845
      %v6876 = vpack.c.b16 %v6848, %v6847
      %v6877 = vpack.c.b16 %v6850, %v6849
      %v6878 = vpack.c.b16 %v6852, %v6851
      %v6879 = vpack.c.b16 %v6854, %v6853
      %v6880 = vpack.c.b16 %v6856, %v6855
      %v6881 = vpack.c.b16 %v6858, %v6857
      %v6882 = vpack.c.b16 %v6860, %v6859
      %v6883 = vpack.c.b16 %v6862, %v6861
      %v6884 = vpack.c.b16 %v6864, %v6863
      %v6885 = vpack.c.b16 %v6866, %v6865
      %v6886 = vpack.c.b16 %v6868, %v6867
      %v6887 = vpack.c.b16 %v6870, %v6869
      %v6888 = vpack.c.b16 %v6872, %v6871
      %vm6889 = vcmask 64512
      %v6891 = vsel %vm6889, %v6873, 0
      %v6894 = vsel %vm6889, %v6874, 0
      %v6897 = vsel %vm6889, %v6875, 0
      %v6900 = vsel %vm6889, %v6876, 0
      %v6903 = vsel %vm6889, %v6877, 0
      %v6906 = vsel %vm6889, %v6878, 0
      %v6909 = vsel %vm6889, %v6879, 0
      %v6912 = vsel %vm6889, %v6880, 0
      %v6915 = vsel %vm6889, %v6881, 0
      %v6918 = vsel %vm6889, %v6882, 0
      %v6921 = vsel %vm6889, %v6883, 0
      %v6924 = vsel %vm6889, %v6884, 0
      %v6927 = vsel %vm6889, %v6885, 0
      %v6930 = vsel %vm6889, %v6886, 0
      %v6933 = vsel %vm6889, %v6887, 0
      %v6936 = vsel %vm6889, %v6888, 0
      %vm6938 = vcmask 1043456
      %v6940 = vsel %vm6938, %v6840, 0
      %6942 = vmatprep.subr.bf16.mxu0 0
      %6943 = vmatpush1.bf16.msra.mxu0 0
      %6944 = vmatprep.subr.bf16.mxu0 0
      %6945 = vmatpush1.bf16.msra.mxu0 0
      %6946 = vmatprep.subr.bf16.mxu0 0
      %6947 = vmatpush1.bf16.msra.mxu0 0
      %6948 = vmatprep.subr.bf16.mxu0 0
      %6949 = vmatpush1.bf16.msra.mxu0 0
      %6950 = vmatprep.subr.bf16.mxu0 0
      %6951 = vmatpush1.bf16.msra.mxu0 0
      %6952 = vmatprep.subr.bf16.mxu0 0
      %6953 = vmatpush1.bf16.msra.mxu0 0
      %6954 = vmatprep.subr.bf16.mxu0 0
      %6955 = vmatpush1.bf16.msra.mxu0 0
      %6956 = vmatprep.subr.bf16.mxu0 0
      %6957 = vmatpush1.bf16.msra.mxu0 %v6940
      %6958 = vmatprep.subr.bf16.mxu0 0
      %6959 = vmatpush2.bf16.msra.mxu0 0
      %6960 = vmatprep.subr.bf16.mxu0 0
      %6961 = vmatpush2.bf16.msra.mxu0 0
      %6962 = vmatprep.subr.bf16.mxu0 0
      %6963 = vmatpush2.bf16.msra.mxu0 0
      %6964 = vmatprep.subr.bf16.mxu0 0
      %6965 = vmatpush2.bf16.msra.mxu0 0
      %6966 = vmatprep.subr.bf16.mxu0 0
      %6967 = vmatpush2.bf16.msra.mxu0 0
      %6968 = vmatprep.subr.bf16.mxu0 0
      %6969 = vmatpush2.bf16.msra.mxu0 0
      %6970 = vmatprep.subr.bf16.mxu0 0
      %6971 = vmatpush2.bf16.msra.mxu0 0
      %6972 = vmatprep.subr.bf16.mxu0 0
      %6973 = vmatpush2.bf16.msra.mxu0 0
      %6974 = vmatprep.mubr.bf16.mxu0 0
      %6975 = vmatmul.mubr.bf16.gmra.mxu0 %v6891
      %v6976 = vpop.f32.mrf.mxu0
      %v6977 = vadd.f32 0.0, %v6976
      %v6978 = vpop.f32.mrf.mxu0
      %v6979 = vpop.f32.mrf.mxu0
      %v6980 = vadd.f32 0.0, %v6979
      %v6981 = vpop.f32.mrf.mxu0
      %6982 = vmatprep.mubr.bf16.mxu0 0
      %6983 = vmatmul.mubr.bf16.gmra.mxu0 %v6894
      %v6984 = vpop.f32.mrf.mxu0
      %v6985 = vadd.f32 0.0, %v6984
      %v6986 = vpop.f32.mrf.mxu0
      %v6987 = vpop.f32.mrf.mxu0
      %v6988 = vadd.f32 0.0, %v6987
      %v6989 = vpop.f32.mrf.mxu0
      %6990 = vmatprep.mubr.bf16.mxu0 0
      %6991 = vmatmul.mubr.bf16.gmra.mxu0 %v6897
      %v6992 = vpop.f32.mrf.mxu0
      %v6993 = vadd.f32 0.0, %v6992
      %v6994 = vpop.f32.mrf.mxu0
      %v6995 = vpop.f32.mrf.mxu0
      %v6996 = vadd.f32 0.0, %v6995
      %v6997 = vpop.f32.mrf.mxu0
      %6998 = vmatprep.mubr.bf16.mxu0 0
      %6999 = vmatmul.mubr.bf16.gmra.mxu0 %v6900
      %v7000 = vpop.f32.mrf.mxu0
      %v7001 = vadd.f32 0.0, %v7000
      %v7002 = vpop.f32.mrf.mxu0
      %v7003 = vpop.f32.mrf.mxu0
      %v7004 = vadd.f32 0.0, %v7003
      %v7005 = vpop.f32.mrf.mxu0
      %7006 = vmatprep.mubr.bf16.mxu0 0
      %7007 = vmatmul.mubr.bf16.gmra.mxu0 %v6903
      %v7008 = vpop.f32.mrf.mxu0
      %v7009 = vadd.f32 0.0, %v7008
      %v7010 = vpop.f32.mrf.mxu0
      %v7011 = vpop.f32.mrf.mxu0
      %v7012 = vadd.f32 0.0, %v7011
      %v7013 = vpop.f32.mrf.mxu0
      %7014 = vmatprep.mubr.bf16.mxu0 0
      %7015 = vmatmul.mubr.bf16.gmra.mxu0 %v6906
      %v7016 = vpop.f32.mrf.mxu0
      %v7017 = vadd.f32 0.0, %v7016
      %v7018 = vpop.f32.mrf.mxu0
      %v7019 = vpop.f32.mrf.mxu0
      %v7020 = vadd.f32 0.0, %v7019
      %v7021 = vpop.f32.mrf.mxu0
      %7022 = vmatprep.mubr.bf16.mxu0 0
      %7023 = vmatmul.mubr.bf16.gmra.mxu0 %v6909
      %v7024 = vpop.f32.mrf.mxu0
      %v7025 = vadd.f32 0.0, %v7024
      %v7026 = vpop.f32.mrf.mxu0
      %v7027 = vpop.f32.mrf.mxu0
      %v7028 = vadd.f32 0.0, %v7027
      %v7029 = vpop.f32.mrf.mxu0
      %7030 = vmatprep.mubr.bf16.mxu0 0
      %7031 = vmatmul.mubr.bf16.gmra.mxu0 %v6912
      %v7032 = vpop.f32.mrf.mxu0
      %v7033 = vadd.f32 0.0, %v7032
      %v7034 = vpop.f32.mrf.mxu0
      %v7035 = vpop.f32.mrf.mxu0
      %v7036 = vadd.f32 0.0, %v7035
      %v7037 = vpop.f32.mrf.mxu0
      %7038 = vmatprep.mubr.bf16.mxu0 0
      %7039 = vmatmul.mubr.bf16.gmra.mxu0 %v6915
      %v7040 = vpop.f32.mrf.mxu0
      %v7041 = vadd.f32 0.0, %v7040
      %v7042 = vpop.f32.mrf.mxu0
      %v7043 = vpop.f32.mrf.mxu0
      %v7044 = vadd.f32 0.0, %v7043
      %v7045 = vpop.f32.mrf.mxu0
      %7046 = vmatprep.mubr.bf16.mxu0 0
      %7047 = vmatmul.mubr.bf16.gmra.mxu0 %v6918
      %v7048 = vpop.f32.mrf.mxu0
      %v7049 = vadd.f32 0.0, %v7048
      %v7050 = vpop.f32.mrf.mxu0
      %v7051 = vpop.f32.mrf.mxu0
      %v7052 = vadd.f32 0.0, %v7051
      %v7053 = vpop.f32.mrf.mxu0
      %7054 = vmatprep.mubr.bf16.mxu0 0
      %7055 = vmatmul.mubr.bf16.gmra.mxu0 %v6921
      %v7056 = vpop.f32.mrf.mxu0
      %v7057 = vadd.f32 0.0, %v7056
      %v7058 = vpop.f32.mrf.mxu0
      %v7059 = vpop.f32.mrf.mxu0
      %v7060 = vadd.f32 0.0, %v7059
      %v7061 = vpop.f32.mrf.mxu0
      %7062 = vmatprep.mubr.bf16.mxu0 0
      %7063 = vmatmul.mubr.bf16.gmra.mxu0 %v6924
      %v7064 = vpop.f32.mrf.mxu0
      %v7065 = vadd.f32 0.0, %v7064
      %v7066 = vpop.f32.mrf.mxu0
      %v7067 = vpop.f32.mrf.mxu0
      %v7068 = vadd.f32 0.0, %v7067
      %v7069 = vpop.f32.mrf.mxu0
      %7070 = vmatprep.mubr.bf16.mxu0 0
      %7071 = vmatmul.mubr.bf16.gmra.mxu0 %v6927
      %v7072 = vpop.f32.mrf.mxu0
      %v7073 = vadd.f32 0.0, %v7072
      %v7074 = vpop.f32.mrf.mxu0
      %v7075 = vpop.f32.mrf.mxu0
      %v7076 = vadd.f32 0.0, %v7075
      %v7077 = vpop.f32.mrf.mxu0
      %7078 = vmatprep.mubr.bf16.mxu0 0
      %7079 = vmatmul.mubr.bf16.gmra.mxu0 %v6930
      %v7080 = vpop.f32.mrf.mxu0
      %v7081 = vadd.f32 0.0, %v7080
      %v7082 = vpop.f32.mrf.mxu0
      %v7083 = vpop.f32.mrf.mxu0
      %v7084 = vadd.f32 0.0, %v7083
      %v7085 = vpop.f32.mrf.mxu0
      %7086 = vmatprep.mubr.bf16.mxu0 0
      %7087 = vmatmul.mubr.bf16.gmra.mxu0 %v6933
      %v7088 = vpop.f32.mrf.mxu0
      %v7089 = vadd.f32 0.0, %v7088
      %v7090 = vpop.f32.mrf.mxu0
      %v7091 = vpop.f32.mrf.mxu0
      %v7092 = vadd.f32 0.0, %v7091
      %v7093 = vpop.f32.mrf.mxu0
      %7094 = vmatprep.mubr.bf16.mxu0 0
      %7095 = vmatmul.mubr.bf16.gmra.mxu0 %v6936
      %v7096 = vpop.f32.mrf.mxu0
      %v7097 = vadd.f32 0.0, %v7096
      %v7098 = vpop.f32.mrf.mxu0
      %v7099 = vpop.f32.mrf.mxu0
      %v7100 = vadd.f32 0.0, %v7099
      %v7101 = vpop.f32.mrf.mxu0
      %7102 = vdwg.mxu0
      %v7135 = vunpack.c.l.b16 %v6406
      %v7136 = vunpack.c.l.b16 %v6407
      %v7137 = vunpack.c.l.b16 %v6408
      %v7138 = vunpack.c.l.b16 %v6409
      %v7139 = vunpack.c.l.b16 %v6410
      %v7140 = vunpack.c.l.b16 %v6411
      %v7141 = vunpack.c.l.b16 %v6412
      %v7142 = vunpack.c.l.b16 %v6413
      %v7143 = vunpack.c.l.b16 %v6414
      %v7144 = vunpack.c.l.b16 %v6415
      %v7145 = vunpack.c.l.b16 %v6416
      %v7146 = vunpack.c.l.b16 %v6417
      %v7147 = vunpack.c.l.b16 %v6418
      %v7148 = vunpack.c.l.b16 %v6419
      %v7149 = vunpack.c.l.b16 %v6420
      %v7150 = vunpack.c.l.b16 %v6421
      %v7151 = vunpack.c.l.b16 %v6422
      %v7152 = vunpack.c.l.b16 %v6423
      %v7153 = vunpack.c.l.b16 %v6424
      %v7154 = vunpack.c.l.b16 %v6425
      %v7155 = vunpack.c.l.b16 %v6426
      %v7156 = vunpack.c.l.b16 %v6427
      %v7157 = vunpack.c.l.b16 %v6428
      %v7158 = vunpack.c.l.b16 %v6429
      %v7159 = vunpack.c.l.b16 %v6430
      %v7160 = vunpack.c.l.b16 %v6431
      %v7161 = vunpack.c.l.b16 %v6432
      %v7162 = vunpack.c.l.b16 %v6433
      %v7163 = vunpack.c.l.b16 %v6434
      %v7164 = vunpack.c.l.b16 %v6435
      %v7165 = vunpack.c.l.b16 %v6436
      %v7166 = vunpack.c.l.b16 %v6437
      %v7167 = vpack.c.b16 %v7136, %v7135
      %v7168 = vpack.c.b16 %v7138, %v7137
      %v7169 = vpack.c.b16 %v7140, %v7139
      %v7170 = vpack.c.b16 %v7142, %v7141
      %v7171 = vpack.c.b16 %v7144, %v7143
      %v7172 = vpack.c.b16 %v7146, %v7145
      %v7173 = vpack.c.b16 %v7148, %v7147
      %v7174 = vpack.c.b16 %v7150, %v7149
      %v7175 = vpack.c.b16 %v7152, %v7151
      %v7176 = vpack.c.b16 %v7154, %v7153
      %v7177 = vpack.c.b16 %v7156, %v7155
      %v7178 = vpack.c.b16 %v7158, %v7157
      %v7179 = vpack.c.b16 %v7160, %v7159
      %v7180 = vpack.c.b16 %v7162, %v7161
      %v7181 = vpack.c.b16 %v7164, %v7163
      %v7182 = vpack.c.b16 %v7166, %v7165
      %v7184 = vsel %vm6889, %v7167, 0
      %v7187 = vsel %vm6889, %v7168, 0
      %v7190 = vsel %vm6889, %v7169, 0
      %v7193 = vsel %vm6889, %v7170, 0
      %v7196 = vsel %vm6889, %v7171, 0
      %v7199 = vsel %vm6889, %v7172, 0
      %v7202 = vsel %vm6889, %v7173, 0
      %v7205 = vsel %vm6889, %v7174, 0
      %v7208 = vsel %vm6889, %v7175, 0
      %v7211 = vsel %vm6889, %v7176, 0
      %v7214 = vsel %vm6889, %v7177, 0
      %v7217 = vsel %vm6889, %v7178, 0
      %v7220 = vsel %vm6889, %v7179, 0
      %v7223 = vsel %vm6889, %v7180, 0
      %v7226 = vsel %vm6889, %v7181, 0
      %v7229 = vsel %vm6889, %v7182, 0
      %v7232 = vsel %vm6938, %v6438, 0
      %7234 = vmatprep.subr.bf16.mxu0 0
      %7235 = vmatpush1.bf16.msra.mxu0 0
      %7236 = vmatprep.subr.bf16.mxu0 0
      %7237 = vmatpush1.bf16.msra.mxu0 0
      %7238 = vmatprep.subr.bf16.mxu0 0
      %7239 = vmatpush1.bf16.msra.mxu0 0
      %7240 = vmatprep.subr.bf16.mxu0 0
      %7241 = vmatpush1.bf16.msra.mxu0 0
      %7242 = vmatprep.subr.bf16.mxu0 0
      %7243 = vmatpush1.bf16.msra.mxu0 0
      %7244 = vmatprep.subr.bf16.mxu0 0
      %7245 = vmatpush1.bf16.msra.mxu0 0
      %7246 = vmatprep.subr.bf16.mxu0 0
      %7247 = vmatpush1.bf16.msra.mxu0 0
      %7248 = vmatprep.subr.bf16.mxu0 0
      %7249 = vmatpush1.bf16.msra.mxu0 %v7232
      %7250 = vmatprep.subr.bf16.mxu0 0
      %7251 = vmatpush2.bf16.msra.mxu0 0
      %7252 = vmatprep.subr.bf16.mxu0 0
      %7253 = vmatpush2.bf16.msra.mxu0 0
      %7254 = vmatprep.subr.bf16.mxu0 0
      %7255 = vmatpush2.bf16.msra.mxu0 0
      %7256 = vmatprep.subr.bf16.mxu0 0
      %7257 = vmatpush2.bf16.msra.mxu0 0
      %7258 = vmatprep.subr.bf16.mxu0 0
      %7259 = vmatpush2.bf16.msra.mxu0 0
      %7260 = vmatprep.subr.bf16.mxu0 0
      %7261 = vmatpush2.bf16.msra.mxu0 0
      %7262 = vmatprep.subr.bf16.mxu0 0
      %7263 = vmatpush2.bf16.msra.mxu0 0
      %7264 = vmatprep.subr.bf16.mxu0 0
      %7265 = vmatpush2.bf16.msra.mxu0 0
      %7266 = vmatprep.mubr.bf16.mxu0 0
      %7267 = vmatmul.mubr.bf16.gmra.mxu0 %v7184
      %v7268 = vpop.f32.mrf.mxu0
      %v7269 = vadd.f32 %v6977, %v7268
      %v7270 = vpop.f32.mrf.mxu0
      %v7271 = vpop.f32.mrf.mxu0
      %v7272 = vadd.f32 %v6980, %v7271
      %v7273 = vpop.f32.mrf.mxu0
      %7274 = vmatprep.mubr.bf16.mxu0 0
      %7275 = vmatmul.mubr.bf16.gmra.mxu0 %v7187
      %v7276 = vpop.f32.mrf.mxu0
      %v7277 = vadd.f32 %v6985, %v7276
      %v7278 = vpop.f32.mrf.mxu0
      %v7279 = vpop.f32.mrf.mxu0
      %v7280 = vadd.f32 %v6988, %v7279
      %v7281 = vpop.f32.mrf.mxu0
      %7282 = vmatprep.mubr.bf16.mxu0 0
      %7283 = vmatmul.mubr.bf16.gmra.mxu0 %v7190
      %v7284 = vpop.f32.mrf.mxu0
      %v7285 = vadd.f32 %v6993, %v7284
      %v7286 = vpop.f32.mrf.mxu0
      %v7287 = vpop.f32.mrf.mxu0
      %v7288 = vadd.f32 %v6996, %v7287
      %v7289 = vpop.f32.mrf.mxu0
      %7290 = vmatprep.mubr.bf16.mxu0 0
      %7291 = vmatmul.mubr.bf16.gmra.mxu0 %v7193
      %v7292 = vpop.f32.mrf.mxu0
      %v7293 = vadd.f32 %v7001, %v7292
      %v7294 = vpop.f32.mrf.mxu0
      %v7295 = vpop.f32.mrf.mxu0
      %v7296 = vadd.f32 %v7004, %v7295
      %v7297 = vpop.f32.mrf.mxu0
      %7298 = vmatprep.mubr.bf16.mxu0 0
      %7299 = vmatmul.mubr.bf16.gmra.mxu0 %v7196
      %v7300 = vpop.f32.mrf.mxu0
      %v7301 = vadd.f32 %v7009, %v7300
      %v7302 = vpop.f32.mrf.mxu0
      %v7303 = vpop.f32.mrf.mxu0
      %v7304 = vadd.f32 %v7012, %v7303
      %v7305 = vpop.f32.mrf.mxu0
      %7306 = vmatprep.mubr.bf16.mxu0 0
      %7307 = vmatmul.mubr.bf16.gmra.mxu0 %v7199
      %v7308 = vpop.f32.mrf.mxu0
      %v7309 = vadd.f32 %v7017, %v7308
      %v7310 = vpop.f32.mrf.mxu0
      %v7311 = vpop.f32.mrf.mxu0
      %v7312 = vadd.f32 %v7020, %v7311
      %v7313 = vpop.f32.mrf.mxu0
      %7314 = vmatprep.mubr.bf16.mxu0 0
      %7315 = vmatmul.mubr.bf16.gmra.mxu0 %v7202
      %v7316 = vpop.f32.mrf.mxu0
      %v7317 = vadd.f32 %v7025, %v7316
      %v7318 = vpop.f32.mrf.mxu0
      %v7319 = vpop.f32.mrf.mxu0
      %v7320 = vadd.f32 %v7028, %v7319
      %v7321 = vpop.f32.mrf.mxu0
      %7322 = vmatprep.mubr.bf16.mxu0 0
      %7323 = vmatmul.mubr.bf16.gmra.mxu0 %v7205
      %v7324 = vpop.f32.mrf.mxu0
      %v7325 = vadd.f32 %v7033, %v7324
      %v7326 = vpop.f32.mrf.mxu0
      %v7327 = vpop.f32.mrf.mxu0
      %v7328 = vadd.f32 %v7036, %v7327
      %v7329 = vpop.f32.mrf.mxu0
      %7330 = vmatprep.mubr.bf16.mxu0 0
      %7331 = vmatmul.mubr.bf16.gmra.mxu0 %v7208
      %v7332 = vpop.f32.mrf.mxu0
      %v7333 = vadd.f32 %v7041, %v7332
      %v7334 = vpop.f32.mrf.mxu0
      %v7335 = vpop.f32.mrf.mxu0
      %v7336 = vadd.f32 %v7044, %v7335
      %v7337 = vpop.f32.mrf.mxu0
      %7338 = vmatprep.mubr.bf16.mxu0 0
      %7339 = vmatmul.mubr.bf16.gmra.mxu0 %v7211
      %v7340 = vpop.f32.mrf.mxu0
      %v7341 = vadd.f32 %v7049, %v7340
      %v7342 = vpop.f32.mrf.mxu0
      %v7343 = vpop.f32.mrf.mxu0
      %v7344 = vadd.f32 %v7052, %v7343
      %v7345 = vpop.f32.mrf.mxu0
      %7346 = vmatprep.mubr.bf16.mxu0 0
      %7347 = vmatmul.mubr.bf16.gmra.mxu0 %v7214
      %v7348 = vpop.f32.mrf.mxu0
      %v7349 = vadd.f32 %v7057, %v7348
      %v7350 = vpop.f32.mrf.mxu0
      %v7351 = vpop.f32.mrf.mxu0
      %v7352 = vadd.f32 %v7060, %v7351
      %v7353 = vpop.f32.mrf.mxu0
      %7354 = vmatprep.mubr.bf16.mxu0 0
      %7355 = vmatmul.mubr.bf16.gmra.mxu0 %v7217
      %v7356 = vpop.f32.mrf.mxu0
      %v7357 = vadd.f32 %v7065, %v7356
      %v7358 = vpop.f32.mrf.mxu0
      %v7359 = vpop.f32.mrf.mxu0
      %v7360 = vadd.f32 %v7068, %v7359
      %v7361 = vpop.f32.mrf.mxu0
      %7362 = vmatprep.mubr.bf16.mxu0 0
      %7363 = vmatmul.mubr.bf16.gmra.mxu0 %v7220
      %v7364 = vpop.f32.mrf.mxu0
      %v7365 = vadd.f32 %v7073, %v7364
      %v7366 = vpop.f32.mrf.mxu0
      %v7367 = vpop.f32.mrf.mxu0
      %v7368 = vadd.f32 %v7076, %v7367
      %v7369 = vpop.f32.mrf.mxu0
      %7370 = vmatprep.mubr.bf16.mxu0 0
      %7371 = vmatmul.mubr.bf16.gmra.mxu0 %v7223
      %v7372 = vpop.f32.mrf.mxu0
      %v7373 = vadd.f32 %v7081, %v7372
      %v7374 = vpop.f32.mrf.mxu0
      %v7375 = vpop.f32.mrf.mxu0
      %v7376 = vadd.f32 %v7084, %v7375
      %v7377 = vpop.f32.mrf.mxu0
      %7378 = vmatprep.mubr.bf16.mxu0 0
      %7379 = vmatmul.mubr.bf16.gmra.mxu0 %v7226
      %v7380 = vpop.f32.mrf.mxu0
      %v7381 = vadd.f32 %v7089, %v7380
      %v7382 = vpop.f32.mrf.mxu0
      %v7383 = vpop.f32.mrf.mxu0
      %v7384 = vadd.f32 %v7092, %v7383
      %v7385 = vpop.f32.mrf.mxu0
      %7386 = vmatprep.mubr.bf16.mxu0 0
      %7387 = vmatmul.mubr.bf16.gmra.mxu0 %v7229
      %v7388 = vpop.f32.mrf.mxu0
      %v7389 = vadd.f32 %v7097, %v7388
      %v7390 = vpop.f32.mrf.mxu0
      %v7391 = vpop.f32.mrf.mxu0
      %v7392 = vadd.f32 %v7100, %v7391
      %v7393 = vpop.f32.mrf.mxu0
      %7394 = vdwg.mxu0
      %v7395 = vld [vmem:[#allocation3] sm:$0xe]
      %v7396 = vld [vmem:[#allocation3 + $0xc] sm:$0xe]
      %v7397 = vld [vmem:[#allocation3 + $0x18] sm:$0xe]
      %v7398 = vld [vmem:[#allocation3 + $0x24] sm:$0xe]
      %v7399 = vld [vmem:[#allocation3 + $0x30] sm:$0xe]
      %v7400 = vld [vmem:[#allocation3 + $0x3c] sm:$0xe]
      %v7401 = vld [vmem:[#allocation3 + $0x48] sm:$0xe]
      %v7402 = vld [vmem:[#allocation3 + $0x54] sm:$0xe]
      %v7403 = vld [vmem:[#allocation3 + $0x60] sm:$0xe]
      %v7404 = vld [vmem:[#allocation3 + $0x6c] sm:$0xe]
      %v7405 = vld [vmem:[#allocation3 + $0x78] sm:$0xe]
      %v7406 = vld [vmem:[#allocation3 + $0x84] sm:$0xe]
      %v7407 = vld [vmem:[#allocation3 + $0x90] sm:$0xe]
      %v7408 = vld [vmem:[#allocation3 + $0x9c] sm:$0xe]
      %v7409 = vld [vmem:[#allocation3 + $0xa8] sm:$0xe]
      %v7410 = vld [vmem:[#allocation3 + $0xb4] sm:$0xe]
      %v7443 = vrot.slane %v7395, 5
      %v7444 = vrot.slane %v7443, 4
      %v7445 = vrot.slane %v6407, 5
      %v7446 = vsel %vm2180, %v7444, %v7445
      %v7447 = vrot.slane %v7445, 4
      %v7448 = vrot.slane %v6439, 5
      %v7449 = vsel %vm2180, %v7447, %v7448
      %v7450 = vrot.slane %v7396, 5
      %v7451 = vrot.slane %v7450, 4
      %v7452 = vrot.slane %v6409, 5
      %v7453 = vsel %vm2180, %v7451, %v7452
      %v7454 = vrot.slane %v7452, 4
      %v7455 = vrot.slane %v6440, 5
      %v7456 = vsel %vm2180, %v7454, %v7455
      %v7457 = vrot.slane %v7397, 5
      %v7458 = vrot.slane %v7457, 4
      %v7459 = vrot.slane %v6411, 5
      %v7460 = vsel %vm2180, %v7458, %v7459
      %v7461 = vrot.slane %v7459, 4
      %v7462 = vrot.slane %v6441, 5
      %v7463 = vsel %vm2180, %v7461, %v7462
      %v7464 = vrot.slane %v7398, 5
      %v7465 = vrot.slane %v7464, 4
      %v7466 = vrot.slane %v6413, 5
      %v7467 = vsel %vm2180, %v7465, %v7466
      %v7468 = vrot.slane %v7466, 4
      %v7469 = vrot.slane %v6442, 5
      %v7470 = vsel %vm2180, %v7468, %v7469
      %v7471 = vrot.slane %v7399, 5
      %v7472 = vrot.slane %v7471, 4
      %v7473 = vrot.slane %v6415, 5
      %v7474 = vsel %vm2180, %v7472, %v7473
      %v7475 = vrot.slane %v7473, 4
      %v7476 = vrot.slane %v6443, 5
      %v7477 = vsel %vm2180, %v7475, %v7476
      %v7478 = vrot.slane %v7400, 5
      %v7479 = vrot.slane %v7478, 4
      %v7480 = vrot.slane %v6417, 5
      %v7481 = vsel %vm2180, %v7479, %v7480
      %v7482 = vrot.slane %v7480, 4
      %v7483 = vrot.slane %v6444, 5
      %v7484 = vsel %vm2180, %v7482, %v7483
      %v7485 = vrot.slane %v7401, 5
      %v7486 = vrot.slane %v7485, 4
      %v7487 = vrot.slane %v6419, 5
      %v7488 = vsel %vm2180, %v7486, %v7487
      %v7489 = vrot.slane %v7487, 4
      %v7490 = vrot.slane %v6445, 5
      %v7491 = vsel %vm2180, %v7489, %v7490
      %v7492 = vrot.slane %v7402, 5
      %v7493 = vrot.slane %v7492, 4
      %v7494 = vrot.slane %v6421, 5
      %v7495 = vsel %vm2180, %v7493, %v7494
      %v7496 = vrot.slane %v7494, 4
      %v7497 = vrot.slane %v6446, 5
      %v7498 = vsel %vm2180, %v7496, %v7497
      %v7499 = vrot.slane %v7403, 5
      %v7500 = vrot.slane %v7499, 4
      %v7501 = vrot.slane %v6423, 5
      %v7502 = vsel %vm2180, %v7500, %v7501
      %v7503 = vrot.slane %v7501, 4
      %v7504 = vrot.slane %v6447, 5
      %v7505 = vsel %vm2180, %v7503, %v7504
      %v7506 = vrot.slane %v7404, 5
      %v7507 = vrot.slane %v7506, 4
      %v7508 = vrot.slane %v6425, 5
      %v7509 = vsel %vm2180, %v7507, %v7508
      %v7510 = vrot.slane %v7508, 4
      %v7511 = vrot.slane %v6448, 5
      %v7512 = vsel %vm2180, %v7510, %v7511
      %v7513 = vrot.slane %v7405, 5
      %v7514 = vrot.slane %v7513, 4
      %v7515 = vrot.slane %v6427, 5
      %v7516 = vsel %vm2180, %v7514, %v7515
      %v7517 = vrot.slane %v7515, 4
      %v7518 = vrot.slane %v6449, 5
      %v7519 = vsel %vm2180, %v7517, %v7518
      %v7520 = vrot.slane %v7406, 5
      %v7521 = vrot.slane %v7520, 4
      %v7522 = vrot.slane %v6429, 5
      %v7523 = vsel %vm2180, %v7521, %v7522
      %v7524 = vrot.slane %v7522, 4
      %v7525 = vrot.slane %v6450, 5
      %v7526 = vsel %vm2180, %v7524, %v7525
      %v7527 = vrot.slane %v7407, 5
      %v7528 = vrot.slane %v7527, 4
      %v7529 = vrot.slane %v6431, 5
      %v7530 = vsel %vm2180, %v7528, %v7529
      %v7531 = vrot.slane %v7529, 4
      %v7532 = vrot.slane %v6451, 5
      %v7533 = vsel %vm2180, %v7531, %v7532
      %v7534 = vrot.slane %v7408, 5
      %v7535 = vrot.slane %v7534, 4
      %v7536 = vrot.slane %v6433, 5
      %v7537 = vsel %vm2180, %v7535, %v7536
      %v7538 = vrot.slane %v7536, 4
      %v7539 = vrot.slane %v6452, 5
      %v7540 = vsel %vm2180, %v7538, %v7539
      %v7541 = vrot.slane %v7409, 5
      %v7542 = vrot.slane %v7541, 4
      %v7543 = vrot.slane %v6435, 5
      %v7544 = vsel %vm2180, %v7542, %v7543
      %v7545 = vrot.slane %v7543, 4
      %v7546 = vrot.slane %v6453, 5
      %v7547 = vsel %vm2180, %v7545, %v7546
      %v7548 = vrot.slane %v7410, 5
      %v7549 = vrot.slane %v7548, 4
      %v7550 = vrot.slane %v6437, 5
      %v7551 = vsel %vm2180, %v7549, %v7550
      %v7552 = vrot.slane %v7550, 4
      %v7553 = vrot.slane %v6454, 5
      %v7554 = vsel %vm2180, %v7552, %v7553
      %s7555 = scalar_lea.vmem %s5, 8
      %v7556 = vld [vmem:[%s7555] sm:$0xf]
      %v7557 = vunpack.c.l.b16 %v7446
      %v7558 = vunpack.c.l.b16 %v7449
      %v7559 = vunpack.c.l.b16 %v7453
      %v7560 = vunpack.c.l.b16 %v7456
      %v7561 = vunpack.c.l.b16 %v7460
      %v7562 = vunpack.c.l.b16 %v7463
      %v7563 = vunpack.c.l.b16 %v7467
      %v7564 = vunpack.c.l.b16 %v7470
      %v7565 = vunpack.c.l.b16 %v7474
      %v7566 = vunpack.c.l.b16 %v7477
      %v7567 = vunpack.c.l.b16 %v7481
      %v7568 = vunpack.c.l.b16 %v7484
      %v7569 = vunpack.c.l.b16 %v7488
      %v7570 = vunpack.c.l.b16 %v7491
      %v7571 = vunpack.c.l.b16 %v7495
      %v7572 = vunpack.c.l.b16 %v7498
      %v7573 = vunpack.c.l.b16 %v7502
      %v7574 = vunpack.c.l.b16 %v7505
      %v7575 = vunpack.c.l.b16 %v7509
      %v7576 = vunpack.c.l.b16 %v7512
      %v7577 = vunpack.c.l.b16 %v7516
      %v7578 = vunpack.c.l.b16 %v7519
      %v7579 = vunpack.c.l.b16 %v7523
      %v7580 = vunpack.c.l.b16 %v7526
      %v7581 = vunpack.c.l.b16 %v7530
      %v7582 = vunpack.c.l.b16 %v7533
      %v7583 = vunpack.c.l.b16 %v7537
      %v7584 = vunpack.c.l.b16 %v7540
      %v7585 = vunpack.c.l.b16 %v7544
      %v7586 = vunpack.c.l.b16 %v7547
      %v7587 = vunpack.c.l.b16 %v7551
      %v7588 = vunpack.c.l.b16 %v7554
      %v7589 = vpack.c.b16 %v7558, %v7557
      %v7590 = vpack.c.b16 %v7560, %v7559
      %v7591 = vpack.c.b16 %v7562, %v7561
      %v7592 = vpack.c.b16 %v7564, %v7563
      %v7593 = vpack.c.b16 %v7566, %v7565
      %v7594 = vpack.c.b16 %v7568, %v7567
      %v7595 = vpack.c.b16 %v7570, %v7569
      %v7596 = vpack.c.b16 %v7572, %v7571
      %v7597 = vpack.c.b16 %v7574, %v7573
      %v7598 = vpack.c.b16 %v7576, %v7575
      %v7599 = vpack.c.b16 %v7578, %v7577
      %v7600 = vpack.c.b16 %v7580, %v7579
      %v7601 = vpack.c.b16 %v7582, %v7581
      %v7602 = vpack.c.b16 %v7584, %v7583
      %v7603 = vpack.c.b16 %v7586, %v7585
      %v7604 = vpack.c.b16 %v7588, %v7587
      %v7606 = vsel %vm6889, %v7589, 0
      %v7609 = vsel %vm6889, %v7590, 0
      %v7612 = vsel %vm6889, %v7591, 0
      %v7615 = vsel %vm6889, %v7592, 0
      %v7618 = vsel %vm6889, %v7593, 0
      %v7621 = vsel %vm6889, %v7594, 0
      %v7624 = vsel %vm6889, %v7595, 0
      %v7627 = vsel %vm6889, %v7596, 0
      %v7630 = vsel %vm6889, %v7597, 0
      %v7633 = vsel %vm6889, %v7598, 0
      %v7636 = vsel %vm6889, %v7599, 0
      %v7639 = vsel %vm6889, %v7600, 0
      %v7642 = vsel %vm6889, %v7601, 0
      %v7645 = vsel %vm6889, %v7602, 0
      %v7648 = vsel %vm6889, %v7603, 0
      %v7651 = vsel %vm6889, %v7604, 0
      %v7654 = vsel %vm6938, %v7556, 0
      %7656 = vmatprep.subr.bf16.mxu0 0
      %7657 = vmatpush1.bf16.msra.mxu0 0
      %7658 = vmatprep.subr.bf16.mxu0 0
      %7659 = vmatpush1.bf16.msra.mxu0 0
      %7660 = vmatprep.subr.bf16.mxu0 0
      %7661 = vmatpush1.bf16.msra.mxu0 0
      %7662 = vmatprep.subr.bf16.mxu0 0
      %7663 = vmatpush1.bf16.msra.mxu0 0
      %7664 = vmatprep.subr.bf16.mxu0 0
      %7665 = vmatpush1.bf16.msra.mxu0 0
      %7666 = vmatprep.subr.bf16.mxu0 0
      %7667 = vmatpush1.bf16.msra.mxu0 0
      %7668 = vmatprep.subr.bf16.mxu0 0
      %7669 = vmatpush1.bf16.msra.mxu0 0
      %7670 = vmatprep.subr.bf16.mxu0 0
      %7671 = vmatpush1.bf16.msra.mxu0 %v7654
      %7672 = vmatprep.subr.bf16.mxu0 0
      %7673 = vmatpush2.bf16.msra.mxu0 0
      %7674 = vmatprep.subr.bf16.mxu0 0
      %7675 = vmatpush2.bf16.msra.mxu0 0
      %7676 = vmatprep.subr.bf16.mxu0 0
      %7677 = vmatpush2.bf16.msra.mxu0 0
      %7678 = vmatprep.subr.bf16.mxu0 0
      %7679 = vmatpush2.bf16.msra.mxu0 0
      %7680 = vmatprep.subr.bf16.mxu0 0
      %7681 = vmatpush2.bf16.msra.mxu0 0
      %7682 = vmatprep.subr.bf16.mxu0 0
      %7683 = vmatpush2.bf16.msra.mxu0 0
      %7684 = vmatprep.subr.bf16.mxu0 0
      %7685 = vmatpush2.bf16.msra.mxu0 0
      %7686 = vmatprep.subr.bf16.mxu0 0
      %7687 = vmatpush2.bf16.msra.mxu0 0
      %7688 = vmatprep.mubr.bf16.mxu0 0
      %7689 = vmatmul.mubr.bf16.gmra.mxu0 %v7606
      %v7690 = vpop.f32.mrf.mxu0
      %v7691 = vadd.f32 0.0, %v7690
      %v7692 = vpop.f32.mrf.mxu0
      %v7693 = vpop.f32.mrf.mxu0
      %v7694 = vadd.f32 0.0, %v7693
      %v7695 = vpop.f32.mrf.mxu0
      %7696 = vmatprep.mubr.bf16.mxu0 0
      %7697 = vmatmul.mubr.bf16.gmra.mxu0 %v7609
      %v7698 = vpop.f32.mrf.mxu0
      %v7699 = vadd.f32 0.0, %v7698
      %v7700 = vpop.f32.mrf.mxu0
      %v7701 = vpop.f32.mrf.mxu0
      %v7702 = vadd.f32 0.0, %v7701
      %v7703 = vpop.f32.mrf.mxu0
      %7704 = vmatprep.mubr.bf16.mxu0 0
      %7705 = vmatmul.mubr.bf16.gmra.mxu0 %v7612
      %v7706 = vpop.f32.mrf.mxu0
      %v7707 = vadd.f32 0.0, %v7706
      %v7708 = vpop.f32.mrf.mxu0
      %v7709 = vpop.f32.mrf.mxu0
      %v7710 = vadd.f32 0.0, %v7709
      %v7711 = vpop.f32.mrf.mxu0
      %7712 = vmatprep.mubr.bf16.mxu0 0
      %7713 = vmatmul.mubr.bf16.gmra.mxu0 %v7615
      %v7714 = vpop.f32.mrf.mxu0
      %v7715 = vadd.f32 0.0, %v7714
      %v7716 = vpop.f32.mrf.mxu0
      %v7717 = vpop.f32.mrf.mxu0
      %v7718 = vadd.f32 0.0, %v7717
      %v7719 = vpop.f32.mrf.mxu0
      %7720 = vmatprep.mubr.bf16.mxu0 0
      %7721 = vmatmul.mubr.bf16.gmra.mxu0 %v7618
      %v7722 = vpop.f32.mrf.mxu0
      %v7723 = vadd.f32 0.0, %v7722
      %v7724 = vpop.f32.mrf.mxu0
      %v7725 = vpop.f32.mrf.mxu0
      %v7726 = vadd.f32 0.0, %v7725
      %v7727 = vpop.f32.mrf.mxu0
      %7728 = vmatprep.mubr.bf16.mxu0 0
      %7729 = vmatmul.mubr.bf16.gmra.mxu0 %v7621
      %v7730 = vpop.f32.mrf.mxu0
      %v7731 = vadd.f32 0.0, %v7730
      %v7732 = vpop.f32.mrf.mxu0
      %v7733 = vpop.f32.mrf.mxu0
      %v7734 = vadd.f32 0.0, %v7733
      %v7735 = vpop.f32.mrf.mxu0
      %7736 = vmatprep.mubr.bf16.mxu0 0
      %7737 = vmatmul.mubr.bf16.gmra.mxu0 %v7624
      %v7738 = vpop.f32.mrf.mxu0
      %v7739 = vadd.f32 0.0, %v7738
      %v7740 = vpop.f32.mrf.mxu0
      %v7741 = vpop.f32.mrf.mxu0
      %v7742 = vadd.f32 0.0, %v7741
      %v7743 = vpop.f32.mrf.mxu0
      %7744 = vmatprep.mubr.bf16.mxu0 0
      %7745 = vmatmul.mubr.bf16.gmra.mxu0 %v7627
      %v7746 = vpop.f32.mrf.mxu0
      %v7747 = vadd.f32 0.0, %v7746
      %v7748 = vpop.f32.mrf.mxu0
      %v7749 = vpop.f32.mrf.mxu0
      %v7750 = vadd.f32 0.0, %v7749
      %v7751 = vpop.f32.mrf.mxu0
      %7752 = vmatprep.mubr.bf16.mxu0 0
      %7753 = vmatmul.mubr.bf16.gmra.mxu0 %v7630
      %v7754 = vpop.f32.mrf.mxu0
      %v7755 = vadd.f32 0.0, %v7754
      %v7756 = vpop.f32.mrf.mxu0
      %v7757 = vpop.f32.mrf.mxu0
      %v7758 = vadd.f32 0.0, %v7757
      %v7759 = vpop.f32.mrf.mxu0
      %7760 = vmatprep.mubr.bf16.mxu0 0
      %7761 = vmatmul.mubr.bf16.gmra.mxu0 %v7633
      %v7762 = vpop.f32.mrf.mxu0
      %v7763 = vadd.f32 0.0, %v7762
      %v7764 = vpop.f32.mrf.mxu0
      %v7765 = vpop.f32.mrf.mxu0
      %v7766 = vadd.f32 0.0, %v7765
      %v7767 = vpop.f32.mrf.mxu0
      %7768 = vmatprep.mubr.bf16.mxu0 0
      %7769 = vmatmul.mubr.bf16.gmra.mxu0 %v7636
      %v7770 = vpop.f32.mrf.mxu0
      %v7771 = vadd.f32 0.0, %v7770
      %v7772 = vpop.f32.mrf.mxu0
      %v7773 = vpop.f32.mrf.mxu0
      %v7774 = vadd.f32 0.0, %v7773
      %v7775 = vpop.f32.mrf.mxu0
      %7776 = vmatprep.mubr.bf16.mxu0 0
      %7777 = vmatmul.mubr.bf16.gmra.mxu0 %v7639
      %v7778 = vpop.f32.mrf.mxu0
      %v7779 = vadd.f32 0.0, %v7778
      %v7780 = vpop.f32.mrf.mxu0
      %v7781 = vpop.f32.mrf.mxu0
      %v7782 = vadd.f32 0.0, %v7781
      %v7783 = vpop.f32.mrf.mxu0
      %7784 = vmatprep.mubr.bf16.mxu0 0
      %7785 = vmatmul.mubr.bf16.gmra.mxu0 %v7642
      %v7786 = vpop.f32.mrf.mxu0
      %v7787 = vadd.f32 0.0, %v7786
      %v7788 = vpop.f32.mrf.mxu0
      %v7789 = vpop.f32.mrf.mxu0
      %v7790 = vadd.f32 0.0, %v7789
      %v7791 = vpop.f32.mrf.mxu0
      %7792 = vmatprep.mubr.bf16.mxu0 0
      %7793 = vmatmul.mubr.bf16.gmra.mxu0 %v7645
      %v7794 = vpop.f32.mrf.mxu0
      %v7795 = vadd.f32 0.0, %v7794
      %v7796 = vpop.f32.mrf.mxu0
      %v7797 = vpop.f32.mrf.mxu0
      %v7798 = vadd.f32 0.0, %v7797
      %v7799 = vpop.f32.mrf.mxu0
      %7800 = vmatprep.mubr.bf16.mxu0 0
      %7801 = vmatmul.mubr.bf16.gmra.mxu0 %v7648
      %v7802 = vpop.f32.mrf.mxu0
      %v7803 = vadd.f32 0.0, %v7802
      %v7804 = vpop.f32.mrf.mxu0
      %v7805 = vpop.f32.mrf.mxu0
      %v7806 = vadd.f32 0.0, %v7805
      %v7807 = vpop.f32.mrf.mxu0
      %7808 = vmatprep.mubr.bf16.mxu0 0
      %7809 = vmatmul.mubr.bf16.gmra.mxu0 %v7651
      %v7810 = vpop.f32.mrf.mxu0
      %v7811 = vadd.f32 0.0, %v7810
      %v7812 = vpop.f32.mrf.mxu0
      %v7813 = vpop.f32.mrf.mxu0
      %v7814 = vadd.f32 0.0, %v7813
      %v7815 = vpop.f32.mrf.mxu0
      %7816 = vdwg.mxu0
      %v7817 = vadd.f32 %v7269, %v7691
      %v7818 = vadd.f32 %v7272, %v7694
      %v7819 = vadd.f32 %v7277, %v7699
      %v7820 = vadd.f32 %v7280, %v7702
      %v7821 = vadd.f32 %v7285, %v7707
      %v7822 = vadd.f32 %v7288, %v7710
      %v7823 = vadd.f32 %v7293, %v7715
      %v7824 = vadd.f32 %v7296, %v7718
      %v7825 = vadd.f32 %v7301, %v7723
      %v7826 = vadd.f32 %v7304, %v7726
      %v7827 = vadd.f32 %v7309, %v7731
      %v7828 = vadd.f32 %v7312, %v7734
      %v7829 = vadd.f32 %v7317, %v7739
      %v7830 = vadd.f32 %v7320, %v7742
      %v7831 = vadd.f32 %v7325, %v7747
      %v7832 = vadd.f32 %v7328, %v7750
      %v7833 = vadd.f32 %v7333, %v7755
      %v7834 = vadd.f32 %v7336, %v7758
      %v7835 = vadd.f32 %v7341, %v7763
      %v7836 = vadd.f32 %v7344, %v7766
      %v7837 = vadd.f32 %v7349, %v7771
      %v7838 = vadd.f32 %v7352, %v7774
      %v7839 = vadd.f32 %v7357, %v7779
      %v7840 = vadd.f32 %v7360, %v7782
      %v7841 = vadd.f32 %v7365, %v7787
      %v7842 = vadd.f32 %v7368, %v7790
      %v7843 = vadd.f32 %v7373, %v7795
      %v7844 = vadd.f32 %v7376, %v7798
      %v7845 = vadd.f32 %v7381, %v7803
      %v7846 = vadd.f32 %v7384, %v7806
      %v7847 = vadd.f32 %v7389, %v7811
      %v7848 = vadd.f32 %v7392, %v7814
      %v7849 = vld [vmem:[%s5792] sm:$0xf]
      %v7850 = vld [vmem:[%s5792 + $0x4] sm:$0xf]
      %v7851 = vld [vmem:[%s5792 + $0xc] sm:$0xf]
      %v7852 = vld [vmem:[%s5792 + $0x10] sm:$0xf]
      %v7853 = vld [vmem:[%s5792 + $0x18] sm:$0xf]
      %v7854 = vld [vmem:[%s5792 + $0x1c] sm:$0xf]
      %v7855 = vld [vmem:[%s5792 + $0x24] sm:$0xf]
      %v7856 = vld [vmem:[%s5792 + $0x28] sm:$0xf]
      %v7857 = vld [vmem:[%s5792 + $0x30] sm:$0xf]
      %v7858 = vld [vmem:[%s5792 + $0x34] sm:$0xf]
      %v7859 = vld [vmem:[%s5792 + $0x3c] sm:$0xf]
      %v7860 = vld [vmem:[%s5792 + $0x40] sm:$0xf]
      %v7861 = vld [vmem:[%s5792 + $0x48] sm:$0xf]
      %v7862 = vld [vmem:[%s5792 + $0x4c] sm:$0xf]
      %v7863 = vld [vmem:[%s5792 + $0x54] sm:$0xf]
      %v7864 = vld [vmem:[%s5792 + $0x58] sm:$0xf]
      %v7865 = vld [vmem:[%s5792 + $0x60] sm:$0xf]
      %v7866 = vld [vmem:[%s5792 + $0x64] sm:$0xf]
      %v7867 = vld [vmem:[%s5792 + $0x6c] sm:$0xf]
      %v7868 = vld [vmem:[%s5792 + $0x70] sm:$0xf]
      %v7869 = vld [vmem:[%s5792 + $0x78] sm:$0xf]
      %v7870 = vld [vmem:[%s5792 + $0x7c] sm:$0xf]
      %v7871 = vld [vmem:[%s5792 + $0x84] sm:$0xf]
      %v7872 = vld [vmem:[%s5792 + $0x88] sm:$0xf]
      %v7873 = vld [vmem:[%s5792 + $0x90] sm:$0xf]
      %v7874 = vld [vmem:[%s5792 + $0x94] sm:$0xf]
      %v7875 = vld [vmem:[%s5792 + $0x9c] sm:$0xf]
      %v7876 = vld [vmem:[%s5792 + $0xa0] sm:$0xf]
      %v7877 = vld [vmem:[%s5792 + $0xa8] sm:$0xf]
      %v7878 = vld [vmem:[%s5792 + $0xac] sm:$0xf]
      %v7879 = vld [vmem:[%s5792 + $0xb4] sm:$0xf]
      %v7880 = vld [vmem:[%s5792 + $0xb8] sm:$0xf]
      %s7881 = scalar_lea.vmem %s5, 12
      %v7882 = vld [vmem:[%s7881] sm:$0xf]
      %v7915 = vunpack.c.l.b16 %v7849
      %v7916 = vunpack.c.l.b16 %v7850
      %v7917 = vunpack.c.l.b16 %v7851
      %v7918 = vunpack.c.l.b16 %v7852
      %v7919 = vunpack.c.l.b16 %v7853
      %v7920 = vunpack.c.l.b16 %v7854
      %v7921 = vunpack.c.l.b16 %v7855
      %v7922 = vunpack.c.l.b16 %v7856
      %v7923 = vunpack.c.l.b16 %v7857
      %v7924 = vunpack.c.l.b16 %v7858
      %v7925 = vunpack.c.l.b16 %v7859
      %v7926 = vunpack.c.l.b16 %v7860
      %v7927 = vunpack.c.l.b16 %v7861
      %v7928 = vunpack.c.l.b16 %v7862
      %v7929 = vunpack.c.l.b16 %v7863
      %v7930 = vunpack.c.l.b16 %v7864
      %v7931 = vunpack.c.l.b16 %v7865
      %v7932 = vunpack.c.l.b16 %v7866
      %v7933 = vunpack.c.l.b16 %v7867
      %v7934 = vunpack.c.l.b16 %v7868
      %v7935 = vunpack.c.l.b16 %v7869
      %v7936 = vunpack.c.l.b16 %v7870
      %v7937 = vunpack.c.l.b16 %v7871
      %v7938 = vunpack.c.l.b16 %v7872
      %v7939 = vunpack.c.l.b16 %v7873
      %v7940 = vunpack.c.l.b16 %v7874
      %v7941 = vunpack.c.l.b16 %v7875
      %v7942 = vunpack.c.l.b16 %v7876
      %v7943 = vunpack.c.l.b16 %v7877
      %v7944 = vunpack.c.l.b16 %v7878
      %v7945 = vunpack.c.l.b16 %v7879
      %v7946 = vunpack.c.l.b16 %v7880
      %v7947 = vpack.c.b16 %v7916, %v7915
      %v7948 = vpack.c.b16 %v7918, %v7917
      %v7949 = vpack.c.b16 %v7920, %v7919
      %v7950 = vpack.c.b16 %v7922, %v7921
      %v7951 = vpack.c.b16 %v7924, %v7923
      %v7952 = vpack.c.b16 %v7926, %v7925
      %v7953 = vpack.c.b16 %v7928, %v7927
      %v7954 = vpack.c.b16 %v7930, %v7929
      %v7955 = vpack.c.b16 %v7932, %v7931
      %v7956 = vpack.c.b16 %v7934, %v7933
      %v7957 = vpack.c.b16 %v7936, %v7935
      %v7958 = vpack.c.b16 %v7938, %v7937
      %v7959 = vpack.c.b16 %v7940, %v7939
      %v7960 = vpack.c.b16 %v7942, %v7941
      %v7961 = vpack.c.b16 %v7944, %v7943
      %v7962 = vpack.c.b16 %v7946, %v7945
      %v7964 = vsel %vm6889, %v7947, 0
      %v7967 = vsel %vm6889, %v7948, 0
      %v7970 = vsel %vm6889, %v7949, 0
      %v7973 = vsel %vm6889, %v7950, 0
      %v7976 = vsel %vm6889, %v7951, 0
      %v7979 = vsel %vm6889, %v7952, 0
      %v7982 = vsel %vm6889, %v7953, 0
      %v7985 = vsel %vm6889, %v7954, 0
      %v7988 = vsel %vm6889, %v7955, 0
      %v7991 = vsel %vm6889, %v7956, 0
      %v7994 = vsel %vm6889, %v7957, 0
      %v7997 = vsel %vm6889, %v7958, 0
      %v8000 = vsel %vm6889, %v7959, 0
      %v8003 = vsel %vm6889, %v7960, 0
      %v8006 = vsel %vm6889, %v7961, 0
      %v8009 = vsel %vm6889, %v7962, 0
      %v8012 = vsel %vm6938, %v7882, 0
      %8014 = vmatprep.subr.bf16.mxu0 0
      %8015 = vmatpush1.bf16.msra.mxu0 0
      %8016 = vmatprep.subr.bf16.mxu0 0
      %8017 = vmatpush1.bf16.msra.mxu0 0
      %8018 = vmatprep.subr.bf16.mxu0 0
      %8019 = vmatpush1.bf16.msra.mxu0 0
      %8020 = vmatprep.subr.bf16.mxu0 0
      %8021 = vmatpush1.bf16.msra.mxu0 0
      %8022 = vmatprep.subr.bf16.mxu0 0
      %8023 = vmatpush1.bf16.msra.mxu0 0
      %8024 = vmatprep.subr.bf16.mxu0 0
      %8025 = vmatpush1.bf16.msra.mxu0 0
      %8026 = vmatprep.subr.bf16.mxu0 0
      %8027 = vmatpush1.bf16.msra.mxu0 0
      %8028 = vmatprep.subr.bf16.mxu0 0
      %8029 = vmatpush1.bf16.msra.mxu0 %v8012
      %8030 = vmatprep.subr.bf16.mxu0 0
      %8031 = vmatpush2.bf16.msra.mxu0 0
      %8032 = vmatprep.subr.bf16.mxu0 0
      %8033 = vmatpush2.bf16.msra.mxu0 0
      %8034 = vmatprep.subr.bf16.mxu0 0
      %8035 = vmatpush2.bf16.msra.mxu0 0
      %8036 = vmatprep.subr.bf16.mxu0 0
      %8037 = vmatpush2.bf16.msra.mxu0 0
      %8038 = vmatprep.subr.bf16.mxu0 0
      %8039 = vmatpush2.bf16.msra.mxu0 0
      %8040 = vmatprep.subr.bf16.mxu0 0
      %8041 = vmatpush2.bf16.msra.mxu0 0
      %8042 = vmatprep.subr.bf16.mxu0 0
      %8043 = vmatpush2.bf16.msra.mxu0 0
      %8044 = vmatprep.subr.bf16.mxu0 0
      %8045 = vmatpush2.bf16.msra.mxu0 0
      %8046 = vmatprep.mubr.bf16.mxu0 0
      %8047 = vmatmul.mubr.bf16.gmra.mxu0 %v7964
      %v8048 = vpop.f32.mrf.mxu0
      %v8049 = vadd.f32 0.0, %v8048
      %v8050 = vpop.f32.mrf.mxu0
      %v8051 = vpop.f32.mrf.mxu0
      %v8052 = vadd.f32 0.0, %v8051
      %v8053 = vpop.f32.mrf.mxu0
      %8054 = vmatprep.mubr.bf16.mxu0 0
      %8055 = vmatmul.mubr.bf16.gmra.mxu0 %v7967
      %v8056 = vpop.f32.mrf.mxu0
      %v8057 = vadd.f32 0.0, %v8056
      %v8058 = vpop.f32.mrf.mxu0
      %v8059 = vpop.f32.mrf.mxu0
      %v8060 = vadd.f32 0.0, %v8059
      %v8061 = vpop.f32.mrf.mxu0
      %8062 = vmatprep.mubr.bf16.mxu0 0
      %8063 = vmatmul.mubr.bf16.gmra.mxu0 %v7970
      %v8064 = vpop.f32.mrf.mxu0
      %v8065 = vadd.f32 0.0, %v8064
      %v8066 = vpop.f32.mrf.mxu0
      %v8067 = vpop.f32.mrf.mxu0
      %v8068 = vadd.f32 0.0, %v8067
      %v8069 = vpop.f32.mrf.mxu0
      %8070 = vmatprep.mubr.bf16.mxu0 0
      %8071 = vmatmul.mubr.bf16.gmra.mxu0 %v7973
      %v8072 = vpop.f32.mrf.mxu0
      %v8073 = vadd.f32 0.0, %v8072
      %v8074 = vpop.f32.mrf.mxu0
      %v8075 = vpop.f32.mrf.mxu0
      %v8076 = vadd.f32 0.0, %v8075
      %v8077 = vpop.f32.mrf.mxu0
      %8078 = vmatprep.mubr.bf16.mxu0 0
      %8079 = vmatmul.mubr.bf16.gmra.mxu0 %v7976
      %v8080 = vpop.f32.mrf.mxu0
      %v8081 = vadd.f32 0.0, %v8080
      %v8082 = vpop.f32.mrf.mxu0
      %v8083 = vpop.f32.mrf.mxu0
      %v8084 = vadd.f32 0.0, %v8083
      %v8085 = vpop.f32.mrf.mxu0
      %8086 = vmatprep.mubr.bf16.mxu0 0
      %8087 = vmatmul.mubr.bf16.gmra.mxu0 %v7979
      %v8088 = vpop.f32.mrf.mxu0
      %v8089 = vadd.f32 0.0, %v8088
      %v8090 = vpop.f32.mrf.mxu0
      %v8091 = vpop.f32.mrf.mxu0
      %v8092 = vadd.f32 0.0, %v8091
      %v8093 = vpop.f32.mrf.mxu0
      %8094 = vmatprep.mubr.bf16.mxu0 0
      %8095 = vmatmul.mubr.bf16.gmra.mxu0 %v7982
      %v8096 = vpop.f32.mrf.mxu0
      %v8097 = vadd.f32 0.0, %v8096
      %v8098 = vpop.f32.mrf.mxu0
      %v8099 = vpop.f32.mrf.mxu0
      %v8100 = vadd.f32 0.0, %v8099
      %v8101 = vpop.f32.mrf.mxu0
      %8102 = vmatprep.mubr.bf16.mxu0 0
      %8103 = vmatmul.mubr.bf16.gmra.mxu0 %v7985
      %v8104 = vpop.f32.mrf.mxu0
      %v8105 = vadd.f32 0.0, %v8104
      %v8106 = vpop.f32.mrf.mxu0
      %v8107 = vpop.f32.mrf.mxu0
      %v8108 = vadd.f32 0.0, %v8107
      %v8109 = vpop.f32.mrf.mxu0
      %8110 = vmatprep.mubr.bf16.mxu0 0
      %8111 = vmatmul.mubr.bf16.gmra.mxu0 %v7988
      %v8112 = vpop.f32.mrf.mxu0
      %v8113 = vadd.f32 0.0, %v8112
      %v8114 = vpop.f32.mrf.mxu0
      %v8115 = vpop.f32.mrf.mxu0
      %v8116 = vadd.f32 0.0, %v8115
      %v8117 = vpop.f32.mrf.mxu0
      %8118 = vmatprep.mubr.bf16.mxu0 0
      %8119 = vmatmul.mubr.bf16.gmra.mxu0 %v7991
      %v8120 = vpop.f32.mrf.mxu0
      %v8121 = vadd.f32 0.0, %v8120
      %v8122 = vpop.f32.mrf.mxu0
      %v8123 = vpop.f32.mrf.mxu0
      %v8124 = vadd.f32 0.0, %v8123
      %v8125 = vpop.f32.mrf.mxu0
      %8126 = vmatprep.mubr.bf16.mxu0 0
      %8127 = vmatmul.mubr.bf16.gmra.mxu0 %v7994
      %v8128 = vpop.f32.mrf.mxu0
      %v8129 = vadd.f32 0.0, %v8128
      %v8130 = vpop.f32.mrf.mxu0
      %v8131 = vpop.f32.mrf.mxu0
      %v8132 = vadd.f32 0.0, %v8131
      %v8133 = vpop.f32.mrf.mxu0
      %8134 = vmatprep.mubr.bf16.mxu0 0
      %8135 = vmatmul.mubr.bf16.gmra.mxu0 %v7997
      %v8136 = vpop.f32.mrf.mxu0
      %v8137 = vadd.f32 0.0, %v8136
      %v8138 = vpop.f32.mrf.mxu0
      %v8139 = vpop.f32.mrf.mxu0
      %v8140 = vadd.f32 0.0, %v8139
      %v8141 = vpop.f32.mrf.mxu0
      %8142 = vmatprep.mubr.bf16.mxu0 0
      %8143 = vmatmul.mubr.bf16.gmra.mxu0 %v8000
      %v8144 = vpop.f32.mrf.mxu0
      %v8145 = vadd.f32 0.0, %v8144
      %v8146 = vpop.f32.mrf.mxu0
      %v8147 = vpop.f32.mrf.mxu0
      %v8148 = vadd.f32 0.0, %v8147
      %v8149 = vpop.f32.mrf.mxu0
      %8150 = vmatprep.mubr.bf16.mxu0 0
      %8151 = vmatmul.mubr.bf16.gmra.mxu0 %v8003
      %v8152 = vpop.f32.mrf.mxu0
      %v8153 = vadd.f32 0.0, %v8152
      %v8154 = vpop.f32.mrf.mxu0
      %v8155 = vpop.f32.mrf.mxu0
      %v8156 = vadd.f32 0.0, %v8155
      %v8157 = vpop.f32.mrf.mxu0
      %8158 = vmatprep.mubr.bf16.mxu0 0
      %8159 = vmatmul.mubr.bf16.gmra.mxu0 %v8006
      %v8160 = vpop.f32.mrf.mxu0
      %v8161 = vadd.f32 0.0, %v8160
      %v8162 = vpop.f32.mrf.mxu0
      %v8163 = vpop.f32.mrf.mxu0
      %v8164 = vadd.f32 0.0, %v8163
      %v8165 = vpop.f32.mrf.mxu0
      %8166 = vmatprep.mubr.bf16.mxu0 0
      %8167 = vmatmul.mubr.bf16.gmra.mxu0 %v8009
      %v8168 = vpop.f32.mrf.mxu0
      %v8169 = vadd.f32 0.0, %v8168
      %v8170 = vpop.f32.mrf.mxu0
      %v8171 = vpop.f32.mrf.mxu0
      %v8172 = vadd.f32 0.0, %v8171
      %v8173 = vpop.f32.mrf.mxu0
      %8174 = vdwg.mxu0
      %v8175 = vadd.f32 %v7817, %v8049
      %v8176 = vadd.f32 %v7818, %v8052
      %v8177 = vadd.f32 %v7819, %v8057
      %v8178 = vadd.f32 %v7820, %v8060
      %v8179 = vadd.f32 %v7821, %v8065
      %v8180 = vadd.f32 %v7822, %v8068
      %v8181 = vadd.f32 %v7823, %v8073
      %v8182 = vadd.f32 %v7824, %v8076
      %v8183 = vadd.f32 %v7825, %v8081
      %v8184 = vadd.f32 %v7826, %v8084
      %v8185 = vadd.f32 %v7827, %v8089
      %v8186 = vadd.f32 %v7828, %v8092
      %v8187 = vadd.f32 %v7829, %v8097
      %v8188 = vadd.f32 %v7830, %v8100
      %v8189 = vadd.f32 %v7831, %v8105
      %v8190 = vadd.f32 %v7832, %v8108
      %v8191 = vadd.f32 %v7833, %v8113
      %v8192 = vadd.f32 %v7834, %v8116
      %v8193 = vadd.f32 %v7835, %v8121
      %v8194 = vadd.f32 %v7836, %v8124
      %v8195 = vadd.f32 %v7837, %v8129
      %v8196 = vadd.f32 %v7838, %v8132
      %v8197 = vadd.f32 %v7839, %v8137
      %v8198 = vadd.f32 %v7840, %v8140
      %v8199 = vadd.f32 %v7841, %v8145
      %v8200 = vadd.f32 %v7842, %v8148
      %v8201 = vadd.f32 %v7843, %v8153
      %v8202 = vadd.f32 %v7844, %v8156
      %v8203 = vadd.f32 %v7845, %v8161
      %v8204 = vadd.f32 %v7846, %v8164
      %v8205 = vadd.f32 %v7847, %v8169
      %v8206 = vadd.f32 %v7848, %v8172
      %v8207 = vld [vmem:[%s5792] sm:$0xf]
      %v8208 = vld [vmem:[%s5792 + $0x4] sm:$0xf]
      %v8209 = vld [vmem:[%s5792 + $0x8] sm:$0x1]
      %v8210 = vld [vmem:[%s5792 + $0xc] sm:$0xf]
      %v8211 = vld [vmem:[%s5792 + $0x10] sm:$0xf]
      %v8212 = vld [vmem:[%s5792 + $0x14] sm:$0x1]
      %v8213 = vld [vmem:[%s5792 + $0x18] sm:$0xf]
      %v8214 = vld [vmem:[%s5792 + $0x1c] sm:$0xf]
      %v8215 = vld [vmem:[%s5792 + $0x20] sm:$0x1]
      %v8216 = vld [vmem:[%s5792 + $0x24] sm:$0xf]
      %v8217 = vld [vmem:[%s5792 + $0x28] sm:$0xf]
      %v8218 = vld [vmem:[%s5792 + $0x2c] sm:$0x1]
      %v8219 = vld [vmem:[%s5792 + $0x30] sm:$0xf]
      %v8220 = vld [vmem:[%s5792 + $0x34] sm:$0xf]
      %v8221 = vld [vmem:[%s5792 + $0x38] sm:$0x1]
      %v8222 = vld [vmem:[%s5792 + $0x3c] sm:$0xf]
      %v8223 = vld [vmem:[%s5792 + $0x40] sm:$0xf]
      %v8224 = vld [vmem:[%s5792 + $0x44] sm:$0x1]
      %v8225 = vld [vmem:[%s5792 + $0x48] sm:$0xf]
      %v8226 = vld [vmem:[%s5792 + $0x4c] sm:$0xf]
      %v8227 = vld [vmem:[%s5792 + $0x50] sm:$0x1]
      %v8228 = vld [vmem:[%s5792 + $0x54] sm:$0xf]
      %v8229 = vld [vmem:[%s5792 + $0x58] sm:$0xf]
      %v8230 = vld [vmem:[%s5792 + $0x5c] sm:$0x1]
      %v8231 = vld [vmem:[%s5792 + $0x60] sm:$0xf]
      %v8232 = vld [vmem:[%s5792 + $0x64] sm:$0xf]
      %v8233 = vld [vmem:[%s5792 + $0x68] sm:$0x1]
      %v8234 = vld [vmem:[%s5792 + $0x6c] sm:$0xf]
      %v8235 = vld [vmem:[%s5792 + $0x70] sm:$0xf]
      %v8236 = vld [vmem:[%s5792 + $0x74] sm:$0x1]
      %v8237 = vld [vmem:[%s5792 + $0x78] sm:$0xf]
      %v8238 = vld [vmem:[%s5792 + $0x7c] sm:$0xf]
      %v8239 = vld [vmem:[%s5792 + $0x80] sm:$0x1]
      %v8240 = vld [vmem:[%s5792 + $0x84] sm:$0xf]
      %v8241 = vld [vmem:[%s5792 + $0x88] sm:$0xf]
      %v8242 = vld [vmem:[%s5792 + $0x8c] sm:$0x1]
      %v8243 = vld [vmem:[%s5792 + $0x90] sm:$0xf]
      %v8244 = vld [vmem:[%s5792 + $0x94] sm:$0xf]
      %v8245 = vld [vmem:[%s5792 + $0x98] sm:$0x1]
      %v8246 = vld [vmem:[%s5792 + $0x9c] sm:$0xf]
      %v8247 = vld [vmem:[%s5792 + $0xa0] sm:$0xf]
      %v8248 = vld [vmem:[%s5792 + $0xa4] sm:$0x1]
      %v8249 = vld [vmem:[%s5792 + $0xa8] sm:$0xf]
      %v8250 = vld [vmem:[%s5792 + $0xac] sm:$0xf]
      %v8251 = vld [vmem:[%s5792 + $0xb0] sm:$0x1]
      %v8252 = vld [vmem:[%s5792 + $0xb4] sm:$0xf]
      %v8253 = vld [vmem:[%s5792 + $0xb8] sm:$0xf]
      %v8254 = vld [vmem:[%s5792 + $0xbc] sm:$0x1]
      %v8256 = vshrl.u32 %v8207, 16
      %v8258 = vrot.slane %v8256, 4
      %v8259 = vshll.u32 %v8207, 16
      %v8261 = vrot.slane %v8259, 5
      %v8262 = vor.u32 %v8258, %v8261
      %v8263 = vrot.slane %v8262, 4
      %v8265 = vshll.u32 %v8208, 16
      %v8267 = vrot.slane %v8265, 5
      %v8268 = vsel %vm1190, %v8263, %v8267
      %v8269 = vshrl.u32 %v8208, 16
      %v8271 = vrot.slane %v8269, 4
      %v8272 = vor.u32 %v8271, %v8267
      %v8273 = vrot.slane %v8272, 4
      %v8275 = vshll.u32 %v8209, 16
      %v8277 = vrot.slane %v8275, 5
      %v8278 = vsel %vm1190, %v8273, %v8277
      %v8280 = vshrl.u32 %v8210, 16
      %v8282 = vrot.slane %v8280, 4
      %v8283 = vshll.u32 %v8210, 16
      %v8285 = vrot.slane %v8283, 5
      %v8286 = vor.u32 %v8282, %v8285
      %v8287 = vrot.slane %v8286, 4
      %v8289 = vshll.u32 %v8211, 16
      %v8291 = vrot.slane %v8289, 5
      %v8292 = vsel %vm1190, %v8287, %v8291
      %v8293 = vshrl.u32 %v8211, 16
      %v8295 = vrot.slane %v8293, 4
      %v8296 = vor.u32 %v8295, %v8291
      %v8297 = vrot.slane %v8296, 4
      %v8299 = vshll.u32 %v8212, 16
      %v8301 = vrot.slane %v8299, 5
      %v8302 = vsel %vm1190, %v8297, %v8301
      %v8304 = vshrl.u32 %v8213, 16
      %v8306 = vrot.slane %v8304, 4
      %v8307 = vshll.u32 %v8213, 16
      %v8309 = vrot.slane %v8307, 5
      %v8310 = vor.u32 %v8306, %v8309
      %v8311 = vrot.slane %v8310, 4
      %v8313 = vshll.u32 %v8214, 16
      %v8315 = vrot.slane %v8313, 5
      %v8316 = vsel %vm1190, %v8311, %v8315
      %v8317 = vshrl.u32 %v8214, 16
      %v8319 = vrot.slane %v8317, 4
      %v8320 = vor.u32 %v8319, %v8315
      %v8321 = vrot.slane %v8320, 4
      %v8323 = vshll.u32 %v8215, 16
      %v8325 = vrot.slane %v8323, 5
      %v8326 = vsel %vm1190, %v8321, %v8325
      %v8328 = vshrl.u32 %v8216, 16
      %v8330 = vrot.slane %v8328, 4
      %v8331 = vshll.u32 %v8216, 16
      %v8333 = vrot.slane %v8331, 5
      %v8334 = vor.u32 %v8330, %v8333
      %v8335 = vrot.slane %v8334, 4
      %v8337 = vshll.u32 %v8217, 16
      %v8339 = vrot.slane %v8337, 5
      %v8340 = vsel %vm1190, %v8335, %v8339
      %v8341 = vshrl.u32 %v8217, 16
      %v8343 = vrot.slane %v8341, 4
      %v8344 = vor.u32 %v8343, %v8339
      %v8345 = vrot.slane %v8344, 4
      %v8347 = vshll.u32 %v8218, 16
      %v8349 = vrot.slane %v8347, 5
      %v8350 = vsel %vm1190, %v8345, %v8349
      %v8352 = vshrl.u32 %v8219, 16
      %v8354 = vrot.slane %v8352, 4
      %v8355 = vshll.u32 %v8219, 16
      %v8357 = vrot.slane %v8355, 5
      %v8358 = vor.u32 %v8354, %v8357
      %v8359 = vrot.slane %v8358, 4
      %v8361 = vshll.u32 %v8220, 16
      %v8363 = vrot.slane %v8361, 5
      %v8364 = vsel %vm1190, %v8359, %v8363
      %v8365 = vshrl.u32 %v8220, 16
      %v8367 = vrot.slane %v8365, 4
      %v8368 = vor.u32 %v8367, %v8363
      %v8369 = vrot.slane %v8368, 4
      %v8371 = vshll.u32 %v8221, 16
      %v8373 = vrot.slane %v8371, 5
      %v8374 = vsel %vm1190, %v8369, %v8373
      %v8376 = vshrl.u32 %v8222, 16
      %v8378 = vrot.slane %v8376, 4
      %v8379 = vshll.u32 %v8222, 16
      %v8381 = vrot.slane %v8379, 5
      %v8382 = vor.u32 %v8378, %v8381
      %v8383 = vrot.slane %v8382, 4
      %v8385 = vshll.u32 %v8223, 16
      %v8387 = vrot.slane %v8385, 5
      %v8388 = vsel %vm1190, %v8383, %v8387
      %v8389 = vshrl.u32 %v8223, 16
      %v8391 = vrot.slane %v8389, 4
      %v8392 = vor.u32 %v8391, %v8387
      %v8393 = vrot.slane %v8392, 4
      %v8395 = vshll.u32 %v8224, 16
      %v8397 = vrot.slane %v8395, 5
      %v8398 = vsel %vm1190, %v8393, %v8397
      %v8400 = vshrl.u32 %v8225, 16
      %v8402 = vrot.slane %v8400, 4
      %v8403 = vshll.u32 %v8225, 16
      %v8405 = vrot.slane %v8403, 5
      %v8406 = vor.u32 %v8402, %v8405
      %v8407 = vrot.slane %v8406, 4
      %v8409 = vshll.u32 %v8226, 16
      %v8411 = vrot.slane %v8409, 5
      %v8412 = vsel %vm1190, %v8407, %v8411
      %v8413 = vshrl.u32 %v8226, 16
      %v8415 = vrot.slane %v8413, 4
      %v8416 = vor.u32 %v8415, %v8411
      %v8417 = vrot.slane %v8416, 4
      %v8419 = vshll.u32 %v8227, 16
      %v8421 = vrot.slane %v8419, 5
      %v8422 = vsel %vm1190, %v8417, %v8421
      %v8424 = vshrl.u32 %v8228, 16
      %v8426 = vrot.slane %v8424, 4
      %v8427 = vshll.u32 %v8228, 16
      %v8429 = vrot.slane %v8427, 5
      %v8430 = vor.u32 %v8426, %v8429
      %v8431 = vrot.slane %v8430, 4
      %v8433 = vshll.u32 %v8229, 16
      %v8435 = vrot.slane %v8433, 5
      %v8436 = vsel %vm1190, %v8431, %v8435
      %v8437 = vshrl.u32 %v8229, 16
      %v8439 = vrot.slane %v8437, 4
      %v8440 = vor.u32 %v8439, %v8435
      %v8441 = vrot.slane %v8440, 4
      %v8443 = vshll.u32 %v8230, 16
      %v8445 = vrot.slane %v8443, 5
      %v8446 = vsel %vm1190, %v8441, %v8445
      %v8448 = vshrl.u32 %v8231, 16
      %v8450 = vrot.slane %v8448, 4
      %v8451 = vshll.u32 %v8231, 16
      %v8453 = vrot.slane %v8451, 5
      %v8454 = vor.u32 %v8450, %v8453
      %v8455 = vrot.slane %v8454, 4
      %v8457 = vshll.u32 %v8232, 16
      %v8459 = vrot.slane %v8457, 5
      %v8460 = vsel %vm1190, %v8455, %v8459
      %v8461 = vshrl.u32 %v8232, 16
      %v8463 = vrot.slane %v8461, 4
      %v8464 = vor.u32 %v8463, %v8459
      %v8465 = vrot.slane %v8464, 4
      %v8467 = vshll.u32 %v8233, 16
      %v8469 = vrot.slane %v8467, 5
      %v8470 = vsel %vm1190, %v8465, %v8469
      %v8472 = vshrl.u32 %v8234, 16
      %v8474 = vrot.slane %v8472, 4
      %v8475 = vshll.u32 %v8234, 16
      %v8477 = vrot.slane %v8475, 5
      %v8478 = vor.u32 %v8474, %v8477
      %v8479 = vrot.slane %v8478, 4
      %v8481 = vshll.u32 %v8235, 16
      %v8483 = vrot.slane %v8481, 5
      %v8484 = vsel %vm1190, %v8479, %v8483
      %v8485 = vshrl.u32 %v8235, 16
      %v8487 = vrot.slane %v8485, 4
      %v8488 = vor.u32 %v8487, %v8483
      %v8489 = vrot.slane %v8488, 4
      %v8491 = vshll.u32 %v8236, 16
      %v8493 = vrot.slane %v8491, 5
      %v8494 = vsel %vm1190, %v8489, %v8493
      %v8496 = vshrl.u32 %v8237, 16
      %v8498 = vrot.slane %v8496, 4
      %v8499 = vshll.u32 %v8237, 16
      %v8501 = vrot.slane %v8499, 5
      %v8502 = vor.u32 %v8498, %v8501
      %v8503 = vrot.slane %v8502, 4
      %v8505 = vshll.u32 %v8238, 16
      %v8507 = vrot.slane %v8505, 5
      %v8508 = vsel %vm1190, %v8503, %v8507
      %v8509 = vshrl.u32 %v8238, 16
      %v8511 = vrot.slane %v8509, 4
      %v8512 = vor.u32 %v8511, %v8507
      %v8513 = vrot.slane %v8512, 4
      %v8515 = vshll.u32 %v8239, 16
      %v8517 = vrot.slane %v8515, 5
      %v8518 = vsel %vm1190, %v8513, %v8517
      %v8520 = vshrl.u32 %v8240, 16
      %v8522 = vrot.slane %v8520, 4
      %v8523 = vshll.u32 %v8240, 16
      %v8525 = vrot.slane %v8523, 5
      %v8526 = vor.u32 %v8522, %v8525
      %v8527 = vrot.slane %v8526, 4
      %v8529 = vshll.u32 %v8241, 16
      %v8531 = vrot.slane %v8529, 5
      %v8532 = vsel %vm1190, %v8527, %v8531
      %v8533 = vshrl.u32 %v8241, 16
      %v8535 = vrot.slane %v8533, 4
      %v8536 = vor.u32 %v8535, %v8531
      %v8537 = vrot.slane %v8536, 4
      %v8539 = vshll.u32 %v8242, 16
      %v8541 = vrot.slane %v8539, 5
      %v8542 = vsel %vm1190, %v8537, %v8541
      %v8544 = vshrl.u32 %v8243, 16
      %v8546 = vrot.slane %v8544, 4
      %v8547 = vshll.u32 %v8243, 16
      %v8549 = vrot.slane %v8547, 5
      %v8550 = vor.u32 %v8546, %v8549
      %v8551 = vrot.slane %v8550, 4
      %v8553 = vshll.u32 %v8244, 16
      %v8555 = vrot.slane %v8553, 5
      %v8556 = vsel %vm1190, %v8551, %v8555
      %v8557 = vshrl.u32 %v8244, 16
      %v8559 = vrot.slane %v8557, 4
      %v8560 = vor.u32 %v8559, %v8555
      %v8561 = vrot.slane %v8560, 4
      %v8563 = vshll.u32 %v8245, 16
      %v8565 = vrot.slane %v8563, 5
      %v8566 = vsel %vm1190, %v8561, %v8565
      %v8568 = vshrl.u32 %v8246, 16
      %v8570 = vrot.slane %v8568, 4
      %v8571 = vshll.u32 %v8246, 16
      %v8573 = vrot.slane %v8571, 5
      %v8574 = vor.u32 %v8570, %v8573
      %v8575 = vrot.slane %v8574, 4
      %v8577 = vshll.u32 %v8247, 16
      %v8579 = vrot.slane %v8577, 5
      %v8580 = vsel %vm1190, %v8575, %v8579
      %v8581 = vshrl.u32 %v8247, 16
      %v8583 = vrot.slane %v8581, 4
      %v8584 = vor.u32 %v8583, %v8579
      %v8585 = vrot.slane %v8584, 4
      %v8587 = vshll.u32 %v8248, 16
      %v8589 = vrot.slane %v8587, 5
      %v8590 = vsel %vm1190, %v8585, %v8589
      %v8592 = vshrl.u32 %v8249, 16
      %v8594 = vrot.slane %v8592, 4
      %v8595 = vshll.u32 %v8249, 16
      %v8597 = vrot.slane %v8595, 5
      %v8598 = vor.u32 %v8594, %v8597
      %v8599 = vrot.slane %v8598, 4
      %v8601 = vshll.u32 %v8250, 16
      %v8603 = vrot.slane %v8601, 5
      %v8604 = vsel %vm1190, %v8599, %v8603
      %v8605 = vshrl.u32 %v8250, 16
      %v8607 = vrot.slane %v8605, 4
      %v8608 = vor.u32 %v8607, %v8603
      %v8609 = vrot.slane %v8608, 4
      %v8611 = vshll.u32 %v8251, 16
      %v8613 = vrot.slane %v8611, 5
      %v8614 = vsel %vm1190, %v8609, %v8613
      %v8616 = vshrl.u32 %v8252, 16
      %v8618 = vrot.slane %v8616, 4
      %v8619 = vshll.u32 %v8252, 16
      %v8621 = vrot.slane %v8619, 5
      %v8622 = vor.u32 %v8618, %v8621
      %v8623 = vrot.slane %v8622, 4
      %v8625 = vshll.u32 %v8253, 16
      %v8627 = vrot.slane %v8625, 5
      %v8628 = vsel %vm1190, %v8623, %v8627
      %v8629 = vshrl.u32 %v8253, 16
      %v8631 = vrot.slane %v8629, 4
      %v8632 = vor.u32 %v8631, %v8627
      %v8633 = vrot.slane %v8632, 4
      %v8635 = vshll.u32 %v8254, 16
      %v8637 = vrot.slane %v8635, 5
      %v8638 = vsel %vm1190, %v8633, %v8637
      %s8639 = scalar_lea.vmem %s5, 16
      %v8640 = vld [vmem:[%s8639] sm:$0xf]
      %v8641 = vunpack.c.l.b16 %v8268
      %v8642 = vunpack.c.l.b16 %v8278
      %v8643 = vunpack.c.l.b16 %v8292
      %v8644 = vunpack.c.l.b16 %v8302
      %v8645 = vunpack.c.l.b16 %v8316
      %v8646 = vunpack.c.l.b16 %v8326
      %v8647 = vunpack.c.l.b16 %v8340
      %v8648 = vunpack.c.l.b16 %v8350
      %v8649 = vunpack.c.l.b16 %v8364
      %v8650 = vunpack.c.l.b16 %v8374
      %v8651 = vunpack.c.l.b16 %v8388
      %v8652 = vunpack.c.l.b16 %v8398
      %v8653 = vunpack.c.l.b16 %v8412
      %v8654 = vunpack.c.l.b16 %v8422
      %v8655 = vunpack.c.l.b16 %v8436
      %v8656 = vunpack.c.l.b16 %v8446
      %v8657 = vunpack.c.l.b16 %v8460
      %v8658 = vunpack.c.l.b16 %v8470
      %v8659 = vunpack.c.l.b16 %v8484
      %v8660 = vunpack.c.l.b16 %v8494
      %v8661 = vunpack.c.l.b16 %v8508
      %v8662 = vunpack.c.l.b16 %v8518
      %v8663 = vunpack.c.l.b16 %v8532
      %v8664 = vunpack.c.l.b16 %v8542
      %v8665 = vunpack.c.l.b16 %v8556
      %v8666 = vunpack.c.l.b16 %v8566
      %v8667 = vunpack.c.l.b16 %v8580
      %v8668 = vunpack.c.l.b16 %v8590
      %v8669 = vunpack.c.l.b16 %v8604
      %v8670 = vunpack.c.l.b16 %v8614
      %v8671 = vunpack.c.l.b16 %v8628
      %v8672 = vunpack.c.l.b16 %v8638
      %v8673 = vpack.c.b16 %v8642, %v8641
      %v8674 = vpack.c.b16 %v8644, %v8643
      %v8675 = vpack.c.b16 %v8646, %v8645
      %v8676 = vpack.c.b16 %v8648, %v8647
      %v8677 = vpack.c.b16 %v8650, %v8649
      %v8678 = vpack.c.b16 %v8652, %v8651
      %v8679 = vpack.c.b16 %v8654, %v8653
      %v8680 = vpack.c.b16 %v8656, %v8655
      %v8681 = vpack.c.b16 %v8658, %v8657
      %v8682 = vpack.c.b16 %v8660, %v8659
      %v8683 = vpack.c.b16 %v8662, %v8661
      %v8684 = vpack.c.b16 %v8664, %v8663
      %v8685 = vpack.c.b16 %v8666, %v8665
      %v8686 = vpack.c.b16 %v8668, %v8667
      %v8687 = vpack.c.b16 %v8670, %v8669
      %v8688 = vpack.c.b16 %v8672, %v8671
      %v8690 = vsel %vm6889, %v8673, 0
      %v8693 = vsel %vm6889, %v8674, 0
      %v8696 = vsel %vm6889, %v8675, 0
      %v8699 = vsel %vm6889, %v8676, 0
      %v8702 = vsel %vm6889, %v8677, 0
      %v8705 = vsel %vm6889, %v8678, 0
      %v8708 = vsel %vm6889, %v8679, 0
      %v8711 = vsel %vm6889, %v8680, 0
      %v8714 = vsel %vm6889, %v8681, 0
      %v8717 = vsel %vm6889, %v8682, 0
      %v8720 = vsel %vm6889, %v8683, 0
      %v8723 = vsel %vm6889, %v8684, 0
      %v8726 = vsel %vm6889, %v8685, 0
      %v8729 = vsel %vm6889, %v8686, 0
      %v8732 = vsel %vm6889, %v8687, 0
      %v8735 = vsel %vm6889, %v8688, 0
      %v8738 = vsel %vm6938, %v8640, 0
      %8740 = vmatprep.subr.bf16.mxu0 0
      %8741 = vmatpush1.bf16.msra.mxu0 0
      %8742 = vmatprep.subr.bf16.mxu0 0
      %8743 = vmatpush1.bf16.msra.mxu0 0
      %8744 = vmatprep.subr.bf16.mxu0 0
      %8745 = vmatpush1.bf16.msra.mxu0 0
      %8746 = vmatprep.subr.bf16.mxu0 0
      %8747 = vmatpush1.bf16.msra.mxu0 0
      %8748 = vmatprep.subr.bf16.mxu0 0
      %8749 = vmatpush1.bf16.msra.mxu0 0
      %8750 = vmatprep.subr.bf16.mxu0 0
      %8751 = vmatpush1.bf16.msra.mxu0 0
      %8752 = vmatprep.subr.bf16.mxu0 0
      %8753 = vmatpush1.bf16.msra.mxu0 0
      %8754 = vmatprep.subr.bf16.mxu0 0
      %8755 = vmatpush1.bf16.msra.mxu0 %v8738
      %8756 = vmatprep.subr.bf16.mxu0 0
      %8757 = vmatpush2.bf16.msra.mxu0 0
      %8758 = vmatprep.subr.bf16.mxu0 0
      %8759 = vmatpush2.bf16.msra.mxu0 0
      %8760 = vmatprep.subr.bf16.mxu0 0
      %8761 = vmatpush2.bf16.msra.mxu0 0
      %8762 = vmatprep.subr.bf16.mxu0 0
      %8763 = vmatpush2.bf16.msra.mxu0 0
      %8764 = vmatprep.subr.bf16.mxu0 0
      %8765 = vmatpush2.bf16.msra.mxu0 0
      %8766 = vmatprep.subr.bf16.mxu0 0
      %8767 = vmatpush2.bf16.msra.mxu0 0
      %8768 = vmatprep.subr.bf16.mxu0 0
      %8769 = vmatpush2.bf16.msra.mxu0 0
      %8770 = vmatprep.subr.bf16.mxu0 0
      %8771 = vmatpush2.bf16.msra.mxu0 0
      %8772 = vmatprep.mubr.bf16.mxu0 0
      %8773 = vmatmul.mubr.bf16.gmra.mxu0 %v8690
      %v8774 = vpop.f32.mrf.mxu0
      %v8775 = vadd.f32 0.0, %v8774
      %v8776 = vpop.f32.mrf.mxu0
      %v8777 = vpop.f32.mrf.mxu0
      %v8778 = vadd.f32 0.0, %v8777
      %v8779 = vpop.f32.mrf.mxu0
      %8780 = vmatprep.mubr.bf16.mxu0 0
      %8781 = vmatmul.mubr.bf16.gmra.mxu0 %v8693
      %v8782 = vpop.f32.mrf.mxu0
      %v8783 = vadd.f32 0.0, %v8782
      %v8784 = vpop.f32.mrf.mxu0
      %v8785 = vpop.f32.mrf.mxu0
      %v8786 = vadd.f32 0.0, %v8785
      %v8787 = vpop.f32.mrf.mxu0
      %8788 = vmatprep.mubr.bf16.mxu0 0
      %8789 = vmatmul.mubr.bf16.gmra.mxu0 %v8696
      %v8790 = vpop.f32.mrf.mxu0
      %v8791 = vadd.f32 0.0, %v8790
      %v8792 = vpop.f32.mrf.mxu0
      %v8793 = vpop.f32.mrf.mxu0
      %v8794 = vadd.f32 0.0, %v8793
      %v8795 = vpop.f32.mrf.mxu0
      %8796 = vmatprep.mubr.bf16.mxu0 0
      %8797 = vmatmul.mubr.bf16.gmra.mxu0 %v8699
      %v8798 = vpop.f32.mrf.mxu0
      %v8799 = vadd.f32 0.0, %v8798
      %v8800 = vpop.f32.mrf.mxu0
      %v8801 = vpop.f32.mrf.mxu0
      %v8802 = vadd.f32 0.0, %v8801
      %v8803 = vpop.f32.mrf.mxu0
      %8804 = vmatprep.mubr.bf16.mxu0 0
      %8805 = vmatmul.mubr.bf16.gmra.mxu0 %v8702
      %v8806 = vpop.f32.mrf.mxu0
      %v8807 = vadd.f32 0.0, %v8806
      %v8808 = vpop.f32.mrf.mxu0
      %v8809 = vpop.f32.mrf.mxu0
      %v8810 = vadd.f32 0.0, %v8809
      %v8811 = vpop.f32.mrf.mxu0
      %8812 = vmatprep.mubr.bf16.mxu0 0
      %8813 = vmatmul.mubr.bf16.gmra.mxu0 %v8705
      %v8814 = vpop.f32.mrf.mxu0
      %v8815 = vadd.f32 0.0, %v8814
      %v8816 = vpop.f32.mrf.mxu0
      %v8817 = vpop.f32.mrf.mxu0
      %v8818 = vadd.f32 0.0, %v8817
      %v8819 = vpop.f32.mrf.mxu0
      %8820 = vmatprep.mubr.bf16.mxu0 0
      %8821 = vmatmul.mubr.bf16.gmra.mxu0 %v8708
      %v8822 = vpop.f32.mrf.mxu0
      %v8823 = vadd.f32 0.0, %v8822
      %v8824 = vpop.f32.mrf.mxu0
      %v8825 = vpop.f32.mrf.mxu0
      %v8826 = vadd.f32 0.0, %v8825
      %v8827 = vpop.f32.mrf.mxu0
      %8828 = vmatprep.mubr.bf16.mxu0 0
      %8829 = vmatmul.mubr.bf16.gmra.mxu0 %v8711
      %v8830 = vpop.f32.mrf.mxu0
      %v8831 = vadd.f32 0.0, %v8830
      %v8832 = vpop.f32.mrf.mxu0
      %v8833 = vpop.f32.mrf.mxu0
      %v8834 = vadd.f32 0.0, %v8833
      %v8835 = vpop.f32.mrf.mxu0
      %8836 = vmatprep.mubr.bf16.mxu0 0
      %8837 = vmatmul.mubr.bf16.gmra.mxu0 %v8714
      %v8838 = vpop.f32.mrf.mxu0
      %v8839 = vadd.f32 0.0, %v8838
      %v8840 = vpop.f32.mrf.mxu0
      %v8841 = vpop.f32.mrf.mxu0
      %v8842 = vadd.f32 0.0, %v8841
      %v8843 = vpop.f32.mrf.mxu0
      %8844 = vmatprep.mubr.bf16.mxu0 0
      %8845 = vmatmul.mubr.bf16.gmra.mxu0 %v8717
      %v8846 = vpop.f32.mrf.mxu0
      %v8847 = vadd.f32 0.0, %v8846
      %v8848 = vpop.f32.mrf.mxu0
      %v8849 = vpop.f32.mrf.mxu0
      %v8850 = vadd.f32 0.0, %v8849
      %v8851 = vpop.f32.mrf.mxu0
      %8852 = vmatprep.mubr.bf16.mxu0 0
      %8853 = vmatmul.mubr.bf16.gmra.mxu0 %v8720
      %v8854 = vpop.f32.mrf.mxu0
      %v8855 = vadd.f32 0.0, %v8854
      %v8856 = vpop.f32.mrf.mxu0
      %v8857 = vpop.f32.mrf.mxu0
      %v8858 = vadd.f32 0.0, %v8857
      %v8859 = vpop.f32.mrf.mxu0
      %8860 = vmatprep.mubr.bf16.mxu0 0
      %8861 = vmatmul.mubr.bf16.gmra.mxu0 %v8723
      %v8862 = vpop.f32.mrf.mxu0
      %v8863 = vadd.f32 0.0, %v8862
      %v8864 = vpop.f32.mrf.mxu0
      %v8865 = vpop.f32.mrf.mxu0
      %v8866 = vadd.f32 0.0, %v8865
      %v8867 = vpop.f32.mrf.mxu0
      %8868 = vmatprep.mubr.bf16.mxu0 0
      %8869 = vmatmul.mubr.bf16.gmra.mxu0 %v8726
      %v8870 = vpop.f32.mrf.mxu0
      %v8871 = vadd.f32 0.0, %v8870
      %v8872 = vpop.f32.mrf.mxu0
      %v8873 = vpop.f32.mrf.mxu0
      %v8874 = vadd.f32 0.0, %v8873
      %v8875 = vpop.f32.mrf.mxu0
      %8876 = vmatprep.mubr.bf16.mxu0 0
      %8877 = vmatmul.mubr.bf16.gmra.mxu0 %v8729
      %v8878 = vpop.f32.mrf.mxu0
      %v8879 = vadd.f32 0.0, %v8878
      %v8880 = vpop.f32.mrf.mxu0
      %v8881 = vpop.f32.mrf.mxu0
      %v8882 = vadd.f32 0.0, %v8881
      %v8883 = vpop.f32.mrf.mxu0
      %8884 = vmatprep.mubr.bf16.mxu0 0
      %8885 = vmatmul.mubr.bf16.gmra.mxu0 %v8732
      %v8886 = vpop.f32.mrf.mxu0
      %v8887 = vadd.f32 0.0, %v8886
      %v8888 = vpop.f32.mrf.mxu0
      %v8889 = vpop.f32.mrf.mxu0
      %v8890 = vadd.f32 0.0, %v8889
      %v8891 = vpop.f32.mrf.mxu0
      %8892 = vmatprep.mubr.bf16.mxu0 0
      %8893 = vmatmul.mubr.bf16.gmra.mxu0 %v8735
      %v8894 = vpop.f32.mrf.mxu0
      %v8895 = vadd.f32 0.0, %v8894
      %v8896 = vpop.f32.mrf.mxu0
      %v8897 = vpop.f32.mrf.mxu0
      %v8898 = vadd.f32 0.0, %v8897
      %v8899 = vpop.f32.mrf.mxu0
      %8900 = vdwg.mxu0
      %v8901 = vadd.f32 %v8175, %v8775
      %v8902 = vadd.f32 %v8176, %v8778
      %v8903 = vadd.f32 %v8177, %v8783
      %v8904 = vadd.f32 %v8178, %v8786
      %v8905 = vadd.f32 %v8179, %v8791
      %v8906 = vadd.f32 %v8180, %v8794
      %v8907 = vadd.f32 %v8181, %v8799
      %v8908 = vadd.f32 %v8182, %v8802
      %v8909 = vadd.f32 %v8183, %v8807
      %v8910 = vadd.f32 %v8184, %v8810
      %v8911 = vadd.f32 %v8185, %v8815
      %v8912 = vadd.f32 %v8186, %v8818
      %v8913 = vadd.f32 %v8187, %v8823
      %v8914 = vadd.f32 %v8188, %v8826
      %v8915 = vadd.f32 %v8189, %v8831
      %v8916 = vadd.f32 %v8190, %v8834
      %v8917 = vadd.f32 %v8191, %v8839
      %v8918 = vadd.f32 %v8192, %v8842
      %v8919 = vadd.f32 %v8193, %v8847
      %v8920 = vadd.f32 %v8194, %v8850
      %v8921 = vadd.f32 %v8195, %v8855
      %v8922 = vadd.f32 %v8196, %v8858
      %v8923 = vadd.f32 %v8197, %v8863
      %v8924 = vadd.f32 %v8198, %v8866
      %v8925 = vadd.f32 %v8199, %v8871
      %v8926 = vadd.f32 %v8200, %v8874
      %v8927 = vadd.f32 %v8201, %v8879
      %v8928 = vadd.f32 %v8202, %v8882
      %v8929 = vadd.f32 %v8203, %v8887
      %v8930 = vadd.f32 %v8204, %v8890
      %v8931 = vadd.f32 %v8205, %v8895
      %v8932 = vadd.f32 %v8206, %v8898
      %v8933 = vld [vmem:[%s5792] sm:$0xe]
      %v8934 = vld [vmem:[%s5792 + $0xc] sm:$0xe]
      %v8935 = vld [vmem:[%s5792 + $0x18] sm:$0xe]
      %v8936 = vld [vmem:[%s5792 + $0x24] sm:$0xe]
      %v8937 = vld [vmem:[%s5792 + $0x30] sm:$0xe]
      %v8938 = vld [vmem:[%s5792 + $0x3c] sm:$0xe]
      %v8939 = vld [vmem:[%s5792 + $0x48] sm:$0xe]
      %v8940 = vld [vmem:[%s5792 + $0x54] sm:$0xe]
      %v8941 = vld [vmem:[%s5792 + $0x60] sm:$0xe]
      %v8942 = vld [vmem:[%s5792 + $0x6c] sm:$0xe]
      %v8943 = vld [vmem:[%s5792 + $0x78] sm:$0xe]
      %v8944 = vld [vmem:[%s5792 + $0x84] sm:$0xe]
      %v8945 = vld [vmem:[%s5792 + $0x90] sm:$0xe]
      %v8946 = vld [vmem:[%s5792 + $0x9c] sm:$0xe]
      %v8947 = vld [vmem:[%s5792 + $0xa8] sm:$0xe]
      %v8948 = vld [vmem:[%s5792 + $0xb4] sm:$0xe]
      %v8997 = vrot.slane %v8933, 5
      %v8998 = vrot.slane %v8997, 4
      %v8999 = vrot.slane %v8208, 5
      %v9000 = vsel %vm2180, %v8998, %v8999
      %v9001 = vrot.slane %v8999, 4
      %v9002 = vrot.slane %v8209, 5
      %v9003 = vsel %vm2180, %v9001, %v9002
      %v9004 = vrot.slane %v8934, 5
      %v9005 = vrot.slane %v9004, 4
      %v9006 = vrot.slane %v8211, 5
      %v9007 = vsel %vm2180, %v9005, %v9006
      %v9008 = vrot.slane %v9006, 4
      %v9009 = vrot.slane %v8212, 5
      %v9010 = vsel %vm2180, %v9008, %v9009
      %v9011 = vrot.slane %v8935, 5
      %v9012 = vrot.slane %v9011, 4
      %v9013 = vrot.slane %v8214, 5
      %v9014 = vsel %vm2180, %v9012, %v9013
      %v9015 = vrot.slane %v9013, 4
      %v9016 = vrot.slane %v8215, 5
      %v9017 = vsel %vm2180, %v9015, %v9016
      %v9018 = vrot.slane %v8936, 5
      %v9019 = vrot.slane %v9018, 4
      %v9020 = vrot.slane %v8217, 5
      %v9021 = vsel %vm2180, %v9019, %v9020
      %v9022 = vrot.slane %v9020, 4
      %v9023 = vrot.slane %v8218, 5
      %v9024 = vsel %vm2180, %v9022, %v9023
      %v9025 = vrot.slane %v8937, 5
      %v9026 = vrot.slane %v9025, 4
      %v9027 = vrot.slane %v8220, 5
      %v9028 = vsel %vm2180, %v9026, %v9027
      %v9029 = vrot.slane %v9027, 4
      %v9030 = vrot.slane %v8221, 5
      %v9031 = vsel %vm2180, %v9029, %v9030
      %v9032 = vrot.slane %v8938, 5
      %v9033 = vrot.slane %v9032, 4
      %v9034 = vrot.slane %v8223, 5
      %v9035 = vsel %vm2180, %v9033, %v9034
      %v9036 = vrot.slane %v9034, 4
      %v9037 = vrot.slane %v8224, 5
      %v9038 = vsel %vm2180, %v9036, %v9037
      %v9039 = vrot.slane %v8939, 5
      %v9040 = vrot.slane %v9039, 4
      %v9041 = vrot.slane %v8226, 5
      %v9042 = vsel %vm2180, %v9040, %v9041
      %v9043 = vrot.slane %v9041, 4
      %v9044 = vrot.slane %v8227, 5
      %v9045 = vsel %vm2180, %v9043, %v9044
      %v9046 = vrot.slane %v8940, 5
      %v9047 = vrot.slane %v9046, 4
      %v9048 = vrot.slane %v8229, 5
      %v9049 = vsel %vm2180, %v9047, %v9048
      %v9050 = vrot.slane %v9048, 4
      %v9051 = vrot.slane %v8230, 5
      %v9052 = vsel %vm2180, %v9050, %v9051
      %v9053 = vrot.slane %v8941, 5
      %v9054 = vrot.slane %v9053, 4
      %v9055 = vrot.slane %v8232, 5
      %v9056 = vsel %vm2180, %v9054, %v9055
      %v9057 = vrot.slane %v9055, 4
      %v9058 = vrot.slane %v8233, 5
      %v9059 = vsel %vm2180, %v9057, %v9058
      %v9060 = vrot.slane %v8942, 5
      %v9061 = vrot.slane %v9060, 4
      %v9062 = vrot.slane %v8235, 5
      %v9063 = vsel %vm2180, %v9061, %v9062
      %v9064 = vrot.slane %v9062, 4
      %v9065 = vrot.slane %v8236, 5
      %v9066 = vsel %vm2180, %v9064, %v9065
      %v9067 = vrot.slane %v8943, 5
      %v9068 = vrot.slane %v9067, 4
      %v9069 = vrot.slane %v8238, 5
      %v9070 = vsel %vm2180, %v9068, %v9069
      %v9071 = vrot.slane %v9069, 4
      %v9072 = vrot.slane %v8239, 5
      %v9073 = vsel %vm2180, %v9071, %v9072
      %v9074 = vrot.slane %v8944, 5
      %v9075 = vrot.slane %v9074, 4
      %v9076 = vrot.slane %v8241, 5
      %v9077 = vsel %vm2180, %v9075, %v9076
      %v9078 = vrot.slane %v9076, 4
      %v9079 = vrot.slane %v8242, 5
      %v9080 = vsel %vm2180, %v9078, %v9079
      %v9081 = vrot.slane %v8945, 5
      %v9082 = vrot.slane %v9081, 4
      %v9083 = vrot.slane %v8244, 5
      %v9084 = vsel %vm2180, %v9082, %v9083
      %v9085 = vrot.slane %v9083, 4
      %v9086 = vrot.slane %v8245, 5
      %v9087 = vsel %vm2180, %v9085, %v9086
      %v9088 = vrot.slane %v8946, 5
      %v9089 = vrot.slane %v9088, 4
      %v9090 = vrot.slane %v8247, 5
      %v9091 = vsel %vm2180, %v9089, %v9090
      %v9092 = vrot.slane %v9090, 4
      %v9093 = vrot.slane %v8248, 5
      %v9094 = vsel %vm2180, %v9092, %v9093
      %v9095 = vrot.slane %v8947, 5
      %v9096 = vrot.slane %v9095, 4
      %v9097 = vrot.slane %v8250, 5
      %v9098 = vsel %vm2180, %v9096, %v9097
      %v9099 = vrot.slane %v9097, 4
      %v9100 = vrot.slane %v8251, 5
      %v9101 = vsel %vm2180, %v9099, %v9100
      %v9102 = vrot.slane %v8948, 5
      %v9103 = vrot.slane %v9102, 4
      %v9104 = vrot.slane %v8253, 5
      %v9105 = vsel %vm2180, %v9103, %v9104
      %v9106 = vrot.slane %v9104, 4
      %v9107 = vrot.slane %v8254, 5
      %v9108 = vsel %vm2180, %v9106, %v9107
      %s9109 = scalar_lea.vmem %s5, 20
      %v9110 = vld [vmem:[%s9109] sm:$0xf]
      %v9111 = vunpack.c.l.b16 %v9000
      %v9112 = vunpack.c.l.b16 %v9003
      %v9113 = vunpack.c.l.b16 %v9007
      %v9114 = vunpack.c.l.b16 %v9010
      %v9115 = vunpack.c.l.b16 %v9014
      %v9116 = vunpack.c.l.b16 %v9017
      %v9117 = vunpack.c.l.b16 %v9021
      %v9118 = vunpack.c.l.b16 %v9024
      %v9119 = vunpack.c.l.b16 %v9028
      %v9120 = vunpack.c.l.b16 %v9031
      %v9121 = vunpack.c.l.b16 %v9035
      %v9122 = vunpack.c.l.b16 %v9038
      %v9123 = vunpack.c.l.b16 %v9042
      %v9124 = vunpack.c.l.b16 %v9045
      %v9125 = vunpack.c.l.b16 %v9049
      %v9126 = vunpack.c.l.b16 %v9052
      %v9127 = vunpack.c.l.b16 %v9056
      %v9128 = vunpack.c.l.b16 %v9059
      %v9129 = vunpack.c.l.b16 %v9063
      %v9130 = vunpack.c.l.b16 %v9066
      %v9131 = vunpack.c.l.b16 %v9070
      %v9132 = vunpack.c.l.b16 %v9073
      %v9133 = vunpack.c.l.b16 %v9077
      %v9134 = vunpack.c.l.b16 %v9080
      %v9135 = vunpack.c.l.b16 %v9084
      %v9136 = vunpack.c.l.b16 %v9087
      %v9137 = vunpack.c.l.b16 %v9091
      %v9138 = vunpack.c.l.b16 %v9094
      %v9139 = vunpack.c.l.b16 %v9098
      %v9140 = vunpack.c.l.b16 %v9101
      %v9141 = vunpack.c.l.b16 %v9105
      %v9142 = vunpack.c.l.b16 %v9108
      %v9143 = vpack.c.b16 %v9112, %v9111
      %v9144 = vpack.c.b16 %v9114, %v9113
      %v9145 = vpack.c.b16 %v9116, %v9115
      %v9146 = vpack.c.b16 %v9118, %v9117
      %v9147 = vpack.c.b16 %v9120, %v9119
      %v9148 = vpack.c.b16 %v9122, %v9121
      %v9149 = vpack.c.b16 %v9124, %v9123
      %v9150 = vpack.c.b16 %v9126, %v9125
      %v9151 = vpack.c.b16 %v9128, %v9127
      %v9152 = vpack.c.b16 %v9130, %v9129
      %v9153 = vpack.c.b16 %v9132, %v9131
      %v9154 = vpack.c.b16 %v9134, %v9133
      %v9155 = vpack.c.b16 %v9136, %v9135
      %v9156 = vpack.c.b16 %v9138, %v9137
      %v9157 = vpack.c.b16 %v9140, %v9139
      %v9158 = vpack.c.b16 %v9142, %v9141
      %v9160 = vsel %vm6889, %v9143, 0
      %v9163 = vsel %vm6889, %v9144, 0
      %v9166 = vsel %vm6889, %v9145, 0
      %v9169 = vsel %vm6889, %v9146, 0
      %v9172 = vsel %vm6889, %v9147, 0
      %v9175 = vsel %vm6889, %v9148, 0
      %v9178 = vsel %vm6889, %v9149, 0
      %v9181 = vsel %vm6889, %v9150, 0
      %v9184 = vsel %vm6889, %v9151, 0
      %v9187 = vsel %vm6889, %v9152, 0
      %v9190 = vsel %vm6889, %v9153, 0
      %v9193 = vsel %vm6889, %v9154, 0
      %v9196 = vsel %vm6889, %v9155, 0
      %v9199 = vsel %vm6889, %v9156, 0
      %v9202 = vsel %vm6889, %v9157, 0
      %v9205 = vsel %vm6889, %v9158, 0
      %v9208 = vsel %vm6938, %v9110, 0
      %9210 = vmatprep.subr.bf16.mxu0 0
      %9211 = vmatpush1.bf16.msra.mxu0 0
      %9212 = vmatprep.subr.bf16.mxu0 0
      %9213 = vmatpush1.bf16.msra.mxu0 0
      %9214 = vmatprep.subr.bf16.mxu0 0
      %9215 = vmatpush1.bf16.msra.mxu0 0
      %9216 = vmatprep.subr.bf16.mxu0 0
      %9217 = vmatpush1.bf16.msra.mxu0 0
      %9218 = vmatprep.subr.bf16.mxu0 0
      %9219 = vmatpush1.bf16.msra.mxu0 0
      %9220 = vmatprep.subr.bf16.mxu0 0
      %9221 = vmatpush1.bf16.msra.mxu0 0
      %9222 = vmatprep.subr.bf16.mxu0 0
      %9223 = vmatpush1.bf16.msra.mxu0 0
      %9224 = vmatprep.subr.bf16.mxu0 0
      %9225 = vmatpush1.bf16.msra.mxu0 %v9208
      %9226 = vmatprep.subr.bf16.mxu0 0
      %9227 = vmatpush2.bf16.msra.mxu0 0
      %9228 = vmatprep.subr.bf16.mxu0 0
      %9229 = vmatpush2.bf16.msra.mxu0 0
      %9230 = vmatprep.subr.bf16.mxu0 0
      %9231 = vmatpush2.bf16.msra.mxu0 0
      %9232 = vmatprep.subr.bf16.mxu0 0
      %9233 = vmatpush2.bf16.msra.mxu0 0
      %9234 = vmatprep.subr.bf16.mxu0 0
      %9235 = vmatpush2.bf16.msra.mxu0 0
      %9236 = vmatprep.subr.bf16.mxu0 0
      %9237 = vmatpush2.bf16.msra.mxu0 0
      %9238 = vmatprep.subr.bf16.mxu0 0
      %9239 = vmatpush2.bf16.msra.mxu0 0
      %9240 = vmatprep.subr.bf16.mxu0 0
      %9241 = vmatpush2.bf16.msra.mxu0 0
      %9242 = vmatprep.mubr.bf16.mxu0 0
      %9243 = vmatmul.mubr.bf16.gmra.mxu0 %v9160
      %v9244 = vpop.f32.mrf.mxu0
      %v9245 = vadd.f32 0.0, %v9244
      %v9246 = vpop.f32.mrf.mxu0
      %v9247 = vpop.f32.mrf.mxu0
      %v9248 = vadd.f32 0.0, %v9247
      %v9249 = vpop.f32.mrf.mxu0
      %9250 = vmatprep.mubr.bf16.mxu0 0
      %9251 = vmatmul.mubr.bf16.gmra.mxu0 %v9163
      %v9252 = vpop.f32.mrf.mxu0
      %v9253 = vadd.f32 0.0, %v9252
      %v9254 = vpop.f32.mrf.mxu0
      %v9255 = vpop.f32.mrf.mxu0
      %v9256 = vadd.f32 0.0, %v9255
      %v9257 = vpop.f32.mrf.mxu0
      %9258 = vmatprep.mubr.bf16.mxu0 0
      %9259 = vmatmul.mubr.bf16.gmra.mxu0 %v9166
      %v9260 = vpop.f32.mrf.mxu0
      %v9261 = vadd.f32 0.0, %v9260
      %v9262 = vpop.f32.mrf.mxu0
      %v9263 = vpop.f32.mrf.mxu0
      %v9264 = vadd.f32 0.0, %v9263
      %v9265 = vpop.f32.mrf.mxu0
      %9266 = vmatprep.mubr.bf16.mxu0 0
      %9267 = vmatmul.mubr.bf16.gmra.mxu0 %v9169
      %v9268 = vpop.f32.mrf.mxu0
      %v9269 = vadd.f32 0.0, %v9268
      %v9270 = vpop.f32.mrf.mxu0
      %v9271 = vpop.f32.mrf.mxu0
      %v9272 = vadd.f32 0.0, %v9271
      %v9273 = vpop.f32.mrf.mxu0
      %9274 = vmatprep.mubr.bf16.mxu0 0
      %9275 = vmatmul.mubr.bf16.gmra.mxu0 %v9172
      %v9276 = vpop.f32.mrf.mxu0
      %v9277 = vadd.f32 0.0, %v9276
      %v9278 = vpop.f32.mrf.mxu0
      %v9279 = vpop.f32.mrf.mxu0
      %v9280 = vadd.f32 0.0, %v9279
      %v9281 = vpop.f32.mrf.mxu0
      %9282 = vmatprep.mubr.bf16.mxu0 0
      %9283 = vmatmul.mubr.bf16.gmra.mxu0 %v9175
      %v9284 = vpop.f32.mrf.mxu0
      %v9285 = vadd.f32 0.0, %v9284
      %v9286 = vpop.f32.mrf.mxu0
      %v9287 = vpop.f32.mrf.mxu0
      %v9288 = vadd.f32 0.0, %v9287
      %v9289 = vpop.f32.mrf.mxu0
      %9290 = vmatprep.mubr.bf16.mxu0 0
      %9291 = vmatmul.mubr.bf16.gmra.mxu0 %v9178
      %v9292 = vpop.f32.mrf.mxu0
      %v9293 = vadd.f32 0.0, %v9292
      %v9294 = vpop.f32.mrf.mxu0
      %v9295 = vpop.f32.mrf.mxu0
      %v9296 = vadd.f32 0.0, %v9295
      %v9297 = vpop.f32.mrf.mxu0
      %9298 = vmatprep.mubr.bf16.mxu0 0
      %9299 = vmatmul.mubr.bf16.gmra.mxu0 %v9181
      %v9300 = vpop.f32.mrf.mxu0
      %v9301 = vadd.f32 0.0, %v9300
      %v9302 = vpop.f32.mrf.mxu0
      %v9303 = vpop.f32.mrf.mxu0
      %v9304 = vadd.f32 0.0, %v9303
      %v9305 = vpop.f32.mrf.mxu0
      %9306 = vmatprep.mubr.bf16.mxu0 0
      %9307 = vmatmul.mubr.bf16.gmra.mxu0 %v9184
      %v9308 = vpop.f32.mrf.mxu0
      %v9309 = vadd.f32 0.0, %v9308
      %v9310 = vpop.f32.mrf.mxu0
      %v9311 = vpop.f32.mrf.mxu0
      %v9312 = vadd.f32 0.0, %v9311
      %v9313 = vpop.f32.mrf.mxu0
      %9314 = vmatprep.mubr.bf16.mxu0 0
      %9315 = vmatmul.mubr.bf16.gmra.mxu0 %v9187
      %v9316 = vpop.f32.mrf.mxu0
      %v9317 = vadd.f32 0.0, %v9316
      %v9318 = vpop.f32.mrf.mxu0
      %v9319 = vpop.f32.mrf.mxu0
      %v9320 = vadd.f32 0.0, %v9319
      %v9321 = vpop.f32.mrf.mxu0
      %9322 = vmatprep.mubr.bf16.mxu0 0
      %9323 = vmatmul.mubr.bf16.gmra.mxu0 %v9190
      %v9324 = vpop.f32.mrf.mxu0
      %v9325 = vadd.f32 0.0, %v9324
      %v9326 = vpop.f32.mrf.mxu0
      %v9327 = vpop.f32.mrf.mxu0
      %v9328 = vadd.f32 0.0, %v9327
      %v9329 = vpop.f32.mrf.mxu0
      %9330 = vmatprep.mubr.bf16.mxu0 0
      %9331 = vmatmul.mubr.bf16.gmra.mxu0 %v9193
      %v9332 = vpop.f32.mrf.mxu0
      %v9333 = vadd.f32 0.0, %v9332
      %v9334 = vpop.f32.mrf.mxu0
      %v9335 = vpop.f32.mrf.mxu0
      %v9336 = vadd.f32 0.0, %v9335
      %v9337 = vpop.f32.mrf.mxu0
      %9338 = vmatprep.mubr.bf16.mxu0 0
      %9339 = vmatmul.mubr.bf16.gmra.mxu0 %v9196
      %v9340 = vpop.f32.mrf.mxu0
      %v9341 = vadd.f32 0.0, %v9340
      %v9342 = vpop.f32.mrf.mxu0
      %v9343 = vpop.f32.mrf.mxu0
      %v9344 = vadd.f32 0.0, %v9343
      %v9345 = vpop.f32.mrf.mxu0
      %9346 = vmatprep.mubr.bf16.mxu0 0
      %9347 = vmatmul.mubr.bf16.gmra.mxu0 %v9199
      %v9348 = vpop.f32.mrf.mxu0
      %v9349 = vadd.f32 0.0, %v9348
      %v9350 = vpop.f32.mrf.mxu0
      %v9351 = vpop.f32.mrf.mxu0
      %v9352 = vadd.f32 0.0, %v9351
      %v9353 = vpop.f32.mrf.mxu0
      %9354 = vmatprep.mubr.bf16.mxu0 0
      %9355 = vmatmul.mubr.bf16.gmra.mxu0 %v9202
      %v9356 = vpop.f32.mrf.mxu0
      %v9357 = vadd.f32 0.0, %v9356
      %v9358 = vpop.f32.mrf.mxu0
      %v9359 = vpop.f32.mrf.mxu0
      %v9360 = vadd.f32 0.0, %v9359
      %v9361 = vpop.f32.mrf.mxu0
      %9362 = vmatprep.mubr.bf16.mxu0 0
      %9363 = vmatmul.mubr.bf16.gmra.mxu0 %v9205
      %v9364 = vpop.f32.mrf.mxu0
      %v9365 = vadd.f32 0.0, %v9364
      %v9366 = vpop.f32.mrf.mxu0
      %v9367 = vpop.f32.mrf.mxu0
      %v9368 = vadd.f32 0.0, %v9367
      %v9369 = vpop.f32.mrf.mxu0
      %9370 = vdwg.mxu0
      %v9371 = vadd.f32 %v8901, %v9245
      %v9372 = vadd.f32 %v8902, %v9248
      %v9373 = vadd.f32 %v8903, %v9253
      %v9374 = vadd.f32 %v8904, %v9256
      %v9375 = vadd.f32 %v8905, %v9261
      %v9376 = vadd.f32 %v8906, %v9264
      %v9377 = vadd.f32 %v8907, %v9269
      %v9378 = vadd.f32 %v8908, %v9272
      %v9379 = vadd.f32 %v8909, %v9277
      %v9380 = vadd.f32 %v8910, %v9280
      %v9381 = vadd.f32 %v8911, %v9285
      %v9382 = vadd.f32 %v8912, %v9288
      %v9383 = vadd.f32 %v8913, %v9293
      %v9384 = vadd.f32 %v8914, %v9296
      %v9385 = vadd.f32 %v8915, %v9301
      %v9386 = vadd.f32 %v8916, %v9304
      %v9387 = vadd.f32 %v8917, %v9309
      %v9388 = vadd.f32 %v8918, %v9312
      %v9389 = vadd.f32 %v8919, %v9317
      %v9390 = vadd.f32 %v8920, %v9320
      %v9391 = vadd.f32 %v8921, %v9325
      %v9392 = vadd.f32 %v8922, %v9328
      %v9393 = vadd.f32 %v8923, %v9333
      %v9394 = vadd.f32 %v8924, %v9336
      %v9395 = vadd.f32 %v8925, %v9341
      %v9396 = vadd.f32 %v8926, %v9344
      %v9397 = vadd.f32 %v8927, %v9349
      %v9398 = vadd.f32 %v8928, %v9352
      %v9399 = vadd.f32 %v8929, %v9357
      %v9400 = vadd.f32 %v8930, %v9360
      %v9401 = vadd.f32 %v8931, %v9365
      %v9402 = vadd.f32 %v8932, %v9368
      %s9403 = scalar_lea.vmem [#allocation3], 24
      %v9404 = vld [vmem:[%s9403] sm:$0xf]
      %v9405 = vld [vmem:[%s9403 + $0x4] sm:$0xf]
      %v9406 = vld [vmem:[%s9403 + $0xc] sm:$0xf]
      %v9407 = vld [vmem:[%s9403 + $0x10] sm:$0xf]
      %v9408 = vld [vmem:[%s9403 + $0x18] sm:$0xf]
      %v9409 = vld [vmem:[%s9403 + $0x1c] sm:$0xf]
      %v9410 = vld [vmem:[%s9403 + $0x24] sm:$0xf]
      %v9411 = vld [vmem:[%s9403 + $0x28] sm:$0xf]
      %v9412 = vld [vmem:[%s9403 + $0x30] sm:$0xf]
      %v9413 = vld [vmem:[%s9403 + $0x34] sm:$0xf]
      %v9414 = vld [vmem:[%s9403 + $0x3c] sm:$0xf]
      %v9415 = vld [vmem:[%s9403 + $0x40] sm:$0xf]
      %v9416 = vld [vmem:[%s9403 + $0x48] sm:$0xf]
      %v9417 = vld [vmem:[%s9403 + $0x4c] sm:$0xf]
      %v9418 = vld [vmem:[%s9403 + $0x54] sm:$0xf]
      %v9419 = vld [vmem:[%s9403 + $0x58] sm:$0xf]
      %v9420 = vld [vmem:[%s9403 + $0x60] sm:$0xf]
      %v9421 = vld [vmem:[%s9403 + $0x64] sm:$0xf]
      %v9422 = vld [vmem:[%s9403 + $0x6c] sm:$0xf]
      %v9423 = vld [vmem:[%s9403 + $0x70] sm:$0xf]
      %v9424 = vld [vmem:[%s9403 + $0x78] sm:$0xf]
      %v9425 = vld [vmem:[%s9403 + $0x7c] sm:$0xf]
      %v9426 = vld [vmem:[%s9403 + $0x84] sm:$0xf]
      %v9427 = vld [vmem:[%s9403 + $0x88] sm:$0xf]
      %v9428 = vld [vmem:[%s9403 + $0x90] sm:$0xf]
      %v9429 = vld [vmem:[%s9403 + $0x94] sm:$0xf]
      %v9430 = vld [vmem:[%s9403 + $0x9c] sm:$0xf]
      %v9431 = vld [vmem:[%s9403 + $0xa0] sm:$0xf]
      %v9432 = vld [vmem:[%s9403 + $0xa8] sm:$0xf]
      %v9433 = vld [vmem:[%s9403 + $0xac] sm:$0xf]
      %v9434 = vld [vmem:[%s9403 + $0xb4] sm:$0xf]
      %v9435 = vld [vmem:[%s9403 + $0xb8] sm:$0xf]
      %s9436 = scalar_lea.vmem %s5, 24
      %v9437 = vld [vmem:[%s9436] sm:$0xf]
      %v9470 = vunpack.c.l.b16 %v9404
      %v9471 = vunpack.c.l.b16 %v9405
      %v9472 = vunpack.c.l.b16 %v9406
      %v9473 = vunpack.c.l.b16 %v9407
      %v9474 = vunpack.c.l.b16 %v9408
      %v9475 = vunpack.c.l.b16 %v9409
      %v9476 = vunpack.c.l.b16 %v9410
      %v9477 = vunpack.c.l.b16 %v9411
      %v9478 = vunpack.c.l.b16 %v9412
      %v9479 = vunpack.c.l.b16 %v9413
      %v9480 = vunpack.c.l.b16 %v9414
      %v9481 = vunpack.c.l.b16 %v9415
      %v9482 = vunpack.c.l.b16 %v9416
      %v9483 = vunpack.c.l.b16 %v9417
      %v9484 = vunpack.c.l.b16 %v9418
      %v9485 = vunpack.c.l.b16 %v9419
      %v9486 = vunpack.c.l.b16 %v9420
      %v9487 = vunpack.c.l.b16 %v9421
      %v9488 = vunpack.c.l.b16 %v9422
      %v9489 = vunpack.c.l.b16 %v9423
      %v9490 = vunpack.c.l.b16 %v9424
      %v9491 = vunpack.c.l.b16 %v9425
      %v9492 = vunpack.c.l.b16 %v9426
      %v9493 = vunpack.c.l.b16 %v9427
      %v9494 = vunpack.c.l.b16 %v9428
      %v9495 = vunpack.c.l.b16 %v9429
      %v9496 = vunpack.c.l.b16 %v9430
      %v9497 = vunpack.c.l.b16 %v9431
      %v9498 = vunpack.c.l.b16 %v9432
      %v9499 = vunpack.c.l.b16 %v9433
      %v9500 = vunpack.c.l.b16 %v9434
      %v9501 = vunpack.c.l.b16 %v9435
      %v9502 = vpack.c.b16 %v9471, %v9470
      %v9503 = vpack.c.b16 %v9473, %v9472
      %v9504 = vpack.c.b16 %v9475, %v9474
      %v9505 = vpack.c.b16 %v9477, %v9476
      %v9506 = vpack.c.b16 %v9479, %v9478
      %v9507 = vpack.c.b16 %v9481, %v9480
      %v9508 = vpack.c.b16 %v9483, %v9482
      %v9509 = vpack.c.b16 %v9485, %v9484
      %v9510 = vpack.c.b16 %v9487, %v9486
      %v9511 = vpack.c.b16 %v9489, %v9488
      %v9512 = vpack.c.b16 %v9491, %v9490
      %v9513 = vpack.c.b16 %v9493, %v9492
      %v9514 = vpack.c.b16 %v9495, %v9494
      %v9515 = vpack.c.b16 %v9497, %v9496
      %v9516 = vpack.c.b16 %v9499, %v9498
      %v9517 = vpack.c.b16 %v9501, %v9500
      %v9519 = vsel %vm6889, %v9502, 0
      %v9522 = vsel %vm6889, %v9503, 0
      %v9525 = vsel %vm6889, %v9504, 0
      %v9528 = vsel %vm6889, %v9505, 0
      %v9531 = vsel %vm6889, %v9506, 0
      %v9534 = vsel %vm6889, %v9507, 0
      %v9537 = vsel %vm6889, %v9508, 0
      %v9540 = vsel %vm6889, %v9509, 0
      %v9543 = vsel %vm6889, %v9510, 0
      %v9546 = vsel %vm6889, %v9511, 0
      %v9549 = vsel %vm6889, %v9512, 0
      %v9552 = vsel %vm6889, %v9513, 0
      %v9555 = vsel %vm6889, %v9514, 0
      %v9558 = vsel %vm6889, %v9515, 0
      %v9561 = vsel %vm6889, %v9516, 0
      %v9564 = vsel %vm6889, %v9517, 0
      %v9567 = vsel %vm6938, %v9437, 0
      %9569 = vmatprep.subr.bf16.mxu0 0
      %9570 = vmatpush1.bf16.msra.mxu0 0
      %9571 = vmatprep.subr.bf16.mxu0 0
      %9572 = vmatpush1.bf16.msra.mxu0 0
      %9573 = vmatprep.subr.bf16.mxu0 0
      %9574 = vmatpush1.bf16.msra.mxu0 0
      %9575 = vmatprep.subr.bf16.mxu0 0
      %9576 = vmatpush1.bf16.msra.mxu0 0
      %9577 = vmatprep.subr.bf16.mxu0 0
      %9578 = vmatpush1.bf16.msra.mxu0 0
      %9579 = vmatprep.subr.bf16.mxu0 0
      %9580 = vmatpush1.bf16.msra.mxu0 0
      %9581 = vmatprep.subr.bf16.mxu0 0
      %9582 = vmatpush1.bf16.msra.mxu0 0
      %9583 = vmatprep.subr.bf16.mxu0 0
      %9584 = vmatpush1.bf16.msra.mxu0 %v9567
      %9585 = vmatprep.subr.bf16.mxu0 0
      %9586 = vmatpush2.bf16.msra.mxu0 0
      %9587 = vmatprep.subr.bf16.mxu0 0
      %9588 = vmatpush2.bf16.msra.mxu0 0
      %9589 = vmatprep.subr.bf16.mxu0 0
      %9590 = vmatpush2.bf16.msra.mxu0 0
      %9591 = vmatprep.subr.bf16.mxu0 0
      %9592 = vmatpush2.bf16.msra.mxu0 0
      %9593 = vmatprep.subr.bf16.mxu0 0
      %9594 = vmatpush2.bf16.msra.mxu0 0
      %9595 = vmatprep.subr.bf16.mxu0 0
      %9596 = vmatpush2.bf16.msra.mxu0 0
      %9597 = vmatprep.subr.bf16.mxu0 0
      %9598 = vmatpush2.bf16.msra.mxu0 0
      %9599 = vmatprep.subr.bf16.mxu0 0
      %9600 = vmatpush2.bf16.msra.mxu0 0
      %9601 = vmatprep.mubr.bf16.mxu0 0
      %9602 = vmatmul.mubr.bf16.gmra.mxu0 %v9519
      %v9603 = vpop.f32.mrf.mxu0
      %v9604 = vadd.f32 0.0, %v9603
      %v9605 = vpop.f32.mrf.mxu0
      %v9606 = vpop.f32.mrf.mxu0
      %v9607 = vadd.f32 0.0, %v9606
      %v9608 = vpop.f32.mrf.mxu0
      %9609 = vmatprep.mubr.bf16.mxu0 0
      %9610 = vmatmul.mubr.bf16.gmra.mxu0 %v9522
      %v9611 = vpop.f32.mrf.mxu0
      %v9612 = vadd.f32 0.0, %v9611
      %v9613 = vpop.f32.mrf.mxu0
      %v9614 = vpop.f32.mrf.mxu0
      %v9615 = vadd.f32 0.0, %v9614
      %v9616 = vpop.f32.mrf.mxu0
      %9617 = vmatprep.mubr.bf16.mxu0 0
      %9618 = vmatmul.mubr.bf16.gmra.mxu0 %v9525
      %v9619 = vpop.f32.mrf.mxu0
      %v9620 = vadd.f32 0.0, %v9619
      %v9621 = vpop.f32.mrf.mxu0
      %v9622 = vpop.f32.mrf.mxu0
      %v9623 = vadd.f32 0.0, %v9622
      %v9624 = vpop.f32.mrf.mxu0
      %9625 = vmatprep.mubr.bf16.mxu0 0
      %9626 = vmatmul.mubr.bf16.gmra.mxu0 %v9528
      %v9627 = vpop.f32.mrf.mxu0
      %v9628 = vadd.f32 0.0, %v9627
      %v9629 = vpop.f32.mrf.mxu0
      %v9630 = vpop.f32.mrf.mxu0
      %v9631 = vadd.f32 0.0, %v9630
      %v9632 = vpop.f32.mrf.mxu0
      %9633 = vmatprep.mubr.bf16.mxu0 0
      %9634 = vmatmul.mubr.bf16.gmra.mxu0 %v9531
      %v9635 = vpop.f32.mrf.mxu0
      %v9636 = vadd.f32 0.0, %v9635
      %v9637 = vpop.f32.mrf.mxu0
      %v9638 = vpop.f32.mrf.mxu0
      %v9639 = vadd.f32 0.0, %v9638
      %v9640 = vpop.f32.mrf.mxu0
      %9641 = vmatprep.mubr.bf16.mxu0 0
      %9642 = vmatmul.mubr.bf16.gmra.mxu0 %v9534
      %v9643 = vpop.f32.mrf.mxu0
      %v9644 = vadd.f32 0.0, %v9643
      %v9645 = vpop.f32.mrf.mxu0
      %v9646 = vpop.f32.mrf.mxu0
      %v9647 = vadd.f32 0.0, %v9646
      %v9648 = vpop.f32.mrf.mxu0
      %9649 = vmatprep.mubr.bf16.mxu0 0
      %9650 = vmatmul.mubr.bf16.gmra.mxu0 %v9537
      %v9651 = vpop.f32.mrf.mxu0
      %v9652 = vadd.f32 0.0, %v9651
      %v9653 = vpop.f32.mrf.mxu0
      %v9654 = vpop.f32.mrf.mxu0
      %v9655 = vadd.f32 0.0, %v9654
      %v9656 = vpop.f32.mrf.mxu0
      %9657 = vmatprep.mubr.bf16.mxu0 0
      %9658 = vmatmul.mubr.bf16.gmra.mxu0 %v9540
      %v9659 = vpop.f32.mrf.mxu0
      %v9660 = vadd.f32 0.0, %v9659
      %v9661 = vpop.f32.mrf.mxu0
      %v9662 = vpop.f32.mrf.mxu0
      %v9663 = vadd.f32 0.0, %v9662
      %v9664 = vpop.f32.mrf.mxu0
      %9665 = vmatprep.mubr.bf16.mxu0 0
      %9666 = vmatmul.mubr.bf16.gmra.mxu0 %v9543
      %v9667 = vpop.f32.mrf.mxu0
      %v9668 = vadd.f32 0.0, %v9667
      %v9669 = vpop.f32.mrf.mxu0
      %v9670 = vpop.f32.mrf.mxu0
      %v9671 = vadd.f32 0.0, %v9670
      %v9672 = vpop.f32.mrf.mxu0
      %9673 = vmatprep.mubr.bf16.mxu0 0
      %9674 = vmatmul.mubr.bf16.gmra.mxu0 %v9546
      %v9675 = vpop.f32.mrf.mxu0
      %v9676 = vadd.f32 0.0, %v9675
      %v9677 = vpop.f32.mrf.mxu0
      %v9678 = vpop.f32.mrf.mxu0
      %v9679 = vadd.f32 0.0, %v9678
      %v9680 = vpop.f32.mrf.mxu0
      %9681 = vmatprep.mubr.bf16.mxu0 0
      %9682 = vmatmul.mubr.bf16.gmra.mxu0 %v9549
      %v9683 = vpop.f32.mrf.mxu0
      %v9684 = vadd.f32 0.0, %v9683
      %v9685 = vpop.f32.mrf.mxu0
      %v9686 = vpop.f32.mrf.mxu0
      %v9687 = vadd.f32 0.0, %v9686
      %v9688 = vpop.f32.mrf.mxu0
      %9689 = vmatprep.mubr.bf16.mxu0 0
      %9690 = vmatmul.mubr.bf16.gmra.mxu0 %v9552
      %v9691 = vpop.f32.mrf.mxu0
      %v9692 = vadd.f32 0.0, %v9691
      %v9693 = vpop.f32.mrf.mxu0
      %v9694 = vpop.f32.mrf.mxu0
      %v9695 = vadd.f32 0.0, %v9694
      %v9696 = vpop.f32.mrf.mxu0
      %9697 = vmatprep.mubr.bf16.mxu0 0
      %9698 = vmatmul.mubr.bf16.gmra.mxu0 %v9555
      %v9699 = vpop.f32.mrf.mxu0
      %v9700 = vadd.f32 0.0, %v9699
      %v9701 = vpop.f32.mrf.mxu0
      %v9702 = vpop.f32.mrf.mxu0
      %v9703 = vadd.f32 0.0, %v9702
      %v9704 = vpop.f32.mrf.mxu0
      %9705 = vmatprep.mubr.bf16.mxu0 0
      %9706 = vmatmul.mubr.bf16.gmra.mxu0 %v9558
      %v9707 = vpop.f32.mrf.mxu0
      %v9708 = vadd.f32 0.0, %v9707
      %v9709 = vpop.f32.mrf.mxu0
      %v9710 = vpop.f32.mrf.mxu0
      %v9711 = vadd.f32 0.0, %v9710
      %v9712 = vpop.f32.mrf.mxu0
      %9713 = vmatprep.mubr.bf16.mxu0 0
      %9714 = vmatmul.mubr.bf16.gmra.mxu0 %v9561
      %v9715 = vpop.f32.mrf.mxu0
      %v9716 = vadd.f32 0.0, %v9715
      %v9717 = vpop.f32.mrf.mxu0
      %v9718 = vpop.f32.mrf.mxu0
      %v9719 = vadd.f32 0.0, %v9718
      %v9720 = vpop.f32.mrf.mxu0
      %9721 = vmatprep.mubr.bf16.mxu0 0
      %9722 = vmatmul.mubr.bf16.gmra.mxu0 %v9564
      %v9723 = vpop.f32.mrf.mxu0
      %v9724 = vadd.f32 0.0, %v9723
      %v9725 = vpop.f32.mrf.mxu0
      %v9726 = vpop.f32.mrf.mxu0
      %v9727 = vadd.f32 0.0, %v9726
      %v9728 = vpop.f32.mrf.mxu0
      %9729 = vdwg.mxu0
      %v9730 = vadd.f32 %v9371, %v9604
      %v9731 = vadd.f32 %v9372, %v9607
      %v9732 = vadd.f32 %v9373, %v9612
      %v9733 = vadd.f32 %v9374, %v9615
      %v9734 = vadd.f32 %v9375, %v9620
      %v9735 = vadd.f32 %v9376, %v9623
      %v9736 = vadd.f32 %v9377, %v9628
      %v9737 = vadd.f32 %v9378, %v9631
      %v9738 = vadd.f32 %v9379, %v9636
      %v9739 = vadd.f32 %v9380, %v9639
      %v9740 = vadd.f32 %v9381, %v9644
      %v9741 = vadd.f32 %v9382, %v9647
      %v9742 = vadd.f32 %v9383, %v9652
      %v9743 = vadd.f32 %v9384, %v9655
      %v9744 = vadd.f32 %v9385, %v9660
      %v9745 = vadd.f32 %v9386, %v9663
      %v9746 = vadd.f32 %v9387, %v9668
      %v9747 = vadd.f32 %v9388, %v9671
      %v9748 = vadd.f32 %v9389, %v9676
      %v9749 = vadd.f32 %v9390, %v9679
      %v9750 = vadd.f32 %v9391, %v9684
      %v9751 = vadd.f32 %v9392, %v9687
      %v9752 = vadd.f32 %v9393, %v9692
      %v9753 = vadd.f32 %v9394, %v9695
      %v9754 = vadd.f32 %v9395, %v9700
      %v9755 = vadd.f32 %v9396, %v9703
      %v9756 = vadd.f32 %v9397, %v9708
      %v9757 = vadd.f32 %v9398, %v9711
      %v9758 = vadd.f32 %v9399, %v9716
      %v9759 = vadd.f32 %v9400, %v9719
      %v9760 = vadd.f32 %v9401, %v9724
      %v9761 = vadd.f32 %v9402, %v9727
      %v9762 = vld [vmem:[%s9403] sm:$0xf]
      %v9763 = vld [vmem:[%s9403 + $0x4] sm:$0xf]
      %v9764 = vld [vmem:[%s9403 + $0x8] sm:$0x1]
      %v9765 = vld [vmem:[%s9403 + $0xc] sm:$0xf]
      %v9766 = vld [vmem:[%s9403 + $0x10] sm:$0xf]
      %v9767 = vld [vmem:[%s9403 + $0x14] sm:$0x1]
      %v9768 = vld [vmem:[%s9403 + $0x18] sm:$0xf]
      %v9769 = vld [vmem:[%s9403 + $0x1c] sm:$0xf]
      %v9770 = vld [vmem:[%s9403 + $0x20] sm:$0x1]
      %v9771 = vld [vmem:[%s9403 + $0x24] sm:$0xf]
      %v9772 = vld [vmem:[%s9403 + $0x28] sm:$0xf]
      %v9773 = vld [vmem:[%s9403 + $0x2c] sm:$0x1]
      %v9774 = vld [vmem:[%s9403 + $0x30] sm:$0xf]
      %v9775 = vld [vmem:[%s9403 + $0x34] sm:$0xf]
      %v9776 = vld [vmem:[%s9403 + $0x38] sm:$0x1]
      %v9777 = vld [vmem:[%s9403 + $0x3c] sm:$0xf]
      %v9778 = vld [vmem:[%s9403 + $0x40] sm:$0xf]
      %v9779 = vld [vmem:[%s9403 + $0x44] sm:$0x1]
      %v9780 = vld [vmem:[%s9403 + $0x48] sm:$0xf]
      %v9781 = vld [vmem:[%s9403 + $0x4c] sm:$0xf]
      %v9782 = vld [vmem:[%s9403 + $0x50] sm:$0x1]
      %v9783 = vld [vmem:[%s9403 + $0x54] sm:$0xf]
      %v9784 = vld [vmem:[%s9403 + $0x58] sm:$0xf]
      %v9785 = vld [vmem:[%s9403 + $0x5c] sm:$0x1]
      %v9786 = vld [vmem:[%s9403 + $0x60] sm:$0xf]
      %v9787 = vld [vmem:[%s9403 + $0x64] sm:$0xf]
      %v9788 = vld [vmem:[%s9403 + $0x68] sm:$0x1]
      %v9789 = vld [vmem:[%s9403 + $0x6c] sm:$0xf]
      %v9790 = vld [vmem:[%s9403 + $0x70] sm:$0xf]
      %v9791 = vld [vmem:[%s9403 + $0x74] sm:$0x1]
      %v9792 = vld [vmem:[%s9403 + $0x78] sm:$0xf]
      %v9793 = vld [vmem:[%s9403 + $0x7c] sm:$0xf]
      %v9794 = vld [vmem:[%s9403 + $0x80] sm:$0x1]
      %v9795 = vld [vmem:[%s9403 + $0x84] sm:$0xf]
      %v9796 = vld [vmem:[%s9403 + $0x88] sm:$0xf]
      %v9797 = vld [vmem:[%s9403 + $0x8c] sm:$0x1]
      %v9798 = vld [vmem:[%s9403 + $0x90] sm:$0xf]
      %v9799 = vld [vmem:[%s9403 + $0x94] sm:$0xf]
      %v9800 = vld [vmem:[%s9403 + $0x98] sm:$0x1]
      %v9801 = vld [vmem:[%s9403 + $0x9c] sm:$0xf]
      %v9802 = vld [vmem:[%s9403 + $0xa0] sm:$0xf]
      %v9803 = vld [vmem:[%s9403 + $0xa4] sm:$0x1]
      %v9804 = vld [vmem:[%s9403 + $0xa8] sm:$0xf]
      %v9805 = vld [vmem:[%s9403 + $0xac] sm:$0xf]
      %v9806 = vld [vmem:[%s9403 + $0xb0] sm:$0x1]
      %v9807 = vld [vmem:[%s9403 + $0xb4] sm:$0xf]
      %v9808 = vld [vmem:[%s9403 + $0xb8] sm:$0xf]
      %v9809 = vld [vmem:[%s9403 + $0xbc] sm:$0x1]
      %v9811 = vshrl.u32 %v9762, 16
      %v9813 = vrot.slane %v9811, 4
      %v9814 = vshll.u32 %v9762, 16
      %v9816 = vrot.slane %v9814, 5
      %v9817 = vor.u32 %v9813, %v9816
      %v9818 = vrot.slane %v9817, 4
      %v9820 = vshll.u32 %v9763, 16
      %v9822 = vrot.slane %v9820, 5
      %v9823 = vsel %vm1190, %v9818, %v9822
      %v9824 = vshrl.u32 %v9763, 16
      %v9826 = vrot.slane %v9824, 4
      %v9827 = vor.u32 %v9826, %v9822
      %v9828 = vrot.slane %v9827, 4
      %v9830 = vshll.u32 %v9764, 16
      %v9832 = vrot.slane %v9830, 5
      %v9833 = vsel %vm1190, %v9828, %v9832
      %v9835 = vshrl.u32 %v9765, 16
      %v9837 = vrot.slane %v9835, 4
      %v9838 = vshll.u32 %v9765, 16
      %v9840 = vrot.slane %v9838, 5
      %v9841 = vor.u32 %v9837, %v9840
      %v9842 = vrot.slane %v9841, 4
      %v9844 = vshll.u32 %v9766, 16
      %v9846 = vrot.slane %v9844, 5
      %v9847 = vsel %vm1190, %v9842, %v9846
      %v9848 = vshrl.u32 %v9766, 16
      %v9850 = vrot.slane %v9848, 4
      %v9851 = vor.u32 %v9850, %v9846
      %v9852 = vrot.slane %v9851, 4
      %v9854 = vshll.u32 %v9767, 16
      %v9856 = vrot.slane %v9854, 5
      %v9857 = vsel %vm1190, %v9852, %v9856
      %v9859 = vshrl.u32 %v9768, 16
      %v9861 = vrot.slane %v9859, 4
      %v9862 = vshll.u32 %v9768, 16
      %v9864 = vrot.slane %v9862, 5
      %v9865 = vor.u32 %v9861, %v9864
      %v9866 = vrot.slane %v9865, 4
      %v9868 = vshll.u32 %v9769, 16
      %v9870 = vrot.slane %v9868, 5
      %v9871 = vsel %vm1190, %v9866, %v9870
      %v9872 = vshrl.u32 %v9769, 16
      %v9874 = vrot.slane %v9872, 4
      %v9875 = vor.u32 %v9874, %v9870
      %v9876 = vrot.slane %v9875, 4
      %v9878 = vshll.u32 %v9770, 16
      %v9880 = vrot.slane %v9878, 5
      %v9881 = vsel %vm1190, %v9876, %v9880
      %v9883 = vshrl.u32 %v9771, 16
      %v9885 = vrot.slane %v9883, 4
      %v9886 = vshll.u32 %v9771, 16
      %v9888 = vrot.slane %v9886, 5
      %v9889 = vor.u32 %v9885, %v9888
      %v9890 = vrot.slane %v9889, 4
      %v9892 = vshll.u32 %v9772, 16
      %v9894 = vrot.slane %v9892, 5
      %v9895 = vsel %vm1190, %v9890, %v9894
      %v9896 = vshrl.u32 %v9772, 16
      %v9898 = vrot.slane %v9896, 4
      %v9899 = vor.u32 %v9898, %v9894
      %v9900 = vrot.slane %v9899, 4
      %v9902 = vshll.u32 %v9773, 16
      %v9904 = vrot.slane %v9902, 5
      %v9905 = vsel %vm1190, %v9900, %v9904
      %v9907 = vshrl.u32 %v9774, 16
      %v9909 = vrot.slane %v9907, 4
      %v9910 = vshll.u32 %v9774, 16
      %v9912 = vrot.slane %v9910, 5
      %v9913 = vor.u32 %v9909, %v9912
      %v9914 = vrot.slane %v9913, 4
      %v9916 = vshll.u32 %v9775, 16
      %v9918 = vrot.slane %v9916, 5
      %v9919 = vsel %vm1190, %v9914, %v9918
      %v9920 = vshrl.u32 %v9775, 16
      %v9922 = vrot.slane %v9920, 4
      %v9923 = vor.u32 %v9922, %v9918
      %v9924 = vrot.slane %v9923, 4
      %v9926 = vshll.u32 %v9776, 16
      %v9928 = vrot.slane %v9926, 5
      %v9929 = vsel %vm1190, %v9924, %v9928
      %v9931 = vshrl.u32 %v9777, 16
      %v9933 = vrot.slane %v9931, 4
      %v9934 = vshll.u32 %v9777, 16
      %v9936 = vrot.slane %v9934, 5
      %v9937 = vor.u32 %v9933, %v9936
      %v9938 = vrot.slane %v9937, 4
      %v9940 = vshll.u32 %v9778, 16
      %v9942 = vrot.slane %v9940, 5
      %v9943 = vsel %vm1190, %v9938, %v9942
      %v9944 = vshrl.u32 %v9778, 16
      %v9946 = vrot.slane %v9944, 4
      %v9947 = vor.u32 %v9946, %v9942
      %v9948 = vrot.slane %v9947, 4
      %v9950 = vshll.u32 %v9779, 16
      %v9952 = vrot.slane %v9950, 5
      %v9953 = vsel %vm1190, %v9948, %v9952
      %v9955 = vshrl.u32 %v9780, 16
      %v9957 = vrot.slane %v9955, 4
      %v9958 = vshll.u32 %v9780, 16
      %v9960 = vrot.slane %v9958, 5
      %v9961 = vor.u32 %v9957, %v9960
      %v9962 = vrot.slane %v9961, 4
      %v9964 = vshll.u32 %v9781, 16
      %v9966 = vrot.slane %v9964, 5
      %v9967 = vsel %vm1190, %v9962, %v9966
      %v9968 = vshrl.u32 %v9781, 16
      %v9970 = vrot.slane %v9968, 4
      %v9971 = vor.u32 %v9970, %v9966
      %v9972 = vrot.slane %v9971, 4
      %v9974 = vshll.u32 %v9782, 16
      %v9976 = vrot.slane %v9974, 5
      %v9977 = vsel %vm1190, %v9972, %v9976
      %v9979 = vshrl.u32 %v9783, 16
      %v9981 = vrot.slane %v9979, 4
      %v9982 = vshll.u32 %v9783, 16
      %v9984 = vrot.slane %v9982, 5
      %v9985 = vor.u32 %v9981, %v9984
      %v9986 = vrot.slane %v9985, 4
      %v9988 = vshll.u32 %v9784, 16
      %v9990 = vrot.slane %v9988, 5
      %v9991 = vsel %vm1190, %v9986, %v9990
      %v9992 = vshrl.u32 %v9784, 16
      %v9994 = vrot.slane %v9992, 4
      %v9995 = vor.u32 %v9994, %v9990
      %v9996 = vrot.slane %v9995, 4
      %v9998 = vshll.u32 %v9785, 16
      %v10000 = vrot.slane %v9998, 5
      %v10001 = vsel %vm1190, %v9996, %v10000
      %v10003 = vshrl.u32 %v9786, 16
      %v10005 = vrot.slane %v10003, 4
      %v10006 = vshll.u32 %v9786, 16
      %v10008 = vrot.slane %v10006, 5
      %v10009 = vor.u32 %v10005, %v10008
      %v10010 = vrot.slane %v10009, 4
      %v10012 = vshll.u32 %v9787, 16
      %v10014 = vrot.slane %v10012, 5
      %v10015 = vsel %vm1190, %v10010, %v10014
      %v10016 = vshrl.u32 %v9787, 16
      %v10018 = vrot.slane %v10016, 4
      %v10019 = vor.u32 %v10018, %v10014
      %v10020 = vrot.slane %v10019, 4
      %v10022 = vshll.u32 %v9788, 16
      %v10024 = vrot.slane %v10022, 5
      %v10025 = vsel %vm1190, %v10020, %v10024
      %v10027 = vshrl.u32 %v9789, 16
      %v10029 = vrot.slane %v10027, 4
      %v10030 = vshll.u32 %v9789, 16
      %v10032 = vrot.slane %v10030, 5
      %v10033 = vor.u32 %v10029, %v10032
      %v10034 = vrot.slane %v10033, 4
      %v10036 = vshll.u32 %v9790, 16
      %v10038 = vrot.slane %v10036, 5
      %v10039 = vsel %vm1190, %v10034, %v10038
      %v10040 = vshrl.u32 %v9790, 16
      %v10042 = vrot.slane %v10040, 4
      %v10043 = vor.u32 %v10042, %v10038
      %v10044 = vrot.slane %v10043, 4
      %v10046 = vshll.u32 %v9791, 16
      %v10048 = vrot.slane %v10046, 5
      %v10049 = vsel %vm1190, %v10044, %v10048
      %v10051 = vshrl.u32 %v9792, 16
      %v10053 = vrot.slane %v10051, 4
      %v10054 = vshll.u32 %v9792, 16
      %v10056 = vrot.slane %v10054, 5
      %v10057 = vor.u32 %v10053, %v10056
      %v10058 = vrot.slane %v10057, 4
      %v10060 = vshll.u32 %v9793, 16
      %v10062 = vrot.slane %v10060, 5
      %v10063 = vsel %vm1190, %v10058, %v10062
      %v10064 = vshrl.u32 %v9793, 16
      %v10066 = vrot.slane %v10064, 4
      %v10067 = vor.u32 %v10066, %v10062
      %v10068 = vrot.slane %v10067, 4
      %v10070 = vshll.u32 %v9794, 16
      %v10072 = vrot.slane %v10070, 5
      %v10073 = vsel %vm1190, %v10068, %v10072
      %v10075 = vshrl.u32 %v9795, 16
      %v10077 = vrot.slane %v10075, 4
      %v10078 = vshll.u32 %v9795, 16
      %v10080 = vrot.slane %v10078, 5
      %v10081 = vor.u32 %v10077, %v10080
      %v10082 = vrot.slane %v10081, 4
      %v10084 = vshll.u32 %v9796, 16
      %v10086 = vrot.slane %v10084, 5
      %v10087 = vsel %vm1190, %v10082, %v10086
      %v10088 = vshrl.u32 %v9796, 16
      %v10090 = vrot.slane %v10088, 4
      %v10091 = vor.u32 %v10090, %v10086
      %v10092 = vrot.slane %v10091, 4
      %v10094 = vshll.u32 %v9797, 16
      %v10096 = vrot.slane %v10094, 5
      %v10097 = vsel %vm1190, %v10092, %v10096
      %v10099 = vshrl.u32 %v9798, 16
      %v10101 = vrot.slane %v10099, 4
      %v10102 = vshll.u32 %v9798, 16
      %v10104 = vrot.slane %v10102, 5
      %v10105 = vor.u32 %v10101, %v10104
      %v10106 = vrot.slane %v10105, 4
      %v10108 = vshll.u32 %v9799, 16
      %v10110 = vrot.slane %v10108, 5
      %v10111 = vsel %vm1190, %v10106, %v10110
      %v10112 = vshrl.u32 %v9799, 16
      %v10114 = vrot.slane %v10112, 4
      %v10115 = vor.u32 %v10114, %v10110
      %v10116 = vrot.slane %v10115, 4
      %v10118 = vshll.u32 %v9800, 16
      %v10120 = vrot.slane %v10118, 5
      %v10121 = vsel %vm1190, %v10116, %v10120
      %v10123 = vshrl.u32 %v9801, 16
      %v10125 = vrot.slane %v10123, 4
      %v10126 = vshll.u32 %v9801, 16
      %v10128 = vrot.slane %v10126, 5
      %v10129 = vor.u32 %v10125, %v10128
      %v10130 = vrot.slane %v10129, 4
      %v10132 = vshll.u32 %v9802, 16
      %v10134 = vrot.slane %v10132, 5
      %v10135 = vsel %vm1190, %v10130, %v10134
      %v10136 = vshrl.u32 %v9802, 16
      %v10138 = vrot.slane %v10136, 4
      %v10139 = vor.u32 %v10138, %v10134
      %v10140 = vrot.slane %v10139, 4
      %v10142 = vshll.u32 %v9803, 16
      %v10144 = vrot.slane %v10142, 5
      %v10145 = vsel %vm1190, %v10140, %v10144
      %v10147 = vshrl.u32 %v9804, 16
      %v10149 = vrot.slane %v10147, 4
      %v10150 = vshll.u32 %v9804, 16
      %v10152 = vrot.slane %v10150, 5
      %v10153 = vor.u32 %v10149, %v10152
      %v10154 = vrot.slane %v10153, 4
      %v10156 = vshll.u32 %v9805, 16
      %v10158 = vrot.slane %v10156, 5
      %v10159 = vsel %vm1190, %v10154, %v10158
      %v10160 = vshrl.u32 %v9805, 16
      %v10162 = vrot.slane %v10160, 4
      %v10163 = vor.u32 %v10162, %v10158
      %v10164 = vrot.slane %v10163, 4
      %v10166 = vshll.u32 %v9806, 16
      %v10168 = vrot.slane %v10166, 5
      %v10169 = vsel %vm1190, %v10164, %v10168
      %v10171 = vshrl.u32 %v9807, 16
      %v10173 = vrot.slane %v10171, 4
      %v10174 = vshll.u32 %v9807, 16
      %v10176 = vrot.slane %v10174, 5
      %v10177 = vor.u32 %v10173, %v10176
      %v10178 = vrot.slane %v10177, 4
      %v10180 = vshll.u32 %v9808, 16
      %v10182 = vrot.slane %v10180, 5
      %v10183 = vsel %vm1190, %v10178, %v10182
      %v10184 = vshrl.u32 %v9808, 16
      %v10186 = vrot.slane %v10184, 4
      %v10187 = vor.u32 %v10186, %v10182
      %v10188 = vrot.slane %v10187, 4
      %v10190 = vshll.u32 %v9809, 16
      %v10192 = vrot.slane %v10190, 5
      %v10193 = vsel %vm1190, %v10188, %v10192
      %s10194 = scalar_lea.vmem %s5, 28
      %v10195 = vld [vmem:[%s10194] sm:$0xf]
      %v10196 = vunpack.c.l.b16 %v9823
      %v10197 = vunpack.c.l.b16 %v9833
      %v10198 = vunpack.c.l.b16 %v9847
      %v10199 = vunpack.c.l.b16 %v9857
      %v10200 = vunpack.c.l.b16 %v9871
      %v10201 = vunpack.c.l.b16 %v9881
      %v10202 = vunpack.c.l.b16 %v9895
      %v10203 = vunpack.c.l.b16 %v9905
      %v10204 = vunpack.c.l.b16 %v9919
      %v10205 = vunpack.c.l.b16 %v9929
      %v10206 = vunpack.c.l.b16 %v9943
      %v10207 = vunpack.c.l.b16 %v9953
      %v10208 = vunpack.c.l.b16 %v9967
      %v10209 = vunpack.c.l.b16 %v9977
      %v10210 = vunpack.c.l.b16 %v9991
      %v10211 = vunpack.c.l.b16 %v10001
      %v10212 = vunpack.c.l.b16 %v10015
      %v10213 = vunpack.c.l.b16 %v10025
      %v10214 = vunpack.c.l.b16 %v10039
      %v10215 = vunpack.c.l.b16 %v10049
      %v10216 = vunpack.c.l.b16 %v10063
      %v10217 = vunpack.c.l.b16 %v10073
      %v10218 = vunpack.c.l.b16 %v10087
      %v10219 = vunpack.c.l.b16 %v10097
      %v10220 = vunpack.c.l.b16 %v10111
      %v10221 = vunpack.c.l.b16 %v10121
      %v10222 = vunpack.c.l.b16 %v10135
      %v10223 = vunpack.c.l.b16 %v10145
      %v10224 = vunpack.c.l.b16 %v10159
      %v10225 = vunpack.c.l.b16 %v10169
      %v10226 = vunpack.c.l.b16 %v10183
      %v10227 = vunpack.c.l.b16 %v10193
      %v10228 = vpack.c.b16 %v10197, %v10196
      %v10229 = vpack.c.b16 %v10199, %v10198
      %v10230 = vpack.c.b16 %v10201, %v10200
      %v10231 = vpack.c.b16 %v10203, %v10202
      %v10232 = vpack.c.b16 %v10205, %v10204
      %v10233 = vpack.c.b16 %v10207, %v10206
      %v10234 = vpack.c.b16 %v10209, %v10208
      %v10235 = vpack.c.b16 %v10211, %v10210
      %v10236 = vpack.c.b16 %v10213, %v10212
      %v10237 = vpack.c.b16 %v10215, %v10214
      %v10238 = vpack.c.b16 %v10217, %v10216
      %v10239 = vpack.c.b16 %v10219, %v10218
      %v10240 = vpack.c.b16 %v10221, %v10220
      %v10241 = vpack.c.b16 %v10223, %v10222
      %v10242 = vpack.c.b16 %v10225, %v10224
      %v10243 = vpack.c.b16 %v10227, %v10226
      %v10245 = vsel %vm6889, %v10228, 0
      %v10248 = vsel %vm6889, %v10229, 0
      %v10251 = vsel %vm6889, %v10230, 0
      %v10254 = vsel %vm6889, %v10231, 0
      %v10257 = vsel %vm6889, %v10232, 0
      %v10260 = vsel %vm6889, %v10233, 0
      %v10263 = vsel %vm6889, %v10234, 0
      %v10266 = vsel %vm6889, %v10235, 0
      %v10269 = vsel %vm6889, %v10236, 0
      %v10272 = vsel %vm6889, %v10237, 0
      %v10275 = vsel %vm6889, %v10238, 0
      %v10278 = vsel %vm6889, %v10239, 0
      %v10281 = vsel %vm6889, %v10240, 0
      %v10284 = vsel %vm6889, %v10241, 0
      %v10287 = vsel %vm6889, %v10242, 0
      %v10290 = vsel %vm6889, %v10243, 0
      %v10293 = vsel %vm6938, %v10195, 0
      %10295 = vmatprep.subr.bf16.mxu0 0
      %10296 = vmatpush1.bf16.msra.mxu0 0
      %10297 = vmatprep.subr.bf16.mxu0 0
      %10298 = vmatpush1.bf16.msra.mxu0 0
      %10299 = vmatprep.subr.bf16.mxu0 0
      %10300 = vmatpush1.bf16.msra.mxu0 0
      %10301 = vmatprep.subr.bf16.mxu0 0
      %10302 = vmatpush1.bf16.msra.mxu0 0
      %10303 = vmatprep.subr.bf16.mxu0 0
      %10304 = vmatpush1.bf16.msra.mxu0 0
      %10305 = vmatprep.subr.bf16.mxu0 0
      %10306 = vmatpush1.bf16.msra.mxu0 0
      %10307 = vmatprep.subr.bf16.mxu0 0
      %10308 = vmatpush1.bf16.msra.mxu0 0
      %10309 = vmatprep.subr.bf16.mxu0 0
      %10310 = vmatpush1.bf16.msra.mxu0 %v10293
      %10311 = vmatprep.subr.bf16.mxu0 0
      %10312 = vmatpush2.bf16.msra.mxu0 0
      %10313 = vmatprep.subr.bf16.mxu0 0
      %10314 = vmatpush2.bf16.msra.mxu0 0
      %10315 = vmatprep.subr.bf16.mxu0 0
      %10316 = vmatpush2.bf16.msra.mxu0 0
      %10317 = vmatprep.subr.bf16.mxu0 0
      %10318 = vmatpush2.bf16.msra.mxu0 0
      %10319 = vmatprep.subr.bf16.mxu0 0
      %10320 = vmatpush2.bf16.msra.mxu0 0
      %10321 = vmatprep.subr.bf16.mxu0 0
      %10322 = vmatpush2.bf16.msra.mxu0 0
      %10323 = vmatprep.subr.bf16.mxu0 0
      %10324 = vmatpush2.bf16.msra.mxu0 0
      %10325 = vmatprep.subr.bf16.mxu0 0
      %10326 = vmatpush2.bf16.msra.mxu0 0
      %10327 = vmatprep.mubr.bf16.mxu0 0
      %10328 = vmatmul.mubr.bf16.gmra.mxu0 %v10245
      %v10329 = vpop.f32.mrf.mxu0
      %v10330 = vadd.f32 0.0, %v10329
      %v10331 = vpop.f32.mrf.mxu0
      %v10332 = vpop.f32.mrf.mxu0
      %v10333 = vadd.f32 0.0, %v10332
      %v10334 = vpop.f32.mrf.mxu0
      %10335 = vmatprep.mubr.bf16.mxu0 0
      %10336 = vmatmul.mubr.bf16.gmra.mxu0 %v10248
      %v10337 = vpop.f32.mrf.mxu0
      %v10338 = vadd.f32 0.0, %v10337
      %v10339 = vpop.f32.mrf.mxu0
      %v10340 = vpop.f32.mrf.mxu0
      %v10341 = vadd.f32 0.0, %v10340
      %v10342 = vpop.f32.mrf.mxu0
      %10343 = vmatprep.mubr.bf16.mxu0 0
      %10344 = vmatmul.mubr.bf16.gmra.mxu0 %v10251
      %v10345 = vpop.f32.mrf.mxu0
      %v10346 = vadd.f32 0.0, %v10345
      %v10347 = vpop.f32.mrf.mxu0
      %v10348 = vpop.f32.mrf.mxu0
      %v10349 = vadd.f32 0.0, %v10348
      %v10350 = vpop.f32.mrf.mxu0
      %10351 = vmatprep.mubr.bf16.mxu0 0
      %10352 = vmatmul.mubr.bf16.gmra.mxu0 %v10254
      %v10353 = vpop.f32.mrf.mxu0
      %v10354 = vadd.f32 0.0, %v10353
      %v10355 = vpop.f32.mrf.mxu0
      %v10356 = vpop.f32.mrf.mxu0
      %v10357 = vadd.f32 0.0, %v10356
      %v10358 = vpop.f32.mrf.mxu0
      %10359 = vmatprep.mubr.bf16.mxu0 0
      %10360 = vmatmul.mubr.bf16.gmra.mxu0 %v10257
      %v10361 = vpop.f32.mrf.mxu0
      %v10362 = vadd.f32 0.0, %v10361
      %v10363 = vpop.f32.mrf.mxu0
      %v10364 = vpop.f32.mrf.mxu0
      %v10365 = vadd.f32 0.0, %v10364
      %v10366 = vpop.f32.mrf.mxu0
      %10367 = vmatprep.mubr.bf16.mxu0 0
      %10368 = vmatmul.mubr.bf16.gmra.mxu0 %v10260
      %v10369 = vpop.f32.mrf.mxu0
      %v10370 = vadd.f32 0.0, %v10369
      %v10371 = vpop.f32.mrf.mxu0
      %v10372 = vpop.f32.mrf.mxu0
      %v10373 = vadd.f32 0.0, %v10372
      %v10374 = vpop.f32.mrf.mxu0
      %10375 = vmatprep.mubr.bf16.mxu0 0
      %10376 = vmatmul.mubr.bf16.gmra.mxu0 %v10263
      %v10377 = vpop.f32.mrf.mxu0
      %v10378 = vadd.f32 0.0, %v10377
      %v10379 = vpop.f32.mrf.mxu0
      %v10380 = vpop.f32.mrf.mxu0
      %v10381 = vadd.f32 0.0, %v10380
      %v10382 = vpop.f32.mrf.mxu0
      %10383 = vmatprep.mubr.bf16.mxu0 0
      %10384 = vmatmul.mubr.bf16.gmra.mxu0 %v10266
      %v10385 = vpop.f32.mrf.mxu0
      %v10386 = vadd.f32 0.0, %v10385
      %v10387 = vpop.f32.mrf.mxu0
      %v10388 = vpop.f32.mrf.mxu0
      %v10389 = vadd.f32 0.0, %v10388
      %v10390 = vpop.f32.mrf.mxu0
      %10391 = vmatprep.mubr.bf16.mxu0 0
      %10392 = vmatmul.mubr.bf16.gmra.mxu0 %v10269
      %v10393 = vpop.f32.mrf.mxu0
      %v10394 = vadd.f32 0.0, %v10393
      %v10395 = vpop.f32.mrf.mxu0
      %v10396 = vpop.f32.mrf.mxu0
      %v10397 = vadd.f32 0.0, %v10396
      %v10398 = vpop.f32.mrf.mxu0
      %10399 = vmatprep.mubr.bf16.mxu0 0
      %10400 = vmatmul.mubr.bf16.gmra.mxu0 %v10272
      %v10401 = vpop.f32.mrf.mxu0
      %v10402 = vadd.f32 0.0, %v10401
      %v10403 = vpop.f32.mrf.mxu0
      %v10404 = vpop.f32.mrf.mxu0
      %v10405 = vadd.f32 0.0, %v10404
      %v10406 = vpop.f32.mrf.mxu0
      %10407 = vmatprep.mubr.bf16.mxu0 0
      %10408 = vmatmul.mubr.bf16.gmra.mxu0 %v10275
      %v10409 = vpop.f32.mrf.mxu0
      %v10410 = vadd.f32 0.0, %v10409
      %v10411 = vpop.f32.mrf.mxu0
      %v10412 = vpop.f32.mrf.mxu0
      %v10413 = vadd.f32 0.0, %v10412
      %v10414 = vpop.f32.mrf.mxu0
      %10415 = vmatprep.mubr.bf16.mxu0 0
      %10416 = vmatmul.mubr.bf16.gmra.mxu0 %v10278
      %v10417 = vpop.f32.mrf.mxu0
      %v10418 = vadd.f32 0.0, %v10417
      %v10419 = vpop.f32.mrf.mxu0
      %v10420 = vpop.f32.mrf.mxu0
      %v10421 = vadd.f32 0.0, %v10420
      %v10422 = vpop.f32.mrf.mxu0
      %10423 = vmatprep.mubr.bf16.mxu0 0
      %10424 = vmatmul.mubr.bf16.gmra.mxu0 %v10281
      %v10425 = vpop.f32.mrf.mxu0
      %v10426 = vadd.f32 0.0, %v10425
      %v10427 = vpop.f32.mrf.mxu0
      %v10428 = vpop.f32.mrf.mxu0
      %v10429 = vadd.f32 0.0, %v10428
      %v10430 = vpop.f32.mrf.mxu0
      %10431 = vmatprep.mubr.bf16.mxu0 0
      %10432 = vmatmul.mubr.bf16.gmra.mxu0 %v10284
      %v10433 = vpop.f32.mrf.mxu0
      %v10434 = vadd.f32 0.0, %v10433
      %v10435 = vpop.f32.mrf.mxu0
      %v10436 = vpop.f32.mrf.mxu0
      %v10437 = vadd.f32 0.0, %v10436
      %v10438 = vpop.f32.mrf.mxu0
      %10439 = vmatprep.mubr.bf16.mxu0 0
      %10440 = vmatmul.mubr.bf16.gmra.mxu0 %v10287
      %v10441 = vpop.f32.mrf.mxu0
      %v10442 = vadd.f32 0.0, %v10441
      %v10443 = vpop.f32.mrf.mxu0
      %v10444 = vpop.f32.mrf.mxu0
      %v10445 = vadd.f32 0.0, %v10444
      %v10446 = vpop.f32.mrf.mxu0
      %10447 = vmatprep.mubr.bf16.mxu0 0
      %10448 = vmatmul.mubr.bf16.gmra.mxu0 %v10290
      %v10449 = vpop.f32.mrf.mxu0
      %v10450 = vadd.f32 0.0, %v10449
      %v10451 = vpop.f32.mrf.mxu0
      %v10452 = vpop.f32.mrf.mxu0
      %v10453 = vadd.f32 0.0, %v10452
      %v10454 = vpop.f32.mrf.mxu0
      %10455 = vdwg.mxu0
      %v10456 = vadd.f32 %v9730, %v10330
      %v10457 = vadd.f32 %v9731, %v10333
      %v10458 = vadd.f32 %v9732, %v10338
      %v10459 = vadd.f32 %v9733, %v10341
      %v10460 = vadd.f32 %v9734, %v10346
      %v10461 = vadd.f32 %v9735, %v10349
      %v10462 = vadd.f32 %v9736, %v10354
      %v10463 = vadd.f32 %v9737, %v10357
      %v10464 = vadd.f32 %v9738, %v10362
      %v10465 = vadd.f32 %v9739, %v10365
      %v10466 = vadd.f32 %v9740, %v10370
      %v10467 = vadd.f32 %v9741, %v10373
      %v10468 = vadd.f32 %v9742, %v10378
      %v10469 = vadd.f32 %v9743, %v10381
      %v10470 = vadd.f32 %v9744, %v10386
      %v10471 = vadd.f32 %v9745, %v10389
      %v10472 = vadd.f32 %v9746, %v10394
      %v10473 = vadd.f32 %v9747, %v10397
      %v10474 = vadd.f32 %v9748, %v10402
      %v10475 = vadd.f32 %v9749, %v10405
      %v10476 = vadd.f32 %v9750, %v10410
      %v10477 = vadd.f32 %v9751, %v10413
      %v10478 = vadd.f32 %v9752, %v10418
      %v10479 = vadd.f32 %v9753, %v10421
      %v10480 = vadd.f32 %v9754, %v10426
      %v10481 = vadd.f32 %v9755, %v10429
      %v10482 = vadd.f32 %v9756, %v10434
      %v10483 = vadd.f32 %v9757, %v10437
      %v10484 = vadd.f32 %v9758, %v10442
      %v10485 = vadd.f32 %v9759, %v10445
      %v10486 = vadd.f32 %v9760, %v10450
      %v10487 = vadd.f32 %v9761, %v10453
      %v10488 = vld [vmem:[%s9403] sm:$0xe]
      %v10489 = vld [vmem:[%s9403 + $0xc] sm:$0xe]
      %v10490 = vld [vmem:[%s9403 + $0x18] sm:$0xe]
      %v10491 = vld [vmem:[%s9403 + $0x24] sm:$0xe]
      %v10492 = vld [vmem:[%s9403 + $0x30] sm:$0xe]
      %v10493 = vld [vmem:[%s9403 + $0x3c] sm:$0xe]
      %v10494 = vld [vmem:[%s9403 + $0x48] sm:$0xe]
      %v10495 = vld [vmem:[%s9403 + $0x54] sm:$0xe]
      %v10496 = vld [vmem:[%s9403 + $0x60] sm:$0xe]
      %v10497 = vld [vmem:[%s9403 + $0x6c] sm:$0xe]
      %v10498 = vld [vmem:[%s9403 + $0x78] sm:$0xe]
      %v10499 = vld [vmem:[%s9403 + $0x84] sm:$0xe]
      %v10500 = vld [vmem:[%s9403 + $0x90] sm:$0xe]
      %v10501 = vld [vmem:[%s9403 + $0x9c] sm:$0xe]
      %v10502 = vld [vmem:[%s9403 + $0xa8] sm:$0xe]
      %v10503 = vld [vmem:[%s9403 + $0xb4] sm:$0xe]
      %v10552 = vrot.slane %v10488, 5
      %v10553 = vrot.slane %v10552, 4
      %v10554 = vrot.slane %v9763, 5
      %v10555 = vsel %vm2180, %v10553, %v10554
      %v10556 = vrot.slane %v10554, 4
      %v10557 = vrot.slane %v9764, 5
      %v10558 = vsel %vm2180, %v10556, %v10557
      %v10559 = vrot.slane %v10489, 5
      %v10560 = vrot.slane %v10559, 4
      %v10561 = vrot.slane %v9766, 5
      %v10562 = vsel %vm2180, %v10560, %v10561
      %v10563 = vrot.slane %v10561, 4
      %v10564 = vrot.slane %v9767, 5
      %v10565 = vsel %vm2180, %v10563, %v10564
      %v10566 = vrot.slane %v10490, 5
      %v10567 = vrot.slane %v10566, 4
      %v10568 = vrot.slane %v9769, 5
      %v10569 = vsel %vm2180, %v10567, %v10568
      %v10570 = vrot.slane %v10568, 4
      %v10571 = vrot.slane %v9770, 5
      %v10572 = vsel %vm2180, %v10570, %v10571
      %v10573 = vrot.slane %v10491, 5
      %v10574 = vrot.slane %v10573, 4
      %v10575 = vrot.slane %v9772, 5
      %v10576 = vsel %vm2180, %v10574, %v10575
      %v10577 = vrot.slane %v10575, 4
      %v10578 = vrot.slane %v9773, 5
      %v10579 = vsel %vm2180, %v10577, %v10578
      %v10580 = vrot.slane %v10492, 5
      %v10581 = vrot.slane %v10580, 4
      %v10582 = vrot.slane %v9775, 5
      %v10583 = vsel %vm2180, %v10581, %v10582
      %v10584 = vrot.slane %v10582, 4
      %v10585 = vrot.slane %v9776, 5
      %v10586 = vsel %vm2180, %v10584, %v10585
      %v10587 = vrot.slane %v10493, 5
      %v10588 = vrot.slane %v10587, 4
      %v10589 = vrot.slane %v9778, 5
      %v10590 = vsel %vm2180, %v10588, %v10589
      %v10591 = vrot.slane %v10589, 4
      %v10592 = vrot.slane %v9779, 5
      %v10593 = vsel %vm2180, %v10591, %v10592
      %v10594 = vrot.slane %v10494, 5
      %v10595 = vrot.slane %v10594, 4
      %v10596 = vrot.slane %v9781, 5
      %v10597 = vsel %vm2180, %v10595, %v10596
      %v10598 = vrot.slane %v10596, 4
      %v10599 = vrot.slane %v9782, 5
      %v10600 = vsel %vm2180, %v10598, %v10599
      %v10601 = vrot.slane %v10495, 5
      %v10602 = vrot.slane %v10601, 4
      %v10603 = vrot.slane %v9784, 5
      %v10604 = vsel %vm2180, %v10602, %v10603
      %v10605 = vrot.slane %v10603, 4
      %v10606 = vrot.slane %v9785, 5
      %v10607 = vsel %vm2180, %v10605, %v10606
      %v10608 = vrot.slane %v10496, 5
      %v10609 = vrot.slane %v10608, 4
      %v10610 = vrot.slane %v9787, 5
      %v10611 = vsel %vm2180, %v10609, %v10610
      %v10612 = vrot.slane %v10610, 4
      %v10613 = vrot.slane %v9788, 5
      %v10614 = vsel %vm2180, %v10612, %v10613
      %v10615 = vrot.slane %v10497, 5
      %v10616 = vrot.slane %v10615, 4
      %v10617 = vrot.slane %v9790, 5
      %v10618 = vsel %vm2180, %v10616, %v10617
      %v10619 = vrot.slane %v10617, 4
      %v10620 = vrot.slane %v9791, 5
      %v10621 = vsel %vm2180, %v10619, %v10620
      %v10622 = vrot.slane %v10498, 5
      %v10623 = vrot.slane %v10622, 4
      %v10624 = vrot.slane %v9793, 5
      %v10625 = vsel %vm2180, %v10623, %v10624
      %v10626 = vrot.slane %v10624, 4
      %v10627 = vrot.slane %v9794, 5
      %v10628 = vsel %vm2180, %v10626, %v10627
      %v10629 = vrot.slane %v10499, 5
      %v10630 = vrot.slane %v10629, 4
      %v10631 = vrot.slane %v9796, 5
      %v10632 = vsel %vm2180, %v10630, %v10631
      %v10633 = vrot.slane %v10631, 4
      %v10634 = vrot.slane %v9797, 5
      %v10635 = vsel %vm2180, %v10633, %v10634
      %v10636 = vrot.slane %v10500, 5
      %v10637 = vrot.slane %v10636, 4
      %v10638 = vrot.slane %v9799, 5
      %v10639 = vsel %vm2180, %v10637, %v10638
      %v10640 = vrot.slane %v10638, 4
      %v10641 = vrot.slane %v9800, 5
      %v10642 = vsel %vm2180, %v10640, %v10641
      %v10643 = vrot.slane %v10501, 5
      %v10644 = vrot.slane %v10643, 4
      %v10645 = vrot.slane %v9802, 5
      %v10646 = vsel %vm2180, %v10644, %v10645
      %v10647 = vrot.slane %v10645, 4
      %v10648 = vrot.slane %v9803, 5
      %v10649 = vsel %vm2180, %v10647, %v10648
      %v10650 = vrot.slane %v10502, 5
      %v10651 = vrot.slane %v10650, 4
      %v10652 = vrot.slane %v9805, 5
      %v10653 = vsel %vm2180, %v10651, %v10652
      %v10654 = vrot.slane %v10652, 4
      %v10655 = vrot.slane %v9806, 5
      %v10656 = vsel %vm2180, %v10654, %v10655
      %v10657 = vrot.slane %v10503, 5
      %v10658 = vrot.slane %v10657, 4
      %v10659 = vrot.slane %v9808, 5
      %v10660 = vsel %vm2180, %v10658, %v10659
      %v10661 = vrot.slane %v10659, 4
      %v10662 = vrot.slane %v9809, 5
      %v10663 = vsel %vm2180, %v10661, %v10662
      %s10664 = scalar_lea.vmem %s5, 32
      %v10665 = vld [vmem:[%s10664] sm:$0xf]
      %v10666 = vunpack.c.l.b16 %v10555
      %v10667 = vunpack.c.l.b16 %v10558
      %v10668 = vunpack.c.l.b16 %v10562
      %v10669 = vunpack.c.l.b16 %v10565
      %v10670 = vunpack.c.l.b16 %v10569
      %v10671 = vunpack.c.l.b16 %v10572
      %v10672 = vunpack.c.l.b16 %v10576
      %v10673 = vunpack.c.l.b16 %v10579
      %v10674 = vunpack.c.l.b16 %v10583
      %v10675 = vunpack.c.l.b16 %v10586
      %v10676 = vunpack.c.l.b16 %v10590
      %v10677 = vunpack.c.l.b16 %v10593
      %v10678 = vunpack.c.l.b16 %v10597
      %v10679 = vunpack.c.l.b16 %v10600
      %v10680 = vunpack.c.l.b16 %v10604
      %v10681 = vunpack.c.l.b16 %v10607
      %v10682 = vunpack.c.l.b16 %v10611
      %v10683 = vunpack.c.l.b16 %v10614
      %v10684 = vunpack.c.l.b16 %v10618
      %v10685 = vunpack.c.l.b16 %v10621
      %v10686 = vunpack.c.l.b16 %v10625
      %v10687 = vunpack.c.l.b16 %v10628
      %v10688 = vunpack.c.l.b16 %v10632
      %v10689 = vunpack.c.l.b16 %v10635
      %v10690 = vunpack.c.l.b16 %v10639
      %v10691 = vunpack.c.l.b16 %v10642
      %v10692 = vunpack.c.l.b16 %v10646
      %v10693 = vunpack.c.l.b16 %v10649
      %v10694 = vunpack.c.l.b16 %v10653
      %v10695 = vunpack.c.l.b16 %v10656
      %v10696 = vunpack.c.l.b16 %v10660
      %v10697 = vunpack.c.l.b16 %v10663
      %v10698 = vpack.c.b16 %v10667, %v10666
      %v10699 = vpack.c.b16 %v10669, %v10668
      %v10700 = vpack.c.b16 %v10671, %v10670
      %v10701 = vpack.c.b16 %v10673, %v10672
      %v10702 = vpack.c.b16 %v10675, %v10674
      %v10703 = vpack.c.b16 %v10677, %v10676
      %v10704 = vpack.c.b16 %v10679, %v10678
      %v10705 = vpack.c.b16 %v10681, %v10680
      %v10706 = vpack.c.b16 %v10683, %v10682
      %v10707 = vpack.c.b16 %v10685, %v10684
      %v10708 = vpack.c.b16 %v10687, %v10686
      %v10709 = vpack.c.b16 %v10689, %v10688
      %v10710 = vpack.c.b16 %v10691, %v10690
      %v10711 = vpack.c.b16 %v10693, %v10692
      %v10712 = vpack.c.b16 %v10695, %v10694
      %v10713 = vpack.c.b16 %v10697, %v10696
      %v10715 = vsel %vm6889, %v10698, 0
      %v10718 = vsel %vm6889, %v10699, 0
      %v10721 = vsel %vm6889, %v10700, 0
      %v10724 = vsel %vm6889, %v10701, 0
      %v10727 = vsel %vm6889, %v10702, 0
      %v10730 = vsel %vm6889, %v10703, 0
      %v10733 = vsel %vm6889, %v10704, 0
      %v10736 = vsel %vm6889, %v10705, 0
      %v10739 = vsel %vm6889, %v10706, 0
      %v10742 = vsel %vm6889, %v10707, 0
      %v10745 = vsel %vm6889, %v10708, 0
      %v10748 = vsel %vm6889, %v10709, 0
      %v10751 = vsel %vm6889, %v10710, 0
      %v10754 = vsel %vm6889, %v10711, 0
      %v10757 = vsel %vm6889, %v10712, 0
      %v10760 = vsel %vm6889, %v10713, 0
      %v10763 = vsel %vm6938, %v10665, 0
      %10765 = vmatprep.subr.bf16.mxu0 0
      %10766 = vmatpush1.bf16.msra.mxu0 0
      %10767 = vmatprep.subr.bf16.mxu0 0
      %10768 = vmatpush1.bf16.msra.mxu0 0
      %10769 = vmatprep.subr.bf16.mxu0 0
      %10770 = vmatpush1.bf16.msra.mxu0 0
      %10771 = vmatprep.subr.bf16.mxu0 0
      %10772 = vmatpush1.bf16.msra.mxu0 0
      %10773 = vmatprep.subr.bf16.mxu0 0
      %10774 = vmatpush1.bf16.msra.mxu0 0
      %10775 = vmatprep.subr.bf16.mxu0 0
      %10776 = vmatpush1.bf16.msra.mxu0 0
      %10777 = vmatprep.subr.bf16.mxu0 0
      %10778 = vmatpush1.bf16.msra.mxu0 0
      %10779 = vmatprep.subr.bf16.mxu0 0
      %10780 = vmatpush1.bf16.msra.mxu0 %v10763
      %10781 = vmatprep.subr.bf16.mxu0 0
      %10782 = vmatpush2.bf16.msra.mxu0 0
      %10783 = vmatprep.subr.bf16.mxu0 0
      %10784 = vmatpush2.bf16.msra.mxu0 0
      %10785 = vmatprep.subr.bf16.mxu0 0
      %10786 = vmatpush2.bf16.msra.mxu0 0
      %10787 = vmatprep.subr.bf16.mxu0 0
      %10788 = vmatpush2.bf16.msra.mxu0 0
      %10789 = vmatprep.subr.bf16.mxu0 0
      %10790 = vmatpush2.bf16.msra.mxu0 0
      %10791 = vmatprep.subr.bf16.mxu0 0
      %10792 = vmatpush2.bf16.msra.mxu0 0
      %10793 = vmatprep.subr.bf16.mxu0 0
      %10794 = vmatpush2.bf16.msra.mxu0 0
      %10795 = vmatprep.subr.bf16.mxu0 0
      %10796 = vmatpush2.bf16.msra.mxu0 0
      %10797 = vmatprep.mubr.bf16.mxu0 0
      %10798 = vmatmul.mubr.bf16.gmra.mxu0 %v10715
      %v10799 = vpop.f32.mrf.mxu0
      %v10800 = vadd.f32 0.0, %v10799
      %v10801 = vpop.f32.mrf.mxu0
      %v10802 = vpop.f32.mrf.mxu0
      %v10803 = vadd.f32 0.0, %v10802
      %v10804 = vpop.f32.mrf.mxu0
      %10805 = vmatprep.mubr.bf16.mxu0 0
      %10806 = vmatmul.mubr.bf16.gmra.mxu0 %v10718
      %v10807 = vpop.f32.mrf.mxu0
      %v10808 = vadd.f32 0.0, %v10807
      %v10809 = vpop.f32.mrf.mxu0
      %v10810 = vpop.f32.mrf.mxu0
      %v10811 = vadd.f32 0.0, %v10810
      %v10812 = vpop.f32.mrf.mxu0
      %10813 = vmatprep.mubr.bf16.mxu0 0
      %10814 = vmatmul.mubr.bf16.gmra.mxu0 %v10721
      %v10815 = vpop.f32.mrf.mxu0
      %v10816 = vadd.f32 0.0, %v10815
      %v10817 = vpop.f32.mrf.mxu0
      %v10818 = vpop.f32.mrf.mxu0
      %v10819 = vadd.f32 0.0, %v10818
      %v10820 = vpop.f32.mrf.mxu0
      %10821 = vmatprep.mubr.bf16.mxu0 0
      %10822 = vmatmul.mubr.bf16.gmra.mxu0 %v10724
      %v10823 = vpop.f32.mrf.mxu0
      %v10824 = vadd.f32 0.0, %v10823
      %v10825 = vpop.f32.mrf.mxu0
      %v10826 = vpop.f32.mrf.mxu0
      %v10827 = vadd.f32 0.0, %v10826
      %v10828 = vpop.f32.mrf.mxu0
      %10829 = vmatprep.mubr.bf16.mxu0 0
      %10830 = vmatmul.mubr.bf16.gmra.mxu0 %v10727
      %v10831 = vpop.f32.mrf.mxu0
      %v10832 = vadd.f32 0.0, %v10831
      %v10833 = vpop.f32.mrf.mxu0
      %v10834 = vpop.f32.mrf.mxu0
      %v10835 = vadd.f32 0.0, %v10834
      %v10836 = vpop.f32.mrf.mxu0
      %10837 = vmatprep.mubr.bf16.mxu0 0
      %10838 = vmatmul.mubr.bf16.gmra.mxu0 %v10730
      %v10839 = vpop.f32.mrf.mxu0
      %v10840 = vadd.f32 0.0, %v10839
      %v10841 = vpop.f32.mrf.mxu0
      %v10842 = vpop.f32.mrf.mxu0
      %v10843 = vadd.f32 0.0, %v10842
      %v10844 = vpop.f32.mrf.mxu0
      %10845 = vmatprep.mubr.bf16.mxu0 0
      %10846 = vmatmul.mubr.bf16.gmra.mxu0 %v10733
      %v10847 = vpop.f32.mrf.mxu0
      %v10848 = vadd.f32 0.0, %v10847
      %v10849 = vpop.f32.mrf.mxu0
      %v10850 = vpop.f32.mrf.mxu0
      %v10851 = vadd.f32 0.0, %v10850
      %v10852 = vpop.f32.mrf.mxu0
      %10853 = vmatprep.mubr.bf16.mxu0 0
      %10854 = vmatmul.mubr.bf16.gmra.mxu0 %v10736
      %v10855 = vpop.f32.mrf.mxu0
      %v10856 = vadd.f32 0.0, %v10855
      %v10857 = vpop.f32.mrf.mxu0
      %v10858 = vpop.f32.mrf.mxu0
      %v10859 = vadd.f32 0.0, %v10858
      %v10860 = vpop.f32.mrf.mxu0
      %10861 = vmatprep.mubr.bf16.mxu0 0
      %10862 = vmatmul.mubr.bf16.gmra.mxu0 %v10739
      %v10863 = vpop.f32.mrf.mxu0
      %v10864 = vadd.f32 0.0, %v10863
      %v10865 = vpop.f32.mrf.mxu0
      %v10866 = vpop.f32.mrf.mxu0
      %v10867 = vadd.f32 0.0, %v10866
      %v10868 = vpop.f32.mrf.mxu0
      %10869 = vmatprep.mubr.bf16.mxu0 0
      %10870 = vmatmul.mubr.bf16.gmra.mxu0 %v10742
      %v10871 = vpop.f32.mrf.mxu0
      %v10872 = vadd.f32 0.0, %v10871
      %v10873 = vpop.f32.mrf.mxu0
      %v10874 = vpop.f32.mrf.mxu0
      %v10875 = vadd.f32 0.0, %v10874
      %v10876 = vpop.f32.mrf.mxu0
      %10877 = vmatprep.mubr.bf16.mxu0 0
      %10878 = vmatmul.mubr.bf16.gmra.mxu0 %v10745
      %v10879 = vpop.f32.mrf.mxu0
      %v10880 = vadd.f32 0.0, %v10879
      %v10881 = vpop.f32.mrf.mxu0
      %v10882 = vpop.f32.mrf.mxu0
      %v10883 = vadd.f32 0.0, %v10882
      %v10884 = vpop.f32.mrf.mxu0
      %10885 = vmatprep.mubr.bf16.mxu0 0
      %10886 = vmatmul.mubr.bf16.gmra.mxu0 %v10748
      %v10887 = vpop.f32.mrf.mxu0
      %v10888 = vadd.f32 0.0, %v10887
      %v10889 = vpop.f32.mrf.mxu0
      %v10890 = vpop.f32.mrf.mxu0
      %v10891 = vadd.f32 0.0, %v10890
      %v10892 = vpop.f32.mrf.mxu0
      %10893 = vmatprep.mubr.bf16.mxu0 0
      %10894 = vmatmul.mubr.bf16.gmra.mxu0 %v10751
      %v10895 = vpop.f32.mrf.mxu0
      %v10896 = vadd.f32 0.0, %v10895
      %v10897 = vpop.f32.mrf.mxu0
      %v10898 = vpop.f32.mrf.mxu0
      %v10899 = vadd.f32 0.0, %v10898
      %v10900 = vpop.f32.mrf.mxu0
      %10901 = vmatprep.mubr.bf16.mxu0 0
      %10902 = vmatmul.mubr.bf16.gmra.mxu0 %v10754
      %v10903 = vpop.f32.mrf.mxu0
      %v10904 = vadd.f32 0.0, %v10903
      %v10905 = vpop.f32.mrf.mxu0
      %v10906 = vpop.f32.mrf.mxu0
      %v10907 = vadd.f32 0.0, %v10906
      %v10908 = vpop.f32.mrf.mxu0
      %10909 = vmatprep.mubr.bf16.mxu0 0
      %10910 = vmatmul.mubr.bf16.gmra.mxu0 %v10757
      %v10911 = vpop.f32.mrf.mxu0
      %v10912 = vadd.f32 0.0, %v10911
      %v10913 = vpop.f32.mrf.mxu0
      %v10914 = vpop.f32.mrf.mxu0
      %v10915 = vadd.f32 0.0, %v10914
      %v10916 = vpop.f32.mrf.mxu0
      %10917 = vmatprep.mubr.bf16.mxu0 0
      %10918 = vmatmul.mubr.bf16.gmra.mxu0 %v10760
      %v10919 = vpop.f32.mrf.mxu0
      %v10920 = vadd.f32 0.0, %v10919
      %v10921 = vpop.f32.mrf.mxu0
      %v10922 = vpop.f32.mrf.mxu0
      %v10923 = vadd.f32 0.0, %v10922
      %v10924 = vpop.f32.mrf.mxu0
      %10925 = vdwg.mxu0
      %v10926 = vadd.f32 %v10456, %v10800
      %v10927 = vadd.f32 %v10457, %v10803
      %v10928 = vadd.f32 %v10458, %v10808
      %v10929 = vadd.f32 %v10459, %v10811
      %v10930 = vadd.f32 %v10460, %v10816
      %v10931 = vadd.f32 %v10461, %v10819
      %v10932 = vadd.f32 %v10462, %v10824
      %v10933 = vadd.f32 %v10463, %v10827
      %v10934 = vadd.f32 %v10464, %v10832
      %v10935 = vadd.f32 %v10465, %v10835
      %v10936 = vadd.f32 %v10466, %v10840
      %v10937 = vadd.f32 %v10467, %v10843
      %v10938 = vadd.f32 %v10468, %v10848
      %v10939 = vadd.f32 %v10469, %v10851
      %v10940 = vadd.f32 %v10470, %v10856
      %v10941 = vadd.f32 %v10471, %v10859
      %v10942 = vadd.f32 %v10472, %v10864
      %v10943 = vadd.f32 %v10473, %v10867
      %v10944 = vadd.f32 %v10474, %v10872
      %v10945 = vadd.f32 %v10475, %v10875
      %v10946 = vadd.f32 %v10476, %v10880
      %v10947 = vadd.f32 %v10477, %v10883
      %v10948 = vadd.f32 %v10478, %v10888
      %v10949 = vadd.f32 %v10479, %v10891
      %v10950 = vadd.f32 %v10480, %v10896
      %v10951 = vadd.f32 %v10481, %v10899
      %v10952 = vadd.f32 %v10482, %v10904
      %v10953 = vadd.f32 %v10483, %v10907
      %v10954 = vadd.f32 %v10484, %v10912
      %v10955 = vadd.f32 %v10485, %v10915
      %v10956 = vadd.f32 %v10486, %v10920
      %v10957 = vadd.f32 %v10487, %v10923
      %v10959 = vsel %vm462, %v495, 0
      %v10962 = vsel %vm462, %v496, 0
      %v10965 = vsel %vm462, %v497, 0
      %v10968 = vsel %vm462, %v498, 0
      %v10971 = vsel %vm462, %v499, 0
      %v10974 = vsel %vm462, %v500, 0
      %v10977 = vsel %vm462, %v501, 0
      %v10980 = vsel %vm462, %v502, 0
      %v10983 = vsel %vm462, %v503, 0
      %v10986 = vsel %vm462, %v504, 0
      %v10989 = vsel %vm462, %v505, 0
      %v10992 = vsel %vm462, %v506, 0
      %v10995 = vsel %vm462, %v507, 0
      %v10998 = vsel %vm462, %v508, 0
      %v11001 = vsel %vm462, %v509, 0
      %v11004 = vsel %vm462, %v510, 0
      %v11007 = vsel %vm1673, %v511, 0
      %11009 = vmatprep.subr.bf16.mxu0 0
      %11010 = vmatpush1.bf16.msra.mxu0 0
      %11011 = vmatprep.subr.bf16.mxu0 0
      %11012 = vmatpush1.bf16.msra.mxu0 0
      %11013 = vmatprep.subr.bf16.mxu0 0
      %11014 = vmatpush1.bf16.msra.mxu0 0
      %11015 = vmatprep.subr.bf16.mxu0 0
      %11016 = vmatpush1.bf16.msra.mxu0 0
      %11017 = vmatprep.subr.bf16.mxu0 0
      %11018 = vmatpush1.bf16.msra.mxu0 0
      %11019 = vmatprep.subr.bf16.mxu0 0
      %11020 = vmatpush1.bf16.msra.mxu0 0
      %11021 = vmatprep.subr.bf16.mxu0 0
      %11022 = vmatpush1.bf16.msra.mxu0 0
      %11023 = vmatprep.subr.bf16.mxu0 0
      %11024 = vmatpush1.bf16.msra.mxu0 %v11007
      %11025 = vmatprep.subr.bf16.mxu0 0
      %11026 = vmatpush2.bf16.msra.mxu0 0
      %11027 = vmatprep.subr.bf16.mxu0 0
      %11028 = vmatpush2.bf16.msra.mxu0 0
      %11029 = vmatprep.subr.bf16.mxu0 0
      %11030 = vmatpush2.bf16.msra.mxu0 0
      %11031 = vmatprep.subr.bf16.mxu0 0
      %11032 = vmatpush2.bf16.msra.mxu0 0
      %11033 = vmatprep.subr.bf16.mxu0 0
      %11034 = vmatpush2.bf16.msra.mxu0 0
      %11035 = vmatprep.subr.bf16.mxu0 0
      %11036 = vmatpush2.bf16.msra.mxu0 0
      %11037 = vmatprep.subr.bf16.mxu0 0
      %11038 = vmatpush2.bf16.msra.mxu0 0
      %11039 = vmatprep.subr.bf16.mxu0 0
      %11040 = vmatpush2.bf16.msra.mxu0 0
      %11041 = vmatprep.mubr.bf16.mxu0 0
      %11042 = vmatmul.mubr.bf16.gmra.mxu0 %v10959
      %v11043 = vpop.f32.mrf.mxu0
      %v11044 = vadd.f32 %v10926, %v11043
      %v11045 = vpop.f32.mrf.mxu0
      %v11046 = vpop.f32.mrf.mxu0
      %v11047 = vadd.f32 %v10927, %v11046
      %v11048 = vpop.f32.mrf.mxu0
      %11049 = vmatprep.mubr.bf16.mxu0 0
      %11050 = vmatmul.mubr.bf16.gmra.mxu0 %v10962
      %v11051 = vpop.f32.mrf.mxu0
      %v11052 = vadd.f32 %v10928, %v11051
      %v11053 = vpop.f32.mrf.mxu0
      %v11054 = vpop.f32.mrf.mxu0
      %v11055 = vadd.f32 %v10929, %v11054
      %v11056 = vpop.f32.mrf.mxu0
      %11057 = vmatprep.mubr.bf16.mxu0 0
      %11058 = vmatmul.mubr.bf16.gmra.mxu0 %v10965
      %v11059 = vpop.f32.mrf.mxu0
      %v11060 = vadd.f32 %v10930, %v11059
      %v11061 = vpop.f32.mrf.mxu0
      %v11062 = vpop.f32.mrf.mxu0
      %v11063 = vadd.f32 %v10931, %v11062
      %v11064 = vpop.f32.mrf.mxu0
      %11065 = vmatprep.mubr.bf16.mxu0 0
      %11066 = vmatmul.mubr.bf16.gmra.mxu0 %v10968
      %v11067 = vpop.f32.mrf.mxu0
      %v11068 = vadd.f32 %v10932, %v11067
      %v11069 = vpop.f32.mrf.mxu0
      %v11070 = vpop.f32.mrf.mxu0
      %v11071 = vadd.f32 %v10933, %v11070
      %v11072 = vpop.f32.mrf.mxu0
      %11073 = vmatprep.mubr.bf16.mxu0 0
      %11074 = vmatmul.mubr.bf16.gmra.mxu0 %v10971
      %v11075 = vpop.f32.mrf.mxu0
      %v11076 = vadd.f32 %v10934, %v11075
      %v11077 = vpop.f32.mrf.mxu0
      %v11078 = vpop.f32.mrf.mxu0
      %v11079 = vadd.f32 %v10935, %v11078
      %v11080 = vpop.f32.mrf.mxu0
      %11081 = vmatprep.mubr.bf16.mxu0 0
      %11082 = vmatmul.mubr.bf16.gmra.mxu0 %v10974
      %v11083 = vpop.f32.mrf.mxu0
      %v11084 = vadd.f32 %v10936, %v11083
      %v11085 = vpop.f32.mrf.mxu0
      %v11086 = vpop.f32.mrf.mxu0
      %v11087 = vadd.f32 %v10937, %v11086
      %v11088 = vpop.f32.mrf.mxu0
      %11089 = vmatprep.mubr.bf16.mxu0 0
      %11090 = vmatmul.mubr.bf16.gmra.mxu0 %v10977
      %v11091 = vpop.f32.mrf.mxu0
      %v11092 = vadd.f32 %v10938, %v11091
      %v11093 = vpop.f32.mrf.mxu0
      %v11094 = vpop.f32.mrf.mxu0
      %v11095 = vadd.f32 %v10939, %v11094
      %v11096 = vpop.f32.mrf.mxu0
      %11097 = vmatprep.mubr.bf16.mxu0 0
      %11098 = vmatmul.mubr.bf16.gmra.mxu0 %v10980
      %v11099 = vpop.f32.mrf.mxu0
      %v11100 = vadd.f32 %v10940, %v11099
      %v11101 = vpop.f32.mrf.mxu0
      %v11102 = vpop.f32.mrf.mxu0
      %v11103 = vadd.f32 %v10941, %v11102
      %v11104 = vpop.f32.mrf.mxu0
      %11105 = vmatprep.mubr.bf16.mxu0 0
      %11106 = vmatmul.mubr.bf16.gmra.mxu0 %v10983
      %v11107 = vpop.f32.mrf.mxu0
      %v11108 = vadd.f32 %v10942, %v11107
      %v11109 = vpop.f32.mrf.mxu0
      %v11110 = vpop.f32.mrf.mxu0
      %v11111 = vadd.f32 %v10943, %v11110
      %v11112 = vpop.f32.mrf.mxu0
      %11113 = vmatprep.mubr.bf16.mxu0 0
      %11114 = vmatmul.mubr.bf16.gmra.mxu0 %v10986
      %v11115 = vpop.f32.mrf.mxu0
      %v11116 = vadd.f32 %v10944, %v11115
      %v11117 = vpop.f32.mrf.mxu0
      %v11118 = vpop.f32.mrf.mxu0
      %v11119 = vadd.f32 %v10945, %v11118
      %v11120 = vpop.f32.mrf.mxu0
      %11121 = vmatprep.mubr.bf16.mxu0 0
      %11122 = vmatmul.mubr.bf16.gmra.mxu0 %v10989
      %v11123 = vpop.f32.mrf.mxu0
      %v11124 = vadd.f32 %v10946, %v11123
      %v11125 = vpop.f32.mrf.mxu0
      %v11126 = vpop.f32.mrf.mxu0
      %v11127 = vadd.f32 %v10947, %v11126
      %v11128 = vpop.f32.mrf.mxu0
      %11129 = vmatprep.mubr.bf16.mxu0 0
      %11130 = vmatmul.mubr.bf16.gmra.mxu0 %v10992
      %v11131 = vpop.f32.mrf.mxu0
      %v11132 = vadd.f32 %v10948, %v11131
      %v11133 = vpop.f32.mrf.mxu0
      %v11134 = vpop.f32.mrf.mxu0
      %v11135 = vadd.f32 %v10949, %v11134
      %v11136 = vpop.f32.mrf.mxu0
      %11137 = vmatprep.mubr.bf16.mxu0 0
      %11138 = vmatmul.mubr.bf16.gmra.mxu0 %v10995
      %v11139 = vpop.f32.mrf.mxu0
      %v11140 = vadd.f32 %v10950, %v11139
      %v11141 = vpop.f32.mrf.mxu0
      %v11142 = vpop.f32.mrf.mxu0
      %v11143 = vadd.f32 %v10951, %v11142
      %v11144 = vpop.f32.mrf.mxu0
      %11145 = vmatprep.mubr.bf16.mxu0 0
      %11146 = vmatmul.mubr.bf16.gmra.mxu0 %v10998
      %v11147 = vpop.f32.mrf.mxu0
      %v11148 = vadd.f32 %v10952, %v11147
      %v11149 = vpop.f32.mrf.mxu0
      %v11150 = vpop.f32.mrf.mxu0
      %v11151 = vadd.f32 %v10953, %v11150
      %v11152 = vpop.f32.mrf.mxu0
      %11153 = vmatprep.mubr.bf16.mxu0 0
      %11154 = vmatmul.mubr.bf16.gmra.mxu0 %v11001
      %v11155 = vpop.f32.mrf.mxu0
      %v11156 = vadd.f32 %v10954, %v11155
      %v11157 = vpop.f32.mrf.mxu0
      %v11158 = vpop.f32.mrf.mxu0
      %v11159 = vadd.f32 %v10955, %v11158
      %v11160 = vpop.f32.mrf.mxu0
      %11161 = vmatprep.mubr.bf16.mxu0 0
      %11162 = vmatmul.mubr.bf16.gmra.mxu0 %v11004
      %v11163 = vpop.f32.mrf.mxu0
      %v11164 = vadd.f32 %v10956, %v11163
      %v11165 = vpop.f32.mrf.mxu0
      %v11166 = vpop.f32.mrf.mxu0
      %v11167 = vadd.f32 %v10957, %v11166
      %v11168 = vpop.f32.mrf.mxu0
      %11169 = vdwg.mxu0
      %11170 = vst.msk [vmem:[%s313] sm:$0xff] %vm6889, %v11044
      %11171 = vst.msk [vmem:[%s313 + $0x8] sm:$0xff] %vm6889, %v11047
      %11172 = vst.msk [vmem:[%s313 + $0x10] sm:$0xff] %vm6889, %v11052
      %11173 = vst.msk [vmem:[%s313 + $0x18] sm:$0xff] %vm6889, %v11055
      %11174 = vst.msk [vmem:[%s313 + $0x20] sm:$0xff] %vm6889, %v11060
      %11175 = vst.msk [vmem:[%s313 + $0x28] sm:$0xff] %vm6889, %v11063
      %11176 = vst.msk [vmem:[%s313 + $0x30] sm:$0xff] %vm6889, %v11068
      %11177 = vst.msk [vmem:[%s313 + $0x38] sm:$0xff] %vm6889, %v11071
      %11178 = vst.msk [vmem:[%s313 + $0x40] sm:$0xff] %vm6889, %v11076
      %11179 = vst.msk [vmem:[%s313 + $0x48] sm:$0xff] %vm6889, %v11079
      %11180 = vst.msk [vmem:[%s313 + $0x50] sm:$0xff] %vm6889, %v11084
      %11181 = vst.msk [vmem:[%s313 + $0x58] sm:$0xff] %vm6889, %v11087
      %11182 = vst.msk [vmem:[%s313 + $0x60] sm:$0xff] %vm6889, %v11092
      %11183 = vst.msk [vmem:[%s313 + $0x68] sm:$0xff] %vm6889, %v11095
      %11184 = vst.msk [vmem:[%s313 + $0x70] sm:$0xff] %vm6889, %v11100
      %11185 = vst.msk [vmem:[%s313 + $0x78] sm:$0xff] %vm6889, %v11103
      %11186 = vst.msk [vmem:[%s313 + $0x80] sm:$0xff] %vm6889, %v11108
      %11187 = vst.msk [vmem:[%s313 + $0x88] sm:$0xff] %vm6889, %v11111
      %11188 = vst.msk [vmem:[%s313 + $0x90] sm:$0xff] %vm6889, %v11116
      %11189 = vst.msk [vmem:[%s313 + $0x98] sm:$0xff] %vm6889, %v11119
      %11190 = vst.msk [vmem:[%s313 + $0xa0] sm:$0xff] %vm6889, %v11124
      %11191 = vst.msk [vmem:[%s313 + $0xa8] sm:$0xff] %vm6889, %v11127
      %11192 = vst.msk [vmem:[%s313 + $0xb0] sm:$0xff] %vm6889, %v11132
      %11193 = vst.msk [vmem:[%s313 + $0xb8] sm:$0xff] %vm6889, %v11135
      %11194 = vst.msk [vmem:[%s313 + $0xc0] sm:$0xff] %vm6889, %v11140
      %11195 = vst.msk [vmem:[%s313 + $0xc8] sm:$0xff] %vm6889, %v11143
      %11196 = vst.msk [vmem:[%s313 + $0xd0] sm:$0xff] %vm6889, %v11148
      %11197 = vst.msk [vmem:[%s313 + $0xd8] sm:$0xff] %vm6889, %v11151
      %11198 = vst.msk [vmem:[%s313 + $0xe0] sm:$0xff] %vm6889, %v11156
      %11199 = vst.msk [vmem:[%s313 + $0xe8] sm:$0xff] %vm6889, %v11159
      %11200 = vst.msk [vmem:[%s313 + $0xf0] sm:$0xff] %vm6889, %v11164
      %11201 = vst.msk [vmem:[%s313 + $0xf8] sm:$0xff] %vm6889, %v11167
      %p11202 = scmp.lt.s32.totalorder %s20, 1
      %s11203 = scalar_select %p11202, %s20, 1
      %s11204 = smul.addr %s11203, 32
      %s11205 = smul.addr %s11204, 8
      %s11206 = scalar_lea.vmem %s7, %s11205
      %p11207 = scmp.lt.s32.totalorder %s20, 1
      %s11208 = scalar_select %p11207, %s20, 1
      %s11209 = smul.addr %s11208, 32
      %s11210 = smul.addr %s11209, 8
      %s11211 = scalar_lea.vmem %s8, %s11210
      // Predicated region
      $region49: #{tpu_custom_call.1} parent=47 // pred_check
        %p11212 = pneg %p190
      $region50: #{tpu_custom_call.1} parent=47 // pred_check_branch
        %11214 = sbr.rel (%p11212) target = $region52
      $region51: #{tpu_custom_call.1} parent=47 // pred_region
        _
      $region52: #{tpu_custom_call.1} parent=47 // pred_fallthru
        _
      // Predicated region
      $region53: #{tpu_custom_call.1} parent=47 // pred_check
        %p11215 = pneg %p216
      $region54: #{tpu_custom_call.1} parent=47 // pred_check_branch
        %11217 = sbr.rel (%p11215) target = $region56
      $region55: #{tpu_custom_call.1} parent=47 // pred_region
        _
      $region56: #{tpu_custom_call.1} parent=47 // pred_fallthru
        _
    $region48: #{tpu_custom_call.1} parent=5 // pred_fallthru
      _
    %p11218 = scmp.le.s32.totalorder 2, %s15
    // Predicated region
    $region57: #{tpu_custom_call.1} parent=5 // pred_check
      %p11219 = pneg %p11218
    $region58: #{tpu_custom_call.1} parent=5 // pred_check_branch
      %11221 = sbr.rel (%p11219) target = $region60
    $region59: #{tpu_custom_call.1} parent=5 // pred_region
      %s11222 = ssub.s32 %s15, 2
      // Predicated region
      $region61: #{tpu_custom_call.1} parent=59 // pred_check
        %p11223 = pneg %p196
      $region62: #{tpu_custom_call.1} parent=59 // pred_check_branch
        %11225 = sbr.rel (%p11223) target = $region64
      $region63: #{tpu_custom_call.1} parent=59 // pred_region
        %p11226 = scmp.lt.s32.totalorder %s21, 1
        %s11227 = scalar_select %p11226, %s21, 1
        %s11228 = smul.addr %s11227, 32
        %s11229 = smul.addr %s11228, 8
        %s11230 = scalar_lea.vmem %s7, %s11229
      $region64: #{tpu_custom_call.1} parent=59 // pred_fallthru
        _
      // Predicated region
      $region65: #{tpu_custom_call.1} parent=59 // pred_check
        %p11231 = pneg %p222
      $region66: #{tpu_custom_call.1} parent=59 // pred_check_branch
        %11233 = sbr.rel (%p11231) target = $region68
      $region67: #{tpu_custom_call.1} parent=59 // pred_region
        %p11234 = scmp.lt.s32.totalorder %s21, 1
        %s11235 = scalar_select %p11234, %s21, 1
        %s11236 = smul.addr %s11235, 32
        %s11237 = smul.addr %s11236, 8
        %s11238 = scalar_lea.vmem %s8, %s11237
      $region68: #{tpu_custom_call.1} parent=59 // pred_fallthru
        _
    $region60: #{tpu_custom_call.1} parent=5 // pred_fallthru
      _
  $region6: #{tpu_custom_call.1} parent=0 // loop_footer
    %s19 = sadd.s32 1, %s15
  $region7: #{tpu_custom_call.1} parent=0 // loop_footer_branch
    %14 = sbr.rel target = $region3
  $region8: #{tpu_custom_call.1} parent=0 // loop_exit
    _

</llo_original>
